<compile_context>
chip_gen: v7x
topology: tpu7x:2x2x1
jax: 0.10.0
libtpu: 0.0.40
codegen_flags: <defaults>
</compile_context>

<pallas_src>
import jax
import jax.numpy as jnp
from jax import lax
from jax.experimental import pallas as pl
from jax.experimental.pallas import tpu as pltpu


# ---------------------------------------------------------------------------
# Generic row-blocked affine GEMM:  out = sum_i X_i @ W_i + b   (bf16 MXU, f32 acc)
# ---------------------------------------------------------------------------
def _make_affine_kernel(n_in):
    def kernel(*refs):
        x_refs = refs[:n_in]
        w_refs = refs[n_in:2 * n_in]
        b_ref = refs[2 * n_in]
        out_ref = refs[2 * n_in + 1]
        acc = jnp.dot(x_refs[0][...].astype(jnp.bfloat16),
                      w_refs[0][...].astype(jnp.bfloat16),
                      preferred_element_type=jnp.float32)
        for x_ref, w_ref in zip(x_refs[1:], w_refs[1:]):
            acc = acc + jnp.dot(x_ref[...].astype(jnp.bfloat16),
                                w_ref[...].astype(jnp.bfloat16),
                                preferred_element_type=jnp.float32)
        out_ref[...] = (acc + b_ref[...]).astype(out_ref.dtype)
    return kernel


def _pick_rows_block(n, max_rows=512):
    tm = min(n, max_rows)
    tm -= tm % 8
    while tm > 8 and n % tm:
        tm -= 8
    if tm <= 0 or n % tm:
        tm = n          # full array (always a legal block)
    return tm


def _affine_rows(xs, ws, bias):
    n = xs[0].shape[0]
    m = ws[0].shape[1]
    tm = _pick_rows_block(n)
    in_specs = ([pl.BlockSpec((tm, x.shape[1]), lambda i: (i, 0)) for x in xs]
                + [pl.BlockSpec(w.shape, lambda i: (0, 0)) for w in ws]
                + [pl.BlockSpec(bias.shape, lambda i: (0, 0))])
    return pl.pallas_call(
        _make_affine_kernel(len(xs)),
        out_shape=jax.ShapeDtypeStruct((n, m), jnp.float32),
        grid=(n // tm,),
        in_specs=in_specs,
        out_specs=pl.BlockSpec((tm, m), lambda i: (i, 0)),
        compiler_params=pltpu.CompilerParams(dimension_semantics=("parallel",)),
    )(*xs, *ws, bias)


# ---------------------------------------------------------------------------
# Fused bidirectional LSTM recurrence (input projection already hoisted into zin)
# ---------------------------------------------------------------------------
def _make_bilstm_kernel(HP, tb, T):
    def kernel(len_ref, zf_ref, zb_ref, whf_ref, whb_ref,
               outf_ref, outb_ref, hf_ref, cf_ref, hb_ref, cb_ref):
        tc = pl.program_id(0)

        @pl.when(tc == 0)
        def _init():
            hf_ref[...] = jnp.zeros_like(hf_ref)
            cf_ref[...] = jnp.zeros_like(cf_ref)
            hb_ref[...] = jnp.zeros_like(hb_ref)
            cb_ref[...] = jnp.zeros_like(cb_ref)

        lengths = len_ref[...]          # (B, 1) int32, loop invariant
        base = tc * tb

        # carries live in vregs for the whole chunk
        h_f, c_f = hf_ref[...], cf_ref[...]
        h_b, c_b = hb_ref[...], cb_ref[...]

        def cell(z, h_prev, c_prev, valid):
            # lane-aligned gate slices (each gate occupies HP = multiple of 128 lanes)
            i_g = jax.nn.sigmoid(z[:, 0 * HP:1 * HP])
            f_g = jax.nn.sigmoid(z[:, 1 * HP:2 * HP])
            g_g = jnp.tanh(z[:, 2 * HP:3 * HP])
            o_g = jax.nn.sigmoid(z[:, 3 * HP:4 * HP])
            c_new = f_g * c_prev + i_g * g_g
            h_new = o_g * jnp.tanh(c_new)
            # packed-sequence semantics: freeze state / emit zeros past the length
            h_out = jnp.where(valid, h_new, h_prev)
            c_out = jnp.where(valid, c_new, c_prev)
            emit = jnp.where(valid, h_new, 0.0)
            return h_out, c_out, emit

        # static unroll -> LLO can interleave the two directions' recurrent matmuls
        for s in range(tb):
            t_fwd = base + s
            z_f = (zf_ref[:, s, 0:4 * HP]
                   + jnp.dot(h_f.astype(jnp.bfloat16), whf_ref[...],
                             preferred_element_type=jnp.float32))
            h_f, c_f, emit_f = cell(z_f, h_f, c_f, t_fwd < lengths)
            outf_ref[:, s, :] = emit_f

            sb = tb - 1 - s
            t_bwd = T - 1 - t_fwd
            z_b = (zb_ref[:, sb, 4 * HP:8 * HP]
                   + jnp.dot(h_b.astype(jnp.bfloat16), whb_ref[...],
                             preferred_element_type=jnp.float32))
            h_b, c_b, emit_b = cell(z_b, h_b, c_b, t_bwd < lengths)
            outb_ref[:, sb, :] = emit_b

        hf_ref[...] = h_f
        cf_ref[...] = c_f
        hb_ref[...] = h_b
        cb_ref[...] = c_b

    return kernel


def _bilstm(zin, lengths, w_hh_f, w_hh_b):
    """zin: (B, T, 8*HP) hoisted gate pre-activations (fwd | bwd), bias included."""
    B, T, G = zin.shape
    HP = w_hh_f.shape[0]
    tb = 8 if T % 8 == 0 else T   # TODO(synk): pad T when seq_len % 8 != 0
    nT = T // tb
    kernel = _make_bilstm_kernel(HP, tb, T)
    return pl.pallas_call(
        kernel,
        out_shape=(jax.ShapeDtypeStruct((B, T, HP), jnp.float32),
                   jax.ShapeDtypeStruct((B, T, HP), jnp.float32)),
        grid=(nT,),
        in_specs=[
            pl.BlockSpec((B, 1), lambda t: (0, 0)),                  # lengths
            pl.BlockSpec((B, tb, G), lambda t: (0, t, 0)),           # zin, fwd chunks
            pl.BlockSpec((B, tb, G), lambda t: (0, nT - 1 - t, 0)),  # zin, bwd chunks
            pl.BlockSpec((HP, 4 * HP), lambda t: (0, 0)),            # W_hh fwd (bf16)
            pl.BlockSpec((HP, 4 * HP), lambda t: (0, 0)),            # W_hh bwd (bf16)
        ],
        out_specs=(
            pl.BlockSpec((B, tb, HP), lambda t: (0, t, 0)),
            pl.BlockSpec((B, tb, HP), lambda t: (0, nT - 1 - t, 0)),
        ),
        scratch_shapes=[pltpu.VMEM((B, HP), jnp.float32) for _ in range(4)],
        compiler_params=pltpu.CompilerParams(dimension_semantics=("arbitrary",)),
    )(lengths, zin, zin, w_hh_f, w_hh_b)


# ---------------------------------------------------------------------------
# Masked log-softmax over the sequence axis (matches squad masked_softmax)
# ---------------------------------------------------------------------------
def _masked_log_softmax_kernel(l1_ref, l2_ref, mask_ref, o1_ref, o2_ref):
    mask = mask_ref[...]

    def mls(logits):
        masked = mask * logits + (1.0 - mask) * (-1e30)
        m = jnp.max(masked, axis=-1, keepdims=True)
        lse = m + jnp.log(jnp.sum(jnp.exp(masked - m), axis=-1, keepdims=True))
        return masked - lse

    o1_ref[...] = mls(l1_ref[...])
    o2_ref[...] = mls(l2_ref[...])


def _masked_log_softmax(logits1, logits2, maskf):
    B, T = logits1.shape
    vmem = pl.BlockSpec(memory_space=pltpu.MemorySpace.VMEM)
    return pl.pallas_call(
        _masked_log_softmax_kernel,
        out_shape=(jax.ShapeDtypeStruct((B, T), jnp.float32),
                   jax.ShapeDtypeStruct((B, T), jnp.float32)),
        in_specs=[vmem] * 3,
        out_specs=(vmem, vmem),
    )(logits1, logits2, maskf)


# ---------------------------------------------------------------------------
# Parameter init (PyTorch-style raw layouts) and packing for the kernels
# ---------------------------------------------------------------------------
def init_raw_params(key, hidden_size):
    H = hidden_size

    def lin(k, in_f):
        k1, k2 = jax.random.split(k)
        bound = float(in_f) ** -0.5
        w = jax.random.uniform(k1, (1, in_f), jnp.float32, -bound, bound)
        b = jax.random.uniform(k2, (1,), jnp.float32, -bound, bound)
        return w, b

    keys = jax.random.split(key, 6)
    raw = {}
    raw["w_a1"], raw["b_a1"] = lin(keys[0], 8 * H)
    raw["w_m1"], raw["b_m1"] = lin(keys[1], 2 * H)
    raw["w_a2"], raw["b_a2"] = lin(keys[2], 8 * H)
    raw["w_m2"], raw["b_m2"] = lin(keys[3], 2 * H)

    kb = float(H) ** -0.5
    for d, kk in zip(("f", "b"), (keys[4], keys[5])):
        k1, k2, k3, k4 = jax.random.split(kk, 4)
        raw["w_ih_" + d] = jax.random.uniform(k1, (4 * H, 2 * H), jnp.float32, -kb, kb)
        raw["w_hh_" + d] = jax.random.uniform(k2, (4 * H, H), jnp.float32, -kb, kb)
        raw["b_ih_" + d] = jax.random.uniform(k3, (4 * H,), jnp.float32, -kb, kb)
        raw["b_hh_" + d] = jax.random.uniform(k4, (4 * H,), jnp.float32, -kb, kb)
    return raw


def pack_params(raw, hidden_size):
    H = hidden_size
    HP = ((H + 127) // 128) * 128          # lane-aligned (padded) hidden size
    A, D = 8 * H, 2 * H
    bf = jnp.bfloat16

    def gate_pad_cols(w):                  # (K, 4H) -> (K, 4*HP), gates lane-aligned
        K = w.shape[0]
        out = jnp.zeros((K, 4 * HP), jnp.float32)
        for g in range(4):
            out = out.at[:, g * HP:g * HP + H].set(w[:, g * H:(g + 1) * H])
        return out

    def pack_ih(d):
        return gate_pad_cols(raw["w_ih_" + d].T)                     # (2H, 4*HP)

    def pack_hh(d):
        w = gate_pad_cols(raw["w_hh_" + d].T)                        # (H, 4*HP)
        return jnp.zeros((HP, 4 * HP), jnp.float32).at[:H].set(w)    # (HP, 4*HP)

    def pack_bias(d):
        b = (raw["b_ih_" + d] + raw["b_hh_" + d])[None, :]
        return gate_pad_cols(b)                                      # (1, 4*HP)

    w_ih_cat = jnp.concatenate([pack_ih("f"), pack_ih("b")], axis=1)   # (2H, 8*HP)
    b_ih_cat = jnp.concatenate([pack_bias("f"), pack_bias("b")], axis=1)

    # logit projections, lane-padded to 128 output columns
    w_att_lg = (jnp.zeros((A, 128), jnp.float32)
                .at[:, 0].set(raw["w_a1"][0]).at[:, 1].set(raw["w_a2"][0]))
    w_mod_lg = jnp.zeros((D, 128), jnp.float32).at[:, 0].set(raw["w_m1"][0])
    b_lg = (jnp.zeros((1, 128), jnp.float32)
            .at[0, 0].set(raw["b_a1"][0] + raw["b_m1"][0])
            .at[0, 1].set(raw["b_a2"][0] + raw["b_m2"][0]))
    w2m_f = jnp.zeros((HP, 128), jnp.float32).at[:H, 0].set(raw["w_m2"][0, :H])
    w2m_b = jnp.zeros((HP, 128), jnp.float32).at[:H, 0].set(raw["w_m2"][0, H:])

    return {
        "w_ih_cat": w_ih_cat.astype(bf), "b_ih_cat": b_ih_cat,
        "w_hh_f": pack_hh("f").astype(bf), "w_hh_b": pack_hh("b").astype(bf),
        "w_att_lg": w_att_lg.astype(bf), "w_mod_lg": w_mod_lg.astype(bf), "b_lg": b_lg,
        "w2m_f": w2m_f.astype(bf), "w2m_b": w2m_b.astype(bf),
        "b_zero": jnp.zeros((1, 128), jnp.float32),
    }


# ---------------------------------------------------------------------------
# BiDAFOutput forward
# ---------------------------------------------------------------------------
@jax.jit
def bidaf_output_forward(att, mod, mask, params):
    B, T, A = att.shape
    D = mod.shape[-1]
    HP = params["w_hh_f"].shape[0]
    N = B * T

    att2d = att.reshape(N, A)
    mod2d = mod.reshape(N, D)
    maskf = mask.astype(jnp.float32)
    lengths = jnp.sum(maskf, axis=-1).astype(jnp.int32).reshape(B, 1)

    # (1) hoisted LSTM input projection for BOTH directions: one big bf16 GEMM.
    zin = _affine_rows([mod2d], [params["w_ih_cat"]], params["b_ih_cat"])
    zin = zin.reshape(B, T, 8 * HP)

    # (2) logit projections that do not depend on mod_2 (col0=logits_1, col1=att part of logits_2).
    lg = _affine_rows([att2d, mod2d], [params["w_att_lg"], params["w_mod_lg"]],
                      params["b_lg"])
    logits1 = lg[:, 0].reshape(B, T)
    logits2_att = lg[:, 1].reshape(B, T)

    # (3) fused bidirectional LSTM recurrence (only h @ W_hh remains per step).
    out_f, out_b = _bilstm(zin, lengths, params["w_hh_f"], params["w_hh_b"])

    # (4) mod_linear_2(mod_2) without ever materializing the concatenated mod_2.
    l2m = _affine_rows([out_f.reshape(N, HP), out_b.reshape(N, HP)],
                       [params["w2m_f"], params["w2m_b"]], params["b_zero"])
    logits2 = logits2_att + l2m[:, 0].reshape(B, T)

    # (5) masked log-softmax over the sequence axis.
    return _masked_log_softmax(logits1, logits2, maskf)


# ---------------------------------------------------------------------------
# Pure-JAX f32 reference (for a sanity check only)
# ---------------------------------------------------------------------------
def _reference_forward(att, mod, mask, raw):
    B, T, _ = mod.shape
    H = raw["w_hh_f"].shape[1]
    maskf = mask.astype(jnp.float32)
    lengths = jnp.sum(maskf, axis=-1).astype(jnp.int32)

    def lstm_dir(d, reverse):
        w_ih, w_hh = raw["w_ih_" + d], raw["w_hh_" + d]
        bias = raw["b_ih_" + d] + raw["b_hh_" + d]
        order = jnp.arange(T)[::-1] if reverse else jnp.arange(T)

        def step(carry, t):
            h, c = carry
            x_t = mod[:, t, :]
            z = x_t @ w_ih.T + h @ w_hh.T + bias
            i = jax.nn.sigmoid(z[:, 0 * H:1 * H])
            f = jax.nn.sigmoid(z[:, 1 * H:2 * H])
            g = jnp.tanh(z[:, 2 * H:3 * H])
            o = jax.nn.sigmoid(z[:, 3 * H:4 * H])
            c_new = f * c + i * g
            h_new = o * jnp.tanh(c_new)
            valid = (t < lengths)[:, None]
            h = jnp.where(valid, h_new, h)
            c = jnp.where(valid, c_new, c)
            return (h, c), jnp.where(valid, h_new, 0.0)

        zeros = jnp.zeros((B, H), jnp.float32)
        _, outs = lax.scan(step, (zeros, zeros), order)
        outs = jnp.transpose(outs, (1, 0, 2))
        return outs[:, ::-1, :] if reverse else outs

    mod_2 = jnp.concatenate([lstm_dir("f", False), lstm_dir("b", True)], axis=-1)

    def lin(x, w, b):
        return x @ w.T + b

    logits1 = (lin(att, raw["w_a1"], raw["b_a1"]) + lin(mod, raw["w_m1"], raw["b_m1"]))[..., 0]
    logits2 = (lin(att, raw["w_a2"], raw["b_a2"]) + lin(mod_2, raw["w_m2"], raw["b_m2"]))[..., 0]

    def mls(logits):
        ml = maskf * logits + (1.0 - maskf) * (-1e30)
        return jax.nn.log_softmax(ml, axis=-1)

    return mls(logits1), mls(logits2)


if __name__ == "__main__":
    hidden_size = 32
    batch, seq_len = 2, 8

    key = jax.random.PRNGKey(0)
    k_att, k_mod, k_par = jax.random.split(key, 3)
    att = jax.random.normal(k_att, (batch, seq_len, 8 * hidden_size), jnp.float32)
    mod = jax.random.normal(k_mod, (batch, seq_len, 2 * hidden_size), jnp.float32)
    lengths = jnp.array([8, 5], jnp.int32)
    mask = (jnp.arange(seq_len)[None, :] < lengths[:, None]).astype(jnp.float32)

    raw = init_raw_params(k_par, hidden_size)
    params = pack_params(raw, hidden_size)

    log_p1, log_p2 = bidaf_output_forward(att, mod, mask, params)
    log_p1, log_p2 = jax.block_until_ready((log_p1, log_p2))

    assert log_p1.shape == (batch, seq_len) and log_p2.shape == (batch, seq_len)
    assert bool(jnp.all(jnp.isfinite(log_p1))) and bool(jnp.all(jnp.isfinite(log_p2)))
    # valid probabilities sum to 1, masked positions carry ~zero probability
    assert bool(jnp.allclose(jnp.exp(log_p1).sum(-1), 1.0, atol=1e-3))
    assert bool(jnp.allclose(jnp.exp(log_p2).sum(-1), 1.0, atol=1e-3))
    assert bool(jnp.all(jnp.exp(log_p1) * (1.0 - mask) < 1e-6))
    assert bool(jnp.all(jnp.exp(log_p2) * (1.0 - mask) < 1e-6))

    # compare against the pure-JAX f32 reference (kernels use bf16 MXU inputs)
    ref1, ref2 = _reference_forward(att, mod, mask, raw)
    d1 = float(jnp.max(jnp.abs(log_p1 - ref1) * mask))
    d2 = float(jnp.max(jnp.abs(log_p2 - ref2) * mask))
    assert d1 < 0.2 and d2 < 0.2, (d1, d2)

    print("KERNEL_OK")
</pallas_src>

<mosaic_0001>
module attributes {stable_mosaic.version = 11 : i64} {
  func.func @kernel(%arg0: i32, %arg1: memref<16x64xf32, #tpu.memory_space<vmem>>, %arg2: memref<64x1024xbf16, #tpu.memory_space<vmem>>, %arg3: memref<1x1024xf32, #tpu.memory_space<vmem>>, %arg4: memref<16x1024xf32, #tpu.memory_space<vmem>>) attributes {dimension_semantics = [#tpu.dimension_semantics<parallel>], iteration_bounds = array<i64: 1>, scalar_prefetch = 0 : i64, scratch_operands = 0 : i64, tpu.core_type = #tpu.core_type<tc>, window_params = [{transform_indices = @transform_0, window_bounds = array<i64: 16, 64>}, {pipeline_mode = #tpu.pipeline_mode<synchronous>, transform_indices = @transform_1, window_bounds = array<i64: 64, 1024>}, {pipeline_mode = #tpu.pipeline_mode<synchronous>, transform_indices = @transform_2, window_bounds = array<i64: 1, 1024>}, {transform_indices = @transform_3, window_bounds = array<i64: 16, 1024>}]} {
    %c0 = arith.constant 0 : index
    %c0_0 = arith.constant 0 : index
    %0 = vector.load %arg1[%c0, %c0_0] : memref<16x64xf32, #tpu.memory_space<vmem>>, vector<16x64xf32>
    %1 = arith.truncf %0 : vector<16x64xf32> to vector<16x64xbf16>
    %c0_1 = arith.constant 0 : index
    %c0_2 = arith.constant 0 : index
    %2 = vector.load %arg2[%c0_1, %c0_2] : memref<64x1024xbf16, #tpu.memory_space<vmem>>, vector<64x1024xbf16>
    %cst = arith.constant dense<0.000000e+00> : vector<16x1024xf32>
    %3 = tpu.matmul %1, %2, %cst {dimension_numbers = #tpu.dot_dimension_numbers<[1], [0], [0], [1], [0, 0, 1, 1], [], []>} : vector<16x64xbf16>, vector<64x1024xbf16>, vector<16x1024xf32> -> vector<16x1024xf32>
    %c0_3 = arith.constant 0 : index
    %c0_4 = arith.constant 0 : index
    %4 = vector.load %arg3[%c0_3, %c0_4] : memref<1x1024xf32, #tpu.memory_space<vmem>>, vector<1x1024xf32>
    %5 = vector.broadcast %4 : vector<1x1024xf32> to vector<16x1024xf32>
    %6 = arith.addf %3, %5 : vector<16x1024xf32>
    %c0_5 = arith.constant 0 : index
    %c0_6 = arith.constant 0 : index
    %7 = vector.load %arg4[%c0_5, %c0_6] : memref<16x1024xf32, #tpu.memory_space<vmem>>, vector<16x1024xf32>
    tpu.vector_store %arg4[%c0_5, %c0_6], %6 {strides = array<i32>} : memref<16x1024xf32, #tpu.memory_space<vmem>>, vector<16x1024xf32>,
    return
  }
  func.func @transform_0(%arg0: i32) -> (i32, i32) {
    %c0_i32 = arith.constant 0 : i32
    %c0_i32_0 = arith.constant 0 : i32
    return %arg0, %c0_i32 : i32, i32
  }
  func.func @transform_1(%arg0: i32) -> (i32, i32) {
    %c0_i32 = arith.constant 0 : i32
    %c0_i32_0 = arith.constant 0 : i32
    %c0_i32_1 = arith.constant 0 : i32
    return %c0_i32, %c0_i32_0 : i32, i32
  }
  func.func @transform_2(%arg0: i32) -> (i32, i32) {
    %c0_i32 = arith.constant 0 : i32
    %c0_i32_0 = arith.constant 0 : i32
    %c0_i32_1 = arith.constant 0 : i32
    return %c0_i32, %c0_i32_0 : i32, i32
  }
  func.func @transform_3(%arg0: i32) -> (i32, i32) {
    %c0_i32 = arith.constant 0 : i32
    %c0_i32_0 = arith.constant 0 : i32
    return %arg0, %c0_i32 : i32, i32
  }
}

module attributes {stable_mosaic.version = 11 : i64} {
  func.func @kernel(%arg0: i32, %arg1: memref<16x128xf32, #tpu.memory_space<vmem>>, %arg2: memref<16x128xf32, #tpu.memory_space<vmem>>, %arg3: memref<128x128xbf16, #tpu.memory_space<vmem>>, %arg4: memref<128x128xbf16, #tpu.memory_space<vmem>>, %arg5: memref<1x128xf32, #tpu.memory_space<vmem>>, %arg6: memref<16x128xf32, #tpu.memory_space<vmem>>) attributes {dimension_semantics = [#tpu.dimension_semantics<parallel>], iteration_bounds = array<i64: 1>, scalar_prefetch = 0 : i64, scratch_operands = 0 : i64, tpu.core_type = #tpu.core_type<tc>, window_params = [{transform_indices = @transform_0, window_bounds = array<i64: 16, 128>}, {transform_indices = @transform_1, window_bounds = array<i64: 16, 128>}, {pipeline_mode = #tpu.pipeline_mode<synchronous>, transform_indices = @transform_2, window_bounds = array<i64: 128, 128>}, {pipeline_mode = #tpu.pipeline_mode<synchronous>, transform_indices = @transform_3, window_bounds = array<i64: 128, 128>}, {pipeline_mode = #tpu.pipeline_mode<synchronous>, transform_indices = @transform_4, window_bounds = array<i64: 1, 128>}, {transform_indices = @transform_5, window_bounds = array<i64: 16, 128>}]} {
    %c0 = arith.constant 0 : index
    %c0_0 = arith.constant 0 : index
    %0 = vector.load %arg1[%c0, %c0_0] : memref<16x128xf32, #tpu.memory_space<vmem>>, vector<16x128xf32>
    %1 = arith.truncf %0 : vector<16x128xf32> to vector<16x128xbf16>
    %c0_1 = arith.constant 0 : index
    %c0_2 = arith.constant 0 : index
    %2 = vector.load %arg3[%c0_1, %c0_2] : memref<128x128xbf16, #tpu.memory_space<vmem>>, vector<128x128xbf16>
    %cst = arith.constant dense<0.000000e+00> : vector<16x128xf32>
    %3 = tpu.matmul %1, %2, %cst {dimension_numbers = #tpu.dot_dimension_numbers<[1], [0], [0], [1], [0, 0, 1, 1], [], []>} : vector<16x128xbf16>, vector<128x128xbf16>, vector<16x128xf32> -> vector<16x128xf32>
    %c0_3 = arith.constant 0 : index
    %c0_4 = arith.constant 0 : index
    %4 = vector.load %arg2[%c0_3, %c0_4] : memref<16x128xf32, #tpu.memory_space<vmem>>, vector<16x128xf32>
    %5 = arith.truncf %4 : vector<16x128xf32> to vector<16x128xbf16>
    %c0_5 = arith.constant 0 : index
    %c0_6 = arith.constant 0 : index
    %6 = vector.load %arg4[%c0_5, %c0_6] : memref<128x128xbf16, #tpu.memory_space<vmem>>, vector<128x128xbf16>
    %cst_7 = arith.constant dense<0.000000e+00> : vector<16x128xf32>
    %7 = tpu.matmul %5, %6, %cst_7 {dimension_numbers = #tpu.dot_dimension_numbers<[1], [0], [0], [1], [0, 0, 1, 1], [], []>} : vector<16x128xbf16>, vector<128x128xbf16>, vector<16x128xf32> -> vector<16x128xf32>
    %8 = arith.addf %3, %7 : vector<16x128xf32>
    %c0_8 = arith.constant 0 : index
    %c0_9 = arith.constant 0 : index
    %9 = vector.load %arg5[%c0_8, %c0_9] : memref<1x128xf32, #tpu.memory_space<vmem>>, vector<1x128xf32>
    %10 = vector.broadcast %9 : vector<1x128xf32> to vector<16x128xf32>
    %11 = arith.addf %8, %10 : vector<16x128xf32>
    %c0_10 = arith.constant 0 : index
    %c0_11 = arith.constant 0 : index
    %12 = vector.load %arg6[%c0_10, %c0_11] : memref<16x128xf32, #tpu.memory_space<vmem>>, vector<16x128xf32>
    tpu.vector_store %arg6[%c0_10, %c0_11], %11 {strides = array<i32>} : memref<16x128xf32, #tpu.memory_space<vmem>>, vector<16x128xf32>,
    return
  }
  func.func @transform_0(%arg0: i32) -> (i32, i32) {
    %c0_i32 = arith.constant 0 : i32
    %c0_i32_0 = arith.constant 0 : i32
    return %arg0, %c0_i32 : i32, i32
  }
  func.func @transform_1(%arg0: i32) -> (i32, i32) {
    %c0_i32 = arith.constant 0 : i32
    %c0_i32_0 = arith.constant 0 : i32
    return %arg0, %c0_i32 : i32, i32
  }
  func.func @transform_2(%arg0: i32) -> (i32, i32) {
    %c0_i32 = arith.constant 0 : i32
    %c0_i32_0 = arith.constant 0 : i32
    %c0_i32_1 = arith.constant 0 : i32
    return %c0_i32, %c0_i32_0 : i32, i32
  }
  func.func @transform_3(%arg0: i32) -> (i32, i32) {
    %c0_i32 = arith.constant 0 : i32
    %c0_i32_0 = arith.constant 0 : i32
    %c0_i32_1 = arith.constant 0 : i32
    return %c0_i32, %c0_i32_0 : i32, i32
  }
  func.func @transform_4(%arg0: i32) -> (i32, i32) {
    %c0_i32 = arith.constant 0 : i32
    %c0_i32_0 = arith.constant 0 : i32
    %c0_i32_1 = arith.constant 0 : i32
    return %c0_i32, %c0_i32_0 : i32, i32
  }
  func.func @transform_5(%arg0: i32) -> (i32, i32) {
    %c0_i32 = arith.constant 0 : i32
    %c0_i32_0 = arith.constant 0 : i32
    return %arg0, %c0_i32 : i32, i32
  }
}

module attributes {stable_mosaic.version = 11 : i64} {
  func.func @kernel(%arg0: i32, %arg1: memref<16x256xf32, #tpu.memory_space<vmem>>, %arg2: memref<16x64xf32, #tpu.memory_space<vmem>>, %arg3: memref<256x128xbf16, #tpu.memory_space<vmem>>, %arg4: memref<64x128xbf16, #tpu.memory_space<vmem>>, %arg5: memref<1x128xf32, #tpu.memory_space<vmem>>, %arg6: memref<16x128xf32, #tpu.memory_space<vmem>>) attributes {dimension_semantics = [#tpu.dimension_semantics<parallel>], iteration_bounds = array<i64: 1>, scalar_prefetch = 0 : i64, scratch_operands = 0 : i64, tpu.core_type = #tpu.core_type<tc>, window_params = [{transform_indices = @transform_0, window_bounds = array<i64: 16, 256>}, {transform_indices = @transform_1, window_bounds = array<i64: 16, 64>}, {pipeline_mode = #tpu.pipeline_mode<synchronous>, transform_indices = @transform_2, window_bounds = array<i64: 256, 128>}, {pipeline_mode = #tpu.pipeline_mode<synchronous>, transform_indices = @transform_3, window_bounds = array<i64: 64, 128>}, {pipeline_mode = #tpu.pipeline_mode<synchronous>, transform_indices = @transform_4, window_bounds = array<i64: 1, 128>}, {transform_indices = @transform_5, window_bounds = array<i64: 16, 128>}]} {
    %c0 = arith.constant 0 : index
    %c0_0 = arith.constant 0 : index
    %0 = vector.load %arg1[%c0, %c0_0] : memref<16x256xf32, #tpu.memory_space<vmem>>, vector<16x256xf32>
    %1 = arith.truncf %0 : vector<16x256xf32> to vector<16x256xbf16>
    %c0_1 = arith.constant 0 : index
    %c0_2 = arith.constant 0 : index
    %2 = vector.load %arg3[%c0_1, %c0_2] : memref<256x128xbf16, #tpu.memory_space<vmem>>, vector<256x128xbf16>
    %cst = arith.constant dense<0.000000e+00> : vector<16x128xf32>
    %3 = tpu.matmul %1, %2, %cst {dimension_numbers = #tpu.dot_dimension_numbers<[1], [0], [0], [1], [0, 0, 1, 1], [], []>} : vector<16x256xbf16>, vector<256x128xbf16>, vector<16x128xf32> -> vector<16x128xf32>
    %c0_3 = arith.constant 0 : index
    %c0_4 = arith.constant 0 : index
    %4 = vector.load %arg2[%c0_3, %c0_4] : memref<16x64xf32, #tpu.memory_space<vmem>>, vector<16x64xf32>
    %5 = arith.truncf %4 : vector<16x64xf32> to vector<16x64xbf16>
    %c0_5 = arith.constant 0 : index
    %c0_6 = arith.constant 0 : index
    %6 = vector.load %arg4[%c0_5, %c0_6] : memref<64x128xbf16, #tpu.memory_space<vmem>>, vector<64x128xbf16>
    %cst_7 = arith.constant dense<0.000000e+00> : vector<16x128xf32>
    %7 = tpu.matmul %5, %6, %cst_7 {dimension_numbers = #tpu.dot_dimension_numbers<[1], [0], [0], [1], [0, 0, 1, 1], [], []>} : vector<16x64xbf16>, vector<64x128xbf16>, vector<16x128xf32> -> vector<16x128xf32>
    %8 = arith.addf %3, %7 : vector<16x128xf32>
    %c0_8 = arith.constant 0 : index
    %c0_9 = arith.constant 0 : index
    %9 = vector.load %arg5[%c0_8, %c0_9] : memref<1x128xf32, #tpu.memory_space<vmem>>, vector<1x128xf32>
    %10 = vector.broadcast %9 : vector<1x128xf32> to vector<16x128xf32>
    %11 = arith.addf %8, %10 : vector<16x128xf32>
    %c0_10 = arith.constant 0 : index
    %c0_11 = arith.constant 0 : index
    %12 = vector.load %arg6[%c0_10, %c0_11] : memref<16x128xf32, #tpu.memory_space<vmem>>, vector<16x128xf32>
    tpu.vector_store %arg6[%c0_10, %c0_11], %11 {strides = array<i32>} : memref<16x128xf32, #tpu.memory_space<vmem>>, vector<16x128xf32>,
    return
  }
  func.func @transform_0(%arg0: i32) -> (i32, i32) {
    %c0_i32 = arith.constant 0 : i32
    %c0_i32_0 = arith.constant 0 : i32
    return %arg0, %c0_i32 : i32, i32
  }
  func.func @transform_1(%arg0: i32) -> (i32, i32) {
    %c0_i32 = arith.constant 0 : i32
    %c0_i32_0 = arith.constant 0 : i32
    return %arg0, %c0_i32 : i32, i32
  }
  func.func @transform_2(%arg0: i32) -> (i32, i32) {
    %c0_i32 = arith.constant 0 : i32
    %c0_i32_0 = arith.constant 0 : i32
    %c0_i32_1 = arith.constant 0 : i32
    return %c0_i32, %c0_i32_0 : i32, i32
  }
  func.func @transform_3(%arg0: i32) -> (i32, i32) {
    %c0_i32 = arith.constant 0 : i32
    %c0_i32_0 = arith.constant 0 : i32
    %c0_i32_1 = arith.constant 0 : i32
    return %c0_i32, %c0_i32_0 : i32, i32
  }
  func.func @transform_4(%arg0: i32) -> (i32, i32) {
    %c0_i32 = arith.constant 0 : i32
    %c0_i32_0 = arith.constant 0 : i32
    %c0_i32_1 = arith.constant 0 : i32
    return %c0_i32, %c0_i32_0 : i32, i32
  }
  func.func @transform_5(%arg0: i32) -> (i32, i32) {
    %c0_i32 = arith.constant 0 : i32
    %c0_i32_0 = arith.constant 0 : i32
    return %arg0, %c0_i32 : i32, i32
  }
}

module attributes {stable_mosaic.version = 11 : i64} {
  func.func @kernel(%arg0: i32, %arg1: memref<2x1xi32, #tpu.memory_space<vmem>>, %arg2: memref<2x8x1024xf32, #tpu.memory_space<vmem>>, %arg3: memref<2x8x1024xf32, #tpu.memory_space<vmem>>, %arg4: memref<128x512xbf16, #tpu.memory_space<vmem>>, %arg5: memref<128x512xbf16, #tpu.memory_space<vmem>>, %arg6: memref<2x8x128xf32, #tpu.memory_space<vmem>>, %arg7: memref<2x8x128xf32, #tpu.memory_space<vmem>>, %arg8: memref<2x128xf32, #tpu.memory_space<vmem>>, %arg9: memref<2x128xf32, #tpu.memory_space<vmem>>, %arg10: memref<2x128xf32, #tpu.memory_space<vmem>>, %arg11: memref<2x128xf32, #tpu.memory_space<vmem>>) attributes {dimension_semantics = [#tpu.dimension_semantics<arbitrary>], iteration_bounds = array<i64: 1>, scalar_prefetch = 0 : i64, scratch_operands = 4 : i64, tpu.core_type = #tpu.core_type<tc>, window_params = [{pipeline_mode = #tpu.pipeline_mode<synchronous>, transform_indices = @transform_0, window_bounds = array<i64: 2, 1>}, {transform_indices = @transform_1, window_bounds = array<i64: 2, 8, 1024>}, {transform_indices = @transform_2, window_bounds = array<i64: 2, 8, 1024>}, {pipeline_mode = #tpu.pipeline_mode<synchronous>, transform_indices = @transform_3, window_bounds = array<i64: 128, 512>}, {pipeline_mode = #tpu.pipeline_mode<synchronous>, transform_indices = @transform_4, window_bounds = array<i64: 128, 512>}, {transform_indices = @transform_5, window_bounds = array<i64: 2, 8, 128>}, {transform_indices = @transform_6, window_bounds = array<i64: 2, 8, 128>}]} {
    %c0_i32 = arith.constant 0 : i32
    %0 = arith.cmpi eq, %arg0, %c0_i32 : i32
    %1 = arith.extui %0 : i1 to i32
    %c0_i32_0 = arith.constant 0 : i32
    %2 = arith.cmpi ne, %1, %c0_i32_0 : i32
    scf.if %2 {
      %cst_226 = arith.constant 0.000000e+00 : f32
      %765 = vector.broadcast %cst_226 : f32 to vector<2x128xf32>
      %c0_227 = arith.constant 0 : index
      %c0_228 = arith.constant 0 : index
      %766 = vector.load %arg8[%c0_227, %c0_228] : memref<2x128xf32, #tpu.memory_space<vmem>>, vector<2x128xf32>
      tpu.vector_store %arg8[%c0_227, %c0_228], %765 {strides = array<i32>} : memref<2x128xf32, #tpu.memory_space<vmem>>, vector<2x128xf32>,
      %cst_229 = arith.constant 0.000000e+00 : f32
      %767 = vector.broadcast %cst_229 : f32 to vector<2x128xf32>
      %c0_230 = arith.constant 0 : index
      %c0_231 = arith.constant 0 : index
      %768 = vector.load %arg9[%c0_230, %c0_231] : memref<2x128xf32, #tpu.memory_space<vmem>>, vector<2x128xf32>
      tpu.vector_store %arg9[%c0_230, %c0_231], %767 {strides = array<i32>} : memref<2x128xf32, #tpu.memory_space<vmem>>, vector<2x128xf32>,
      %cst_232 = arith.constant 0.000000e+00 : f32
      %769 = vector.broadcast %cst_232 : f32 to vector<2x128xf32>
      %c0_233 = arith.constant 0 : index
      %c0_234 = arith.constant 0 : index
      %770 = vector.load %arg10[%c0_233, %c0_234] : memref<2x128xf32, #tpu.memory_space<vmem>>, vector<2x128xf32>
      tpu.vector_store %arg10[%c0_233, %c0_234], %769 {strides = array<i32>} : memref<2x128xf32, #tpu.memory_space<vmem>>, vector<2x128xf32>,
      %cst_235 = arith.constant 0.000000e+00 : f32
      %771 = vector.broadcast %cst_235 : f32 to vector<2x128xf32>
      %c0_236 = arith.constant 0 : index
      %c0_237 = arith.constant 0 : index
      %772 = vector.load %arg11[%c0_236, %c0_237] : memref<2x128xf32, #tpu.memory_space<vmem>>, vector<2x128xf32>
      tpu.vector_store %arg11[%c0_236, %c0_237], %771 {strides = array<i32>} : memref<2x128xf32, #tpu.memory_space<vmem>>, vector<2x128xf32>,
    } else {
    }
    %c0 = arith.constant 0 : index
    %c0_1 = arith.constant 0 : index
    %3 = vector.load %arg1[%c0, %c0_1] : memref<2x1xi32, #tpu.memory_space<vmem>>, vector<2x1xi32>
    %c8_i32 = arith.constant 8 : i32
    %4 = arith.muli %arg0, %c8_i32 : i32
    %c0_2 = arith.constant 0 : index
    %c0_3 = arith.constant 0 : index
    %5 = vector.load %arg8[%c0_2, %c0_3] : memref<2x128xf32, #tpu.memory_space<vmem>>, vector<2x128xf32>
    %c0_4 = arith.constant 0 : index
    %c0_5 = arith.constant 0 : index
    %6 = vector.load %arg9[%c0_4, %c0_5] : memref<2x128xf32, #tpu.memory_space<vmem>>, vector<2x128xf32>
    %c0_6 = arith.constant 0 : index
    %c0_7 = arith.constant 0 : index
    %7 = vector.load %arg10[%c0_6, %c0_7] : memref<2x128xf32, #tpu.memory_space<vmem>>, vector<2x128xf32>
    %c0_8 = arith.constant 0 : index
    %c0_9 = arith.constant 0 : index
    %8 = vector.load %arg11[%c0_8, %c0_9] : memref<2x128xf32, #tpu.memory_space<vmem>>, vector<2x128xf32>
    %c0_i32_10 = arith.constant 0 : i32
    %9 = arith.addi %4, %c0_i32_10 : i32
    %c0_11 = arith.constant 0 : index
    %c0_12 = arith.constant 0 : index
    %c0_13 = arith.constant 0 : index
    %10 = vector.load %arg2[%c0_11, %c0_12, %c0_13] : memref<2x8x1024xf32, #tpu.memory_space<vmem>>, vector<2x1x512xf32>
    %11 = vector.shape_cast %10 : vector<2x1x512xf32> to vector<2x512xf32>
    %12 = arith.truncf %5 : vector<2x128xf32> to vector<2x128xbf16>
    %c0_14 = arith.constant 0 : index
    %c0_15 = arith.constant 0 : index
    %13 = vector.load %arg4[%c0_14, %c0_15] : memref<128x512xbf16, #tpu.memory_space<vmem>>, vector<128x512xbf16>
    %cst = arith.constant dense<0.000000e+00> : vector<2x512xf32>
    %14 = tpu.matmul %12, %13, %cst {dimension_numbers = #tpu.dot_dimension_numbers<[1], [0], [0], [1], [0, 0, 1, 1], [], []>} : vector<2x128xbf16>, vector<128x512xbf16>, vector<2x512xf32> -> vector<2x512xf32>
    %15 = arith.addf %11, %14 : vector<2x512xf32>
    %16 = vector.broadcast %9 : i32 to vector<2x1xi32>
    %17 = arith.cmpi slt, %16, %3 : vector<2x1xi32>
    %18 = vector.extract_strided_slice %15 {offsets = [0, 0], sizes = [2, 128], strides = [1, 1]} : vector<2x512xf32> to vector<2x128xf32>
    %19 = arith.negf %18 : vector<2x128xf32>
    %20 = math.exp %19 : vector<2x128xf32>
    %cst_16 = arith.constant 1.000000e+00 : f32
    %21 = vector.broadcast %cst_16 : f32 to vector<2x128xf32>
    %22 = arith.addf %21, %20 : vector<2x128xf32>
    %23 = arith.divf %21, %22 : vector<2x128xf32>
    %24 = vector.extract_strided_slice %15 {offsets = [0, 128], sizes = [2, 128], strides = [1, 1]} : vector<2x512xf32> to vector<2x128xf32>
    %25 = arith.negf %24 : vector<2x128xf32>
    %26 = math.exp %25 : vector<2x128xf32>
    %cst_17 = arith.constant 1.000000e+00 : f32
    %27 = vector.broadcast %cst_17 : f32 to vector<2x128xf32>
    %28 = arith.addf %27, %26 : vector<2x128xf32>
    %29 = arith.divf %27, %28 : vector<2x128xf32>
    %30 = vector.extract_strided_slice %15 {offsets = [0, 256], sizes = [2, 128], strides = [1, 1]} : vector<2x512xf32> to vector<2x128xf32>
    %31 = math.tanh %30 : vector<2x128xf32>
    %32 = vector.extract_strided_slice %15 {offsets = [0, 384], sizes = [2, 128], strides = [1, 1]} : vector<2x512xf32> to vector<2x128xf32>
    %33 = arith.negf %32 : vector<2x128xf32>
    %34 = math.exp %33 : vector<2x128xf32>
    %cst_18 = arith.constant 1.000000e+00 : f32
    %35 = vector.broadcast %cst_18 : f32 to vector<2x128xf32>
    %36 = arith.addf %35, %34 : vector<2x128xf32>
    %37 = arith.divf %35, %36 : vector<2x128xf32>
    %38 = arith.mulf %29, %6 : vector<2x128xf32>
    %39 = arith.mulf %23, %31 : vector<2x128xf32>
    %40 = arith.addf %38, %39 : vector<2x128xf32>
    %41 = math.tanh %40 : vector<2x128xf32>
    %42 = arith.mulf %37, %41 : vector<2x128xf32>
    %43 = vector.shape_cast %17 : vector<2x1xi1> to vector<2x1xi1>
    %44 = vector.broadcast %43 : vector<2x1xi1> to vector<2x128xi1>
    %45 = arith.select %44, %42, %5 : vector<2x128xi1>, vector<2x128xf32>
    %46 = vector.shape_cast %17 : vector<2x1xi1> to vector<2x1xi1>
    %47 = vector.broadcast %46 : vector<2x1xi1> to vector<2x128xi1>
    %48 = arith.select %47, %40, %6 : vector<2x128xi1>, vector<2x128xf32>
    %cst_19 = arith.constant 0.000000e+00 : f32
    %49 = vector.shape_cast %17 : vector<2x1xi1> to vector<2x1xi1>
    %50 = vector.broadcast %49 : vector<2x1xi1> to vector<2x128xi1>
    %51 = vector.broadcast %cst_19 : f32 to vector<2x128xf32>
    %52 = arith.select %50, %42, %51 : vector<2x128xi1>, vector<2x128xf32>
    %c0_20 = arith.constant 0 : index
    %c0_21 = arith.constant 0 : index
    %c0_22 = arith.constant 0 : index
    %53 = vector.load %arg6[%c0_20, %c0_21, %c0_22] : memref<2x8x128xf32, #tpu.memory_space<vmem>>, vector<2x1x128xf32>
    %54 = vector.shape_cast %53 : vector<2x1x128xf32> to vector<2x128xf32>
    %55 = vector.shape_cast %52 : vector<2x128xf32> to vector<2x1x128xf32>
    tpu.vector_store %arg6[%c0_20, %c0_21, %c0_22], %55 {strides = array<i32>} : memref<2x8x128xf32, #tpu.memory_space<vmem>>, vector<2x1x128xf32>,
    %c7_i32 = arith.constant 7 : i32
    %56 = arith.subi %c7_i32, %9 : i32
    %c0_23 = arith.constant 0 : index
    %c7 = arith.constant 7 : index
    %c512 = arith.constant 512 : index
    %57 = vector.load %arg3[%c0_23, %c7, %c512] : memref<2x8x1024xf32, #tpu.memory_space<vmem>>, vector<2x1x512xf32>
    %58 = vector.shape_cast %57 : vector<2x1x512xf32> to vector<2x512xf32>
    %59 = arith.truncf %7 : vector<2x128xf32> to vector<2x128xbf16>
    %c0_24 = arith.constant 0 : index
    %c0_25 = arith.constant 0 : index
    %60 = vector.load %arg5[%c0_24, %c0_25] : memref<128x512xbf16, #tpu.memory_space<vmem>>, vector<128x512xbf16>
    %cst_26 = arith.constant dense<0.000000e+00> : vector<2x512xf32>
    %61 = tpu.matmul %59, %60, %cst_26 {dimension_numbers = #tpu.dot_dimension_numbers<[1], [0], [0], [1], [0, 0, 1, 1], [], []>} : vector<2x128xbf16>, vector<128x512xbf16>, vector<2x512xf32> -> vector<2x512xf32>
    %62 = arith.addf %58, %61 : vector<2x512xf32>
    %63 = vector.broadcast %56 : i32 to vector<2x1xi32>
    %64 = arith.cmpi slt, %63, %3 : vector<2x1xi32>
    %65 = vector.extract_strided_slice %62 {offsets = [0, 0], sizes = [2, 128], strides = [1, 1]} : vector<2x512xf32> to vector<2x128xf32>
    %66 = arith.negf %65 : vector<2x128xf32>
    %67 = math.exp %66 : vector<2x128xf32>
    %cst_27 = arith.constant 1.000000e+00 : f32
    %68 = vector.broadcast %cst_27 : f32 to vector<2x128xf32>
    %69 = arith.addf %68, %67 : vector<2x128xf32>
    %70 = arith.divf %68, %69 : vector<2x128xf32>
    %71 = vector.extract_strided_slice %62 {offsets = [0, 128], sizes = [2, 128], strides = [1, 1]} : vector<2x512xf32> to vector<2x128xf32>
    %72 = arith.negf %71 : vector<2x128xf32>
    %73 = math.exp %72 : vector<2x128xf32>
    %cst_28 = arith.constant 1.000000e+00 : f32
    %74 = vector.broadcast %cst_28 : f32 to vector<2x128xf32>
    %75 = arith.addf %74, %73 : vector<2x128xf32>
    %76 = arith.divf %74, %75 : vector<2x128xf32>
    %77 = vector.extract_strided_slice %62 {offsets = [0, 256], sizes = [2, 128], strides = [1, 1]} : vector<2x512xf32> to vector<2x128xf32>
    %78 = math.tanh %77 : vector<2x128xf32>
    %79 = vector.extract_strided_slice %62 {offsets = [0, 384], sizes = [2, 128], strides = [1, 1]} : vector<2x512xf32> to vector<2x128xf32>
    %80 = arith.negf %79 : vector<2x128xf32>
    %81 = math.exp %80 : vector<2x128xf32>
    %cst_29 = arith.constant 1.000000e+00 : f32
    %82 = vector.broadcast %cst_29 : f32 to vector<2x128xf32>
    %83 = arith.addf %82, %81 : vector<2x128xf32>
    %84 = arith.divf %82, %83 : vector<2x128xf32>
    %85 = arith.mulf %76, %8 : vector<2x128xf32>
    %86 = arith.mulf %70, %78 : vector<2x128xf32>
    %87 = arith.addf %85, %86 : vector<2x128xf32>
    %88 = math.tanh %87 : vector<2x128xf32>
    %89 = arith.mulf %84, %88 : vector<2x128xf32>
    %90 = vector.shape_cast %64 : vector<2x1xi1> to vector<2x1xi1>
    %91 = vector.broadcast %90 : vector<2x1xi1> to vector<2x128xi1>
    %92 = arith.select %91, %89, %7 : vector<2x128xi1>, vector<2x128xf32>
    %93 = vector.shape_cast %64 : vector<2x1xi1> to vector<2x1xi1>
    %94 = vector.broadcast %93 : vector<2x1xi1> to vector<2x128xi1>
    %95 = arith.select %94, %87, %8 : vector<2x128xi1>, vector<2x128xf32>
    %cst_30 = arith.constant 0.000000e+00 : f32
    %96 = vector.shape_cast %64 : vector<2x1xi1> to vector<2x1xi1>
    %97 = vector.broadcast %96 : vector<2x1xi1> to vector<2x128xi1>
    %98 = vector.broadcast %cst_30 : f32 to vector<2x128xf32>
    %99 = arith.select %97, %89, %98 : vector<2x128xi1>, vector<2x128xf32>
    %c0_31 = arith.constant 0 : index
    %c7_32 = arith.constant 7 : index
    %c0_33 = arith.constant 0 : index
    %100 = vector.load %arg7[%c0_31, %c7_32, %c0_33] : memref<2x8x128xf32, #tpu.memory_space<vmem>>, vector<2x1x128xf32>
    %101 = vector.shape_cast %100 : vector<2x1x128xf32> to vector<2x128xf32>
    %102 = vector.shape_cast %99 : vector<2x128xf32> to vector<2x1x128xf32>
    tpu.vector_store %arg7[%c0_31, %c7_32, %c0_33], %102 {strides = array<i32>} : memref<2x8x128xf32, #tpu.memory_space<vmem>>, vector<2x1x128xf32>,
    %c1_i32 = arith.constant 1 : i32
    %103 = arith.addi %4, %c1_i32 : i32
    %c0_34 = arith.constant 0 : index
    %c1 = arith.constant 1 : index
    %c0_35 = arith.constant 0 : index
    %104 = vector.load %arg2[%c0_34, %c1, %c0_35] : memref<2x8x1024xf32, #tpu.memory_space<vmem>>, vector<2x1x512xf32>
    %105 = vector.shape_cast %104 : vector<2x1x512xf32> to vector<2x512xf32>
    %106 = arith.truncf %45 : vector<2x128xf32> to vector<2x128xbf16>
    %c0_36 = arith.constant 0 : index
    %c0_37 = arith.constant 0 : index
    %107 = vector.load %arg4[%c0_36, %c0_37] : memref<128x512xbf16, #tpu.memory_space<vmem>>, vector<128x512xbf16>
    %cst_38 = arith.constant dense<0.000000e+00> : vector<2x512xf32>
    %108 = tpu.matmul %106, %107, %cst_38 {dimension_numbers = #tpu.dot_dimension_numbers<[1], [0], [0], [1], [0, 0, 1, 1], [], []>} : vector<2x128xbf16>, vector<128x512xbf16>, vector<2x512xf32> -> vector<2x512xf32>
    %109 = arith.addf %105, %108 : vector<2x512xf32>
    %110 = vector.broadcast %103 : i32 to vector<2x1xi32>
    %111 = arith.cmpi slt, %110, %3 : vector<2x1xi32>
    %112 = vector.extract_strided_slice %109 {offsets = [0, 0], sizes = [2, 128], strides = [1, 1]} : vector<2x512xf32> to vector<2x128xf32>
    %113 = arith.negf %112 : vector<2x128xf32>
    %114 = math.exp %113 : vector<2x128xf32>
    %cst_39 = arith.constant 1.000000e+00 : f32
    %115 = vector.broadcast %cst_39 : f32 to vector<2x128xf32>
    %116 = arith.addf %115, %114 : vector<2x128xf32>
    %117 = arith.divf %115, %116 : vector<2x128xf32>
    %118 = vector.extract_strided_slice %109 {offsets = [0, 128], sizes = [2, 128], strides = [1, 1]} : vector<2x512xf32> to vector<2x128xf32>
    %119 = arith.negf %118 : vector<2x128xf32>
    %120 = math.exp %119 : vector<2x128xf32>
    %cst_40 = arith.constant 1.000000e+00 : f32
    %121 = vector.broadcast %cst_40 : f32 to vector<2x128xf32>
    %122 = arith.addf %121, %120 : vector<2x128xf32>
    %123 = arith.divf %121, %122 : vector<2x128xf32>
    %124 = vector.extract_strided_slice %109 {offsets = [0, 256], sizes = [2, 128], strides = [1, 1]} : vector<2x512xf32> to vector<2x128xf32>
    %125 = math.tanh %124 : vector<2x128xf32>
    %126 = vector.extract_strided_slice %109 {offsets = [0, 384], sizes = [2, 128], strides = [1, 1]} : vector<2x512xf32> to vector<2x128xf32>
    %127 = arith.negf %126 : vector<2x128xf32>
    %128 = math.exp %127 : vector<2x128xf32>
    %cst_41 = arith.constant 1.000000e+00 : f32
    %129 = vector.broadcast %cst_41 : f32 to vector<2x128xf32>
    %130 = arith.addf %129, %128 : vector<2x128xf32>
    %131 = arith.divf %129, %130 : vector<2x128xf32>
    %132 = arith.mulf %123, %48 : vector<2x128xf32>
    %133 = arith.mulf %117, %125 : vector<2x128xf32>
    %134 = arith.addf %132, %133 : vector<2x128xf32>
    %135 = math.tanh %134 : vector<2x128xf32>
    %136 = arith.mulf %131, %135 : vector<2x128xf32>
    %137 = vector.shape_cast %111 : vector<2x1xi1> to vector<2x1xi1>
    %138 = vector.broadcast %137 : vector<2x1xi1> to vector<2x128xi1>
    %139 = arith.select %138, %136, %45 : vector<2x128xi1>, vector<2x128xf32>
    %140 = vector.shape_cast %111 : vector<2x1xi1> to vector<2x1xi1>
    %141 = vector.broadcast %140 : vector<2x1xi1> to vector<2x128xi1>
    %142 = arith.select %141, %134, %48 : vector<2x128xi1>, vector<2x128xf32>
    %cst_42 = arith.constant 0.000000e+00 : f32
    %143 = vector.shape_cast %111 : vector<2x1xi1> to vector<2x1xi1>
    %144 = vector.broadcast %143 : vector<2x1xi1> to vector<2x128xi1>
    %145 = vector.broadcast %cst_42 : f32 to vector<2x128xf32>
    %146 = arith.select %144, %136, %145 : vector<2x128xi1>, vector<2x128xf32>
    %c0_43 = arith.constant 0 : index
    %c1_44 = arith.constant 1 : index
    %c0_45 = arith.constant 0 : index
    %147 = vector.load %arg6[%c0_43, %c1_44, %c0_45] : memref<2x8x128xf32, #tpu.memory_space<vmem>>, vector<2x1x128xf32>
    %148 = vector.shape_cast %147 : vector<2x1x128xf32> to vector<2x128xf32>
    %149 = vector.shape_cast %146 : vector<2x128xf32> to vector<2x1x128xf32>
    tpu.vector_store %arg6[%c0_43, %c1_44, %c0_45], %149 {strides = array<i32>} : memref<2x8x128xf32, #tpu.memory_space<vmem>>, vector<2x1x128xf32>,
    %c7_i32_46 = arith.constant 7 : i32
    %150 = arith.subi %c7_i32_46, %103 : i32
    %c0_47 = arith.constant 0 : index
    %c6 = arith.constant 6 : index
    %c512_48 = arith.constant 512 : index
    %151 = vector.load %arg3[%c0_47, %c6, %c512_48] : memref<2x8x1024xf32, #tpu.memory_space<vmem>>, vector<2x1x512xf32>
    %152 = vector.shape_cast %151 : vector<2x1x512xf32> to vector<2x512xf32>
    %153 = arith.truncf %92 : vector<2x128xf32> to vector<2x128xbf16>
    %c0_49 = arith.constant 0 : index
    %c0_50 = arith.constant 0 : index
    %154 = vector.load %arg5[%c0_49, %c0_50] : memref<128x512xbf16, #tpu.memory_space<vmem>>, vector<128x512xbf16>
    %cst_51 = arith.constant dense<0.000000e+00> : vector<2x512xf32>
    %155 = tpu.matmul %153, %154, %cst_51 {dimension_numbers = #tpu.dot_dimension_numbers<[1], [0], [0], [1], [0, 0, 1, 1], [], []>} : vector<2x128xbf16>, vector<128x512xbf16>, vector<2x512xf32> -> vector<2x512xf32>
    %156 = arith.addf %152, %155 : vector<2x512xf32>
    %157 = vector.broadcast %150 : i32 to vector<2x1xi32>
    %158 = arith.cmpi slt, %157, %3 : vector<2x1xi32>
    %159 = vector.extract_strided_slice %156 {offsets = [0, 0], sizes = [2, 128], strides = [1, 1]} : vector<2x512xf32> to vector<2x128xf32>
    %160 = arith.negf %159 : vector<2x128xf32>
    %161 = math.exp %160 : vector<2x128xf32>
    %cst_52 = arith.constant 1.000000e+00 : f32
    %162 = vector.broadcast %cst_52 : f32 to vector<2x128xf32>
    %163 = arith.addf %162, %161 : vector<2x128xf32>
    %164 = arith.divf %162, %163 : vector<2x128xf32>
    %165 = vector.extract_strided_slice %156 {offsets = [0, 128], sizes = [2, 128], strides = [1, 1]} : vector<2x512xf32> to vector<2x128xf32>
    %166 = arith.negf %165 : vector<2x128xf32>
    %167 = math.exp %166 : vector<2x128xf32>
    %cst_53 = arith.constant 1.000000e+00 : f32
    %168 = vector.broadcast %cst_53 : f32 to vector<2x128xf32>
    %169 = arith.addf %168, %167 : vector<2x128xf32>
    %170 = arith.divf %168, %169 : vector<2x128xf32>
    %171 = vector.extract_strided_slice %156 {offsets = [0, 256], sizes = [2, 128], strides = [1, 1]} : vector<2x512xf32> to vector<2x128xf32>
    %172 = math.tanh %171 : vector<2x128xf32>
    %173 = vector.extract_strided_slice %156 {offsets = [0, 384], sizes = [2, 128], strides = [1, 1]} : vector<2x512xf32> to vector<2x128xf32>
    %174 = arith.negf %173 : vector<2x128xf32>
    %175 = math.exp %174 : vector<2x128xf32>
    %cst_54 = arith.constant 1.000000e+00 : f32
    %176 = vector.broadcast %cst_54 : f32 to vector<2x128xf32>
    %177 = arith.addf %176, %175 : vector<2x128xf32>
    %178 = arith.divf %176, %177 : vector<2x128xf32>
    %179 = arith.mulf %170, %95 : vector<2x128xf32>
    %180 = arith.mulf %164, %172 : vector<2x128xf32>
    %181 = arith.addf %179, %180 : vector<2x128xf32>
    %182 = math.tanh %181 : vector<2x128xf32>
    %183 = arith.mulf %178, %182 : vector<2x128xf32>
    %184 = vector.shape_cast %158 : vector<2x1xi1> to vector<2x1xi1>
    %185 = vector.broadcast %184 : vector<2x1xi1> to vector<2x128xi1>
    %186 = arith.select %185, %183, %92 : vector<2x128xi1>, vector<2x128xf32>
    %187 = vector.shape_cast %158 : vector<2x1xi1> to vector<2x1xi1>
    %188 = vector.broadcast %187 : vector<2x1xi1> to vector<2x128xi1>
    %189 = arith.select %188, %181, %95 : vector<2x128xi1>, vector<2x128xf32>
    %cst_55 = arith.constant 0.000000e+00 : f32
    %190 = vector.shape_cast %158 : vector<2x1xi1> to vector<2x1xi1>
    %191 = vector.broadcast %190 : vector<2x1xi1> to vector<2x128xi1>
    %192 = vector.broadcast %cst_55 : f32 to vector<2x128xf32>
    %193 = arith.select %191, %183, %192 : vector<2x128xi1>, vector<2x128xf32>
    %c0_56 = arith.constant 0 : index
    %c6_57 = arith.constant 6 : index
    %c0_58 = arith.constant 0 : index
    %194 = vector.load %arg7[%c0_56, %c6_57, %c0_58] : memref<2x8x128xf32, #tpu.memory_space<vmem>>, vector<2x1x128xf32>
    %195 = vector.shape_cast %194 : vector<2x1x128xf32> to vector<2x128xf32>
    %196 = vector.shape_cast %193 : vector<2x128xf32> to vector<2x1x128xf32>
    tpu.vector_store %arg7[%c0_56, %c6_57, %c0_58], %196 {strides = array<i32>} : memref<2x8x128xf32, #tpu.memory_space<vmem>>, vector<2x1x128xf32>,
    %c2_i32 = arith.constant 2 : i32
    %197 = arith.addi %4, %c2_i32 : i32
    %c0_59 = arith.constant 0 : index
    %c2 = arith.constant 2 : index
    %c0_60 = arith.constant 0 : index
    %198 = vector.load %arg2[%c0_59, %c2, %c0_60] : memref<2x8x1024xf32, #tpu.memory_space<vmem>>, vector<2x1x512xf32>
    %199 = vector.shape_cast %198 : vector<2x1x512xf32> to vector<2x512xf32>
    %200 = arith.truncf %139 : vector<2x128xf32> to vector<2x128xbf16>
    %c0_61 = arith.constant 0 : index
    %c0_62 = arith.constant 0 : index
    %201 = vector.load %arg4[%c0_61, %c0_62] : memref<128x512xbf16, #tpu.memory_space<vmem>>, vector<128x512xbf16>
    %cst_63 = arith.constant dense<0.000000e+00> : vector<2x512xf32>
    %202 = tpu.matmul %200, %201, %cst_63 {dimension_numbers = #tpu.dot_dimension_numbers<[1], [0], [0], [1], [0, 0, 1, 1], [], []>} : vector<2x128xbf16>, vector<128x512xbf16>, vector<2x512xf32> -> vector<2x512xf32>
    %203 = arith.addf %199, %202 : vector<2x512xf32>
    %204 = vector.broadcast %197 : i32 to vector<2x1xi32>
    %205 = arith.cmpi slt, %204, %3 : vector<2x1xi32>
    %206 = vector.extract_strided_slice %203 {offsets = [0, 0], sizes = [2, 128], strides = [1, 1]} : vector<2x512xf32> to vector<2x128xf32>
    %207 = arith.negf %206 : vector<2x128xf32>
    %208 = math.exp %207 : vector<2x128xf32>
    %cst_64 = arith.constant 1.000000e+00 : f32
    %209 = vector.broadcast %cst_64 : f32 to vector<2x128xf32>
    %210 = arith.addf %209, %208 : vector<2x128xf32>
    %211 = arith.divf %209, %210 : vector<2x128xf32>
    %212 = vector.extract_strided_slice %203 {offsets = [0, 128], sizes = [2, 128], strides = [1, 1]} : vector<2x512xf32> to vector<2x128xf32>
    %213 = arith.negf %212 : vector<2x128xf32>
    %214 = math.exp %213 : vector<2x128xf32>
    %cst_65 = arith.constant 1.000000e+00 : f32
    %215 = vector.broadcast %cst_65 : f32 to vector<2x128xf32>
    %216 = arith.addf %215, %214 : vector<2x128xf32>
    %217 = arith.divf %215, %216 : vector<2x128xf32>
    %218 = vector.extract_strided_slice %203 {offsets = [0, 256], sizes = [2, 128], strides = [1, 1]} : vector<2x512xf32> to vector<2x128xf32>
    %219 = math.tanh %218 : vector<2x128xf32>
    %220 = vector.extract_strided_slice %203 {offsets = [0, 384], sizes = [2, 128], strides = [1, 1]} : vector<2x512xf32> to vector<2x128xf32>
    %221 = arith.negf %220 : vector<2x128xf32>
    %222 = math.exp %221 : vector<2x128xf32>
    %cst_66 = arith.constant 1.000000e+00 : f32
    %223 = vector.broadcast %cst_66 : f32 to vector<2x128xf32>
    %224 = arith.addf %223, %222 : vector<2x128xf32>
    %225 = arith.divf %223, %224 : vector<2x128xf32>
    %226 = arith.mulf %217, %142 : vector<2x128xf32>
    %227 = arith.mulf %211, %219 : vector<2x128xf32>
    %228 = arith.addf %226, %227 : vector<2x128xf32>
    %229 = math.tanh %228 : vector<2x128xf32>
    %230 = arith.mulf %225, %229 : vector<2x128xf32>
    %231 = vector.shape_cast %205 : vector<2x1xi1> to vector<2x1xi1>
    %232 = vector.broadcast %231 : vector<2x1xi1> to vector<2x128xi1>
    %233 = arith.select %232, %230, %139 : vector<2x128xi1>, vector<2x128xf32>
    %234 = vector.shape_cast %205 : vector<2x1xi1> to vector<2x1xi1>
    %235 = vector.broadcast %234 : vector<2x1xi1> to vector<2x128xi1>
    %236 = arith.select %235, %228, %142 : vector<2x128xi1>, vector<2x128xf32>
    %cst_67 = arith.constant 0.000000e+00 : f32
    %237 = vector.shape_cast %205 : vector<2x1xi1> to vector<2x1xi1>
    %238 = vector.broadcast %237 : vector<2x1xi1> to vector<2x128xi1>
    %239 = vector.broadcast %cst_67 : f32 to vector<2x128xf32>
    %240 = arith.select %238, %230, %239 : vector<2x128xi1>, vector<2x128xf32>
    %c0_68 = arith.constant 0 : index
    %c2_69 = arith.constant 2 : index
    %c0_70 = arith.constant 0 : index
    %241 = vector.load %arg6[%c0_68, %c2_69, %c0_70] : memref<2x8x128xf32, #tpu.memory_space<vmem>>, vector<2x1x128xf32>
    %242 = vector.shape_cast %241 : vector<2x1x128xf32> to vector<2x128xf32>
    %243 = vector.shape_cast %240 : vector<2x128xf32> to vector<2x1x128xf32>
    tpu.vector_store %arg6[%c0_68, %c2_69, %c0_70], %243 {strides = array<i32>} : memref<2x8x128xf32, #tpu.memory_space<vmem>>, vector<2x1x128xf32>,
    %c7_i32_71 = arith.constant 7 : i32
    %244 = arith.subi %c7_i32_71, %197 : i32
    %c0_72 = arith.constant 0 : index
    %c5 = arith.constant 5 : index
    %c512_73 = arith.constant 512 : index
    %245 = vector.load %arg3[%c0_72, %c5, %c512_73] : memref<2x8x1024xf32, #tpu.memory_space<vmem>>, vector<2x1x512xf32>
    %246 = vector.shape_cast %245 : vector<2x1x512xf32> to vector<2x512xf32>
    %247 = arith.truncf %186 : vector<2x128xf32> to vector<2x128xbf16>
    %c0_74 = arith.constant 0 : index
    %c0_75 = arith.constant 0 : index
    %248 = vector.load %arg5[%c0_74, %c0_75] : memref<128x512xbf16, #tpu.memory_space<vmem>>, vector<128x512xbf16>
    %cst_76 = arith.constant dense<0.000000e+00> : vector<2x512xf32>
    %249 = tpu.matmul %247, %248, %cst_76 {dimension_numbers = #tpu.dot_dimension_numbers<[1], [0], [0], [1], [0, 0, 1, 1], [], []>} : vector<2x128xbf16>, vector<128x512xbf16>, vector<2x512xf32> -> vector<2x512xf32>
    %250 = arith.addf %246, %249 : vector<2x512xf32>
    %251 = vector.broadcast %244 : i32 to vector<2x1xi32>
    %252 = arith.cmpi slt, %251, %3 : vector<2x1xi32>
    %253 = vector.extract_strided_slice %250 {offsets = [0, 0], sizes = [2, 128], strides = [1, 1]} : vector<2x512xf32> to vector<2x128xf32>
    %254 = arith.negf %253 : vector<2x128xf32>
    %255 = math.exp %254 : vector<2x128xf32>
    %cst_77 = arith.constant 1.000000e+00 : f32
    %256 = vector.broadcast %cst_77 : f32 to vector<2x128xf32>
    %257 = arith.addf %256, %255 : vector<2x128xf32>
    %258 = arith.divf %256, %257 : vector<2x128xf32>
    %259 = vector.extract_strided_slice %250 {offsets = [0, 128], sizes = [2, 128], strides = [1, 1]} : vector<2x512xf32> to vector<2x128xf32>
    %260 = arith.negf %259 : vector<2x128xf32>
    %261 = math.exp %260 : vector<2x128xf32>
    %cst_78 = arith.constant 1.000000e+00 : f32
    %262 = vector.broadcast %cst_78 : f32 to vector<2x128xf32>
    %263 = arith.addf %262, %261 : vector<2x128xf32>
    %264 = arith.divf %262, %263 : vector<2x128xf32>
    %265 = vector.extract_strided_slice %250 {offsets = [0, 256], sizes = [2, 128], strides = [1, 1]} : vector<2x512xf32> to vector<2x128xf32>
    %266 = math.tanh %265 : vector<2x128xf32>
    %267 = vector.extract_strided_slice %250 {offsets = [0, 384], sizes = [2, 128], strides = [1, 1]} : vector<2x512xf32> to vector<2x128xf32>
    %268 = arith.negf %267 : vector<2x128xf32>
    %269 = math.exp %268 : vector<2x128xf32>
    %cst_79 = arith.constant 1.000000e+00 : f32
    %270 = vector.broadcast %cst_79 : f32 to vector<2x128xf32>
    %271 = arith.addf %270, %269 : vector<2x128xf32>
    %272 = arith.divf %270, %271 : vector<2x128xf32>
    %273 = arith.mulf %264, %189 : vector<2x128xf32>
    %274 = arith.mulf %258, %266 : vector<2x128xf32>
    %275 = arith.addf %273, %274 : vector<2x128xf32>
    %276 = math.tanh %275 : vector<2x128xf32>
    %277 = arith.mulf %272, %276 : vector<2x128xf32>
    %278 = vector.shape_cast %252 : vector<2x1xi1> to vector<2x1xi1>
    %279 = vector.broadcast %278 : vector<2x1xi1> to vector<2x128xi1>
    %280 = arith.select %279, %277, %186 : vector<2x128xi1>, vector<2x128xf32>
    %281 = vector.shape_cast %252 : vector<2x1xi1> to vector<2x1xi1>
    %282 = vector.broadcast %281 : vector<2x1xi1> to vector<2x128xi1>
    %283 = arith.select %282, %275, %189 : vector<2x128xi1>, vector<2x128xf32>
    %cst_80 = arith.constant 0.000000e+00 : f32
    %284 = vector.shape_cast %252 : vector<2x1xi1> to vector<2x1xi1>
    %285 = vector.broadcast %284 : vector<2x1xi1> to vector<2x128xi1>
    %286 = vector.broadcast %cst_80 : f32 to vector<2x128xf32>
    %287 = arith.select %285, %277, %286 : vector<2x128xi1>, vector<2x128xf32>
    %c0_81 = arith.constant 0 : index
    %c5_82 = arith.constant 5 : index
    %c0_83 = arith.constant 0 : index
    %288 = vector.load %arg7[%c0_81, %c5_82, %c0_83] : memref<2x8x128xf32, #tpu.memory_space<vmem>>, vector<2x1x128xf32>
    %289 = vector.shape_cast %288 : vector<2x1x128xf32> to vector<2x128xf32>
    %290 = vector.shape_cast %287 : vector<2x128xf32> to vector<2x1x128xf32>
    tpu.vector_store %arg7[%c0_81, %c5_82, %c0_83], %290 {strides = array<i32>} : memref<2x8x128xf32, #tpu.memory_space<vmem>>, vector<2x1x128xf32>,
    %c3_i32 = arith.constant 3 : i32
    %291 = arith.addi %4, %c3_i32 : i32
    %c0_84 = arith.constant 0 : index
    %c3 = arith.constant 3 : index
    %c0_85 = arith.constant 0 : index
    %292 = vector.load %arg2[%c0_84, %c3, %c0_85] : memref<2x8x1024xf32, #tpu.memory_space<vmem>>, vector<2x1x512xf32>
    %293 = vector.shape_cast %292 : vector<2x1x512xf32> to vector<2x512xf32>
    %294 = arith.truncf %233 : vector<2x128xf32> to vector<2x128xbf16>
    %c0_86 = arith.constant 0 : index
    %c0_87 = arith.constant 0 : index
    %295 = vector.load %arg4[%c0_86, %c0_87] : memref<128x512xbf16, #tpu.memory_space<vmem>>, vector<128x512xbf16>
    %cst_88 = arith.constant dense<0.000000e+00> : vector<2x512xf32>
    %296 = tpu.matmul %294, %295, %cst_88 {dimension_numbers = #tpu.dot_dimension_numbers<[1], [0], [0], [1], [0, 0, 1, 1], [], []>} : vector<2x128xbf16>, vector<128x512xbf16>, vector<2x512xf32> -> vector<2x512xf32>
    %297 = arith.addf %293, %296 : vector<2x512xf32>
    %298 = vector.broadcast %291 : i32 to vector<2x1xi32>
    %299 = arith.cmpi slt, %298, %3 : vector<2x1xi32>
    %300 = vector.extract_strided_slice %297 {offsets = [0, 0], sizes = [2, 128], strides = [1, 1]} : vector<2x512xf32> to vector<2x128xf32>
    %301 = arith.negf %300 : vector<2x128xf32>
    %302 = math.exp %301 : vector<2x128xf32>
    %cst_89 = arith.constant 1.000000e+00 : f32
    %303 = vector.broadcast %cst_89 : f32 to vector<2x128xf32>
    %304 = arith.addf %303, %302 : vector<2x128xf32>
    %305 = arith.divf %303, %304 : vector<2x128xf32>
    %306 = vector.extract_strided_slice %297 {offsets = [0, 128], sizes = [2, 128], strides = [1, 1]} : vector<2x512xf32> to vector<2x128xf32>
    %307 = arith.negf %306 : vector<2x128xf32>
    %308 = math.exp %307 : vector<2x128xf32>
    %cst_90 = arith.constant 1.000000e+00 : f32
    %309 = vector.broadcast %cst_90 : f32 to vector<2x128xf32>
    %310 = arith.addf %309, %308 : vector<2x128xf32>
    %311 = arith.divf %309, %310 : vector<2x128xf32>
    %312 = vector.extract_strided_slice %297 {offsets = [0, 256], sizes = [2, 128], strides = [1, 1]} : vector<2x512xf32> to vector<2x128xf32>
    %313 = math.tanh %312 : vector<2x128xf32>
    %314 = vector.extract_strided_slice %297 {offsets = [0, 384], sizes = [2, 128], strides = [1, 1]} : vector<2x512xf32> to vector<2x128xf32>
    %315 = arith.negf %314 : vector<2x128xf32>
    %316 = math.exp %315 : vector<2x128xf32>
    %cst_91 = arith.constant 1.000000e+00 : f32
    %317 = vector.broadcast %cst_91 : f32 to vector<2x128xf32>
    %318 = arith.addf %317, %316 : vector<2x128xf32>
    %319 = arith.divf %317, %318 : vector<2x128xf32>
    %320 = arith.mulf %311, %236 : vector<2x128xf32>
    %321 = arith.mulf %305, %313 : vector<2x128xf32>
    %322 = arith.addf %320, %321 : vector<2x128xf32>
    %323 = math.tanh %322 : vector<2x128xf32>
    %324 = arith.mulf %319, %323 : vector<2x128xf32>
    %325 = vector.shape_cast %299 : vector<2x1xi1> to vector<2x1xi1>
    %326 = vector.broadcast %325 : vector<2x1xi1> to vector<2x128xi1>
    %327 = arith.select %326, %324, %233 : vector<2x128xi1>, vector<2x128xf32>
    %328 = vector.shape_cast %299 : vector<2x1xi1> to vector<2x1xi1>
    %329 = vector.broadcast %328 : vector<2x1xi1> to vector<2x128xi1>
    %330 = arith.select %329, %322, %236 : vector<2x128xi1>, vector<2x128xf32>
    %cst_92 = arith.constant 0.000000e+00 : f32
    %331 = vector.shape_cast %299 : vector<2x1xi1> to vector<2x1xi1>
    %332 = vector.broadcast %331 : vector<2x1xi1> to vector<2x128xi1>
    %333 = vector.broadcast %cst_92 : f32 to vector<2x128xf32>
    %334 = arith.select %332, %324, %333 : vector<2x128xi1>, vector<2x128xf32>
    %c0_93 = arith.constant 0 : index
    %c3_94 = arith.constant 3 : index
    %c0_95 = arith.constant 0 : index
    %335 = vector.load %arg6[%c0_93, %c3_94, %c0_95] : memref<2x8x128xf32, #tpu.memory_space<vmem>>, vector<2x1x128xf32>
    %336 = vector.shape_cast %335 : vector<2x1x128xf32> to vector<2x128xf32>
    %337 = vector.shape_cast %334 : vector<2x128xf32> to vector<2x1x128xf32>
    tpu.vector_store %arg6[%c0_93, %c3_94, %c0_95], %337 {strides = array<i32>} : memref<2x8x128xf32, #tpu.memory_space<vmem>>, vector<2x1x128xf32>,
    %c7_i32_96 = arith.constant 7 : i32
    %338 = arith.subi %c7_i32_96, %291 : i32
    %c0_97 = arith.constant 0 : index
    %c4 = arith.constant 4 : index
    %c512_98 = arith.constant 512 : index
    %339 = vector.load %arg3[%c0_97, %c4, %c512_98] : memref<2x8x1024xf32, #tpu.memory_space<vmem>>, vector<2x1x512xf32>
    %340 = vector.shape_cast %339 : vector<2x1x512xf32> to vector<2x512xf32>
    %341 = arith.truncf %280 : vector<2x128xf32> to vector<2x128xbf16>
    %c0_99 = arith.constant 0 : index
    %c0_100 = arith.constant 0 : index
    %342 = vector.load %arg5[%c0_99, %c0_100] : memref<128x512xbf16, #tpu.memory_space<vmem>>, vector<128x512xbf16>
    %cst_101 = arith.constant dense<0.000000e+00> : vector<2x512xf32>
    %343 = tpu.matmul %341, %342, %cst_101 {dimension_numbers = #tpu.dot_dimension_numbers<[1], [0], [0], [1], [0, 0, 1, 1], [], []>} : vector<2x128xbf16>, vector<128x512xbf16>, vector<2x512xf32> -> vector<2x512xf32>
    %344 = arith.addf %340, %343 : vector<2x512xf32>
    %345 = vector.broadcast %338 : i32 to vector<2x1xi32>
    %346 = arith.cmpi slt, %345, %3 : vector<2x1xi32>
    %347 = vector.extract_strided_slice %344 {offsets = [0, 0], sizes = [2, 128], strides = [1, 1]} : vector<2x512xf32> to vector<2x128xf32>
    %348 = arith.negf %347 : vector<2x128xf32>
    %349 = math.exp %348 : vector<2x128xf32>
    %cst_102 = arith.constant 1.000000e+00 : f32
    %350 = vector.broadcast %cst_102 : f32 to vector<2x128xf32>
    %351 = arith.addf %350, %349 : vector<2x128xf32>
    %352 = arith.divf %350, %351 : vector<2x128xf32>
    %353 = vector.extract_strided_slice %344 {offsets = [0, 128], sizes = [2, 128], strides = [1, 1]} : vector<2x512xf32> to vector<2x128xf32>
    %354 = arith.negf %353 : vector<2x128xf32>
    %355 = math.exp %354 : vector<2x128xf32>
    %cst_103 = arith.constant 1.000000e+00 : f32
    %356 = vector.broadcast %cst_103 : f32 to vector<2x128xf32>
    %357 = arith.addf %356, %355 : vector<2x128xf32>
    %358 = arith.divf %356, %357 : vector<2x128xf32>
    %359 = vector.extract_strided_slice %344 {offsets = [0, 256], sizes = [2, 128], strides = [1, 1]} : vector<2x512xf32> to vector<2x128xf32>
    %360 = math.tanh %359 : vector<2x128xf32>
    %361 = vector.extract_strided_slice %344 {offsets = [0, 384], sizes = [2, 128], strides = [1, 1]} : vector<2x512xf32> to vector<2x128xf32>
    %362 = arith.negf %361 : vector<2x128xf32>
    %363 = math.exp %362 : vector<2x128xf32>
    %cst_104 = arith.constant 1.000000e+00 : f32
    %364 = vector.broadcast %cst_104 : f32 to vector<2x128xf32>
    %365 = arith.addf %364, %363 : vector<2x128xf32>
    %366 = arith.divf %364, %365 : vector<2x128xf32>
    %367 = arith.mulf %358, %283 : vector<2x128xf32>
    %368 = arith.mulf %352, %360 : vector<2x128xf32>
    %369 = arith.addf %367, %368 : vector<2x128xf32>
    %370 = math.tanh %369 : vector<2x128xf32>
    %371 = arith.mulf %366, %370 : vector<2x128xf32>
    %372 = vector.shape_cast %346 : vector<2x1xi1> to vector<2x1xi1>
    %373 = vector.broadcast %372 : vector<2x1xi1> to vector<2x128xi1>
    %374 = arith.select %373, %371, %280 : vector<2x128xi1>, vector<2x128xf32>
    %375 = vector.shape_cast %346 : vector<2x1xi1> to vector<2x1xi1>
    %376 = vector.broadcast %375 : vector<2x1xi1> to vector<2x128xi1>
    %377 = arith.select %376, %369, %283 : vector<2x128xi1>, vector<2x128xf32>
    %cst_105 = arith.constant 0.000000e+00 : f32
    %378 = vector.shape_cast %346 : vector<2x1xi1> to vector<2x1xi1>
    %379 = vector.broadcast %378 : vector<2x1xi1> to vector<2x128xi1>
    %380 = vector.broadcast %cst_105 : f32 to vector<2x128xf32>
    %381 = arith.select %379, %371, %380 : vector<2x128xi1>, vector<2x128xf32>
    %c0_106 = arith.constant 0 : index
    %c4_107 = arith.constant 4 : index
    %c0_108 = arith.constant 0 : index
    %382 = vector.load %arg7[%c0_106, %c4_107, %c0_108] : memref<2x8x128xf32, #tpu.memory_space<vmem>>, vector<2x1x128xf32>
    %383 = vector.shape_cast %382 : vector<2x1x128xf32> to vector<2x128xf32>
    %384 = vector.shape_cast %381 : vector<2x128xf32> to vector<2x1x128xf32>
    tpu.vector_store %arg7[%c0_106, %c4_107, %c0_108], %384 {strides = array<i32>} : memref<2x8x128xf32, #tpu.memory_space<vmem>>, vector<2x1x128xf32>,
    %c4_i32 = arith.constant 4 : i32
    %385 = arith.addi %4, %c4_i32 : i32
    %c0_109 = arith.constant 0 : index
    %c4_110 = arith.constant 4 : index
    %c0_111 = arith.constant 0 : index
    %386 = vector.load %arg2[%c0_109, %c4_110, %c0_111] : memref<2x8x1024xf32, #tpu.memory_space<vmem>>, vector<2x1x512xf32>
    %387 = vector.shape_cast %386 : vector<2x1x512xf32> to vector<2x512xf32>
    %388 = arith.truncf %327 : vector<2x128xf32> to vector<2x128xbf16>
    %c0_112 = arith.constant 0 : index
    %c0_113 = arith.constant 0 : index
    %389 = vector.load %arg4[%c0_112, %c0_113] : memref<128x512xbf16, #tpu.memory_space<vmem>>, vector<128x512xbf16>
    %cst_114 = arith.constant dense<0.000000e+00> : vector<2x512xf32>
    %390 = tpu.matmul %388, %389, %cst_114 {dimension_numbers = #tpu.dot_dimension_numbers<[1], [0], [0], [1], [0, 0, 1, 1], [], []>} : vector<2x128xbf16>, vector<128x512xbf16>, vector<2x512xf32> -> vector<2x512xf32>
    %391 = arith.addf %387, %390 : vector<2x512xf32>
    %392 = vector.broadcast %385 : i32 to vector<2x1xi32>
    %393 = arith.cmpi slt, %392, %3 : vector<2x1xi32>
    %394 = vector.extract_strided_slice %391 {offsets = [0, 0], sizes = [2, 128], strides = [1, 1]} : vector<2x512xf32> to vector<2x128xf32>
    %395 = arith.negf %394 : vector<2x128xf32>
    %396 = math.exp %395 : vector<2x128xf32>
    %cst_115 = arith.constant 1.000000e+00 : f32
    %397 = vector.broadcast %cst_115 : f32 to vector<2x128xf32>
    %398 = arith.addf %397, %396 : vector<2x128xf32>
    %399 = arith.divf %397, %398 : vector<2x128xf32>
    %400 = vector.extract_strided_slice %391 {offsets = [0, 128], sizes = [2, 128], strides = [1, 1]} : vector<2x512xf32> to vector<2x128xf32>
    %401 = arith.negf %400 : vector<2x128xf32>
    %402 = math.exp %401 : vector<2x128xf32>
    %cst_116 = arith.constant 1.000000e+00 : f32
    %403 = vector.broadcast %cst_116 : f32 to vector<2x128xf32>
    %404 = arith.addf %403, %402 : vector<2x128xf32>
    %405 = arith.divf %403, %404 : vector<2x128xf32>
    %406 = vector.extract_strided_slice %391 {offsets = [0, 256], sizes = [2, 128], strides = [1, 1]} : vector<2x512xf32> to vector<2x128xf32>
    %407 = math.tanh %406 : vector<2x128xf32>
    %408 = vector.extract_strided_slice %391 {offsets = [0, 384], sizes = [2, 128], strides = [1, 1]} : vector<2x512xf32> to vector<2x128xf32>
    %409 = arith.negf %408 : vector<2x128xf32>
    %410 = math.exp %409 : vector<2x128xf32>
    %cst_117 = arith.constant 1.000000e+00 : f32
    %411 = vector.broadcast %cst_117 : f32 to vector<2x128xf32>
    %412 = arith.addf %411, %410 : vector<2x128xf32>
    %413 = arith.divf %411, %412 : vector<2x128xf32>
    %414 = arith.mulf %405, %330 : vector<2x128xf32>
    %415 = arith.mulf %399, %407 : vector<2x128xf32>
    %416 = arith.addf %414, %415 : vector<2x128xf32>
    %417 = math.tanh %416 : vector<2x128xf32>
    %418 = arith.mulf %413, %417 : vector<2x128xf32>
    %419 = vector.shape_cast %393 : vector<2x1xi1> to vector<2x1xi1>
    %420 = vector.broadcast %419 : vector<2x1xi1> to vector<2x128xi1>
    %421 = arith.select %420, %418, %327 : vector<2x128xi1>, vector<2x128xf32>
    %422 = vector.shape_cast %393 : vector<2x1xi1> to vector<2x1xi1>
    %423 = vector.broadcast %422 : vector<2x1xi1> to vector<2x128xi1>
    %424 = arith.select %423, %416, %330 : vector<2x128xi1>, vector<2x128xf32>
    %cst_118 = arith.constant 0.000000e+00 : f32
    %425 = vector.shape_cast %393 : vector<2x1xi1> to vector<2x1xi1>
    %426 = vector.broadcast %425 : vector<2x1xi1> to vector<2x128xi1>
    %427 = vector.broadcast %cst_118 : f32 to vector<2x128xf32>
    %428 = arith.select %426, %418, %427 : vector<2x128xi1>, vector<2x128xf32>
    %c0_119 = arith.constant 0 : index
    %c4_120 = arith.constant 4 : index
    %c0_121 = arith.constant 0 : index
    %429 = vector.load %arg6[%c0_119, %c4_120, %c0_121] : memref<2x8x128xf32, #tpu.memory_space<vmem>>, vector<2x1x128xf32>
    %430 = vector.shape_cast %429 : vector<2x1x128xf32> to vector<2x128xf32>
    %431 = vector.shape_cast %428 : vector<2x128xf32> to vector<2x1x128xf32>
    tpu.vector_store %arg6[%c0_119, %c4_120, %c0_121], %431 {strides = array<i32>} : memref<2x8x128xf32, #tpu.memory_space<vmem>>, vector<2x1x128xf32>,
    %c7_i32_122 = arith.constant 7 : i32
    %432 = arith.subi %c7_i32_122, %385 : i32
    %c0_123 = arith.constant 0 : index
    %c3_124 = arith.constant 3 : index
    %c512_125 = arith.constant 512 : index
    %433 = vector.load %arg3[%c0_123, %c3_124, %c512_125] : memref<2x8x1024xf32, #tpu.memory_space<vmem>>, vector<2x1x512xf32>
    %434 = vector.shape_cast %433 : vector<2x1x512xf32> to vector<2x512xf32>
    %435 = arith.truncf %374 : vector<2x128xf32> to vector<2x128xbf16>
    %c0_126 = arith.constant 0 : index
    %c0_127 = arith.constant 0 : index
    %436 = vector.load %arg5[%c0_126, %c0_127] : memref<128x512xbf16, #tpu.memory_space<vmem>>, vector<128x512xbf16>
    %cst_128 = arith.constant dense<0.000000e+00> : vector<2x512xf32>
    %437 = tpu.matmul %435, %436, %cst_128 {dimension_numbers = #tpu.dot_dimension_numbers<[1], [0], [0], [1], [0, 0, 1, 1], [], []>} : vector<2x128xbf16>, vector<128x512xbf16>, vector<2x512xf32> -> vector<2x512xf32>
    %438 = arith.addf %434, %437 : vector<2x512xf32>
    %439 = vector.broadcast %432 : i32 to vector<2x1xi32>
    %440 = arith.cmpi slt, %439, %3 : vector<2x1xi32>
    %441 = vector.extract_strided_slice %438 {offsets = [0, 0], sizes = [2, 128], strides = [1, 1]} : vector<2x512xf32> to vector<2x128xf32>
    %442 = arith.negf %441 : vector<2x128xf32>
    %443 = math.exp %442 : vector<2x128xf32>
    %cst_129 = arith.constant 1.000000e+00 : f32
    %444 = vector.broadcast %cst_129 : f32 to vector<2x128xf32>
    %445 = arith.addf %444, %443 : vector<2x128xf32>
    %446 = arith.divf %444, %445 : vector<2x128xf32>
    %447 = vector.extract_strided_slice %438 {offsets = [0, 128], sizes = [2, 128], strides = [1, 1]} : vector<2x512xf32> to vector<2x128xf32>
    %448 = arith.negf %447 : vector<2x128xf32>
    %449 = math.exp %448 : vector<2x128xf32>
    %cst_130 = arith.constant 1.000000e+00 : f32
    %450 = vector.broadcast %cst_130 : f32 to vector<2x128xf32>
    %451 = arith.addf %450, %449 : vector<2x128xf32>
    %452 = arith.divf %450, %451 : vector<2x128xf32>
    %453 = vector.extract_strided_slice %438 {offsets = [0, 256], sizes = [2, 128], strides = [1, 1]} : vector<2x512xf32> to vector<2x128xf32>
    %454 = math.tanh %453 : vector<2x128xf32>
    %455 = vector.extract_strided_slice %438 {offsets = [0, 384], sizes = [2, 128], strides = [1, 1]} : vector<2x512xf32> to vector<2x128xf32>
    %456 = arith.negf %455 : vector<2x128xf32>
    %457 = math.exp %456 : vector<2x128xf32>
    %cst_131 = arith.constant 1.000000e+00 : f32
    %458 = vector.broadcast %cst_131 : f32 to vector<2x128xf32>
    %459 = arith.addf %458, %457 : vector<2x128xf32>
    %460 = arith.divf %458, %459 : vector<2x128xf32>
    %461 = arith.mulf %452, %377 : vector<2x128xf32>
    %462 = arith.mulf %446, %454 : vector<2x128xf32>
    %463 = arith.addf %461, %462 : vector<2x128xf32>
    %464 = math.tanh %463 : vector<2x128xf32>
    %465 = arith.mulf %460, %464 : vector<2x128xf32>
    %466 = vector.shape_cast %440 : vector<2x1xi1> to vector<2x1xi1>
    %467 = vector.broadcast %466 : vector<2x1xi1> to vector<2x128xi1>
    %468 = arith.select %467, %465, %374 : vector<2x128xi1>, vector<2x128xf32>
    %469 = vector.shape_cast %440 : vector<2x1xi1> to vector<2x1xi1>
    %470 = vector.broadcast %469 : vector<2x1xi1> to vector<2x128xi1>
    %471 = arith.select %470, %463, %377 : vector<2x128xi1>, vector<2x128xf32>
    %cst_132 = arith.constant 0.000000e+00 : f32
    %472 = vector.shape_cast %440 : vector<2x1xi1> to vector<2x1xi1>
    %473 = vector.broadcast %472 : vector<2x1xi1> to vector<2x128xi1>
    %474 = vector.broadcast %cst_132 : f32 to vector<2x128xf32>
    %475 = arith.select %473, %465, %474 : vector<2x128xi1>, vector<2x128xf32>
    %c0_133 = arith.constant 0 : index
    %c3_134 = arith.constant 3 : index
    %c0_135 = arith.constant 0 : index
    %476 = vector.load %arg7[%c0_133, %c3_134, %c0_135] : memref<2x8x128xf32, #tpu.memory_space<vmem>>, vector<2x1x128xf32>
    %477 = vector.shape_cast %476 : vector<2x1x128xf32> to vector<2x128xf32>
    %478 = vector.shape_cast %475 : vector<2x128xf32> to vector<2x1x128xf32>
    tpu.vector_store %arg7[%c0_133, %c3_134, %c0_135], %478 {strides = array<i32>} : memref<2x8x128xf32, #tpu.memory_space<vmem>>, vector<2x1x128xf32>,
    %c5_i32 = arith.constant 5 : i32
    %479 = arith.addi %4, %c5_i32 : i32
    %c0_136 = arith.constant 0 : index
    %c5_137 = arith.constant 5 : index
    %c0_138 = arith.constant 0 : index
    %480 = vector.load %arg2[%c0_136, %c5_137, %c0_138] : memref<2x8x1024xf32, #tpu.memory_space<vmem>>, vector<2x1x512xf32>
    %481 = vector.shape_cast %480 : vector<2x1x512xf32> to vector<2x512xf32>
    %482 = arith.truncf %421 : vector<2x128xf32> to vector<2x128xbf16>
    %c0_139 = arith.constant 0 : index
    %c0_140 = arith.constant 0 : index
    %483 = vector.load %arg4[%c0_139, %c0_140] : memref<128x512xbf16, #tpu.memory_space<vmem>>, vector<128x512xbf16>
    %cst_141 = arith.constant dense<0.000000e+00> : vector<2x512xf32>
    %484 = tpu.matmul %482, %483, %cst_141 {dimension_numbers = #tpu.dot_dimension_numbers<[1], [0], [0], [1], [0, 0, 1, 1], [], []>} : vector<2x128xbf16>, vector<128x512xbf16>, vector<2x512xf32> -> vector<2x512xf32>
    %485 = arith.addf %481, %484 : vector<2x512xf32>
    %486 = vector.broadcast %479 : i32 to vector<2x1xi32>
    %487 = arith.cmpi slt, %486, %3 : vector<2x1xi32>
    %488 = vector.extract_strided_slice %485 {offsets = [0, 0], sizes = [2, 128], strides = [1, 1]} : vector<2x512xf32> to vector<2x128xf32>
    %489 = arith.negf %488 : vector<2x128xf32>
    %490 = math.exp %489 : vector<2x128xf32>
    %cst_142 = arith.constant 1.000000e+00 : f32
    %491 = vector.broadcast %cst_142 : f32 to vector<2x128xf32>
    %492 = arith.addf %491, %490 : vector<2x128xf32>
    %493 = arith.divf %491, %492 : vector<2x128xf32>
    %494 = vector.extract_strided_slice %485 {offsets = [0, 128], sizes = [2, 128], strides = [1, 1]} : vector<2x512xf32> to vector<2x128xf32>
    %495 = arith.negf %494 : vector<2x128xf32>
    %496 = math.exp %495 : vector<2x128xf32>
    %cst_143 = arith.constant 1.000000e+00 : f32
    %497 = vector.broadcast %cst_143 : f32 to vector<2x128xf32>
    %498 = arith.addf %497, %496 : vector<2x128xf32>
    %499 = arith.divf %497, %498 : vector<2x128xf32>
    %500 = vector.extract_strided_slice %485 {offsets = [0, 256], sizes = [2, 128], strides = [1, 1]} : vector<2x512xf32> to vector<2x128xf32>
    %501 = math.tanh %500 : vector<2x128xf32>
    %502 = vector.extract_strided_slice %485 {offsets = [0, 384], sizes = [2, 128], strides = [1, 1]} : vector<2x512xf32> to vector<2x128xf32>
    %503 = arith.negf %502 : vector<2x128xf32>
    %504 = math.exp %503 : vector<2x128xf32>
    %cst_144 = arith.constant 1.000000e+00 : f32
    %505 = vector.broadcast %cst_144 : f32 to vector<2x128xf32>
    %506 = arith.addf %505, %504 : vector<2x128xf32>
    %507 = arith.divf %505, %506 : vector<2x128xf32>
    %508 = arith.mulf %499, %424 : vector<2x128xf32>
    %509 = arith.mulf %493, %501 : vector<2x128xf32>
    %510 = arith.addf %508, %509 : vector<2x128xf32>
    %511 = math.tanh %510 : vector<2x128xf32>
    %512 = arith.mulf %507, %511 : vector<2x128xf32>
    %513 = vector.shape_cast %487 : vector<2x1xi1> to vector<2x1xi1>
    %514 = vector.broadcast %513 : vector<2x1xi1> to vector<2x128xi1>
    %515 = arith.select %514, %512, %421 : vector<2x128xi1>, vector<2x128xf32>
    %516 = vector.shape_cast %487 : vector<2x1xi1> to vector<2x1xi1>
    %517 = vector.broadcast %516 : vector<2x1xi1> to vector<2x128xi1>
    %518 = arith.select %517, %510, %424 : vector<2x128xi1>, vector<2x128xf32>
    %cst_145 = arith.constant 0.000000e+00 : f32
    %519 = vector.shape_cast %487 : vector<2x1xi1> to vector<2x1xi1>
    %520 = vector.broadcast %519 : vector<2x1xi1> to vector<2x128xi1>
    %521 = vector.broadcast %cst_145 : f32 to vector<2x128xf32>
    %522 = arith.select %520, %512, %521 : vector<2x128xi1>, vector<2x128xf32>
    %c0_146 = arith.constant 0 : index
    %c5_147 = arith.constant 5 : index
    %c0_148 = arith.constant 0 : index
    %523 = vector.load %arg6[%c0_146, %c5_147, %c0_148] : memref<2x8x128xf32, #tpu.memory_space<vmem>>, vector<2x1x128xf32>
    %524 = vector.shape_cast %523 : vector<2x1x128xf32> to vector<2x128xf32>
    %525 = vector.shape_cast %522 : vector<2x128xf32> to vector<2x1x128xf32>
    tpu.vector_store %arg6[%c0_146, %c5_147, %c0_148], %525 {strides = array<i32>} : memref<2x8x128xf32, #tpu.memory_space<vmem>>, vector<2x1x128xf32>,
    %c7_i32_149 = arith.constant 7 : i32
    %526 = arith.subi %c7_i32_149, %479 : i32
    %c0_150 = arith.constant 0 : index
    %c2_151 = arith.constant 2 : index
    %c512_152 = arith.constant 512 : index
    %527 = vector.load %arg3[%c0_150, %c2_151, %c512_152] : memref<2x8x1024xf32, #tpu.memory_space<vmem>>, vector<2x1x512xf32>
    %528 = vector.shape_cast %527 : vector<2x1x512xf32> to vector<2x512xf32>
    %529 = arith.truncf %468 : vector<2x128xf32> to vector<2x128xbf16>
    %c0_153 = arith.constant 0 : index
    %c0_154 = arith.constant 0 : index
    %530 = vector.load %arg5[%c0_153, %c0_154] : memref<128x512xbf16, #tpu.memory_space<vmem>>, vector<128x512xbf16>
    %cst_155 = arith.constant dense<0.000000e+00> : vector<2x512xf32>
    %531 = tpu.matmul %529, %530, %cst_155 {dimension_numbers = #tpu.dot_dimension_numbers<[1], [0], [0], [1], [0, 0, 1, 1], [], []>} : vector<2x128xbf16>, vector<128x512xbf16>, vector<2x512xf32> -> vector<2x512xf32>
    %532 = arith.addf %528, %531 : vector<2x512xf32>
    %533 = vector.broadcast %526 : i32 to vector<2x1xi32>
    %534 = arith.cmpi slt, %533, %3 : vector<2x1xi32>
    %535 = vector.extract_strided_slice %532 {offsets = [0, 0], sizes = [2, 128], strides = [1, 1]} : vector<2x512xf32> to vector<2x128xf32>
    %536 = arith.negf %535 : vector<2x128xf32>
    %537 = math.exp %536 : vector<2x128xf32>
    %cst_156 = arith.constant 1.000000e+00 : f32
    %538 = vector.broadcast %cst_156 : f32 to vector<2x128xf32>
    %539 = arith.addf %538, %537 : vector<2x128xf32>
    %540 = arith.divf %538, %539 : vector<2x128xf32>
    %541 = vector.extract_strided_slice %532 {offsets = [0, 128], sizes = [2, 128], strides = [1, 1]} : vector<2x512xf32> to vector<2x128xf32>
    %542 = arith.negf %541 : vector<2x128xf32>
    %543 = math.exp %542 : vector<2x128xf32>
    %cst_157 = arith.constant 1.000000e+00 : f32
    %544 = vector.broadcast %cst_157 : f32 to vector<2x128xf32>
    %545 = arith.addf %544, %543 : vector<2x128xf32>
    %546 = arith.divf %544, %545 : vector<2x128xf32>
    %547 = vector.extract_strided_slice %532 {offsets = [0, 256], sizes = [2, 128], strides = [1, 1]} : vector<2x512xf32> to vector<2x128xf32>
    %548 = math.tanh %547 : vector<2x128xf32>
    %549 = vector.extract_strided_slice %532 {offsets = [0, 384], sizes = [2, 128], strides = [1, 1]} : vector<2x512xf32> to vector<2x128xf32>
    %550 = arith.negf %549 : vector<2x128xf32>
    %551 = math.exp %550 : vector<2x128xf32>
    %cst_158 = arith.constant 1.000000e+00 : f32
    %552 = vector.broadcast %cst_158 : f32 to vector<2x128xf32>
    %553 = arith.addf %552, %551 : vector<2x128xf32>
    %554 = arith.divf %552, %553 : vector<2x128xf32>
    %555 = arith.mulf %546, %471 : vector<2x128xf32>
    %556 = arith.mulf %540, %548 : vector<2x128xf32>
    %557 = arith.addf %555, %556 : vector<2x128xf32>
    %558 = math.tanh %557 : vector<2x128xf32>
    %559 = arith.mulf %554, %558 : vector<2x128xf32>
    %560 = vector.shape_cast %534 : vector<2x1xi1> to vector<2x1xi1>
    %561 = vector.broadcast %560 : vector<2x1xi1> to vector<2x128xi1>
    %562 = arith.select %561, %559, %468 : vector<2x128xi1>, vector<2x128xf32>
    %563 = vector.shape_cast %534 : vector<2x1xi1> to vector<2x1xi1>
    %564 = vector.broadcast %563 : vector<2x1xi1> to vector<2x128xi1>
    %565 = arith.select %564, %557, %471 : vector<2x128xi1>, vector<2x128xf32>
    %cst_159 = arith.constant 0.000000e+00 : f32
    %566 = vector.shape_cast %534 : vector<2x1xi1> to vector<2x1xi1>
    %567 = vector.broadcast %566 : vector<2x1xi1> to vector<2x128xi1>
    %568 = vector.broadcast %cst_159 : f32 to vector<2x128xf32>
    %569 = arith.select %567, %559, %568 : vector<2x128xi1>, vector<2x128xf32>
    %c0_160 = arith.constant 0 : index
    %c2_161 = arith.constant 2 : index
    %c0_162 = arith.constant 0 : index
    %570 = vector.load %arg7[%c0_160, %c2_161, %c0_162] : memref<2x8x128xf32, #tpu.memory_space<vmem>>, vector<2x1x128xf32>
    %571 = vector.shape_cast %570 : vector<2x1x128xf32> to vector<2x128xf32>
    %572 = vector.shape_cast %569 : vector<2x128xf32> to vector<2x1x128xf32>
    tpu.vector_store %arg7[%c0_160, %c2_161, %c0_162], %572 {strides = array<i32>} : memref<2x8x128xf32, #tpu.memory_space<vmem>>, vector<2x1x128xf32>,
    %c6_i32 = arith.constant 6 : i32
    %573 = arith.addi %4, %c6_i32 : i32
    %c0_163 = arith.constant 0 : index
    %c6_164 = arith.constant 6 : index
    %c0_165 = arith.constant 0 : index
    %574 = vector.load %arg2[%c0_163, %c6_164, %c0_165] : memref<2x8x1024xf32, #tpu.memory_space<vmem>>, vector<2x1x512xf32>
    %575 = vector.shape_cast %574 : vector<2x1x512xf32> to vector<2x512xf32>
    %576 = arith.truncf %515 : vector<2x128xf32> to vector<2x128xbf16>
    %c0_166 = arith.constant 0 : index
    %c0_167 = arith.constant 0 : index
    %577 = vector.load %arg4[%c0_166, %c0_167] : memref<128x512xbf16, #tpu.memory_space<vmem>>, vector<128x512xbf16>
    %cst_168 = arith.constant dense<0.000000e+00> : vector<2x512xf32>
    %578 = tpu.matmul %576, %577, %cst_168 {dimension_numbers = #tpu.dot_dimension_numbers<[1], [0], [0], [1], [0, 0, 1, 1], [], []>} : vector<2x128xbf16>, vector<128x512xbf16>, vector<2x512xf32> -> vector<2x512xf32>
    %579 = arith.addf %575, %578 : vector<2x512xf32>
    %580 = vector.broadcast %573 : i32 to vector<2x1xi32>
    %581 = arith.cmpi slt, %580, %3 : vector<2x1xi32>
    %582 = vector.extract_strided_slice %579 {offsets = [0, 0], sizes = [2, 128], strides = [1, 1]} : vector<2x512xf32> to vector<2x128xf32>
    %583 = arith.negf %582 : vector<2x128xf32>
    %584 = math.exp %583 : vector<2x128xf32>
    %cst_169 = arith.constant 1.000000e+00 : f32
    %585 = vector.broadcast %cst_169 : f32 to vector<2x128xf32>
    %586 = arith.addf %585, %584 : vector<2x128xf32>
    %587 = arith.divf %585, %586 : vector<2x128xf32>
    %588 = vector.extract_strided_slice %579 {offsets = [0, 128], sizes = [2, 128], strides = [1, 1]} : vector<2x512xf32> to vector<2x128xf32>
    %589 = arith.negf %588 : vector<2x128xf32>
    %590 = math.exp %589 : vector<2x128xf32>
    %cst_170 = arith.constant 1.000000e+00 : f32
    %591 = vector.broadcast %cst_170 : f32 to vector<2x128xf32>
    %592 = arith.addf %591, %590 : vector<2x128xf32>
    %593 = arith.divf %591, %592 : vector<2x128xf32>
    %594 = vector.extract_strided_slice %579 {offsets = [0, 256], sizes = [2, 128], strides = [1, 1]} : vector<2x512xf32> to vector<2x128xf32>
    %595 = math.tanh %594 : vector<2x128xf32>
    %596 = vector.extract_strided_slice %579 {offsets = [0, 384], sizes = [2, 128], strides = [1, 1]} : vector<2x512xf32> to vector<2x128xf32>
    %597 = arith.negf %596 : vector<2x128xf32>
    %598 = math.exp %597 : vector<2x128xf32>
    %cst_171 = arith.constant 1.000000e+00 : f32
    %599 = vector.broadcast %cst_171 : f32 to vector<2x128xf32>
    %600 = arith.addf %599, %598 : vector<2x128xf32>
    %601 = arith.divf %599, %600 : vector<2x128xf32>
    %602 = arith.mulf %593, %518 : vector<2x128xf32>
    %603 = arith.mulf %587, %595 : vector<2x128xf32>
    %604 = arith.addf %602, %603 : vector<2x128xf32>
    %605 = math.tanh %604 : vector<2x128xf32>
    %606 = arith.mulf %601, %605 : vector<2x128xf32>
    %607 = vector.shape_cast %581 : vector<2x1xi1> to vector<2x1xi1>
    %608 = vector.broadcast %607 : vector<2x1xi1> to vector<2x128xi1>
    %609 = arith.select %608, %606, %515 : vector<2x128xi1>, vector<2x128xf32>
    %610 = vector.shape_cast %581 : vector<2x1xi1> to vector<2x1xi1>
    %611 = vector.broadcast %610 : vector<2x1xi1> to vector<2x128xi1>
    %612 = arith.select %611, %604, %518 : vector<2x128xi1>, vector<2x128xf32>
    %cst_172 = arith.constant 0.000000e+00 : f32
    %613 = vector.shape_cast %581 : vector<2x1xi1> to vector<2x1xi1>
    %614 = vector.broadcast %613 : vector<2x1xi1> to vector<2x128xi1>
    %615 = vector.broadcast %cst_172 : f32 to vector<2x128xf32>
    %616 = arith.select %614, %606, %615 : vector<2x128xi1>, vector<2x128xf32>
    %c0_173 = arith.constant 0 : index
    %c6_174 = arith.constant 6 : index
    %c0_175 = arith.constant 0 : index
    %617 = vector.load %arg6[%c0_173, %c6_174, %c0_175] : memref<2x8x128xf32, #tpu.memory_space<vmem>>, vector<2x1x128xf32>
    %618 = vector.shape_cast %617 : vector<2x1x128xf32> to vector<2x128xf32>
    %619 = vector.shape_cast %616 : vector<2x128xf32> to vector<2x1x128xf32>
    tpu.vector_store %arg6[%c0_173, %c6_174, %c0_175], %619 {strides = array<i32>} : memref<2x8x128xf32, #tpu.memory_space<vmem>>, vector<2x1x128xf32>,
    %c7_i32_176 = arith.constant 7 : i32
    %620 = arith.subi %c7_i32_176, %573 : i32
    %c0_177 = arith.constant 0 : index
    %c1_178 = arith.constant 1 : index
    %c512_179 = arith.constant 512 : index
    %621 = vector.load %arg3[%c0_177, %c1_178, %c512_179] : memref<2x8x1024xf32, #tpu.memory_space<vmem>>, vector<2x1x512xf32>
    %622 = vector.shape_cast %621 : vector<2x1x512xf32> to vector<2x512xf32>
    %623 = arith.truncf %562 : vector<2x128xf32> to vector<2x128xbf16>
    %c0_180 = arith.constant 0 : index
    %c0_181 = arith.constant 0 : index
    %624 = vector.load %arg5[%c0_180, %c0_181] : memref<128x512xbf16, #tpu.memory_space<vmem>>, vector<128x512xbf16>
    %cst_182 = arith.constant dense<0.000000e+00> : vector<2x512xf32>
    %625 = tpu.matmul %623, %624, %cst_182 {dimension_numbers = #tpu.dot_dimension_numbers<[1], [0], [0], [1], [0, 0, 1, 1], [], []>} : vector<2x128xbf16>, vector<128x512xbf16>, vector<2x512xf32> -> vector<2x512xf32>
    %626 = arith.addf %622, %625 : vector<2x512xf32>
    %627 = vector.broadcast %620 : i32 to vector<2x1xi32>
    %628 = arith.cmpi slt, %627, %3 : vector<2x1xi32>
    %629 = vector.extract_strided_slice %626 {offsets = [0, 0], sizes = [2, 128], strides = [1, 1]} : vector<2x512xf32> to vector<2x128xf32>
    %630 = arith.negf %629 : vector<2x128xf32>
    %631 = math.exp %630 : vector<2x128xf32>
    %cst_183 = arith.constant 1.000000e+00 : f32
    %632 = vector.broadcast %cst_183 : f32 to vector<2x128xf32>
    %633 = arith.addf %632, %631 : vector<2x128xf32>
    %634 = arith.divf %632, %633 : vector<2x128xf32>
    %635 = vector.extract_strided_slice %626 {offsets = [0, 128], sizes = [2, 128], strides = [1, 1]} : vector<2x512xf32> to vector<2x128xf32>
    %636 = arith.negf %635 : vector<2x128xf32>
    %637 = math.exp %636 : vector<2x128xf32>
    %cst_184 = arith.constant 1.000000e+00 : f32
    %638 = vector.broadcast %cst_184 : f32 to vector<2x128xf32>
    %639 = arith.addf %638, %637 : vector<2x128xf32>
    %640 = arith.divf %638, %639 : vector<2x128xf32>
    %641 = vector.extract_strided_slice %626 {offsets = [0, 256], sizes = [2, 128], strides = [1, 1]} : vector<2x512xf32> to vector<2x128xf32>
    %642 = math.tanh %641 : vector<2x128xf32>
    %643 = vector.extract_strided_slice %626 {offsets = [0, 384], sizes = [2, 128], strides = [1, 1]} : vector<2x512xf32> to vector<2x128xf32>
    %644 = arith.negf %643 : vector<2x128xf32>
    %645 = math.exp %644 : vector<2x128xf32>
    %cst_185 = arith.constant 1.000000e+00 : f32
    %646 = vector.broadcast %cst_185 : f32 to vector<2x128xf32>
    %647 = arith.addf %646, %645 : vector<2x128xf32>
    %648 = arith.divf %646, %647 : vector<2x128xf32>
    %649 = arith.mulf %640, %565 : vector<2x128xf32>
    %650 = arith.mulf %634, %642 : vector<2x128xf32>
    %651 = arith.addf %649, %650 : vector<2x128xf32>
    %652 = math.tanh %651 : vector<2x128xf32>
    %653 = arith.mulf %648, %652 : vector<2x128xf32>
    %654 = vector.shape_cast %628 : vector<2x1xi1> to vector<2x1xi1>
    %655 = vector.broadcast %654 : vector<2x1xi1> to vector<2x128xi1>
    %656 = arith.select %655, %653, %562 : vector<2x128xi1>, vector<2x128xf32>
    %657 = vector.shape_cast %628 : vector<2x1xi1> to vector<2x1xi1>
    %658 = vector.broadcast %657 : vector<2x1xi1> to vector<2x128xi1>
    %659 = arith.select %658, %651, %565 : vector<2x128xi1>, vector<2x128xf32>
    %cst_186 = arith.constant 0.000000e+00 : f32
    %660 = vector.shape_cast %628 : vector<2x1xi1> to vector<2x1xi1>
    %661 = vector.broadcast %660 : vector<2x1xi1> to vector<2x128xi1>
    %662 = vector.broadcast %cst_186 : f32 to vector<2x128xf32>
    %663 = arith.select %661, %653, %662 : vector<2x128xi1>, vector<2x128xf32>
    %c0_187 = arith.constant 0 : index
    %c1_188 = arith.constant 1 : index
    %c0_189 = arith.constant 0 : index
    %664 = vector.load %arg7[%c0_187, %c1_188, %c0_189] : memref<2x8x128xf32, #tpu.memory_space<vmem>>, vector<2x1x128xf32>
    %665 = vector.shape_cast %664 : vector<2x1x128xf32> to vector<2x128xf32>
    %666 = vector.shape_cast %663 : vector<2x128xf32> to vector<2x1x128xf32>
    tpu.vector_store %arg7[%c0_187, %c1_188, %c0_189], %666 {strides = array<i32>} : memref<2x8x128xf32, #tpu.memory_space<vmem>>, vector<2x1x128xf32>,
    %c7_i32_190 = arith.constant 7 : i32
    %667 = arith.addi %4, %c7_i32_190 : i32
    %c0_191 = arith.constant 0 : index
    %c7_192 = arith.constant 7 : index
    %c0_193 = arith.constant 0 : index
    %668 = vector.load %arg2[%c0_191, %c7_192, %c0_193] : memref<2x8x1024xf32, #tpu.memory_space<vmem>>, vector<2x1x512xf32>
    %669 = vector.shape_cast %668 : vector<2x1x512xf32> to vector<2x512xf32>
    %670 = arith.truncf %609 : vector<2x128xf32> to vector<2x128xbf16>
    %c0_194 = arith.constant 0 : index
    %c0_195 = arith.constant 0 : index
    %671 = vector.load %arg4[%c0_194, %c0_195] : memref<128x512xbf16, #tpu.memory_space<vmem>>, vector<128x512xbf16>
    %cst_196 = arith.constant dense<0.000000e+00> : vector<2x512xf32>
    %672 = tpu.matmul %670, %671, %cst_196 {dimension_numbers = #tpu.dot_dimension_numbers<[1], [0], [0], [1], [0, 0, 1, 1], [], []>} : vector<2x128xbf16>, vector<128x512xbf16>, vector<2x512xf32> -> vector<2x512xf32>
    %673 = arith.addf %669, %672 : vector<2x512xf32>
    %674 = vector.broadcast %667 : i32 to vector<2x1xi32>
    %675 = arith.cmpi slt, %674, %3 : vector<2x1xi32>
    %676 = vector.extract_strided_slice %673 {offsets = [0, 0], sizes = [2, 128], strides = [1, 1]} : vector<2x512xf32> to vector<2x128xf32>
    %677 = arith.negf %676 : vector<2x128xf32>
    %678 = math.exp %677 : vector<2x128xf32>
    %cst_197 = arith.constant 1.000000e+00 : f32
    %679 = vector.broadcast %cst_197 : f32 to vector<2x128xf32>
    %680 = arith.addf %679, %678 : vector<2x128xf32>
    %681 = arith.divf %679, %680 : vector<2x128xf32>
    %682 = vector.extract_strided_slice %673 {offsets = [0, 128], sizes = [2, 128], strides = [1, 1]} : vector<2x512xf32> to vector<2x128xf32>
    %683 = arith.negf %682 : vector<2x128xf32>
    %684 = math.exp %683 : vector<2x128xf32>
    %cst_198 = arith.constant 1.000000e+00 : f32
    %685 = vector.broadcast %cst_198 : f32 to vector<2x128xf32>
    %686 = arith.addf %685, %684 : vector<2x128xf32>
    %687 = arith.divf %685, %686 : vector<2x128xf32>
    %688 = vector.extract_strided_slice %673 {offsets = [0, 256], sizes = [2, 128], strides = [1, 1]} : vector<2x512xf32> to vector<2x128xf32>
    %689 = math.tanh %688 : vector<2x128xf32>
    %690 = vector.extract_strided_slice %673 {offsets = [0, 384], sizes = [2, 128], strides = [1, 1]} : vector<2x512xf32> to vector<2x128xf32>
    %691 = arith.negf %690 : vector<2x128xf32>
    %692 = math.exp %691 : vector<2x128xf32>
    %cst_199 = arith.constant 1.000000e+00 : f32
    %693 = vector.broadcast %cst_199 : f32 to vector<2x128xf32>
    %694 = arith.addf %693, %692 : vector<2x128xf32>
    %695 = arith.divf %693, %694 : vector<2x128xf32>
    %696 = arith.mulf %687, %612 : vector<2x128xf32>
    %697 = arith.mulf %681, %689 : vector<2x128xf32>
    %698 = arith.addf %696, %697 : vector<2x128xf32>
    %699 = math.tanh %698 : vector<2x128xf32>
    %700 = arith.mulf %695, %699 : vector<2x128xf32>
    %701 = vector.shape_cast %675 : vector<2x1xi1> to vector<2x1xi1>
    %702 = vector.broadcast %701 : vector<2x1xi1> to vector<2x128xi1>
    %703 = arith.select %702, %700, %609 : vector<2x128xi1>, vector<2x128xf32>
    %704 = vector.shape_cast %675 : vector<2x1xi1> to vector<2x1xi1>
    %705 = vector.broadcast %704 : vector<2x1xi1> to vector<2x128xi1>
    %706 = arith.select %705, %698, %612 : vector<2x128xi1>, vector<2x128xf32>
    %cst_200 = arith.constant 0.000000e+00 : f32
    %707 = vector.shape_cast %675 : vector<2x1xi1> to vector<2x1xi1>
    %708 = vector.broadcast %707 : vector<2x1xi1> to vector<2x128xi1>
    %709 = vector.broadcast %cst_200 : f32 to vector<2x128xf32>
    %710 = arith.select %708, %700, %709 : vector<2x128xi1>, vector<2x128xf32>
    %c0_201 = arith.constant 0 : index
    %c7_202 = arith.constant 7 : index
    %c0_203 = arith.constant 0 : index
    %711 = vector.load %arg6[%c0_201, %c7_202, %c0_203] : memref<2x8x128xf32, #tpu.memory_space<vmem>>, vector<2x1x128xf32>
    %712 = vector.shape_cast %711 : vector<2x1x128xf32> to vector<2x128xf32>
    %713 = vector.shape_cast %710 : vector<2x128xf32> to vector<2x1x128xf32>
    tpu.vector_store %arg6[%c0_201, %c7_202, %c0_203], %713 {strides = array<i32>} : memref<2x8x128xf32, #tpu.memory_space<vmem>>, vector<2x1x128xf32>,
    %c7_i32_204 = arith.constant 7 : i32
    %714 = arith.subi %c7_i32_204, %667 : i32
    %c0_205 = arith.constant 0 : index
    %c0_206 = arith.constant 0 : index
    %c512_207 = arith.constant 512 : index
    %715 = vector.load %arg3[%c0_205, %c0_206, %c512_207] : memref<2x8x1024xf32, #tpu.memory_space<vmem>>, vector<2x1x512xf32>
    %716 = vector.shape_cast %715 : vector<2x1x512xf32> to vector<2x512xf32>
    %717 = arith.truncf %656 : vector<2x128xf32> to vector<2x128xbf16>
    %c0_208 = arith.constant 0 : index
    %c0_209 = arith.constant 0 : index
    %718 = vector.load %arg5[%c0_208, %c0_209] : memref<128x512xbf16, #tpu.memory_space<vmem>>, vector<128x512xbf16>
    %cst_210 = arith.constant dense<0.000000e+00> : vector<2x512xf32>
    %719 = tpu.matmul %717, %718, %cst_210 {dimension_numbers = #tpu.dot_dimension_numbers<[1], [0], [0], [1], [0, 0, 1, 1], [], []>} : vector<2x128xbf16>, vector<128x512xbf16>, vector<2x512xf32> -> vector<2x512xf32>
    %720 = arith.addf %716, %719 : vector<2x512xf32>
    %721 = vector.broadcast %714 : i32 to vector<2x1xi32>
    %722 = arith.cmpi slt, %721, %3 : vector<2x1xi32>
    %723 = vector.extract_strided_slice %720 {offsets = [0, 0], sizes = [2, 128], strides = [1, 1]} : vector<2x512xf32> to vector<2x128xf32>
    %724 = arith.negf %723 : vector<2x128xf32>
    %725 = math.exp %724 : vector<2x128xf32>
    %cst_211 = arith.constant 1.000000e+00 : f32
    %726 = vector.broadcast %cst_211 : f32 to vector<2x128xf32>
    %727 = arith.addf %726, %725 : vector<2x128xf32>
    %728 = arith.divf %726, %727 : vector<2x128xf32>
    %729 = vector.extract_strided_slice %720 {offsets = [0, 128], sizes = [2, 128], strides = [1, 1]} : vector<2x512xf32> to vector<2x128xf32>
    %730 = arith.negf %729 : vector<2x128xf32>
    %731 = math.exp %730 : vector<2x128xf32>
    %cst_212 = arith.constant 1.000000e+00 : f32
    %732 = vector.broadcast %cst_212 : f32 to vector<2x128xf32>
    %733 = arith.addf %732, %731 : vector<2x128xf32>
    %734 = arith.divf %732, %733 : vector<2x128xf32>
    %735 = vector.extract_strided_slice %720 {offsets = [0, 256], sizes = [2, 128], strides = [1, 1]} : vector<2x512xf32> to vector<2x128xf32>
    %736 = math.tanh %735 : vector<2x128xf32>
    %737 = vector.extract_strided_slice %720 {offsets = [0, 384], sizes = [2, 128], strides = [1, 1]} : vector<2x512xf32> to vector<2x128xf32>
    %738 = arith.negf %737 : vector<2x128xf32>
    %739 = math.exp %738 : vector<2x128xf32>
    %cst_213 = arith.constant 1.000000e+00 : f32
    %740 = vector.broadcast %cst_213 : f32 to vector<2x128xf32>
    %741 = arith.addf %740, %739 : vector<2x128xf32>
    %742 = arith.divf %740, %741 : vector<2x128xf32>
    %743 = arith.mulf %734, %659 : vector<2x128xf32>
    %744 = arith.mulf %728, %736 : vector<2x128xf32>
    %745 = arith.addf %743, %744 : vector<2x128xf32>
    %746 = math.tanh %745 : vector<2x128xf32>
    %747 = arith.mulf %742, %746 : vector<2x128xf32>
    %748 = vector.shape_cast %722 : vector<2x1xi1> to vector<2x1xi1>
    %749 = vector.broadcast %748 : vector<2x1xi1> to vector<2x128xi1>
    %750 = arith.select %749, %747, %656 : vector<2x128xi1>, vector<2x128xf32>
    %751 = vector.shape_cast %722 : vector<2x1xi1> to vector<2x1xi1>
    %752 = vector.broadcast %751 : vector<2x1xi1> to vector<2x128xi1>
    %753 = arith.select %752, %745, %659 : vector<2x128xi1>, vector<2x128xf32>
    %cst_214 = arith.constant 0.000000e+00 : f32
    %754 = vector.shape_cast %722 : vector<2x1xi1> to vector<2x1xi1>
    %755 = vector.broadcast %754 : vector<2x1xi1> to vector<2x128xi1>
    %756 = vector.broadcast %cst_214 : f32 to vector<2x128xf32>
    %757 = arith.select %755, %747, %756 : vector<2x128xi1>, vector<2x128xf32>
    %c0_215 = arith.constant 0 : index
    %c0_216 = arith.constant 0 : index
    %c0_217 = arith.constant 0 : index
    %758 = vector.load %arg7[%c0_215, %c0_216, %c0_217] : memref<2x8x128xf32, #tpu.memory_space<vmem>>, vector<2x1x128xf32>
    %759 = vector.shape_cast %758 : vector<2x1x128xf32> to vector<2x128xf32>
    %760 = vector.shape_cast %757 : vector<2x128xf32> to vector<2x1x128xf32>
    tpu.vector_store %arg7[%c0_215, %c0_216, %c0_217], %760 {strides = array<i32>} : memref<2x8x128xf32, #tpu.memory_space<vmem>>, vector<2x1x128xf32>,
    %c0_218 = arith.constant 0 : index
    %c0_219 = arith.constant 0 : index
    %761 = vector.load %arg8[%c0_218, %c0_219] : memref<2x128xf32, #tpu.memory_space<vmem>>, vector<2x128xf32>
    tpu.vector_store %arg8[%c0_218, %c0_219], %703 {strides = array<i32>} : memref<2x128xf32, #tpu.memory_space<vmem>>, vector<2x128xf32>,
    %c0_220 = arith.constant 0 : index
    %c0_221 = arith.constant 0 : index
    %762 = vector.load %arg9[%c0_220, %c0_221] : memref<2x128xf32, #tpu.memory_space<vmem>>, vector<2x128xf32>
    tpu.vector_store %arg9[%c0_220, %c0_221], %706 {strides = array<i32>} : memref<2x128xf32, #tpu.memory_space<vmem>>, vector<2x128xf32>,
    %c0_222 = arith.constant 0 : index
    %c0_223 = arith.constant 0 : index
    %763 = vector.load %arg10[%c0_222, %c0_223] : memref<2x128xf32, #tpu.memory_space<vmem>>, vector<2x128xf32>
    tpu.vector_store %arg10[%c0_222, %c0_223], %750 {strides = array<i32>} : memref<2x128xf32, #tpu.memory_space<vmem>>, vector<2x128xf32>,
    %c0_224 = arith.constant 0 : index
    %c0_225 = arith.constant 0 : index
    %764 = vector.load %arg11[%c0_224, %c0_225] : memref<2x128xf32, #tpu.memory_space<vmem>>, vector<2x128xf32>
    tpu.vector_store %arg11[%c0_224, %c0_225], %753 {strides = array<i32>} : memref<2x128xf32, #tpu.memory_space<vmem>>, vector<2x128xf32>,
    return
  }
  func.func @transform_0(%arg0: i32) -> (i32, i32) {
    %c0_i32 = arith.constant 0 : i32
    %c0_i32_0 = arith.constant 0 : i32
    %c0_i32_1 = arith.constant 0 : i32
    return %c0_i32, %c0_i32_0 : i32, i32
  }
  func.func @transform_1(%arg0: i32) -> (i32, i32, i32) {
    %c0_i32 = arith.constant 0 : i32
    %c0_i32_0 = arith.constant 0 : i32
    %c0_i32_1 = arith.constant 0 : i32
    return %c0_i32, %arg0, %c0_i32_0 : i32, i32, i32
  }
  func.func @transform_2(%arg0: i32) -> (i32, i32, i32) {
    %c0_i32 = arith.constant 0 : i32
    %0 = arith.subi %c0_i32, %arg0 : i32
    %c0_i32_0 = arith.constant 0 : i32
    %c0_i32_1 = arith.constant 0 : i32
    %c0_i32_2 = arith.constant 0 : i32
    return %c0_i32_0, %0, %c0_i32_1 : i32, i32, i32
  }
  func.func @transform_3(%arg0: i32) -> (i32, i32) {
    %c0_i32 = arith.constant 0 : i32
    %c0_i32_0 = arith.constant 0 : i32
    %c0_i32_1 = arith.constant 0 : i32
    return %c0_i32, %c0_i32_0 : i32, i32
  }
  func.func @transform_4(%arg0: i32) -> (i32, i32) {
    %c0_i32 = arith.constant 0 : i32
    %c0_i32_0 = arith.constant 0 : i32
    %c0_i32_1 = arith.constant 0 : i32
    return %c0_i32, %c0_i32_0 : i32, i32
  }
  func.func @transform_5(%arg0: i32) -> (i32, i32, i32) {
    %c0_i32 = arith.constant 0 : i32
    %c0_i32_0 = arith.constant 0 : i32
    %c0_i32_1 = arith.constant 0 : i32
    return %c0_i32, %arg0, %c0_i32_0 : i32, i32, i32
  }
  func.func @transform_6(%arg0: i32) -> (i32, i32, i32) {
    %c0_i32 = arith.constant 0 : i32
    %0 = arith.subi %c0_i32, %arg0 : i32
    %c0_i32_0 = arith.constant 0 : i32
    %c0_i32_1 = arith.constant 0 : i32
    %c0_i32_2 = arith.constant 0 : i32
    return %c0_i32_0, %0, %c0_i32_1 : i32, i32, i32
  }
}

module attributes {stable_mosaic.version = 11 : i64} {
  func.func @_masked_log_softmax_kernel(%arg0: memref<2x8xf32, #tpu.memory_space<vmem>>, %arg1: memref<2x8xf32, #tpu.memory_space<vmem>>, %arg2: memref<2x8xf32, #tpu.memory_space<vmem>>, %arg3: memref<2x8xf32, #tpu.memory_space<vmem>>, %arg4: memref<2x8xf32, #tpu.memory_space<vmem>>) attributes {dimension_semantics = [], scalar_prefetch = 0 : i64, scratch_operands = 0 : i64, tpu.core_type = #tpu.core_type<tc>} {
    %c0 = arith.constant 0 : index
    %c0_0 = arith.constant 0 : index
    %0 = vector.load %arg2[%c0, %c0_0] : memref<2x8xf32, #tpu.memory_space<vmem>>, vector<2x8xf32>
    %c0_1 = arith.constant 0 : index
    %c0_2 = arith.constant 0 : index
    %1 = vector.load %arg0[%c0_1, %c0_2] : memref<2x8xf32, #tpu.memory_space<vmem>>, vector<2x8xf32>
    %2 = arith.mulf %0, %1 : vector<2x8xf32>
    %cst = arith.constant 1.000000e+00 : f32
    %3 = vector.broadcast %cst : f32 to vector<2x8xf32>
    %4 = arith.subf %3, %0 : vector<2x8xf32>
    %cst_3 = arith.constant -1.000000e+30 : f32
    %5 = vector.broadcast %cst_3 : f32 to vector<2x8xf32>
    %6 = arith.mulf %4, %5 : vector<2x8xf32>
    %7 = arith.addf %2, %6 : vector<2x8xf32>
    %cst_4 = arith.constant dense<0xFF800000> : vector<2xf32>
    %8 = vector.multi_reduction <maximumf>, %7, %cst_4 [1] : vector<2x8xf32> to vector<2xf32>
    %9 = vector.shape_cast %8 : vector<2xf32> to vector<2x1xf32>
    %10 = vector.broadcast %9 : vector<2x1xf32> to vector<2x8xf32>
    %11 = arith.subf %7, %10 : vector<2x8xf32>
    %12 = math.exp %11 : vector<2x8xf32>
    %cst_5 = arith.constant dense<0.000000e+00> : vector<2xf32>
    %13 = vector.multi_reduction <add>, %12, %cst_5 [1] : vector<2x8xf32> to vector<2xf32>
    %14 = vector.shape_cast %13 : vector<2xf32> to vector<2x1xf32>
    %15 = math.log %14 : vector<2x1xf32>
    %16 = arith.addf %9, %15 : vector<2x1xf32>
    %17 = vector.broadcast %16 : vector<2x1xf32> to vector<2x8xf32>
    %18 = arith.subf %7, %17 : vector<2x8xf32>
    %c0_6 = arith.constant 0 : index
    %c0_7 = arith.constant 0 : index
    %19 = vector.load %arg3[%c0_6, %c0_7] : memref<2x8xf32, #tpu.memory_space<vmem>>, vector<2x8xf32>
    tpu.vector_store %arg3[%c0_6, %c0_7], %18 {strides = array<i32>} : memref<2x8xf32, #tpu.memory_space<vmem>>, vector<2x8xf32>,
    %c0_8 = arith.constant 0 : index
    %c0_9 = arith.constant 0 : index
    %20 = vector.load %arg1[%c0_8, %c0_9] : memref<2x8xf32, #tpu.memory_space<vmem>>, vector<2x8xf32>
    %21 = arith.mulf %0, %20 : vector<2x8xf32>
    %cst_10 = arith.constant 1.000000e+00 : f32
    %22 = vector.broadcast %cst_10 : f32 to vector<2x8xf32>
    %23 = arith.subf %22, %0 : vector<2x8xf32>
    %cst_11 = arith.constant -1.000000e+30 : f32
    %24 = vector.broadcast %cst_11 : f32 to vector<2x8xf32>
    %25 = arith.mulf %23, %24 : vector<2x8xf32>
    %26 = arith.addf %21, %25 : vector<2x8xf32>
    %cst_12 = arith.constant dense<0xFF800000> : vector<2xf32>
    %27 = vector.multi_reduction <maximumf>, %26, %cst_12 [1] : vector<2x8xf32> to vector<2xf32>
    %28 = vector.shape_cast %27 : vector<2xf32> to vector<2x1xf32>
    %29 = vector.broadcast %28 : vector<2x1xf32> to vector<2x8xf32>
    %30 = arith.subf %26, %29 : vector<2x8xf32>
    %31 = math.exp %30 : vector<2x8xf32>
    %cst_13 = arith.constant dense<0.000000e+00> : vector<2xf32>
    %32 = vector.multi_reduction <add>, %31, %cst_13 [1] : vector<2x8xf32> to vector<2xf32>
    %33 = vector.shape_cast %32 : vector<2xf32> to vector<2x1xf32>
    %34 = math.log %33 : vector<2x1xf32>
    %35 = arith.addf %28, %34 : vector<2x1xf32>
    %36 = vector.broadcast %35 : vector<2x1xf32> to vector<2x8xf32>
    %37 = arith.subf %26, %36 : vector<2x8xf32>
    %c0_14 = arith.constant 0 : index
    %c0_15 = arith.constant 0 : index
    %38 = vector.load %arg4[%c0_14, %c0_15] : memref<2x8xf32, #tpu.memory_space<vmem>>, vector<2x8xf32>
    tpu.vector_store %arg4[%c0_14, %c0_15], %37 {strides = array<i32>} : memref<2x8xf32, #tpu.memory_space<vmem>>, vector<2x8xf32>,
    return
  }
}

</mosaic_0001>

<llo_original>
// kernel: bidaf_output_forward.6
$region0: #{bidaf_output_forward.6}
  #allocation0 [shape = 'u32[]', space=smem, size = 0x4, offset = 0x4, fixed_abs, tag = 'smem constant byte address 0x4 - core index']
  #allocation1 [shape = 'u32[144,128]{1,0:T(1,128)}', space=vmem, size = 0x12000, scoped, tag = 'internal scratch']
  %s0 = inlined_call_operand.vmem [shape: f32[16,256], index: 0, kind: input, shape index: {}]
  %s1 = inlined_call_operand.vmem [shape: f32[16,64], index: 1, kind: input, shape index: {}]
  %s2 = inlined_call_operand.vmem [shape: bf16[256,128], index: 2, kind: input, shape index: {}]
  %s3 = inlined_call_operand.vmem [shape: bf16[64,128], index: 3, kind: input, shape index: {}]
  %s4 = inlined_call_operand.vmem [shape: f32[1,128], index: 4, kind: input, shape index: {}]
  %s5 = inlined_call_operand.vmem [shape: f32[16,128], index: 5, kind: output, shape index: {}]
  %s6 = sld [smem:[#allocation0]]
  $region30: #{bidaf_output_forward.6} parent=0
    _
  %s8 = ssub.s32 1, %s6
  %s9 = scalar_select 0, %s8, %s6
  // Predicated region
  $region2: #{bidaf_output_forward.6} parent=0 // pred_check
    _
  $region3: #{bidaf_output_forward.6} parent=0 // pred_check_branch
    %11 = sbr.rel (0) target = $region5
  $region4: #{bidaf_output_forward.6} parent=0 // pred_region
    _
  $region5: #{bidaf_output_forward.6} parent=0 // pred_fallthru
    _
  // Predicated region
  $region6: #{bidaf_output_forward.6} parent=0 // pred_check
    _
  $region7: #{bidaf_output_forward.6} parent=0 // pred_check_branch
    %13 = sbr.rel (0) target = $region9
  $region8: #{bidaf_output_forward.6} parent=0 // pred_region
    _
  $region9: #{bidaf_output_forward.6} parent=0 // pred_fallthru
    _
  // Predicated region
  $region10: #{bidaf_output_forward.6} parent=0 // pred_check
    _
  $region11: #{bidaf_output_forward.6} parent=0 // pred_check_branch
    %15 = sbr.rel (0) target = $region13
  $region12: #{bidaf_output_forward.6} parent=0 // pred_region
    _
  $region13: #{bidaf_output_forward.6} parent=0 // pred_fallthru
    _
  // Predicated region
  $region14: #{bidaf_output_forward.6} parent=0 // pred_check
    _
  $region15: #{bidaf_output_forward.6} parent=0 // pred_check_branch
    %17 = sbr.rel (0) target = $region17
  $region16: #{bidaf_output_forward.6} parent=0 // pred_region
    _
  $region17: #{bidaf_output_forward.6} parent=0 // pred_fallthru
    _
  // Predicated region
  $region18: #{bidaf_output_forward.6} parent=0 // pred_check
    _
  $region19: #{bidaf_output_forward.6} parent=0 // pred_check_branch
    %19 = sbr.rel (0) target = $region21
  $region20: #{bidaf_output_forward.6} parent=0 // pred_region
    _
  $region21: #{bidaf_output_forward.6} parent=0 // pred_fallthru
    _
  %v21 = vld [vmem:[%s0] sm:$0xff]
  %v22 = vld [vmem:[%s0 + $0x8] sm:$0xff]
  %v23 = vld [vmem:[%s0 + $0x10] sm:$0xff]
  %v24 = vld [vmem:[%s0 + $0x18] sm:$0xff]
  %v25 = vpack.c.bf16 %v23, %v21
  %v26 = vpack.c.bf16 %v24, %v22
  %v27 = vld [vmem:[%s2] sm:$0xf]
  %v28 = vld [vmem:[%s2 + $0x4] sm:$0xf]
  %v29 = vld [vmem:[%s2 + $0x8] sm:$0xf]
  %v30 = vld [vmem:[%s2 + $0xc] sm:$0xf]
  %v31 = vld [vmem:[%s2 + $0x10] sm:$0xf]
  %v32 = vld [vmem:[%s2 + $0x14] sm:$0xf]
  %v33 = vld [vmem:[%s2 + $0x18] sm:$0xf]
  %v34 = vld [vmem:[%s2 + $0x1c] sm:$0xf]
  %v35 = vld [vmem:[%s2 + $0x20] sm:$0xf]
  %v36 = vld [vmem:[%s2 + $0x24] sm:$0xf]
  %v37 = vld [vmem:[%s2 + $0x28] sm:$0xf]
  %v38 = vld [vmem:[%s2 + $0x2c] sm:$0xf]
  %v39 = vld [vmem:[%s2 + $0x30] sm:$0xf]
  %v40 = vld [vmem:[%s2 + $0x34] sm:$0xf]
  %v41 = vld [vmem:[%s2 + $0x38] sm:$0xf]
  %v42 = vld [vmem:[%s2 + $0x3c] sm:$0xf]
  %v43 = vld [vmem:[%s2 + $0x40] sm:$0xf]
  %v44 = vld [vmem:[%s2 + $0x44] sm:$0xf]
  %v45 = vld [vmem:[%s2 + $0x48] sm:$0xf]
  %v46 = vld [vmem:[%s2 + $0x4c] sm:$0xf]
  %v47 = vld [vmem:[%s2 + $0x50] sm:$0xf]
  %v48 = vld [vmem:[%s2 + $0x54] sm:$0xf]
  %v49 = vld [vmem:[%s2 + $0x58] sm:$0xf]
  %v50 = vld [vmem:[%s2 + $0x5c] sm:$0xf]
  %v51 = vld [vmem:[%s2 + $0x60] sm:$0xf]
  %v52 = vld [vmem:[%s2 + $0x64] sm:$0xf]
  %v53 = vld [vmem:[%s2 + $0x68] sm:$0xf]
  %v54 = vld [vmem:[%s2 + $0x6c] sm:$0xf]
  %v55 = vld [vmem:[%s2 + $0x70] sm:$0xf]
  %v56 = vld [vmem:[%s2 + $0x74] sm:$0xf]
  %v57 = vld [vmem:[%s2 + $0x78] sm:$0xf]
  %v58 = vld [vmem:[%s2 + $0x7c] sm:$0xf]
  %v59 = vld [vmem:[%s1] sm:$0xff]
  %v60 = vld [vmem:[%s1 + $0x8] sm:$0xff]
  %v61 = vpack.c.bf16 %v60, %v59
  %v62 = vld [vmem:[%s3] sm:$0xf]
  %v63 = vld [vmem:[%s3 + $0x4] sm:$0xf]
  %v64 = vld [vmem:[%s3 + $0x8] sm:$0xf]
  %v65 = vld [vmem:[%s3 + $0xc] sm:$0xf]
  %v66 = vld [vmem:[%s3 + $0x10] sm:$0xf]
  %v67 = vld [vmem:[%s3 + $0x14] sm:$0xf]
  %v68 = vld [vmem:[%s3 + $0x18] sm:$0xf]
  %v69 = vld [vmem:[%s3 + $0x1c] sm:$0xf]
  %v78 = vunpack.c.l.b16 %v62
  %v79 = vunpack.c.l.b16 %v63
  %v80 = vunpack.c.l.b16 %v64
  %v81 = vunpack.c.l.b16 %v65
  %v82 = vunpack.c.l.b16 %v66
  %v83 = vunpack.c.l.b16 %v67
  %v84 = vunpack.c.l.b16 %v68
  %v85 = vunpack.c.l.b16 %v69
  %v86 = vpack.c.b16 %v79, %v78
  %v87 = vpack.c.b16 %v81, %v80
  %v88 = vpack.c.b16 %v83, %v82
  %v89 = vpack.c.b16 %v85, %v84
  %vm94 = vcmask 523264
  %v96 = vsel %vm94, %v61, 0
  %98 = vmatprep.subr.bf16.mxu0 0
  %99 = vmatpush1.bf16.msra.mxu0 %v86
  %100 = vmatprep.subr.bf16.mxu0 0
  %101 = vmatpush1.bf16.msra.mxu0 %v87
  %102 = vmatprep.subr.bf16.mxu0 0
  %103 = vmatpush1.bf16.msra.mxu0 %v88
  %104 = vmatprep.subr.bf16.mxu0 0
  %105 = vmatpush1.bf16.msra.mxu0 %v89
  %106 = vmatprep.subr.bf16.mxu0 0
  %107 = vmatpush1.bf16.msra.mxu0 0
  %108 = vmatprep.subr.bf16.mxu0 0
  %109 = vmatpush1.bf16.msra.mxu0 0
  %110 = vmatprep.subr.bf16.mxu0 0
  %111 = vmatpush1.bf16.msra.mxu0 0
  %112 = vmatprep.subr.bf16.mxu0 0
  %113 = vmatpush1.bf16.msra.mxu0 0
  %114 = vmatprep.subr.bf16.mxu0 0
  %115 = vmatpush1.bf16.msra.mxu0 0
  %116 = vmatprep.subr.bf16.mxu0 0
  %117 = vmatpush1.bf16.msra.mxu0 0
  %118 = vmatprep.subr.bf16.mxu0 0
  %119 = vmatpush1.bf16.msra.mxu0 0
  %120 = vmatprep.subr.bf16.mxu0 0
  %121 = vmatpush1.bf16.msra.mxu0 0
  %122 = vmatprep.subr.bf16.mxu0 0
  %123 = vmatpush1.bf16.msra.mxu0 0
  %124 = vmatprep.subr.bf16.mxu0 0
  %125 = vmatpush1.bf16.msra.mxu0 0
  %126 = vmatprep.subr.bf16.mxu0 0
  %127 = vmatpush1.bf16.msra.mxu0 0
  %128 = vmatprep.subr.bf16.mxu0 0
  %129 = vmatpush1.bf16.msra.mxu0 0
  %130 = vmatprep.mubr.bf16.mxu0 0
  %131 = vmatmul.mubr.bf16.gmra.mrb[0].mxu0 %v96
  %v132 = vpop.f32.mrb[0].mxu0
  %v133 = vadd.f32 0.0, %v132
  %v134 = vpop.f32.mrb[0].mxu0
  %v135 = vpop.f32.mrb[0].mxu0
  %v136 = vadd.f32 0.0, %v135
  %v137 = vpop.f32.mrb[0].mxu0
  %138 = vdwg.mxu0
  %v171 = vunpack.c.l.b16 %v27
  %v172 = vunpack.c.l.b16 %v28
  %v173 = vunpack.c.l.b16 %v29
  %v174 = vunpack.c.l.b16 %v30
  %v175 = vunpack.c.l.b16 %v31
  %v176 = vunpack.c.l.b16 %v32
  %v177 = vunpack.c.l.b16 %v33
  %v178 = vunpack.c.l.b16 %v34
  %v179 = vunpack.c.l.b16 %v35
  %v180 = vunpack.c.l.b16 %v36
  %v181 = vunpack.c.l.b16 %v37
  %v182 = vunpack.c.l.b16 %v38
  %v183 = vunpack.c.l.b16 %v39
  %v184 = vunpack.c.l.b16 %v40
  %v185 = vunpack.c.l.b16 %v41
  %v186 = vunpack.c.l.b16 %v42
  %v187 = vunpack.c.l.b16 %v43
  %v188 = vunpack.c.l.b16 %v44
  %v189 = vunpack.c.l.b16 %v45
  %v190 = vunpack.c.l.b16 %v46
  %v191 = vunpack.c.l.b16 %v47
  %v192 = vunpack.c.l.b16 %v48
  %v193 = vunpack.c.l.b16 %v49
  %v194 = vunpack.c.l.b16 %v50
  %v195 = vunpack.c.l.b16 %v51
  %v196 = vunpack.c.l.b16 %v52
  %v197 = vunpack.c.l.b16 %v53
  %v198 = vunpack.c.l.b16 %v54
  %v199 = vunpack.c.l.b16 %v55
  %v200 = vunpack.c.l.b16 %v56
  %v201 = vunpack.c.l.b16 %v57
  %v202 = vunpack.c.l.b16 %v58
  %v203 = vpack.c.b16 %v172, %v171
  %v204 = vpack.c.b16 %v174, %v173
  %v205 = vpack.c.b16 %v176, %v175
  %v206 = vpack.c.b16 %v178, %v177
  %v207 = vpack.c.b16 %v180, %v179
  %v208 = vpack.c.b16 %v182, %v181
  %v209 = vpack.c.b16 %v184, %v183
  %v210 = vpack.c.b16 %v186, %v185
  %v211 = vpack.c.b16 %v188, %v187
  %v212 = vpack.c.b16 %v190, %v189
  %v213 = vpack.c.b16 %v192, %v191
  %v214 = vpack.c.b16 %v194, %v193
  %v215 = vpack.c.b16 %v196, %v195
  %v216 = vpack.c.b16 %v198, %v197
  %v217 = vpack.c.b16 %v200, %v199
  %v218 = vpack.c.b16 %v202, %v201
  %235 = vmatprep.subr.bf16.mxu0 0
  %236 = vmatpush1.bf16.msra.mxu0 %v203
  %237 = vmatprep.subr.bf16.mxu0 0
  %238 = vmatpush1.bf16.msra.mxu0 %v204
  %239 = vmatprep.subr.bf16.mxu0 0
  %240 = vmatpush1.bf16.msra.mxu0 %v205
  %241 = vmatprep.subr.bf16.mxu0 0
  %242 = vmatpush1.bf16.msra.mxu0 %v206
  %243 = vmatprep.subr.bf16.mxu0 0
  %244 = vmatpush1.bf16.msra.mxu0 %v207
  %245 = vmatprep.subr.bf16.mxu0 0
  %246 = vmatpush1.bf16.msra.mxu0 %v208
  %247 = vmatprep.subr.bf16.mxu0 0
  %248 = vmatpush1.bf16.msra.mxu0 %v209
  %249 = vmatprep.subr.bf16.mxu0 0
  %250 = vmatpush1.bf16.msra.mxu0 %v210
  %251 = vmatprep.subr.bf16.mxu0 0
  %252 = vmatpush1.bf16.msra.mxu0 %v211
  %253 = vmatprep.subr.bf16.mxu0 0
  %254 = vmatpush1.bf16.msra.mxu0 %v212
  %255 = vmatprep.subr.bf16.mxu0 0
  %256 = vmatpush1.bf16.msra.mxu0 %v213
  %257 = vmatprep.subr.bf16.mxu0 0
  %258 = vmatpush1.bf16.msra.mxu0 %v214
  %259 = vmatprep.subr.bf16.mxu0 0
  %260 = vmatpush1.bf16.msra.mxu0 %v215
  %261 = vmatprep.subr.bf16.mxu0 0
  %262 = vmatpush1.bf16.msra.mxu0 %v216
  %263 = vmatprep.subr.bf16.mxu0 0
  %264 = vmatpush1.bf16.msra.mxu0 %v217
  %265 = vmatprep.subr.bf16.mxu0 0
  %266 = vmatpush1.bf16.msra.mxu0 %v218
  %267 = vmatprep.mubr.bf16.mxu0 %v26
  %268 = vmatmul.mubr.bf16.gmra.mrb[0].mxu0 %v25
  %v269 = vpop.f32.mrb[0].mxu0
  %v270 = vadd.f32 %v133, %v269
  %v271 = vpop.f32.mrb[0].mxu0
  %v272 = vpop.f32.mrb[0].mxu0
  %v273 = vadd.f32 %v136, %v272
  %v274 = vpop.f32.mrb[0].mxu0
  %275 = vdwg.mxu0
  %v276 = vld [vmem:[%s4] sm:$0x1]
  %v278 = vlaneseq
  %v279 = vshrl.u32 %v278, 7
  %v280 = vsub.s32 0, %v279
  %v281 = vrot.slane %v276, %v280
  %v283 = vadd.f32 %v270, %v281
  %v284 = vadd.f32 %v273, %v281
  %285 = vst [vmem:[%s5] sm:$0xff] %v283
  %286 = vst [vmem:[%s5 + $0x8] sm:$0xff] %v284
  // Predicated region
  $region22: #{bidaf_output_forward.6} parent=0 // pred_check
    _
  $region23: #{bidaf_output_forward.6} parent=0 // pred_check_branch
    %288 = sbr.rel (0) target = $region25
  $region24: #{bidaf_output_forward.6} parent=0 // pred_region
    _
  $region25: #{bidaf_output_forward.6} parent=0 // pred_fallthru
    _
  // Predicated region
  $region26: #{bidaf_output_forward.6} parent=0 // pred_check
    _
  $region27: #{bidaf_output_forward.6} parent=0 // pred_check_branch
    %290 = sbr.rel (0) target = $region29
  $region28: #{bidaf_output_forward.6} parent=0 // pred_region
    _
  $region29: #{bidaf_output_forward.6} parent=0 // pred_fallthru
    _

// kernel: bidaf_output_forward.8
$region0: #{bidaf_output_forward.8}
  #allocation0 [shape = 'u32[]', space=smem, size = 0x4, offset = 0x4, fixed_abs, tag = 'smem constant byte address 0x4 - core index']
  #allocation1 [shape = 'u32[144,128]{1,0:T(1,128)}', space=vmem, size = 0x12000, scoped, tag = 'internal scratch']
  %s0 = inlined_call_operand.vmem [shape: f32[16,128], index: 0, kind: input, shape index: {}]
  %s1 = inlined_call_operand.vmem [shape: f32[16,128], index: 1, kind: input, shape index: {}]
  %s2 = inlined_call_operand.vmem [shape: bf16[128,128], index: 2, kind: input, shape index: {}]
  %s3 = inlined_call_operand.vmem [shape: bf16[128,128], index: 3, kind: input, shape index: {}]
  %s4 = inlined_call_operand.vmem [shape: f32[1,128], index: 4, kind: input, shape index: {}]
  %s5 = inlined_call_operand.vmem [shape: f32[16,128], index: 5, kind: output, shape index: {}]
  %s6 = sld [smem:[#allocation0]]
  $region30: #{bidaf_output_forward.8} parent=0
    _
  %s8 = ssub.s32 1, %s6
  %s9 = scalar_select 0, %s8, %s6
  // Predicated region
  $region2: #{bidaf_output_forward.8} parent=0 // pred_check
    _
  $region3: #{bidaf_output_forward.8} parent=0 // pred_check_branch
    %11 = sbr.rel (0) target = $region5
  $region4: #{bidaf_output_forward.8} parent=0 // pred_region
    _
  $region5: #{bidaf_output_forward.8} parent=0 // pred_fallthru
    _
  // Predicated region
  $region6: #{bidaf_output_forward.8} parent=0 // pred_check
    _
  $region7: #{bidaf_output_forward.8} parent=0 // pred_check_branch
    %13 = sbr.rel (0) target = $region9
  $region8: #{bidaf_output_forward.8} parent=0 // pred_region
    _
  $region9: #{bidaf_output_forward.8} parent=0 // pred_fallthru
    _
  // Predicated region
  $region10: #{bidaf_output_forward.8} parent=0 // pred_check
    _
  $region11: #{bidaf_output_forward.8} parent=0 // pred_check_branch
    %15 = sbr.rel (0) target = $region13
  $region12: #{bidaf_output_forward.8} parent=0 // pred_region
    _
  $region13: #{bidaf_output_forward.8} parent=0 // pred_fallthru
    _
  // Predicated region
  $region14: #{bidaf_output_forward.8} parent=0 // pred_check
    _
  $region15: #{bidaf_output_forward.8} parent=0 // pred_check_branch
    %17 = sbr.rel (0) target = $region17
  $region16: #{bidaf_output_forward.8} parent=0 // pred_region
    _
  $region17: #{bidaf_output_forward.8} parent=0 // pred_fallthru
    _
  // Predicated region
  $region18: #{bidaf_output_forward.8} parent=0 // pred_check
    _
  $region19: #{bidaf_output_forward.8} parent=0 // pred_check_branch
    %19 = sbr.rel (0) target = $region21
  $region20: #{bidaf_output_forward.8} parent=0 // pred_region
    _
  $region21: #{bidaf_output_forward.8} parent=0 // pred_fallthru
    _
  %v21 = vld [vmem:[%s0] sm:$0xff]
  %v22 = vld [vmem:[%s0 + $0x8] sm:$0xff]
  %v23 = vpack.c.bf16 %v22, %v21
  %v24 = vld [vmem:[%s2] sm:$0xf]
  %v25 = vld [vmem:[%s2 + $0x4] sm:$0xf]
  %v26 = vld [vmem:[%s2 + $0x8] sm:$0xf]
  %v27 = vld [vmem:[%s2 + $0xc] sm:$0xf]
  %v28 = vld [vmem:[%s2 + $0x10] sm:$0xf]
  %v29 = vld [vmem:[%s2 + $0x14] sm:$0xf]
  %v30 = vld [vmem:[%s2 + $0x18] sm:$0xf]
  %v31 = vld [vmem:[%s2 + $0x1c] sm:$0xf]
  %v32 = vld [vmem:[%s2 + $0x20] sm:$0xf]
  %v33 = vld [vmem:[%s2 + $0x24] sm:$0xf]
  %v34 = vld [vmem:[%s2 + $0x28] sm:$0xf]
  %v35 = vld [vmem:[%s2 + $0x2c] sm:$0xf]
  %v36 = vld [vmem:[%s2 + $0x30] sm:$0xf]
  %v37 = vld [vmem:[%s2 + $0x34] sm:$0xf]
  %v38 = vld [vmem:[%s2 + $0x38] sm:$0xf]
  %v39 = vld [vmem:[%s2 + $0x3c] sm:$0xf]
  %v40 = vld [vmem:[%s1] sm:$0xff]
  %v41 = vld [vmem:[%s1 + $0x8] sm:$0xff]
  %v42 = vpack.c.bf16 %v41, %v40
  %v43 = vld [vmem:[%s3] sm:$0xf]
  %v44 = vld [vmem:[%s3 + $0x4] sm:$0xf]
  %v45 = vld [vmem:[%s3 + $0x8] sm:$0xf]
  %v46 = vld [vmem:[%s3 + $0xc] sm:$0xf]
  %v47 = vld [vmem:[%s3 + $0x10] sm:$0xf]
  %v48 = vld [vmem:[%s3 + $0x14] sm:$0xf]
  %v49 = vld [vmem:[%s3 + $0x18] sm:$0xf]
  %v50 = vld [vmem:[%s3 + $0x1c] sm:$0xf]
  %v51 = vld [vmem:[%s3 + $0x20] sm:$0xf]
  %v52 = vld [vmem:[%s3 + $0x24] sm:$0xf]
  %v53 = vld [vmem:[%s3 + $0x28] sm:$0xf]
  %v54 = vld [vmem:[%s3 + $0x2c] sm:$0xf]
  %v55 = vld [vmem:[%s3 + $0x30] sm:$0xf]
  %v56 = vld [vmem:[%s3 + $0x34] sm:$0xf]
  %v57 = vld [vmem:[%s3 + $0x38] sm:$0xf]
  %v58 = vld [vmem:[%s3 + $0x3c] sm:$0xf]
  %v75 = vunpack.c.l.b16 %v43
  %v76 = vunpack.c.l.b16 %v44
  %v77 = vunpack.c.l.b16 %v45
  %v78 = vunpack.c.l.b16 %v46
  %v79 = vunpack.c.l.b16 %v47
  %v80 = vunpack.c.l.b16 %v48
  %v81 = vunpack.c.l.b16 %v49
  %v82 = vunpack.c.l.b16 %v50
  %v83 = vunpack.c.l.b16 %v51
  %v84 = vunpack.c.l.b16 %v52
  %v85 = vunpack.c.l.b16 %v53
  %v86 = vunpack.c.l.b16 %v54
  %v87 = vunpack.c.l.b16 %v55
  %v88 = vunpack.c.l.b16 %v56
  %v89 = vunpack.c.l.b16 %v57
  %v90 = vunpack.c.l.b16 %v58
  %v91 = vpack.c.b16 %v76, %v75
  %v92 = vpack.c.b16 %v78, %v77
  %v93 = vpack.c.b16 %v80, %v79
  %v94 = vpack.c.b16 %v82, %v81
  %v95 = vpack.c.b16 %v84, %v83
  %v96 = vpack.c.b16 %v86, %v85
  %v97 = vpack.c.b16 %v88, %v87
  %v98 = vpack.c.b16 %v90, %v89
  %107 = vmatprep.subr.bf16.mxu0 0
  %108 = vmatpush1.bf16.msra.mxu0 %v91
  %109 = vmatprep.subr.bf16.mxu0 0
  %110 = vmatpush1.bf16.msra.mxu0 %v92
  %111 = vmatprep.subr.bf16.mxu0 0
  %112 = vmatpush1.bf16.msra.mxu0 %v93
  %113 = vmatprep.subr.bf16.mxu0 0
  %114 = vmatpush1.bf16.msra.mxu0 %v94
  %115 = vmatprep.subr.bf16.mxu0 0
  %116 = vmatpush1.bf16.msra.mxu0 %v95
  %117 = vmatprep.subr.bf16.mxu0 0
  %118 = vmatpush1.bf16.msra.mxu0 %v96
  %119 = vmatprep.subr.bf16.mxu0 0
  %120 = vmatpush1.bf16.msra.mxu0 %v97
  %121 = vmatprep.subr.bf16.mxu0 0
  %122 = vmatpush1.bf16.msra.mxu0 %v98
  %123 = vmatprep.subr.bf16.mxu0 0
  %124 = vmatpush1.bf16.msra.mxu0 0
  %125 = vmatprep.subr.bf16.mxu0 0
  %126 = vmatpush1.bf16.msra.mxu0 0
  %127 = vmatprep.subr.bf16.mxu0 0
  %128 = vmatpush1.bf16.msra.mxu0 0
  %129 = vmatprep.subr.bf16.mxu0 0
  %130 = vmatpush1.bf16.msra.mxu0 0
  %131 = vmatprep.subr.bf16.mxu0 0
  %132 = vmatpush1.bf16.msra.mxu0 0
  %133 = vmatprep.subr.bf16.mxu0 0
  %134 = vmatpush1.bf16.msra.mxu0 0
  %135 = vmatprep.subr.bf16.mxu0 0
  %136 = vmatpush1.bf16.msra.mxu0 0
  %137 = vmatprep.subr.bf16.mxu0 0
  %138 = vmatpush1.bf16.msra.mxu0 0
  %139 = vmatprep.mubr.bf16.mxu0 0
  %140 = vmatmul.mubr.bf16.gmra.mrb[0].mxu0 %v42
  %v141 = vpop.f32.mrb[0].mxu0
  %v142 = vadd.f32 0.0, %v141
  %v143 = vpop.f32.mrb[0].mxu0
  %v144 = vpop.f32.mrb[0].mxu0
  %v145 = vadd.f32 0.0, %v144
  %v146 = vpop.f32.mrb[0].mxu0
  %147 = vdwg.mxu0
  %v164 = vunpack.c.l.b16 %v24
  %v165 = vunpack.c.l.b16 %v25
  %v166 = vunpack.c.l.b16 %v26
  %v167 = vunpack.c.l.b16 %v27
  %v168 = vunpack.c.l.b16 %v28
  %v169 = vunpack.c.l.b16 %v29
  %v170 = vunpack.c.l.b16 %v30
  %v171 = vunpack.c.l.b16 %v31
  %v172 = vunpack.c.l.b16 %v32
  %v173 = vunpack.c.l.b16 %v33
  %v174 = vunpack.c.l.b16 %v34
  %v175 = vunpack.c.l.b16 %v35
  %v176 = vunpack.c.l.b16 %v36
  %v177 = vunpack.c.l.b16 %v37
  %v178 = vunpack.c.l.b16 %v38
  %v179 = vunpack.c.l.b16 %v39
  %v180 = vpack.c.b16 %v165, %v164
  %v181 = vpack.c.b16 %v167, %v166
  %v182 = vpack.c.b16 %v169, %v168
  %v183 = vpack.c.b16 %v171, %v170
  %v184 = vpack.c.b16 %v173, %v172
  %v185 = vpack.c.b16 %v175, %v174
  %v186 = vpack.c.b16 %v177, %v176
  %v187 = vpack.c.b16 %v179, %v178
  %196 = vmatprep.subr.bf16.mxu0 0
  %197 = vmatpush1.bf16.msra.mxu0 %v180
  %198 = vmatprep.subr.bf16.mxu0 0
  %199 = vmatpush1.bf16.msra.mxu0 %v181
  %200 = vmatprep.subr.bf16.mxu0 0
  %201 = vmatpush1.bf16.msra.mxu0 %v182
  %202 = vmatprep.subr.bf16.mxu0 0
  %203 = vmatpush1.bf16.msra.mxu0 %v183
  %204 = vmatprep.subr.bf16.mxu0 0
  %205 = vmatpush1.bf16.msra.mxu0 %v184
  %206 = vmatprep.subr.bf16.mxu0 0
  %207 = vmatpush1.bf16.msra.mxu0 %v185
  %208 = vmatprep.subr.bf16.mxu0 0
  %209 = vmatpush1.bf16.msra.mxu0 %v186
  %210 = vmatprep.subr.bf16.mxu0 0
  %211 = vmatpush1.bf16.msra.mxu0 %v187
  %212 = vmatprep.subr.bf16.mxu0 0
  %213 = vmatpush1.bf16.msra.mxu0 0
  %214 = vmatprep.subr.bf16.mxu0 0
  %215 = vmatpush1.bf16.msra.mxu0 0
  %216 = vmatprep.subr.bf16.mxu0 0
  %217 = vmatpush1.bf16.msra.mxu0 0
  %218 = vmatprep.subr.bf16.mxu0 0
  %219 = vmatpush1.bf16.msra.mxu0 0
  %220 = vmatprep.subr.bf16.mxu0 0
  %221 = vmatpush1.bf16.msra.mxu0 0
  %222 = vmatprep.subr.bf16.mxu0 0
  %223 = vmatpush1.bf16.msra.mxu0 0
  %224 = vmatprep.subr.bf16.mxu0 0
  %225 = vmatpush1.bf16.msra.mxu0 0
  %226 = vmatprep.subr.bf16.mxu0 0
  %227 = vmatpush1.bf16.msra.mxu0 0
  %228 = vmatprep.mubr.bf16.mxu0 0
  %229 = vmatmul.mubr.bf16.gmra.mrb[0].mxu0 %v23
  %v230 = vpop.f32.mrb[0].mxu0
  %v231 = vadd.f32 %v142, %v230
  %v232 = vpop.f32.mrb[0].mxu0
  %v233 = vpop.f32.mrb[0].mxu0
  %v234 = vadd.f32 %v145, %v233
  %v235 = vpop.f32.mrb[0].mxu0
  %236 = vdwg.mxu0
  %v237 = vld [vmem:[%s4] sm:$0x1]
  %v239 = vlaneseq
  %v240 = vshrl.u32 %v239, 7
  %v241 = vsub.s32 0, %v240
  %v242 = vrot.slane %v237, %v241
  %v244 = vadd.f32 %v231, %v242
  %v245 = vadd.f32 %v234, %v242
  %246 = vst [vmem:[%s5] sm:$0xff] %v244
  %247 = vst [vmem:[%s5 + $0x8] sm:$0xff] %v245
  // Predicated region
  $region22: #{bidaf_output_forward.8} parent=0 // pred_check
    _
  $region23: #{bidaf_output_forward.8} parent=0 // pred_check_branch
    %249 = sbr.rel (0) target = $region25
  $region24: #{bidaf_output_forward.8} parent=0 // pred_region
    _
  $region25: #{bidaf_output_forward.8} parent=0 // pred_fallthru
    _
  // Predicated region
  $region26: #{bidaf_output_forward.8} parent=0 // pred_check
    _
  $region27: #{bidaf_output_forward.8} parent=0 // pred_check_branch
    %251 = sbr.rel (0) target = $region29
  $region28: #{bidaf_output_forward.8} parent=0 // pred_region
    _
  $region29: #{bidaf_output_forward.8} parent=0 // pred_fallthru
    _

// kernel: bidaf_output_forward.5
$region0: #{bidaf_output_forward.5}
  #allocation0 [shape = 'u32[]', space=smem, size = 0x4, offset = 0x4, fixed_abs, tag = 'smem constant byte address 0x4 - core index']
  #allocation1 [shape = 'u32[144,128]{1,0:T(1,128)}', space=vmem, size = 0x12000, scoped, tag = 'internal scratch']
  %s0 = inlined_call_operand.vmem [shape: f32[16,64], index: 0, kind: input, shape index: {}]
  %s1 = inlined_call_operand.hbm [shape: bf16[64,1024], index: 1, kind: input, shape index: {}]
  %s2 = inlined_call_operand.vmem [shape: f32[1,1024], index: 2, kind: input, shape index: {}]
  %s3 = inlined_call_operand.vmem [shape: f32[16,1024], index: 3, kind: output, shape index: {}]
  %s4 = sld [smem:[#allocation0]]
  $region26: #{bidaf_output_forward.5} parent=0
    _
  %s6 = ssub.s32 1, %s4
  %s7 = scalar_select 0, %s6, %s4
  $region1: #{bidaf_output_forward.5} parent=0
    #allocation2 [shape = 'u8[131072]{0}', space=vmem, size = 0x20000, scoped, tag = 'input window, operand 1, single buffered']
    #allocation3 [shape = 's32[1]{0}', space=sflag, size = 0x4, scoped, tag = 'scoped memory for bidaf_output_forward.5']
    %8 = vsyncpa [#allocation3], 0
    // Predicated region
    $region2: #{bidaf_output_forward.5} parent=1 // pred_check
      _
    $region3: #{bidaf_output_forward.5} parent=1 // pred_check_branch
      %10 = sbr.rel (0) target = $region5
    $region4: #{bidaf_output_forward.5} parent=1 // pred_region
      _
    $region5: #{bidaf_output_forward.5} parent=1 // pred_fallthru
      _
    // Predicated region
    $region6: #{bidaf_output_forward.5} parent=1 // pred_check
      _
    $region7: #{bidaf_output_forward.5} parent=1 // pred_check_branch
      %12 = sbr.rel (0) target = $region9
    $region8: #{bidaf_output_forward.5} parent=1 // pred_region
      %s14 = ssub.s32 4096, 4096
      %15 = vsyncadd [#allocation3], %s14
      %s16 = sshll.u32 [#allocation2], 4
      %s17 = int_to_ptr.vmem [resolvable:$true] %s16
      %22 = dma.hbm_to_vmem [thread:$0]  %s1, 4096, %s17, [#allocation3], 512, 512, 32
    $region9: #{bidaf_output_forward.5} parent=1 // pred_fallthru
      _
    // Predicated region
    $region10: #{bidaf_output_forward.5} parent=1 // pred_check
      _
    $region11: #{bidaf_output_forward.5} parent=1 // pred_check_branch
      %24 = sbr.rel (0) target = $region13
    $region12: #{bidaf_output_forward.5} parent=1 // pred_region
      _
    $region13: #{bidaf_output_forward.5} parent=1 // pred_fallthru
      _
    // Predicated region
    $region14: #{bidaf_output_forward.5} parent=1 // pred_check
      _
    $region15: #{bidaf_output_forward.5} parent=1 // pred_check_branch
      %26 = sbr.rel (0) target = $region17
    $region16: #{bidaf_output_forward.5} parent=1 // pred_region
      %27 = dma.done [#allocation3], 4096
    $region17: #{bidaf_output_forward.5} parent=1 // pred_fallthru
      _
    %v29 = vld [vmem:[%s0] sm:$0xff]
    %v30 = vld [vmem:[%s0 + $0x8] sm:$0xff]
    %v31 = vpack.c.bf16 %v30, %v29
    %v32 = vld [vmem:[#allocation2] sm:$0xff]
    %v33 = vld [vmem:[#allocation2 + $0x8] sm:$0xff]
    %v34 = vld [vmem:[#allocation2 + $0x10] sm:$0xff]
    %v35 = vld [vmem:[#allocation2 + $0x18] sm:$0xff]
    %v36 = vld [vmem:[#allocation2 + $0x20] sm:$0xff]
    %v37 = vld [vmem:[#allocation2 + $0x28] sm:$0xff]
    %v38 = vld [vmem:[#allocation2 + $0x30] sm:$0xff]
    %v39 = vld [vmem:[#allocation2 + $0x38] sm:$0xff]
    %v40 = vld [vmem:[#allocation2 + $0x40] sm:$0xff]
    %v41 = vld [vmem:[#allocation2 + $0x48] sm:$0xff]
    %v42 = vld [vmem:[#allocation2 + $0x50] sm:$0xff]
    %v43 = vld [vmem:[#allocation2 + $0x58] sm:$0xff]
    %v44 = vld [vmem:[#allocation2 + $0x60] sm:$0xff]
    %v45 = vld [vmem:[#allocation2 + $0x68] sm:$0xff]
    %v46 = vld [vmem:[#allocation2 + $0x70] sm:$0xff]
    %v47 = vld [vmem:[#allocation2 + $0x78] sm:$0xff]
    %v48 = vld [vmem:[#allocation2 + $0x80] sm:$0xff]
    %v49 = vld [vmem:[#allocation2 + $0x88] sm:$0xff]
    %v50 = vld [vmem:[#allocation2 + $0x90] sm:$0xff]
    %v51 = vld [vmem:[#allocation2 + $0x98] sm:$0xff]
    %v52 = vld [vmem:[#allocation2 + $0xa0] sm:$0xff]
    %v53 = vld [vmem:[#allocation2 + $0xa8] sm:$0xff]
    %v54 = vld [vmem:[#allocation2 + $0xb0] sm:$0xff]
    %v55 = vld [vmem:[#allocation2 + $0xb8] sm:$0xff]
    %v56 = vld [vmem:[#allocation2 + $0xc0] sm:$0xff]
    %v57 = vld [vmem:[#allocation2 + $0xc8] sm:$0xff]
    %v58 = vld [vmem:[#allocation2 + $0xd0] sm:$0xff]
    %v59 = vld [vmem:[#allocation2 + $0xd8] sm:$0xff]
    %v60 = vld [vmem:[#allocation2 + $0xe0] sm:$0xff]
    %v61 = vld [vmem:[#allocation2 + $0xe8] sm:$0xff]
    %v62 = vld [vmem:[#allocation2 + $0xf0] sm:$0xff]
    %v63 = vld [vmem:[#allocation2 + $0xf8] sm:$0xff]
    %v64 = vld [vmem:[%s2] sm:$0xff]
    %v66 = vlaneseq
    %v67 = vshrl.u32 %v66, 7
    %v68 = vsub.s32 0, %v67
    %v69 = vrot.slane %v64, %v68
    %v70 = vlaneseq
    %v71 = vshrl.u32 %v70, 7
    %v72 = vsub.s32 1, %v71
    %v73 = vrot.slane %v64, %v72
    %v74 = vlaneseq
    %v75 = vshrl.u32 %v74, 7
    %v76 = vsub.s32 2, %v75
    %v77 = vrot.slane %v64, %v76
    %v78 = vlaneseq
    %v79 = vshrl.u32 %v78, 7
    %v80 = vsub.s32 3, %v79
    %v81 = vrot.slane %v64, %v80
    %v82 = vlaneseq
    %v83 = vshrl.u32 %v82, 7
    %v84 = vsub.s32 4, %v83
    %v85 = vrot.slane %v64, %v84
    %v86 = vlaneseq
    %v87 = vshrl.u32 %v86, 7
    %v88 = vsub.s32 5, %v87
    %v89 = vrot.slane %v64, %v88
    %v90 = vlaneseq
    %v91 = vshrl.u32 %v90, 7
    %v92 = vsub.s32 6, %v91
    %v93 = vrot.slane %v64, %v92
    %v94 = vlaneseq
    %v95 = vshrl.u32 %v94, 7
    %v96 = vsub.s32 7, %v95
    %v97 = vrot.slane %v64, %v96
    %v138 = vunpack.c.l.b16 %v32
    %v139 = vunpack.c.h.b16 %v32
    %v140 = vunpack.c.l.b16 %v33
    %v141 = vunpack.c.h.b16 %v33
    %v142 = vunpack.c.l.b16 %v34
    %v143 = vunpack.c.h.b16 %v34
    %v144 = vunpack.c.l.b16 %v35
    %v145 = vunpack.c.h.b16 %v35
    %v146 = vunpack.c.l.b16 %v36
    %v147 = vunpack.c.h.b16 %v36
    %v148 = vunpack.c.l.b16 %v37
    %v149 = vunpack.c.h.b16 %v37
    %v150 = vunpack.c.l.b16 %v38
    %v151 = vunpack.c.h.b16 %v38
    %v152 = vunpack.c.l.b16 %v39
    %v153 = vunpack.c.h.b16 %v39
    %v154 = vunpack.c.l.b16 %v40
    %v155 = vunpack.c.h.b16 %v40
    %v156 = vunpack.c.l.b16 %v41
    %v157 = vunpack.c.h.b16 %v41
    %v158 = vunpack.c.l.b16 %v42
    %v159 = vunpack.c.h.b16 %v42
    %v160 = vunpack.c.l.b16 %v43
    %v161 = vunpack.c.h.b16 %v43
    %v162 = vunpack.c.l.b16 %v44
    %v163 = vunpack.c.h.b16 %v44
    %v164 = vunpack.c.l.b16 %v45
    %v165 = vunpack.c.h.b16 %v45
    %v166 = vunpack.c.l.b16 %v46
    %v167 = vunpack.c.h.b16 %v46
    %v168 = vunpack.c.l.b16 %v47
    %v169 = vunpack.c.h.b16 %v47
    %v170 = vunpack.c.l.b16 %v48
    %v171 = vunpack.c.h.b16 %v48
    %v172 = vunpack.c.l.b16 %v49
    %v173 = vunpack.c.h.b16 %v49
    %v174 = vunpack.c.l.b16 %v50
    %v175 = vunpack.c.h.b16 %v50
    %v176 = vunpack.c.l.b16 %v51
    %v177 = vunpack.c.h.b16 %v51
    %v178 = vunpack.c.l.b16 %v52
    %v179 = vunpack.c.h.b16 %v52
    %v180 = vunpack.c.l.b16 %v53
    %v181 = vunpack.c.h.b16 %v53
    %v182 = vunpack.c.l.b16 %v54
    %v183 = vunpack.c.h.b16 %v54
    %v184 = vunpack.c.l.b16 %v55
    %v185 = vunpack.c.h.b16 %v55
    %v186 = vunpack.c.l.b16 %v56
    %v187 = vunpack.c.h.b16 %v56
    %v188 = vunpack.c.l.b16 %v57
    %v189 = vunpack.c.h.b16 %v57
    %v190 = vunpack.c.l.b16 %v58
    %v191 = vunpack.c.h.b16 %v58
    %v192 = vunpack.c.l.b16 %v59
    %v193 = vunpack.c.h.b16 %v59
    %v194 = vunpack.c.l.b16 %v60
    %v195 = vunpack.c.h.b16 %v60
    %v196 = vunpack.c.l.b16 %v61
    %v197 = vunpack.c.h.b16 %v61
    %v198 = vunpack.c.l.b16 %v62
    %v199 = vunpack.c.h.b16 %v62
    %v200 = vunpack.c.l.b16 %v63
    %v201 = vunpack.c.h.b16 %v63
    %v202 = vpack.c.b16 %v146, %v138
    %v203 = vpack.c.b16 %v147, %v139
    %v204 = vpack.c.b16 %v148, %v140
    %v205 = vpack.c.b16 %v149, %v141
    %v206 = vpack.c.b16 %v150, %v142
    %v207 = vpack.c.b16 %v151, %v143
    %v208 = vpack.c.b16 %v152, %v144
    %v209 = vpack.c.b16 %v153, %v145
    %v210 = vpack.c.b16 %v162, %v154
    %v211 = vpack.c.b16 %v163, %v155
    %v212 = vpack.c.b16 %v164, %v156
    %v213 = vpack.c.b16 %v165, %v157
    %v214 = vpack.c.b16 %v166, %v158
    %v215 = vpack.c.b16 %v167, %v159
    %v216 = vpack.c.b16 %v168, %v160
    %v217 = vpack.c.b16 %v169, %v161
    %v218 = vpack.c.b16 %v178, %v170
    %v219 = vpack.c.b16 %v179, %v171
    %v220 = vpack.c.b16 %v180, %v172
    %v221 = vpack.c.b16 %v181, %v173
    %v222 = vpack.c.b16 %v182, %v174
    %v223 = vpack.c.b16 %v183, %v175
    %v224 = vpack.c.b16 %v184, %v176
    %v225 = vpack.c.b16 %v185, %v177
    %v226 = vpack.c.b16 %v194, %v186
    %v227 = vpack.c.b16 %v195, %v187
    %v228 = vpack.c.b16 %v196, %v188
    %v229 = vpack.c.b16 %v197, %v189
    %v230 = vpack.c.b16 %v198, %v190
    %v231 = vpack.c.b16 %v199, %v191
    %v232 = vpack.c.b16 %v200, %v192
    %v233 = vpack.c.b16 %v201, %v193
    %vm266 = vcmask 523264
    %v268 = vsel %vm266, %v31, 0
    %270 = vmatprep.subr.bf16.mxu0 %v203
    %271 = vmatpush1.bf16.msra.mxu0 %v202
    %272 = vmatprep.subr.bf16.mxu0 %v211
    %273 = vmatpush1.bf16.msra.mxu0 %v210
    %274 = vmatprep.subr.bf16.mxu0 %v219
    %275 = vmatpush1.bf16.msra.mxu0 %v218
    %276 = vmatprep.subr.bf16.mxu0 %v227
    %277 = vmatpush1.bf16.msra.mxu0 %v226
    %278 = vmatprep.subr.bf16.mxu0 0
    %279 = vmatpush1.bf16.msra.mxu0 0
    %280 = vmatprep.subr.bf16.mxu0 0
    %281 = vmatpush1.bf16.msra.mxu0 0
    %282 = vmatprep.subr.bf16.mxu0 0
    %283 = vmatpush1.bf16.msra.mxu0 0
    %284 = vmatprep.subr.bf16.mxu0 0
    %285 = vmatpush1.bf16.msra.mxu0 0
    %286 = vmatprep.subr.bf16.mxu0 0
    %287 = vmatpush1.bf16.msra.mxu0 0
    %288 = vmatprep.subr.bf16.mxu0 0
    %289 = vmatpush1.bf16.msra.mxu0 0
    %290 = vmatprep.subr.bf16.mxu0 0
    %291 = vmatpush1.bf16.msra.mxu0 0
    %292 = vmatprep.subr.bf16.mxu0 0
    %293 = vmatpush1.bf16.msra.mxu0 0
    %294 = vmatprep.subr.bf16.mxu0 0
    %295 = vmatpush1.bf16.msra.mxu0 0
    %296 = vmatprep.subr.bf16.mxu0 0
    %297 = vmatpush1.bf16.msra.mxu0 0
    %298 = vmatprep.subr.bf16.mxu0 0
    %299 = vmatpush1.bf16.msra.mxu0 0
    %300 = vmatprep.subr.bf16.mxu0 0
    %301 = vmatpush1.bf16.msra.mxu0 0
    %302 = vmatprep.mubr.bf16.mxu0 0
    %303 = vmatmul.mubr.bf16.gmra.mrb[0].mxu0 %v268
    %v304 = vpop.f32.mrb[0].mxu0
    %v305 = vadd.f32 %v69, %v304
    %v306 = vpop.f32.mrb[0].mxu0
    %v307 = vadd.f32 %v73, %v306
    %v308 = vpop.f32.mrb[0].mxu0
    %v309 = vadd.f32 %v69, %v308
    %v310 = vpop.f32.mrb[0].mxu0
    %v311 = vadd.f32 %v73, %v310
    %312 = vdwg.mxu0
    %313 = vmatprep.subr.bf16.mxu0 %v205
    %314 = vmatpush1.bf16.msra.mxu0 %v204
    %315 = vmatprep.subr.bf16.mxu0 %v213
    %316 = vmatpush1.bf16.msra.mxu0 %v212
    %317 = vmatprep.subr.bf16.mxu0 %v221
    %318 = vmatpush1.bf16.msra.mxu0 %v220
    %319 = vmatprep.subr.bf16.mxu0 %v229
    %320 = vmatpush1.bf16.msra.mxu0 %v228
    %321 = vmatprep.subr.bf16.mxu0 0
    %322 = vmatpush1.bf16.msra.mxu0 0
    %323 = vmatprep.subr.bf16.mxu0 0
    %324 = vmatpush1.bf16.msra.mxu0 0
    %325 = vmatprep.subr.bf16.mxu0 0
    %326 = vmatpush1.bf16.msra.mxu0 0
    %327 = vmatprep.subr.bf16.mxu0 0
    %328 = vmatpush1.bf16.msra.mxu0 0
    %329 = vmatprep.subr.bf16.mxu0 0
    %330 = vmatpush1.bf16.msra.mxu0 0
    %331 = vmatprep.subr.bf16.mxu0 0
    %332 = vmatpush1.bf16.msra.mxu0 0
    %333 = vmatprep.subr.bf16.mxu0 0
    %334 = vmatpush1.bf16.msra.mxu0 0
    %335 = vmatprep.subr.bf16.mxu0 0
    %336 = vmatpush1.bf16.msra.mxu0 0
    %337 = vmatprep.subr.bf16.mxu0 0
    %338 = vmatpush1.bf16.msra.mxu0 0
    %339 = vmatprep.subr.bf16.mxu0 0
    %340 = vmatpush1.bf16.msra.mxu0 0
    %341 = vmatprep.subr.bf16.mxu0 0
    %342 = vmatpush1.bf16.msra.mxu0 0
    %343 = vmatprep.subr.bf16.mxu0 0
    %344 = vmatpush1.bf16.msra.mxu0 0
    %345 = vmatprep.mubr.bf16.mxu0 0
    %346 = vmatmul.mubr.bf16.gmra.mrb[0].mxu0 %v268
    %v347 = vpop.f32.mrb[0].mxu0
    %v348 = vadd.f32 %v77, %v347
    %v349 = vpop.f32.mrb[0].mxu0
    %v350 = vadd.f32 %v81, %v349
    %v351 = vpop.f32.mrb[0].mxu0
    %v352 = vadd.f32 %v77, %v351
    %v353 = vpop.f32.mrb[0].mxu0
    %v354 = vadd.f32 %v81, %v353
    %355 = vdwg.mxu0
    %356 = vmatprep.subr.bf16.mxu0 %v207
    %357 = vmatpush1.bf16.msra.mxu0 %v206
    %358 = vmatprep.subr.bf16.mxu0 %v215
    %359 = vmatpush1.bf16.msra.mxu0 %v214
    %360 = vmatprep.subr.bf16.mxu0 %v223
    %361 = vmatpush1.bf16.msra.mxu0 %v222
    %362 = vmatprep.subr.bf16.mxu0 %v231
    %363 = vmatpush1.bf16.msra.mxu0 %v230
    %364 = vmatprep.subr.bf16.mxu0 0
    %365 = vmatpush1.bf16.msra.mxu0 0
    %366 = vmatprep.subr.bf16.mxu0 0
    %367 = vmatpush1.bf16.msra.mxu0 0
    %368 = vmatprep.subr.bf16.mxu0 0
    %369 = vmatpush1.bf16.msra.mxu0 0
    %370 = vmatprep.subr.bf16.mxu0 0
    %371 = vmatpush1.bf16.msra.mxu0 0
    %372 = vmatprep.subr.bf16.mxu0 0
    %373 = vmatpush1.bf16.msra.mxu0 0
    %374 = vmatprep.subr.bf16.mxu0 0
    %375 = vmatpush1.bf16.msra.mxu0 0
    %376 = vmatprep.subr.bf16.mxu0 0
    %377 = vmatpush1.bf16.msra.mxu0 0
    %378 = vmatprep.subr.bf16.mxu0 0
    %379 = vmatpush1.bf16.msra.mxu0 0
    %380 = vmatprep.subr.bf16.mxu0 0
    %381 = vmatpush1.bf16.msra.mxu0 0
    %382 = vmatprep.subr.bf16.mxu0 0
    %383 = vmatpush1.bf16.msra.mxu0 0
    %384 = vmatprep.subr.bf16.mxu0 0
    %385 = vmatpush1.bf16.msra.mxu0 0
    %386 = vmatprep.subr.bf16.mxu0 0
    %387 = vmatpush1.bf16.msra.mxu0 0
    %388 = vmatprep.mubr.bf16.mxu0 0
    %389 = vmatmul.mubr.bf16.gmra.mrb[0].mxu0 %v268
    %v390 = vpop.f32.mrb[0].mxu0
    %v391 = vadd.f32 %v85, %v390
    %v392 = vpop.f32.mrb[0].mxu0
    %v393 = vadd.f32 %v89, %v392
    %v394 = vpop.f32.mrb[0].mxu0
    %v395 = vadd.f32 %v85, %v394
    %v396 = vpop.f32.mrb[0].mxu0
    %v397 = vadd.f32 %v89, %v396
    %398 = vdwg.mxu0
    %399 = vmatprep.subr.bf16.mxu0 %v209
    %400 = vmatpush1.bf16.msra.mxu0 %v208
    %401 = vmatprep.subr.bf16.mxu0 %v217
    %402 = vmatpush1.bf16.msra.mxu0 %v216
    %403 = vmatprep.subr.bf16.mxu0 %v225
    %404 = vmatpush1.bf16.msra.mxu0 %v224
    %405 = vmatprep.subr.bf16.mxu0 %v233
    %406 = vmatpush1.bf16.msra.mxu0 %v232
    %407 = vmatprep.subr.bf16.mxu0 0
    %408 = vmatpush1.bf16.msra.mxu0 0
    %409 = vmatprep.subr.bf16.mxu0 0
    %410 = vmatpush1.bf16.msra.mxu0 0
    %411 = vmatprep.subr.bf16.mxu0 0
    %412 = vmatpush1.bf16.msra.mxu0 0
    %413 = vmatprep.subr.bf16.mxu0 0
    %414 = vmatpush1.bf16.msra.mxu0 0
    %415 = vmatprep.subr.bf16.mxu0 0
    %416 = vmatpush1.bf16.msra.mxu0 0
    %417 = vmatprep.subr.bf16.mxu0 0
    %418 = vmatpush1.bf16.msra.mxu0 0
    %419 = vmatprep.subr.bf16.mxu0 0
    %420 = vmatpush1.bf16.msra.mxu0 0
    %421 = vmatprep.subr.bf16.mxu0 0
    %422 = vmatpush1.bf16.msra.mxu0 0
    %423 = vmatprep.subr.bf16.mxu0 0
    %424 = vmatpush1.bf16.msra.mxu0 0
    %425 = vmatprep.subr.bf16.mxu0 0
    %426 = vmatpush1.bf16.msra.mxu0 0
    %427 = vmatprep.subr.bf16.mxu0 0
    %428 = vmatpush1.bf16.msra.mxu0 0
    %429 = vmatprep.subr.bf16.mxu0 0
    %430 = vmatpush1.bf16.msra.mxu0 0
    %431 = vmatprep.mubr.bf16.mxu0 0
    %432 = vmatmul.mubr.bf16.gmra.mrb[0].mxu0 %v268
    %v433 = vpop.f32.mrb[0].mxu0
    %v434 = vadd.f32 %v93, %v433
    %v435 = vpop.f32.mrb[0].mxu0
    %v436 = vadd.f32 %v97, %v435
    %v437 = vpop.f32.mrb[0].mxu0
    %v438 = vadd.f32 %v93, %v437
    %v439 = vpop.f32.mrb[0].mxu0
    %v440 = vadd.f32 %v97, %v439
    %441 = vdwg.mxu0
    %442 = vst [vmem:[%s3] sm:$0xff] %v305
    %443 = vst [vmem:[%s3 + $0x8] sm:$0xff] %v307
    %444 = vst [vmem:[%s3 + $0x10] sm:$0xff] %v348
    %445 = vst [vmem:[%s3 + $0x18] sm:$0xff] %v350
    %446 = vst [vmem:[%s3 + $0x20] sm:$0xff] %v391
    %447 = vst [vmem:[%s3 + $0x28] sm:$0xff] %v393
    %448 = vst [vmem:[%s3 + $0x30] sm:$0xff] %v434
    %449 = vst [vmem:[%s3 + $0x38] sm:$0xff] %v436
    %450 = vst [vmem:[%s3 + $0x40] sm:$0xff] %v309
    %451 = vst [vmem:[%s3 + $0x48] sm:$0xff] %v311
    %452 = vst [vmem:[%s3 + $0x50] sm:$0xff] %v352
    %453 = vst [vmem:[%s3 + $0x58] sm:$0xff] %v354
    %454 = vst [vmem:[%s3 + $0x60] sm:$0xff] %v395
    %455 = vst [vmem:[%s3 + $0x68] sm:$0xff] %v397
    %456 = vst [vmem:[%s3 + $0x70] sm:$0xff] %v438
    %457 = vst [vmem:[%s3 + $0x78] sm:$0xff] %v440
    // Predicated region
    $region18: #{bidaf_output_forward.5} parent=1 // pred_check
      _
    $region19: #{bidaf_output_forward.5} parent=1 // pred_check_branch
      %459 = sbr.rel (0) target = $region21
    $region20: #{bidaf_output_forward.5} parent=1 // pred_region
      _
    $region21: #{bidaf_output_forward.5} parent=1 // pred_fallthru
      _
    // Predicated region
    $region22: #{bidaf_output_forward.5} parent=1 // pred_check
      _
    $region23: #{bidaf_output_forward.5} parent=1 // pred_check_branch
      %461 = sbr.rel (0) target = $region25
    $region24: #{bidaf_output_forward.5} parent=1 // pred_region
      _
    $region25: #{bidaf_output_forward.5} parent=1 // pred_fallthru
      _
    %462 = vsyncpa [#allocation3], 1

// kernel: bidaf_output_forward.9
$region0: #{bidaf_output_forward.9}
  #allocation0 [shape = 'u32[]', space=smem, size = 0x4, offset = 0x4, fixed_abs, tag = 'smem constant byte address 0x4 - core index']
  #allocation1 [shape = 'u32[144,128]{1,0:T(1,128)}', space=vmem, size = 0x12000, scoped, tag = 'internal scratch']
  %s0 = inlined_call_operand.vmem [shape: f32[2,8], index: 0, kind: input, shape index: {}]
  %s1 = inlined_call_operand.vmem [shape: f32[2,8], index: 1, kind: input, shape index: {}]
  %s2 = inlined_call_operand.vmem [shape: f32[2,8], index: 2, kind: input, shape index: {}]
  %s3 = inlined_call_operand.hbm [shape: f32[2,8], index: 3, kind: output, shape index: {0}]
  %s4 = inlined_call_operand.hbm [shape: f32[2,8], index: 4, kind: output, shape index: {1}]
  %5 = xla_tuple %s3, %s4
  %s6 = sld [smem:[#allocation0]]
  $region30: #{bidaf_output_forward.9} parent=0
    _
  %s8 = ssub.s32 1, %s6
  %s9 = scalar_select 0, %s8, %s6
  $region1: #{bidaf_output_forward.9} parent=0
    #allocation2 [shape = 'u8[1024]{0}', space=vmem, size = 0x400, scoped, tag = 'output window, operand 0, single buffered']
    #allocation3 [shape = 's32[1]{0}', space=sflag, size = 0x4, scoped, tag = 'scoped memory for bidaf_output_forward.9']
    #allocation4 [shape = 'u8[1024]{0}', space=vmem, size = 0x400, scoped, tag = 'output window, operand 1, single buffered']
    #allocation5 [shape = 's32[1]{0}', space=sflag, size = 0x4, scoped, tag = 'scoped memory for bidaf_output_forward.9']
    %10 = vsyncpa [#allocation3], 0
    %11 = vsyncpa [#allocation5], 0
    // Predicated region
    $region2: #{bidaf_output_forward.9} parent=1 // pred_check
      _
    $region3: #{bidaf_output_forward.9} parent=1 // pred_check_branch
      %13 = sbr.rel (0) target = $region5
    $region4: #{bidaf_output_forward.9} parent=1 // pred_region
      _
    $region5: #{bidaf_output_forward.9} parent=1 // pred_fallthru
      _
    // Predicated region
    $region6: #{bidaf_output_forward.9} parent=1 // pred_check
      _
    $region7: #{bidaf_output_forward.9} parent=1 // pred_check_branch
      %15 = sbr.rel (0) target = $region9
    $region8: #{bidaf_output_forward.9} parent=1 // pred_region
      _
    $region9: #{bidaf_output_forward.9} parent=1 // pred_fallthru
      _
    // Predicated region
    $region10: #{bidaf_output_forward.9} parent=1 // pred_check
      _
    $region11: #{bidaf_output_forward.9} parent=1 // pred_check_branch
      %17 = sbr.rel (0) target = $region13
    $region12: #{bidaf_output_forward.9} parent=1 // pred_region
      _
    $region13: #{bidaf_output_forward.9} parent=1 // pred_fallthru
      _
    %v18 = vld [vmem:[%s2] sm:$0x3]
    %v19 = vld [vmem:[%s0] sm:$0x3]
    %v20 = vmul.f32 %v18, %v19
    %v21 = vsub.f32 1.0, %v18
    %v22 = vmul.f32 %v21, -1e+30
    %v23 = vadd.f32 %v20, %v22
    %vm24 = vcmask 58368
    %v25 = vsel %vm24, %v23, -inf
    %26 = vmax.xlane.f32.xlu0 %v25
    %v27 = vpop.xlane.xlu0 %26
    %v28 = vsub.f32 %v23, %v27
    %v29 = vmul.f32 %v28, 1.442695
    %v30 = vpow.pop %v29
    %v31 = vsel %vm24, %v30, 0.0
    %32 = vadd.xlane.f32.xlu0 %v31
    %v33 = vpop.xlane.xlu0 %32
    %v34 = vlog2.pop %v33
    %v35 = vmul.f32 %v34, 0.6931472
    %v36 = vadd.f32 %v27, %v35
    %v37 = vsub.f32 %v23, %v36
    %38 = vst.msk [vmem:[#allocation2] sm:$0x3] %vm24, %v37
    %v39 = vld [vmem:[%s1] sm:$0x3]
    %v40 = vmul.f32 %v18, %v39
    %v41 = vadd.f32 %v40, %v22
    %v42 = vsel %vm24, %v41, -inf
    %43 = vmax.xlane.f32.xlu0 %v42
    %v44 = vpop.xlane.xlu0 %43
    %v45 = vsub.f32 %v41, %v44
    %v46 = vmul.f32 %v45, 1.442695
    %v47 = vpow.pop %v46
    %v48 = vsel %vm24, %v47, 0.0
    %49 = vadd.xlane.f32.xlu0 %v48
    %v50 = vpop.xlane.xlu0 %49
    %v51 = vlog2.pop %v50
    %v52 = vmul.f32 %v51, 0.6931472
    %v53 = vadd.f32 %v44, %v52
    %v54 = vsub.f32 %v41, %v53
    %55 = vst.msk [vmem:[#allocation4] sm:$0x3] %vm24, %v54
    // Predicated region
    $region14: #{bidaf_output_forward.9} parent=1 // pred_check
      _
    $region15: #{bidaf_output_forward.9} parent=1 // pred_check_branch
      %57 = sbr.rel (0) target = $region17
    $region16: #{bidaf_output_forward.9} parent=1 // pred_region
      %s59 = ssub.s32 32, 32
      %60 = vsyncadd [#allocation3], %s59
      %s62 = sshll.u32 [#allocation2], 4
      %s63 = int_to_ptr.vmem [resolvable:$true] %s62
      %65 = dma.vmem_to_hbm [thread:$0]  %s63, 32, %s3, [#allocation3]
    $region17: #{bidaf_output_forward.9} parent=1 // pred_fallthru
      _
    // Predicated region
    $region18: #{bidaf_output_forward.9} parent=1 // pred_check
      _
    $region19: #{bidaf_output_forward.9} parent=1 // pred_check_branch
      %67 = sbr.rel (0) target = $region21
    $region20: #{bidaf_output_forward.9} parent=1 // pred_region
      %s69 = ssub.s32 32, 32
      %70 = vsyncadd [#allocation5], %s69
      %s72 = sshll.u32 [#allocation4], 4
      %s73 = int_to_ptr.vmem [resolvable:$true] %s72
      %75 = dma.vmem_to_hbm [thread:$0]  %s73, 32, %s4, [#allocation5]
    $region21: #{bidaf_output_forward.9} parent=1 // pred_fallthru
      _
    // Predicated region
    $region22: #{bidaf_output_forward.9} parent=1 // pred_check
      _
    $region23: #{bidaf_output_forward.9} parent=1 // pred_check_branch
      %77 = sbr.rel (0) target = $region25
    $region24: #{bidaf_output_forward.9} parent=1 // pred_region
      %78 = dma.done [#allocation3], 32
    $region25: #{bidaf_output_forward.9} parent=1 // pred_fallthru
      _
    // Predicated region
    $region26: #{bidaf_output_forward.9} parent=1 // pred_check
      _
    $region27: #{bidaf_output_forward.9} parent=1 // pred_check_branch
      %80 = sbr.rel (0) target = $region29
    $region28: #{bidaf_output_forward.9} parent=1 // pred_region
      %81 = dma.done [#allocation5], 32
    $region29: #{bidaf_output_forward.9} parent=1 // pred_fallthru
      _
    %82 = vsyncpa [#allocation3], 1
    %83 = vsyncpa [#allocation5], 1

// kernel: bidaf_output_forward.7
$region0: #{bidaf_output_forward.7}
  #allocation0 [shape = 'u32[]', space=smem, size = 0x4, offset = 0x4, fixed_abs, tag = 'smem constant byte address 0x4 - core index']
  #allocation1 [shape = 'u32[144,128]{1,0:T(1,128)}', space=vmem, size = 0x12000, scoped, tag = 'internal scratch']
  #allocation2 [shape = 'f32[2,128]{1,0:T(2,128)}', space=vmem, size = 0x400, scoped, tag = 'scratch operand']
  #allocation3 [shape = 'f32[2,128]{1,0:T(2,128)}', space=vmem, size = 0x400, scoped, tag = 'scratch operand']
  #allocation4 [shape = 'f32[2,128]{1,0:T(2,128)}', space=vmem, size = 0x400, scoped, tag = 'scratch operand']
  #allocation5 [shape = 'f32[2,128]{1,0:T(2,128)}', space=vmem, size = 0x400, scoped, tag = 'scratch operand']
  %s0 = inlined_call_operand.vmem [shape: s32[2,1], index: 0, kind: input, shape index: {}]
  %s1 = inlined_call_operand.vmem [shape: f32[2,8,1024], index: 1, kind: input, shape index: {}, may-alias: {1,2}]
  %s2 = inlined_call_operand.vmem [shape: f32[2,8,1024], index: 2, kind: input, shape index: {}, may-alias: {1,2}]
  %s3 = inlined_call_operand.vmem [shape: bf16[128,512], index: 3, kind: input, shape index: {}]
  %s4 = inlined_call_operand.hbm [shape: bf16[128,512], index: 4, kind: input, shape index: {}]
  %s5 = inlined_call_operand.vmem [shape: f32[2,8,128], index: 5, kind: output, shape index: {0}]
  %s6 = inlined_call_operand.vmem [shape: f32[2,8,128], index: 6, kind: output, shape index: {1}]
  %7 = xla_tuple %s5, %s6
  %s8 = sld [smem:[#allocation0]]
  $region46: #{bidaf_output_forward.7} parent=0
    _
  %s10 = ssub.s32 1, %s8
  %s11 = scalar_select 0, %s10, %s8
  $region1: #{bidaf_output_forward.7} parent=0
    #allocation6 [shape = 'u8[131072]{0}', space=vmem, size = 0x20000, scoped, tag = 'input window, operand 4, single buffered']
    #allocation7 [shape = 's32[1]{0}', space=sflag, size = 0x4, scoped, tag = 'scoped memory for bidaf_output_forward.7']
    %12 = vsyncpa [#allocation7], 0
    // Predicated region
    $region2: #{bidaf_output_forward.7} parent=1 // pred_check
      _
    $region3: #{bidaf_output_forward.7} parent=1 // pred_check_branch
      %14 = sbr.rel (0) target = $region5
    $region4: #{bidaf_output_forward.7} parent=1 // pred_region
      _
    $region5: #{bidaf_output_forward.7} parent=1 // pred_fallthru
      _
    // Predicated region
    $region6: #{bidaf_output_forward.7} parent=1 // pred_check
      _
    $region7: #{bidaf_output_forward.7} parent=1 // pred_check_branch
      %16 = sbr.rel (0) target = $region9
    $region8: #{bidaf_output_forward.7} parent=1 // pred_region
      _
    $region9: #{bidaf_output_forward.7} parent=1 // pred_fallthru
      _
    // Predicated region
    $region10: #{bidaf_output_forward.7} parent=1 // pred_check
      _
    $region11: #{bidaf_output_forward.7} parent=1 // pred_check_branch
      %18 = sbr.rel (0) target = $region13
    $region12: #{bidaf_output_forward.7} parent=1 // pred_region
      %s19 = ssub.s32 0, 0
      %p20 = scmp.lt.s32.totalorder %s19, 0
      %s21 = scalar_select %p20, %s19, 0
      %s22 = smul.addr %s21, 8
      %s23 = smul.addr %s22, 8
      %s24 = scalar_lea.vmem %s2, %s23
      %s25 = ssub.s32 0, 0
    $region13: #{bidaf_output_forward.7} parent=1 // pred_fallthru
      _
    // Predicated region
    $region14: #{bidaf_output_forward.7} parent=1 // pred_check
      _
    $region15: #{bidaf_output_forward.7} parent=1 // pred_check_branch
      %27 = sbr.rel (0) target = $region17
    $region16: #{bidaf_output_forward.7} parent=1 // pred_region
      _
    $region17: #{bidaf_output_forward.7} parent=1 // pred_fallthru
      _
    // Predicated region
    $region18: #{bidaf_output_forward.7} parent=1 // pred_check
      _
    $region19: #{bidaf_output_forward.7} parent=1 // pred_check_branch
      %29 = sbr.rel (0) target = $region21
    $region20: #{bidaf_output_forward.7} parent=1 // pred_region
      %s31 = ssub.s32 4096, 4096
      %32 = vsyncadd [#allocation7], %s31
      %s33 = sshll.u32 [#allocation6], 4
      %s34 = int_to_ptr.vmem [resolvable:$true] %s33
      %39 = dma.hbm_to_vmem [thread:$0]  %s4, 4096, %s34, [#allocation7], 256, 256, 16
    $region21: #{bidaf_output_forward.7} parent=1 // pred_fallthru
      _
    // Predicated region
    $region22: #{bidaf_output_forward.7} parent=1 // pred_check
      _
    $region23: #{bidaf_output_forward.7} parent=1 // pred_check_branch
      %41 = sbr.rel (0) target = $region25
    $region24: #{bidaf_output_forward.7} parent=1 // pred_region
      %42 = dma.done [#allocation7], 4096
    $region25: #{bidaf_output_forward.7} parent=1 // pred_fallthru
      _
    %s43 = ssub.s32 0, 0
    %p44 = scmp.lt.s32.totalorder %s43, 0
    %s45 = scalar_select %p44, %s43, 0
    %s46 = smul.addr %s45, 8
    %s47 = smul.addr %s46, 8
    %s48 = scalar_lea.vmem %s2, %s47
    %s49 = ssub.s32 0, 0
    %p50 = scmp.lt.s32.totalorder %s49, 0
    %s51 = scalar_select %p50, %s49, 0
    %s52 = smul.addr %s51, 8
    %s53 = scalar_lea.vmem %s6, %s52
    %s54 = ssub.s32 0, 0
    %p55 = scmp.lt.s32.totalorder %s54, 0
    %s56 = scalar_select %p55, %s54, 0
    %s57 = smul.addr %s56, 8
    %s58 = smul.addr %s57, 8
    %s59 = scalar_lea.vmem %s2, %s58
    %s60 = ssub.s32 0, 0
    %s61 = ssub.s32 0, 0
    %p62 = scmp.lt.s32.totalorder %s61, 0
    %s63 = scalar_select %p62, %s61, 0
    %s64 = smul.addr %s63, 8
    %s65 = scalar_lea.vmem %s6, %s64
    %s66 = ssub.s32 0, 0
    %p68 = scmp.eq.s32.totalorder 0, 0
    // Predicated region
    $region26: #{bidaf_output_forward.7} parent=1 // pred_check
      %p69 = pneg %p68
    $region27: #{bidaf_output_forward.7} parent=1 // pred_check_branch
      %71 = sbr.rel (%p69) target = $region29
    $region28: #{bidaf_output_forward.7} parent=1 // pred_region
      %72 = vst [vmem:[#allocation2] sm:$0x3] 0.0
      %73 = vst [vmem:[#allocation3] sm:$0x3] 0.0
      %74 = vst [vmem:[#allocation4] sm:$0x3] 0.0
      %75 = vst [vmem:[#allocation5] sm:$0x3] 0.0
    $region29: #{bidaf_output_forward.7} parent=1 // pred_fallthru
      _
    %v76 = vld [vmem:[%s0] sm:$0x3]
    %s77 = smul.u32 0, 8
    %v78 = vld [vmem:[#allocation2] sm:$0x3]
    %v79 = vld [vmem:[#allocation3] sm:$0x3]
    %v80 = vld [vmem:[#allocation4] sm:$0x3]
    %v81 = vld [vmem:[#allocation5] sm:$0x3]
    %v82 = vld [vmem:[%s1] ss:$8 sm:$0xf]
    %s83 = scalar_lea.vmem %s1, 64
    %v84 = vld [vmem:[%s83] ss:$8 sm:$0xf]
    %v85 = vpack.c.bf16 %v78, %v78
    %v86 = vld [vmem:[%s3] sm:$0xff]
    %v87 = vld [vmem:[%s3 + $0x8] sm:$0xff]
    %v88 = vld [vmem:[%s3 + $0x10] sm:$0xff]
    %v89 = vld [vmem:[%s3 + $0x18] sm:$0xff]
    %v90 = vld [vmem:[%s3 + $0x20] sm:$0xff]
    %v91 = vld [vmem:[%s3 + $0x28] sm:$0xff]
    %v92 = vld [vmem:[%s3 + $0x30] sm:$0xff]
    %v93 = vld [vmem:[%s3 + $0x38] sm:$0xff]
    %v94 = vld [vmem:[%s3 + $0x40] sm:$0xff]
    %v95 = vld [vmem:[%s3 + $0x48] sm:$0xff]
    %v96 = vld [vmem:[%s3 + $0x50] sm:$0xff]
    %v97 = vld [vmem:[%s3 + $0x58] sm:$0xff]
    %v98 = vld [vmem:[%s3 + $0x60] sm:$0xff]
    %v99 = vld [vmem:[%s3 + $0x68] sm:$0xff]
    %v100 = vld [vmem:[%s3 + $0x70] sm:$0xff]
    %v101 = vld [vmem:[%s3 + $0x78] sm:$0xff]
    %v102 = vld [vmem:[%s3 + $0x80] sm:$0xff]
    %v103 = vld [vmem:[%s3 + $0x88] sm:$0xff]
    %v104 = vld [vmem:[%s3 + $0x90] sm:$0xff]
    %v105 = vld [vmem:[%s3 + $0x98] sm:$0xff]
    %v106 = vld [vmem:[%s3 + $0xa0] sm:$0xff]
    %v107 = vld [vmem:[%s3 + $0xa8] sm:$0xff]
    %v108 = vld [vmem:[%s3 + $0xb0] sm:$0xff]
    %v109 = vld [vmem:[%s3 + $0xb8] sm:$0xff]
    %v110 = vld [vmem:[%s3 + $0xc0] sm:$0xff]
    %v111 = vld [vmem:[%s3 + $0xc8] sm:$0xff]
    %v112 = vld [vmem:[%s3 + $0xd0] sm:$0xff]
    %v113 = vld [vmem:[%s3 + $0xd8] sm:$0xff]
    %v114 = vld [vmem:[%s3 + $0xe0] sm:$0xff]
    %v115 = vld [vmem:[%s3 + $0xe8] sm:$0xff]
    %v116 = vld [vmem:[%s3 + $0xf0] sm:$0xff]
    %v117 = vld [vmem:[%s3 + $0xf8] sm:$0xff]
    %v150 = vunpack.c.l.b16 %v86
    %v151 = vunpack.c.h.b16 %v86
    %v152 = vunpack.c.l.b16 %v87
    %v153 = vunpack.c.h.b16 %v87
    %v154 = vunpack.c.l.b16 %v88
    %v155 = vunpack.c.h.b16 %v88
    %v156 = vunpack.c.l.b16 %v89
    %v157 = vunpack.c.h.b16 %v89
    %v158 = vunpack.c.l.b16 %v90
    %v159 = vunpack.c.h.b16 %v90
    %v160 = vunpack.c.l.b16 %v91
    %v161 = vunpack.c.h.b16 %v91
    %v162 = vunpack.c.l.b16 %v92
    %v163 = vunpack.c.h.b16 %v92
    %v164 = vunpack.c.l.b16 %v93
    %v165 = vunpack.c.h.b16 %v93
    %v166 = vunpack.c.l.b16 %v94
    %v167 = vunpack.c.h.b16 %v94
    %v168 = vunpack.c.l.b16 %v95
    %v169 = vunpack.c.h.b16 %v95
    %v170 = vunpack.c.l.b16 %v96
    %v171 = vunpack.c.h.b16 %v96
    %v172 = vunpack.c.l.b16 %v97
    %v173 = vunpack.c.h.b16 %v97
    %v174 = vunpack.c.l.b16 %v98
    %v175 = vunpack.c.h.b16 %v98
    %v176 = vunpack.c.l.b16 %v99
    %v177 = vunpack.c.h.b16 %v99
    %v178 = vunpack.c.l.b16 %v100
    %v179 = vunpack.c.h.b16 %v100
    %v180 = vunpack.c.l.b16 %v101
    %v181 = vunpack.c.h.b16 %v101
    %v182 = vunpack.c.l.b16 %v102
    %v183 = vunpack.c.h.b16 %v102
    %v184 = vunpack.c.l.b16 %v103
    %v185 = vunpack.c.h.b16 %v103
    %v186 = vunpack.c.l.b16 %v104
    %v187 = vunpack.c.h.b16 %v104
    %v188 = vunpack.c.l.b16 %v105
    %v189 = vunpack.c.h.b16 %v105
    %v190 = vunpack.c.l.b16 %v106
    %v191 = vunpack.c.h.b16 %v106
    %v192 = vunpack.c.l.b16 %v107
    %v193 = vunpack.c.h.b16 %v107
    %v194 = vunpack.c.l.b16 %v108
    %v195 = vunpack.c.h.b16 %v108
    %v196 = vunpack.c.l.b16 %v109
    %v197 = vunpack.c.h.b16 %v109
    %v198 = vunpack.c.l.b16 %v110
    %v199 = vunpack.c.h.b16 %v110
    %v200 = vunpack.c.l.b16 %v111
    %v201 = vunpack.c.h.b16 %v111
    %v202 = vunpack.c.l.b16 %v112
    %v203 = vunpack.c.h.b16 %v112
    %v204 = vunpack.c.l.b16 %v113
    %v205 = vunpack.c.h.b16 %v113
    %v206 = vunpack.c.l.b16 %v114
    %v207 = vunpack.c.h.b16 %v114
    %v208 = vunpack.c.l.b16 %v115
    %v209 = vunpack.c.h.b16 %v115
    %v210 = vunpack.c.l.b16 %v116
    %v211 = vunpack.c.h.b16 %v116
    %v212 = vunpack.c.l.b16 %v117
    %v213 = vunpack.c.h.b16 %v117
    %v214 = vpack.c.b16 %v154, %v150
    %v215 = vpack.c.b16 %v155, %v151
    %v216 = vpack.c.b16 %v156, %v152
    %v217 = vpack.c.b16 %v157, %v153
    %v218 = vpack.c.b16 %v162, %v158
    %v219 = vpack.c.b16 %v163, %v159
    %v220 = vpack.c.b16 %v164, %v160
    %v221 = vpack.c.b16 %v165, %v161
    %v222 = vpack.c.b16 %v170, %v166
    %v223 = vpack.c.b16 %v171, %v167
    %v224 = vpack.c.b16 %v172, %v168
    %v225 = vpack.c.b16 %v173, %v169
    %v226 = vpack.c.b16 %v178, %v174
    %v227 = vpack.c.b16 %v179, %v175
    %v228 = vpack.c.b16 %v180, %v176
    %v229 = vpack.c.b16 %v181, %v177
    %v230 = vpack.c.b16 %v186, %v182
    %v231 = vpack.c.b16 %v187, %v183
    %v232 = vpack.c.b16 %v188, %v184
    %v233 = vpack.c.b16 %v189, %v185
    %v234 = vpack.c.b16 %v194, %v190
    %v235 = vpack.c.b16 %v195, %v191
    %v236 = vpack.c.b16 %v196, %v192
    %v237 = vpack.c.b16 %v197, %v193
    %v238 = vpack.c.b16 %v202, %v198
    %v239 = vpack.c.b16 %v203, %v199
    %v240 = vpack.c.b16 %v204, %v200
    %v241 = vpack.c.b16 %v205, %v201
    %v242 = vpack.c.b16 %v210, %v206
    %v243 = vpack.c.b16 %v211, %v207
    %v244 = vpack.c.b16 %v212, %v208
    %v245 = vpack.c.b16 %v213, %v209
    %278 = vmatprep.subr.bf16.mxu0 %v215
    %279 = vmatpush1.bf16.msra.mxu0 %v214
    %280 = vmatprep.subr.bf16.mxu0 %v219
    %281 = vmatpush1.bf16.msra.mxu0 %v218
    %282 = vmatprep.subr.bf16.mxu0 %v223
    %283 = vmatpush1.bf16.msra.mxu0 %v222
    %284 = vmatprep.subr.bf16.mxu0 %v227
    %285 = vmatpush1.bf16.msra.mxu0 %v226
    %286 = vmatprep.subr.bf16.mxu0 %v231
    %287 = vmatpush1.bf16.msra.mxu0 %v230
    %288 = vmatprep.subr.bf16.mxu0 %v235
    %289 = vmatpush1.bf16.msra.mxu0 %v234
    %290 = vmatprep.subr.bf16.mxu0 %v239
    %291 = vmatpush1.bf16.msra.mxu0 %v238
    %292 = vmatprep.subr.bf16.mxu0 %v243
    %293 = vmatpush1.bf16.msra.mxu0 %v242
    %294 = vmatprep.subr.bf16.mxu0 0
    %295 = vmatpush1.bf16.msra.mxu0 0
    %296 = vmatprep.subr.bf16.mxu0 0
    %297 = vmatpush1.bf16.msra.mxu0 0
    %298 = vmatprep.subr.bf16.mxu0 0
    %299 = vmatpush1.bf16.msra.mxu0 0
    %300 = vmatprep.subr.bf16.mxu0 0
    %301 = vmatpush1.bf16.msra.mxu0 0
    %302 = vmatprep.subr.bf16.mxu0 0
    %303 = vmatpush1.bf16.msra.mxu0 0
    %304 = vmatprep.subr.bf16.mxu0 0
    %305 = vmatpush1.bf16.msra.mxu0 0
    %306 = vmatprep.subr.bf16.mxu0 0
    %307 = vmatpush1.bf16.msra.mxu0 0
    %308 = vmatprep.subr.bf16.mxu0 0
    %309 = vmatpush1.bf16.msra.mxu0 0
    %310 = vmatprep.mubr.bf16.mxu0 0
    %311 = vmatmul.mubr.bf16.gmra.mrb[0].mxu0 %v85
    %v312 = vpop.f32.mrb[0].mxu0
    %v313 = vadd.f32 0.0, %v312
    %v314 = vpop.f32.mrb[0].mxu0
    %v315 = vadd.f32 0.0, %v314
    %v316 = vpop.f32.mrb[0].mxu0
    %v317 = vpop.f32.mrb[0].mxu0
    %318 = vdwg.mxu0
    %319 = vmatprep.subr.bf16.mxu0 %v217
    %320 = vmatpush1.bf16.msra.mxu0 %v216
    %321 = vmatprep.subr.bf16.mxu0 %v221
    %322 = vmatpush1.bf16.msra.mxu0 %v220
    %323 = vmatprep.subr.bf16.mxu0 %v225
    %324 = vmatpush1.bf16.msra.mxu0 %v224
    %325 = vmatprep.subr.bf16.mxu0 %v229
    %326 = vmatpush1.bf16.msra.mxu0 %v228
    %327 = vmatprep.subr.bf16.mxu0 %v233
    %328 = vmatpush1.bf16.msra.mxu0 %v232
    %329 = vmatprep.subr.bf16.mxu0 %v237
    %330 = vmatpush1.bf16.msra.mxu0 %v236
    %331 = vmatprep.subr.bf16.mxu0 %v241
    %332 = vmatpush1.bf16.msra.mxu0 %v240
    %333 = vmatprep.subr.bf16.mxu0 %v245
    %334 = vmatpush1.bf16.msra.mxu0 %v244
    %335 = vmatprep.subr.bf16.mxu0 0
    %336 = vmatpush1.bf16.msra.mxu0 0
    %337 = vmatprep.subr.bf16.mxu0 0
    %338 = vmatpush1.bf16.msra.mxu0 0
    %339 = vmatprep.subr.bf16.mxu0 0
    %340 = vmatpush1.bf16.msra.mxu0 0
    %341 = vmatprep.subr.bf16.mxu0 0
    %342 = vmatpush1.bf16.msra.mxu0 0
    %343 = vmatprep.subr.bf16.mxu0 0
    %344 = vmatpush1.bf16.msra.mxu0 0
    %345 = vmatprep.subr.bf16.mxu0 0
    %346 = vmatpush1.bf16.msra.mxu0 0
    %347 = vmatprep.subr.bf16.mxu0 0
    %348 = vmatpush1.bf16.msra.mxu0 0
    %349 = vmatprep.subr.bf16.mxu0 0
    %350 = vmatpush1.bf16.msra.mxu0 0
    %351 = vmatprep.mubr.bf16.mxu0 0
    %352 = vmatmul.mubr.bf16.gmra.mrb[0].mxu0 %v85
    %v353 = vpop.f32.mrb[0].mxu0
    %v354 = vadd.f32 0.0, %v353
    %v355 = vpop.f32.mrb[0].mxu0
    %v356 = vadd.f32 0.0, %v355
    %v357 = vpop.f32.mrb[0].mxu0
    %v358 = vpop.f32.mrb[0].mxu0
    %359 = vdwg.mxu0
    %v364 = vcombine.low %v313, %v315
    %v365 = vcombine.low %v354, %v356
    %v367 = vunpack.c.l.s4 1966171168
    %v368 = vunpack.c.0.s8 %v367
    %v369 = vlaneseq
    %v370 = vshrl.u32 %v369, 7
    %v371 = vsub.s32 %v368, %v370
    %v372 = vrot.slane %v364, %v371
    %v374 = vunpack.c.l.s4 1966171168
    %v375 = vunpack.c.0.s8 %v374
    %v376 = vlaneseq
    %v377 = vshrl.u32 %v376, 7
    %v378 = vsub.s32 %v375, %v377
    %v379 = vrot.slane %v365, %v378
    %v380 = vcombine.low %v372, %v379
    %v381 = vcombine.high %v372, %v379
    %v383 = vunpack.c.l.s4 1966171168
    %v384 = vunpack.c.0.s8 %v383
    %v385 = vlaneseq
    %v386 = vshrl.u32 %v385, 7
    %v387 = vsub.s32 %v384, %v386
    %v388 = vrot.slane %v380, %v387
    %v390 = vunpack.c.l.s4 1966171168
    %v391 = vunpack.c.0.s8 %v390
    %v392 = vlaneseq
    %v393 = vshrl.u32 %v392, 7
    %v394 = vsub.s32 %v391, %v393
    %v395 = vrot.slane %v381, %v394
    %v398 = vadd.f32 %v82, %v388
    %v399 = vadd.f32 %v84, %v395
    %v400 = vstv %s77
    %vm401 = vcmp.lt.s32.totalorder %v400, %v76
    %v402 = vxor.u32 %v398, 2147483648
    %v403 = vxor.u32 %v399, 2147483648
    %v404 = vmul.f32 %v402, 1.442695
    %v405 = vpow.pop %v404
    %v406 = vmul.f32 %v403, 1.442695
    %v407 = vpow.pop %v406
    %v408 = vadd.f32 %v405, 1.0
    %v409 = vadd.f32 %v407, 1.0
    %v410 = vrcp.pop %v408
    %v411 = vmul.f32 1.0, %v410
    %v412 = vrcp.pop %v409
    %v413 = vmul.f32 1.0, %v412
    %v416 = vrot.slane %v398, 1
    %v417 = vrot.slane %v399, 1
    %v420 = vxor.u32 %v416, 2147483648
    %v421 = vxor.u32 %v417, 2147483648
    %v422 = vmul.f32 %v420, 1.442695
    %v423 = vpow.pop %v422
    %v424 = vmul.f32 %v421, 1.442695
    %v425 = vpow.pop %v424
    %v426 = vadd.f32 %v423, 1.0
    %v427 = vadd.f32 %v425, 1.0
    %v428 = vrcp.pop %v426
    %v429 = vmul.f32 1.0, %v428
    %v430 = vrcp.pop %v427
    %v431 = vmul.f32 1.0, %v430
    %v432 = vrot.slane %v398, 2
    %v433 = vrot.slane %v399, 2
    %v436 = vtanh.pop %v432
    %v437 = vtanh.pop %v433
    %v438 = vrot.slane %v398, 3
    %v439 = vrot.slane %v399, 3
    %v442 = vxor.u32 %v438, 2147483648
    %v443 = vxor.u32 %v439, 2147483648
    %v444 = vmul.f32 %v442, 1.442695
    %v445 = vpow.pop %v444
    %v446 = vmul.f32 %v443, 1.442695
    %v447 = vpow.pop %v446
    %v448 = vadd.f32 %v445, 1.0
    %v449 = vadd.f32 %v447, 1.0
    %v450 = vrcp.pop %v448
    %v451 = vmul.f32 1.0, %v450
    %v452 = vrcp.pop %v449
    %v453 = vmul.f32 1.0, %v452
    %v456 = vunpack.c.l.s4 1966171168
    %v457 = vunpack.c.0.s8 %v456
    %v458 = vlaneseq
    %v459 = vshrl.u32 %v458, 7
    %v460 = vsub.s32 %v457, %v459
    %v461 = vrot.slane %v79, %v460
    %v462 = vcombine.high %v461, %v461
    %v464 = vunpack.c.l.s4 1966171168
    %v465 = vunpack.c.0.s8 %v464
    %v466 = vlaneseq
    %v467 = vshrl.u32 %v466, 7
    %v468 = vsub.s32 %v465, %v467
    %v469 = vrot.slane %v461, %v468
    %v471 = vunpack.c.l.s4 1966171168
    %v472 = vunpack.c.0.s8 %v471
    %v473 = vlaneseq
    %v474 = vshrl.u32 %v473, 7
    %v475 = vsub.s32 %v472, %v474
    %v476 = vrot.slane %v462, %v475
    %v479 = vmul.f32 %v429, %v469
    %v480 = vmul.f32 %v431, %v476
    %v481 = vmul.f32 %v411, %v436
    %v482 = vmul.f32 %v413, %v437
    %v483 = vadd.f32 %v479, %v481
    %v484 = vadd.f32 %v480, %v482
    %v485 = vtanh.pop %v483
    %v486 = vtanh.pop %v484
    %v487 = vmul.f32 %v451, %v485
    %v488 = vmul.f32 %v453, %v486
    %v489 = vsel %vm401, 1, 0
    %490 = vset.pattern.permute.xlu0 0
    %491 = vperm.xlu0 %490, %v489
    %v492 = vpop.permute.xlu0 %491
    %vm493 = vcmp.eq.s32.totalorder %v492, 1
    %v496 = vcombine.low %v487, %v488
    %v498 = vunpack.c.l.s4 1966171168
    %v499 = vunpack.c.0.s8 %v498
    %v500 = vlaneseq
    %v501 = vshrl.u32 %v500, 7
    %v502 = vsub.s32 %v499, %v501
    %v503 = vrot.slane %v496, %v502
    %v505 = vunpack.c.l.s4 1966171168
    %v506 = vunpack.c.0.s8 %v505
    %v507 = vlaneseq
    %v508 = vshrl.u32 %v507, 7
    %v509 = vsub.s32 %v506, %v508
    %v510 = vrot.slane %v503, %v509
    %v512 = vsel %vm493, %v510, %v78
    %v515 = vcombine.low %v483, %v484
    %v517 = vunpack.c.l.s4 1966171168
    %v518 = vunpack.c.0.s8 %v517
    %v519 = vlaneseq
    %v520 = vshrl.u32 %v519, 7
    %v521 = vsub.s32 %v518, %v520
    %v522 = vrot.slane %v515, %v521
    %v524 = vunpack.c.l.s4 1966171168
    %v525 = vunpack.c.0.s8 %v524
    %v526 = vlaneseq
    %v527 = vshrl.u32 %v526, 7
    %v528 = vsub.s32 %v525, %v527
    %v529 = vrot.slane %v522, %v528
    %v531 = vsel %vm493, %v529, %v79
    %v532 = vsel %vm493, %v510, 0.0
    %v535 = vunpack.c.l.s4 1966171168
    %v536 = vunpack.c.0.s8 %v535
    %v537 = vlaneseq
    %v538 = vshrl.u32 %v537, 7
    %v539 = vsub.s32 %v536, %v538
    %v540 = vrot.slane %v532, %v539
    %v541 = vcombine.high %v540, %v540
    %v543 = vunpack.c.l.s4 1966171168
    %v544 = vunpack.c.0.s8 %v543
    %v545 = vlaneseq
    %v546 = vshrl.u32 %v545, 7
    %v547 = vsub.s32 %v544, %v546
    %v548 = vrot.slane %v540, %v547
    %v550 = vunpack.c.l.s4 1966171168
    %v551 = vunpack.c.0.s8 %v550
    %v552 = vlaneseq
    %v553 = vshrl.u32 %v552, 7
    %v554 = vsub.s32 %v551, %v553
    %v555 = vrot.slane %v541, %v554
    %558 = vst [vmem:[%s5] sm:$0x1] %v548
    %559 = vst [vmem:[%s5 + $0x8] sm:$0x1] %v555
    %s560 = ssub.s32 7, %s77
    %s561 = scalar_lea.vmem %s59, 39
    %v562 = vld [vmem:[%s561] ss:$8 sm:$0xf]
    %s563 = scalar_lea.vmem %s59, 103
    %v564 = vld [vmem:[%s563] ss:$8 sm:$0xf]
    %v565 = vpack.c.bf16 %v80, %v80
    %v566 = vld [vmem:[#allocation6] sm:$0xff]
    %v567 = vld [vmem:[#allocation6 + $0x8] sm:$0xff]
    %v568 = vld [vmem:[#allocation6 + $0x10] sm:$0xff]
    %v569 = vld [vmem:[#allocation6 + $0x18] sm:$0xff]
    %v570 = vld [vmem:[#allocation6 + $0x20] sm:$0xff]
    %v571 = vld [vmem:[#allocation6 + $0x28] sm:$0xff]
    %v572 = vld [vmem:[#allocation6 + $0x30] sm:$0xff]
    %v573 = vld [vmem:[#allocation6 + $0x38] sm:$0xff]
    %v574 = vld [vmem:[#allocation6 + $0x40] sm:$0xff]
    %v575 = vld [vmem:[#allocation6 + $0x48] sm:$0xff]
    %v576 = vld [vmem:[#allocation6 + $0x50] sm:$0xff]
    %v577 = vld [vmem:[#allocation6 + $0x58] sm:$0xff]
    %v578 = vld [vmem:[#allocation6 + $0x60] sm:$0xff]
    %v579 = vld [vmem:[#allocation6 + $0x68] sm:$0xff]
    %v580 = vld [vmem:[#allocation6 + $0x70] sm:$0xff]
    %v581 = vld [vmem:[#allocation6 + $0x78] sm:$0xff]
    %v582 = vld [vmem:[#allocation6 + $0x80] sm:$0xff]
    %v583 = vld [vmem:[#allocation6 + $0x88] sm:$0xff]
    %v584 = vld [vmem:[#allocation6 + $0x90] sm:$0xff]
    %v585 = vld [vmem:[#allocation6 + $0x98] sm:$0xff]
    %v586 = vld [vmem:[#allocation6 + $0xa0] sm:$0xff]
    %v587 = vld [vmem:[#allocation6 + $0xa8] sm:$0xff]
    %v588 = vld [vmem:[#allocation6 + $0xb0] sm:$0xff]
    %v589 = vld [vmem:[#allocation6 + $0xb8] sm:$0xff]
    %v590 = vld [vmem:[#allocation6 + $0xc0] sm:$0xff]
    %v591 = vld [vmem:[#allocation6 + $0xc8] sm:$0xff]
    %v592 = vld [vmem:[#allocation6 + $0xd0] sm:$0xff]
    %v593 = vld [vmem:[#allocation6 + $0xd8] sm:$0xff]
    %v594 = vld [vmem:[#allocation6 + $0xe0] sm:$0xff]
    %v595 = vld [vmem:[#allocation6 + $0xe8] sm:$0xff]
    %v596 = vld [vmem:[#allocation6 + $0xf0] sm:$0xff]
    %v597 = vld [vmem:[#allocation6 + $0xf8] sm:$0xff]
    %v630 = vunpack.c.l.b16 %v566
    %v631 = vunpack.c.h.b16 %v566
    %v632 = vunpack.c.l.b16 %v567
    %v633 = vunpack.c.h.b16 %v567
    %v634 = vunpack.c.l.b16 %v568
    %v635 = vunpack.c.h.b16 %v568
    %v636 = vunpack.c.l.b16 %v569
    %v637 = vunpack.c.h.b16 %v569
    %v638 = vunpack.c.l.b16 %v570
    %v639 = vunpack.c.h.b16 %v570
    %v640 = vunpack.c.l.b16 %v571
    %v641 = vunpack.c.h.b16 %v571
    %v642 = vunpack.c.l.b16 %v572
    %v643 = vunpack.c.h.b16 %v572
    %v644 = vunpack.c.l.b16 %v573
    %v645 = vunpack.c.h.b16 %v573
    %v646 = vunpack.c.l.b16 %v574
    %v647 = vunpack.c.h.b16 %v574
    %v648 = vunpack.c.l.b16 %v575
    %v649 = vunpack.c.h.b16 %v575
    %v650 = vunpack.c.l.b16 %v576
    %v651 = vunpack.c.h.b16 %v576
    %v652 = vunpack.c.l.b16 %v577
    %v653 = vunpack.c.h.b16 %v577
    %v654 = vunpack.c.l.b16 %v578
    %v655 = vunpack.c.h.b16 %v578
    %v656 = vunpack.c.l.b16 %v579
    %v657 = vunpack.c.h.b16 %v579
    %v658 = vunpack.c.l.b16 %v580
    %v659 = vunpack.c.h.b16 %v580
    %v660 = vunpack.c.l.b16 %v581
    %v661 = vunpack.c.h.b16 %v581
    %v662 = vunpack.c.l.b16 %v582
    %v663 = vunpack.c.h.b16 %v582
    %v664 = vunpack.c.l.b16 %v583
    %v665 = vunpack.c.h.b16 %v583
    %v666 = vunpack.c.l.b16 %v584
    %v667 = vunpack.c.h.b16 %v584
    %v668 = vunpack.c.l.b16 %v585
    %v669 = vunpack.c.h.b16 %v585
    %v670 = vunpack.c.l.b16 %v586
    %v671 = vunpack.c.h.b16 %v586
    %v672 = vunpack.c.l.b16 %v587
    %v673 = vunpack.c.h.b16 %v587
    %v674 = vunpack.c.l.b16 %v588
    %v675 = vunpack.c.h.b16 %v588
    %v676 = vunpack.c.l.b16 %v589
    %v677 = vunpack.c.h.b16 %v589
    %v678 = vunpack.c.l.b16 %v590
    %v679 = vunpack.c.h.b16 %v590
    %v680 = vunpack.c.l.b16 %v591
    %v681 = vunpack.c.h.b16 %v591
    %v682 = vunpack.c.l.b16 %v592
    %v683 = vunpack.c.h.b16 %v592
    %v684 = vunpack.c.l.b16 %v593
    %v685 = vunpack.c.h.b16 %v593
    %v686 = vunpack.c.l.b16 %v594
    %v687 = vunpack.c.h.b16 %v594
    %v688 = vunpack.c.l.b16 %v595
    %v689 = vunpack.c.h.b16 %v595
    %v690 = vunpack.c.l.b16 %v596
    %v691 = vunpack.c.h.b16 %v596
    %v692 = vunpack.c.l.b16 %v597
    %v693 = vunpack.c.h.b16 %v597
    %v694 = vpack.c.b16 %v634, %v630
    %v695 = vpack.c.b16 %v635, %v631
    %v696 = vpack.c.b16 %v636, %v632
    %v697 = vpack.c.b16 %v637, %v633
    %v698 = vpack.c.b16 %v642, %v638
    %v699 = vpack.c.b16 %v643, %v639
    %v700 = vpack.c.b16 %v644, %v640
    %v701 = vpack.c.b16 %v645, %v641
    %v702 = vpack.c.b16 %v650, %v646
    %v703 = vpack.c.b16 %v651, %v647
    %v704 = vpack.c.b16 %v652, %v648
    %v705 = vpack.c.b16 %v653, %v649
    %v706 = vpack.c.b16 %v658, %v654
    %v707 = vpack.c.b16 %v659, %v655
    %v708 = vpack.c.b16 %v660, %v656
    %v709 = vpack.c.b16 %v661, %v657
    %v710 = vpack.c.b16 %v666, %v662
    %v711 = vpack.c.b16 %v667, %v663
    %v712 = vpack.c.b16 %v668, %v664
    %v713 = vpack.c.b16 %v669, %v665
    %v714 = vpack.c.b16 %v674, %v670
    %v715 = vpack.c.b16 %v675, %v671
    %v716 = vpack.c.b16 %v676, %v672
    %v717 = vpack.c.b16 %v677, %v673
    %v718 = vpack.c.b16 %v682, %v678
    %v719 = vpack.c.b16 %v683, %v679
    %v720 = vpack.c.b16 %v684, %v680
    %v721 = vpack.c.b16 %v685, %v681
    %v722 = vpack.c.b16 %v690, %v686
    %v723 = vpack.c.b16 %v691, %v687
    %v724 = vpack.c.b16 %v692, %v688
    %v725 = vpack.c.b16 %v693, %v689
    %758 = vmatprep.subr.bf16.mxu0 %v695
    %759 = vmatpush1.bf16.msra.mxu0 %v694
    %760 = vmatprep.subr.bf16.mxu0 %v699
    %761 = vmatpush1.bf16.msra.mxu0 %v698
    %762 = vmatprep.subr.bf16.mxu0 %v703
    %763 = vmatpush1.bf16.msra.mxu0 %v702
    %764 = vmatprep.subr.bf16.mxu0 %v707
    %765 = vmatpush1.bf16.msra.mxu0 %v706
    %766 = vmatprep.subr.bf16.mxu0 %v711
    %767 = vmatpush1.bf16.msra.mxu0 %v710
    %768 = vmatprep.subr.bf16.mxu0 %v715
    %769 = vmatpush1.bf16.msra.mxu0 %v714
    %770 = vmatprep.subr.bf16.mxu0 %v719
    %771 = vmatpush1.bf16.msra.mxu0 %v718
    %772 = vmatprep.subr.bf16.mxu0 %v723
    %773 = vmatpush1.bf16.msra.mxu0 %v722
    %774 = vmatprep.subr.bf16.mxu0 0
    %775 = vmatpush1.bf16.msra.mxu0 0
    %776 = vmatprep.subr.bf16.mxu0 0
    %777 = vmatpush1.bf16.msra.mxu0 0
    %778 = vmatprep.subr.bf16.mxu0 0
    %779 = vmatpush1.bf16.msra.mxu0 0
    %780 = vmatprep.subr.bf16.mxu0 0
    %781 = vmatpush1.bf16.msra.mxu0 0
    %782 = vmatprep.subr.bf16.mxu0 0
    %783 = vmatpush1.bf16.msra.mxu0 0
    %784 = vmatprep.subr.bf16.mxu0 0
    %785 = vmatpush1.bf16.msra.mxu0 0
    %786 = vmatprep.subr.bf16.mxu0 0
    %787 = vmatpush1.bf16.msra.mxu0 0
    %788 = vmatprep.subr.bf16.mxu0 0
    %789 = vmatpush1.bf16.msra.mxu0 0
    %790 = vmatprep.mubr.bf16.mxu0 0
    %791 = vmatmul.mubr.bf16.gmra.mrb[0].mxu0 %v565
    %v792 = vpop.f32.mrb[0].mxu0
    %v793 = vadd.f32 0.0, %v792
    %v794 = vpop.f32.mrb[0].mxu0
    %v795 = vadd.f32 0.0, %v794
    %v796 = vpop.f32.mrb[0].mxu0
    %v797 = vpop.f32.mrb[0].mxu0
    %798 = vdwg.mxu0
    %799 = vmatprep.subr.bf16.mxu0 %v697
    %800 = vmatpush1.bf16.msra.mxu0 %v696
    %801 = vmatprep.subr.bf16.mxu0 %v701
    %802 = vmatpush1.bf16.msra.mxu0 %v700
    %803 = vmatprep.subr.bf16.mxu0 %v705
    %804 = vmatpush1.bf16.msra.mxu0 %v704
    %805 = vmatprep.subr.bf16.mxu0 %v709
    %806 = vmatpush1.bf16.msra.mxu0 %v708
    %807 = vmatprep.subr.bf16.mxu0 %v713
    %808 = vmatpush1.bf16.msra.mxu0 %v712
    %809 = vmatprep.subr.bf16.mxu0 %v717
    %810 = vmatpush1.bf16.msra.mxu0 %v716
    %811 = vmatprep.subr.bf16.mxu0 %v721
    %812 = vmatpush1.bf16.msra.mxu0 %v720
    %813 = vmatprep.subr.bf16.mxu0 %v725
    %814 = vmatpush1.bf16.msra.mxu0 %v724
    %815 = vmatprep.subr.bf16.mxu0 0
    %816 = vmatpush1.bf16.msra.mxu0 0
    %817 = vmatprep.subr.bf16.mxu0 0
    %818 = vmatpush1.bf16.msra.mxu0 0
    %819 = vmatprep.subr.bf16.mxu0 0
    %820 = vmatpush1.bf16.msra.mxu0 0
    %821 = vmatprep.subr.bf16.mxu0 0
    %822 = vmatpush1.bf16.msra.mxu0 0
    %823 = vmatprep.subr.bf16.mxu0 0
    %824 = vmatpush1.bf16.msra.mxu0 0
    %825 = vmatprep.subr.bf16.mxu0 0
    %826 = vmatpush1.bf16.msra.mxu0 0
    %827 = vmatprep.subr.bf16.mxu0 0
    %828 = vmatpush1.bf16.msra.mxu0 0
    %829 = vmatprep.subr.bf16.mxu0 0
    %830 = vmatpush1.bf16.msra.mxu0 0
    %831 = vmatprep.mubr.bf16.mxu0 0
    %832 = vmatmul.mubr.bf16.gmra.mrb[0].mxu0 %v565
    %v833 = vpop.f32.mrb[0].mxu0
    %v834 = vadd.f32 0.0, %v833
    %v835 = vpop.f32.mrb[0].mxu0
    %v836 = vadd.f32 0.0, %v835
    %v837 = vpop.f32.mrb[0].mxu0
    %v838 = vpop.f32.mrb[0].mxu0
    %839 = vdwg.mxu0
    %v844 = vcombine.low %v793, %v795
    %v845 = vcombine.low %v834, %v836
    %v847 = vunpack.c.l.s4 1966171168
    %v848 = vunpack.c.0.s8 %v847
    %v849 = vlaneseq
    %v850 = vshrl.u32 %v849, 7
    %v851 = vsub.s32 %v848, %v850
    %v852 = vrot.slane %v844, %v851
    %v854 = vunpack.c.l.s4 1966171168
    %v855 = vunpack.c.0.s8 %v854
    %v856 = vlaneseq
    %v857 = vshrl.u32 %v856, 7
    %v858 = vsub.s32 %v855, %v857
    %v859 = vrot.slane %v845, %v858
    %v860 = vcombine.low %v852, %v859
    %v861 = vcombine.high %v852, %v859
    %v863 = vunpack.c.l.s4 1966171168
    %v864 = vunpack.c.0.s8 %v863
    %v865 = vlaneseq
    %v866 = vshrl.u32 %v865, 7
    %v867 = vsub.s32 %v864, %v866
    %v868 = vrot.slane %v860, %v867
    %v870 = vunpack.c.l.s4 1966171168
    %v871 = vunpack.c.0.s8 %v870
    %v872 = vlaneseq
    %v873 = vshrl.u32 %v872, 7
    %v874 = vsub.s32 %v871, %v873
    %v875 = vrot.slane %v861, %v874
    %v878 = vadd.f32 %v562, %v868
    %v879 = vadd.f32 %v564, %v875
    %v880 = vstv %s560
    %vm881 = vcmp.lt.s32.totalorder %v880, %v76
    %v882 = vxor.u32 %v878, 2147483648
    %v883 = vxor.u32 %v879, 2147483648
    %v884 = vmul.f32 %v882, 1.442695
    %v885 = vpow.pop %v884
    %v886 = vmul.f32 %v883, 1.442695
    %v887 = vpow.pop %v886
    %v888 = vadd.f32 %v885, 1.0
    %v889 = vadd.f32 %v887, 1.0
    %v890 = vrcp.pop %v888
    %v891 = vmul.f32 1.0, %v890
    %v892 = vrcp.pop %v889
    %v893 = vmul.f32 1.0, %v892
    %v896 = vrot.slane %v878, 1
    %v897 = vrot.slane %v879, 1
    %v900 = vxor.u32 %v896, 2147483648
    %v901 = vxor.u32 %v897, 2147483648
    %v902 = vmul.f32 %v900, 1.442695
    %v903 = vpow.pop %v902
    %v904 = vmul.f32 %v901, 1.442695
    %v905 = vpow.pop %v904
    %v906 = vadd.f32 %v903, 1.0
    %v907 = vadd.f32 %v905, 1.0
    %v908 = vrcp.pop %v906
    %v909 = vmul.f32 1.0, %v908
    %v910 = vrcp.pop %v907
    %v911 = vmul.f32 1.0, %v910
    %v912 = vrot.slane %v878, 2
    %v913 = vrot.slane %v879, 2
    %v916 = vtanh.pop %v912
    %v917 = vtanh.pop %v913
    %v918 = vrot.slane %v878, 3
    %v919 = vrot.slane %v879, 3
    %v922 = vxor.u32 %v918, 2147483648
    %v923 = vxor.u32 %v919, 2147483648
    %v924 = vmul.f32 %v922, 1.442695
    %v925 = vpow.pop %v924
    %v926 = vmul.f32 %v923, 1.442695
    %v927 = vpow.pop %v926
    %v928 = vadd.f32 %v925, 1.0
    %v929 = vadd.f32 %v927, 1.0
    %v930 = vrcp.pop %v928
    %v931 = vmul.f32 1.0, %v930
    %v932 = vrcp.pop %v929
    %v933 = vmul.f32 1.0, %v932
    %v936 = vunpack.c.l.s4 1966171168
    %v937 = vunpack.c.0.s8 %v936
    %v938 = vlaneseq
    %v939 = vshrl.u32 %v938, 7
    %v940 = vsub.s32 %v937, %v939
    %v941 = vrot.slane %v81, %v940
    %v942 = vcombine.high %v941, %v941
    %v944 = vunpack.c.l.s4 1966171168
    %v945 = vunpack.c.0.s8 %v944
    %v946 = vlaneseq
    %v947 = vshrl.u32 %v946, 7
    %v948 = vsub.s32 %v945, %v947
    %v949 = vrot.slane %v941, %v948
    %v951 = vunpack.c.l.s4 1966171168
    %v952 = vunpack.c.0.s8 %v951
    %v953 = vlaneseq
    %v954 = vshrl.u32 %v953, 7
    %v955 = vsub.s32 %v952, %v954
    %v956 = vrot.slane %v942, %v955
    %v959 = vmul.f32 %v909, %v949
    %v960 = vmul.f32 %v911, %v956
    %v961 = vmul.f32 %v891, %v916
    %v962 = vmul.f32 %v893, %v917
    %v963 = vadd.f32 %v959, %v961
    %v964 = vadd.f32 %v960, %v962
    %v965 = vtanh.pop %v963
    %v966 = vtanh.pop %v964
    %v967 = vmul.f32 %v931, %v965
    %v968 = vmul.f32 %v933, %v966
    %v969 = vsel %vm881, 1, 0
    %970 = vset.pattern.permute.xlu0 0
    %971 = vperm.xlu0 %970, %v969
    %v972 = vpop.permute.xlu0 %971
    %vm973 = vcmp.eq.s32.totalorder %v972, 1
    %v976 = vcombine.low %v967, %v968
    %v978 = vunpack.c.l.s4 1966171168
    %v979 = vunpack.c.0.s8 %v978
    %v980 = vlaneseq
    %v981 = vshrl.u32 %v980, 7
    %v982 = vsub.s32 %v979, %v981
    %v983 = vrot.slane %v976, %v982
    %v985 = vunpack.c.l.s4 1966171168
    %v986 = vunpack.c.0.s8 %v985
    %v987 = vlaneseq
    %v988 = vshrl.u32 %v987, 7
    %v989 = vsub.s32 %v986, %v988
    %v990 = vrot.slane %v983, %v989
    %v992 = vsel %vm973, %v990, %v80
    %v995 = vcombine.low %v963, %v964
    %v997 = vunpack.c.l.s4 1966171168
    %v998 = vunpack.c.0.s8 %v997
    %v999 = vlaneseq
    %v1000 = vshrl.u32 %v999, 7
    %v1001 = vsub.s32 %v998, %v1000
    %v1002 = vrot.slane %v995, %v1001
    %v1004 = vunpack.c.l.s4 1966171168
    %v1005 = vunpack.c.0.s8 %v1004
    %v1006 = vlaneseq
    %v1007 = vshrl.u32 %v1006, 7
    %v1008 = vsub.s32 %v1005, %v1007
    %v1009 = vrot.slane %v1002, %v1008
    %v1011 = vsel %vm973, %v1009, %v81
    %v1012 = vsel %vm973, %v990, 0.0
    %v1015 = vunpack.c.l.s4 1966171168
    %v1016 = vunpack.c.0.s8 %v1015
    %v1017 = vlaneseq
    %v1018 = vshrl.u32 %v1017, 7
    %v1019 = vsub.s32 %v1016, %v1018
    %v1020 = vrot.slane %v1012, %v1019
    %v1021 = vcombine.high %v1020, %v1020
    %v1023 = vunpack.c.l.s4 1966171168
    %v1024 = vunpack.c.0.s8 %v1023
    %v1025 = vlaneseq
    %v1026 = vshrl.u32 %v1025, 7
    %v1027 = vsub.s32 %v1024, %v1026
    %v1028 = vrot.slane %v1020, %v1027
    %v1030 = vunpack.c.l.s4 1966171168
    %v1031 = vunpack.c.0.s8 %v1030
    %v1032 = vlaneseq
    %v1033 = vshrl.u32 %v1032, 7
    %v1034 = vsub.s32 %v1031, %v1033
    %v1035 = vrot.slane %v1021, %v1034
    %1038 = vst [vmem:[%s65 + $0x7] sm:$0x1] %v1028
    %1039 = vst [vmem:[%s65 + $0xf] sm:$0x1] %v1035
    %s1040 = sadd.s32 %s77, 1
    %s1041 = scalar_lea.vmem %s1, 1
    %v1042 = vld [vmem:[%s1041] ss:$8 sm:$0xf]
    %s1043 = scalar_lea.vmem %s1, 65
    %v1044 = vld [vmem:[%s1043] ss:$8 sm:$0xf]
    %v1045 = vpack.c.bf16 %v512, %v512
    %v1046 = vld [vmem:[%s3] sm:$0xff]
    %v1047 = vld [vmem:[%s3 + $0x8] sm:$0xff]
    %v1048 = vld [vmem:[%s3 + $0x10] sm:$0xff]
    %v1049 = vld [vmem:[%s3 + $0x18] sm:$0xff]
    %v1050 = vld [vmem:[%s3 + $0x20] sm:$0xff]
    %v1051 = vld [vmem:[%s3 + $0x28] sm:$0xff]
    %v1052 = vld [vmem:[%s3 + $0x30] sm:$0xff]
    %v1053 = vld [vmem:[%s3 + $0x38] sm:$0xff]
    %v1054 = vld [vmem:[%s3 + $0x40] sm:$0xff]
    %v1055 = vld [vmem:[%s3 + $0x48] sm:$0xff]
    %v1056 = vld [vmem:[%s3 + $0x50] sm:$0xff]
    %v1057 = vld [vmem:[%s3 + $0x58] sm:$0xff]
    %v1058 = vld [vmem:[%s3 + $0x60] sm:$0xff]
    %v1059 = vld [vmem:[%s3 + $0x68] sm:$0xff]
    %v1060 = vld [vmem:[%s3 + $0x70] sm:$0xff]
    %v1061 = vld [vmem:[%s3 + $0x78] sm:$0xff]
    %v1062 = vld [vmem:[%s3 + $0x80] sm:$0xff]
    %v1063 = vld [vmem:[%s3 + $0x88] sm:$0xff]
    %v1064 = vld [vmem:[%s3 + $0x90] sm:$0xff]
    %v1065 = vld [vmem:[%s3 + $0x98] sm:$0xff]
    %v1066 = vld [vmem:[%s3 + $0xa0] sm:$0xff]
    %v1067 = vld [vmem:[%s3 + $0xa8] sm:$0xff]
    %v1068 = vld [vmem:[%s3 + $0xb0] sm:$0xff]
    %v1069 = vld [vmem:[%s3 + $0xb8] sm:$0xff]
    %v1070 = vld [vmem:[%s3 + $0xc0] sm:$0xff]
    %v1071 = vld [vmem:[%s3 + $0xc8] sm:$0xff]
    %v1072 = vld [vmem:[%s3 + $0xd0] sm:$0xff]
    %v1073 = vld [vmem:[%s3 + $0xd8] sm:$0xff]
    %v1074 = vld [vmem:[%s3 + $0xe0] sm:$0xff]
    %v1075 = vld [vmem:[%s3 + $0xe8] sm:$0xff]
    %v1076 = vld [vmem:[%s3 + $0xf0] sm:$0xff]
    %v1077 = vld [vmem:[%s3 + $0xf8] sm:$0xff]
    %v1110 = vunpack.c.l.b16 %v1046
    %v1111 = vunpack.c.h.b16 %v1046
    %v1112 = vunpack.c.l.b16 %v1047
    %v1113 = vunpack.c.h.b16 %v1047
    %v1114 = vunpack.c.l.b16 %v1048
    %v1115 = vunpack.c.h.b16 %v1048
    %v1116 = vunpack.c.l.b16 %v1049
    %v1117 = vunpack.c.h.b16 %v1049
    %v1118 = vunpack.c.l.b16 %v1050
    %v1119 = vunpack.c.h.b16 %v1050
    %v1120 = vunpack.c.l.b16 %v1051
    %v1121 = vunpack.c.h.b16 %v1051
    %v1122 = vunpack.c.l.b16 %v1052
    %v1123 = vunpack.c.h.b16 %v1052
    %v1124 = vunpack.c.l.b16 %v1053
    %v1125 = vunpack.c.h.b16 %v1053
    %v1126 = vunpack.c.l.b16 %v1054
    %v1127 = vunpack.c.h.b16 %v1054
    %v1128 = vunpack.c.l.b16 %v1055
    %v1129 = vunpack.c.h.b16 %v1055
    %v1130 = vunpack.c.l.b16 %v1056
    %v1131 = vunpack.c.h.b16 %v1056
    %v1132 = vunpack.c.l.b16 %v1057
    %v1133 = vunpack.c.h.b16 %v1057
    %v1134 = vunpack.c.l.b16 %v1058
    %v1135 = vunpack.c.h.b16 %v1058
    %v1136 = vunpack.c.l.b16 %v1059
    %v1137 = vunpack.c.h.b16 %v1059
    %v1138 = vunpack.c.l.b16 %v1060
    %v1139 = vunpack.c.h.b16 %v1060
    %v1140 = vunpack.c.l.b16 %v1061
    %v1141 = vunpack.c.h.b16 %v1061
    %v1142 = vunpack.c.l.b16 %v1062
    %v1143 = vunpack.c.h.b16 %v1062
    %v1144 = vunpack.c.l.b16 %v1063
    %v1145 = vunpack.c.h.b16 %v1063
    %v1146 = vunpack.c.l.b16 %v1064
    %v1147 = vunpack.c.h.b16 %v1064
    %v1148 = vunpack.c.l.b16 %v1065
    %v1149 = vunpack.c.h.b16 %v1065
    %v1150 = vunpack.c.l.b16 %v1066
    %v1151 = vunpack.c.h.b16 %v1066
    %v1152 = vunpack.c.l.b16 %v1067
    %v1153 = vunpack.c.h.b16 %v1067
    %v1154 = vunpack.c.l.b16 %v1068
    %v1155 = vunpack.c.h.b16 %v1068
    %v1156 = vunpack.c.l.b16 %v1069
    %v1157 = vunpack.c.h.b16 %v1069
    %v1158 = vunpack.c.l.b16 %v1070
    %v1159 = vunpack.c.h.b16 %v1070
    %v1160 = vunpack.c.l.b16 %v1071
    %v1161 = vunpack.c.h.b16 %v1071
    %v1162 = vunpack.c.l.b16 %v1072
    %v1163 = vunpack.c.h.b16 %v1072
    %v1164 = vunpack.c.l.b16 %v1073
    %v1165 = vunpack.c.h.b16 %v1073
    %v1166 = vunpack.c.l.b16 %v1074
    %v1167 = vunpack.c.h.b16 %v1074
    %v1168 = vunpack.c.l.b16 %v1075
    %v1169 = vunpack.c.h.b16 %v1075
    %v1170 = vunpack.c.l.b16 %v1076
    %v1171 = vunpack.c.h.b16 %v1076
    %v1172 = vunpack.c.l.b16 %v1077
    %v1173 = vunpack.c.h.b16 %v1077
    %v1174 = vpack.c.b16 %v1114, %v1110
    %v1175 = vpack.c.b16 %v1115, %v1111
    %v1176 = vpack.c.b16 %v1116, %v1112
    %v1177 = vpack.c.b16 %v1117, %v1113
    %v1178 = vpack.c.b16 %v1122, %v1118
    %v1179 = vpack.c.b16 %v1123, %v1119
    %v1180 = vpack.c.b16 %v1124, %v1120
    %v1181 = vpack.c.b16 %v1125, %v1121
    %v1182 = vpack.c.b16 %v1130, %v1126
    %v1183 = vpack.c.b16 %v1131, %v1127
    %v1184 = vpack.c.b16 %v1132, %v1128
    %v1185 = vpack.c.b16 %v1133, %v1129
    %v1186 = vpack.c.b16 %v1138, %v1134
    %v1187 = vpack.c.b16 %v1139, %v1135
    %v1188 = vpack.c.b16 %v1140, %v1136
    %v1189 = vpack.c.b16 %v1141, %v1137
    %v1190 = vpack.c.b16 %v1146, %v1142
    %v1191 = vpack.c.b16 %v1147, %v1143
    %v1192 = vpack.c.b16 %v1148, %v1144
    %v1193 = vpack.c.b16 %v1149, %v1145
    %v1194 = vpack.c.b16 %v1154, %v1150
    %v1195 = vpack.c.b16 %v1155, %v1151
    %v1196 = vpack.c.b16 %v1156, %v1152
    %v1197 = vpack.c.b16 %v1157, %v1153
    %v1198 = vpack.c.b16 %v1162, %v1158
    %v1199 = vpack.c.b16 %v1163, %v1159
    %v1200 = vpack.c.b16 %v1164, %v1160
    %v1201 = vpack.c.b16 %v1165, %v1161
    %v1202 = vpack.c.b16 %v1170, %v1166
    %v1203 = vpack.c.b16 %v1171, %v1167
    %v1204 = vpack.c.b16 %v1172, %v1168
    %v1205 = vpack.c.b16 %v1173, %v1169
    %1238 = vmatprep.subr.bf16.mxu0 %v1175
    %1239 = vmatpush1.bf16.msra.mxu0 %v1174
    %1240 = vmatprep.subr.bf16.mxu0 %v1179
    %1241 = vmatpush1.bf16.msra.mxu0 %v1178
    %1242 = vmatprep.subr.bf16.mxu0 %v1183
    %1243 = vmatpush1.bf16.msra.mxu0 %v1182
    %1244 = vmatprep.subr.bf16.mxu0 %v1187
    %1245 = vmatpush1.bf16.msra.mxu0 %v1186
    %1246 = vmatprep.subr.bf16.mxu0 %v1191
    %1247 = vmatpush1.bf16.msra.mxu0 %v1190
    %1248 = vmatprep.subr.bf16.mxu0 %v1195
    %1249 = vmatpush1.bf16.msra.mxu0 %v1194
    %1250 = vmatprep.subr.bf16.mxu0 %v1199
    %1251 = vmatpush1.bf16.msra.mxu0 %v1198
    %1252 = vmatprep.subr.bf16.mxu0 %v1203
    %1253 = vmatpush1.bf16.msra.mxu0 %v1202
    %1254 = vmatprep.subr.bf16.mxu0 0
    %1255 = vmatpush1.bf16.msra.mxu0 0
    %1256 = vmatprep.subr.bf16.mxu0 0
    %1257 = vmatpush1.bf16.msra.mxu0 0
    %1258 = vmatprep.subr.bf16.mxu0 0
    %1259 = vmatpush1.bf16.msra.mxu0 0
    %1260 = vmatprep.subr.bf16.mxu0 0
    %1261 = vmatpush1.bf16.msra.mxu0 0
    %1262 = vmatprep.subr.bf16.mxu0 0
    %1263 = vmatpush1.bf16.msra.mxu0 0
    %1264 = vmatprep.subr.bf16.mxu0 0
    %1265 = vmatpush1.bf16.msra.mxu0 0
    %1266 = vmatprep.subr.bf16.mxu0 0
    %1267 = vmatpush1.bf16.msra.mxu0 0
    %1268 = vmatprep.subr.bf16.mxu0 0
    %1269 = vmatpush1.bf16.msra.mxu0 0
    %1270 = vmatprep.mubr.bf16.mxu0 0
    %1271 = vmatmul.mubr.bf16.gmra.mrb[0].mxu0 %v1045
    %v1272 = vpop.f32.mrb[0].mxu0
    %v1273 = vadd.f32 0.0, %v1272
    %v1274 = vpop.f32.mrb[0].mxu0
    %v1275 = vadd.f32 0.0, %v1274
    %v1276 = vpop.f32.mrb[0].mxu0
    %v1277 = vpop.f32.mrb[0].mxu0
    %1278 = vdwg.mxu0
    %1279 = vmatprep.subr.bf16.mxu0 %v1177
    %1280 = vmatpush1.bf16.msra.mxu0 %v1176
    %1281 = vmatprep.subr.bf16.mxu0 %v1181
    %1282 = vmatpush1.bf16.msra.mxu0 %v1180
    %1283 = vmatprep.subr.bf16.mxu0 %v1185
    %1284 = vmatpush1.bf16.msra.mxu0 %v1184
    %1285 = vmatprep.subr.bf16.mxu0 %v1189
    %1286 = vmatpush1.bf16.msra.mxu0 %v1188
    %1287 = vmatprep.subr.bf16.mxu0 %v1193
    %1288 = vmatpush1.bf16.msra.mxu0 %v1192
    %1289 = vmatprep.subr.bf16.mxu0 %v1197
    %1290 = vmatpush1.bf16.msra.mxu0 %v1196
    %1291 = vmatprep.subr.bf16.mxu0 %v1201
    %1292 = vmatpush1.bf16.msra.mxu0 %v1200
    %1293 = vmatprep.subr.bf16.mxu0 %v1205
    %1294 = vmatpush1.bf16.msra.mxu0 %v1204
    %1295 = vmatprep.subr.bf16.mxu0 0
    %1296 = vmatpush1.bf16.msra.mxu0 0
    %1297 = vmatprep.subr.bf16.mxu0 0
    %1298 = vmatpush1.bf16.msra.mxu0 0
    %1299 = vmatprep.subr.bf16.mxu0 0
    %1300 = vmatpush1.bf16.msra.mxu0 0
    %1301 = vmatprep.subr.bf16.mxu0 0
    %1302 = vmatpush1.bf16.msra.mxu0 0
    %1303 = vmatprep.subr.bf16.mxu0 0
    %1304 = vmatpush1.bf16.msra.mxu0 0
    %1305 = vmatprep.subr.bf16.mxu0 0
    %1306 = vmatpush1.bf16.msra.mxu0 0
    %1307 = vmatprep.subr.bf16.mxu0 0
    %1308 = vmatpush1.bf16.msra.mxu0 0
    %1309 = vmatprep.subr.bf16.mxu0 0
    %1310 = vmatpush1.bf16.msra.mxu0 0
    %1311 = vmatprep.mubr.bf16.mxu0 0
    %1312 = vmatmul.mubr.bf16.gmra.mrb[0].mxu0 %v1045
    %v1313 = vpop.f32.mrb[0].mxu0
    %v1314 = vadd.f32 0.0, %v1313
    %v1315 = vpop.f32.mrb[0].mxu0
    %v1316 = vadd.f32 0.0, %v1315
    %v1317 = vpop.f32.mrb[0].mxu0
    %v1318 = vpop.f32.mrb[0].mxu0
    %1319 = vdwg.mxu0
    %v1324 = vcombine.low %v1273, %v1275
    %v1325 = vcombine.low %v1314, %v1316
    %v1327 = vunpack.c.l.s4 1966171168
    %v1328 = vunpack.c.0.s8 %v1327
    %v1329 = vlaneseq
    %v1330 = vshrl.u32 %v1329, 7
    %v1331 = vsub.s32 %v1328, %v1330
    %v1332 = vrot.slane %v1324, %v1331
    %v1334 = vunpack.c.l.s4 1966171168
    %v1335 = vunpack.c.0.s8 %v1334
    %v1336 = vlaneseq
    %v1337 = vshrl.u32 %v1336, 7
    %v1338 = vsub.s32 %v1335, %v1337
    %v1339 = vrot.slane %v1325, %v1338
    %v1340 = vcombine.low %v1332, %v1339
    %v1341 = vcombine.high %v1332, %v1339
    %v1343 = vunpack.c.l.s4 1966171168
    %v1344 = vunpack.c.0.s8 %v1343
    %v1345 = vlaneseq
    %v1346 = vshrl.u32 %v1345, 7
    %v1347 = vsub.s32 %v1344, %v1346
    %v1348 = vrot.slane %v1340, %v1347
    %v1350 = vunpack.c.l.s4 1966171168
    %v1351 = vunpack.c.0.s8 %v1350
    %v1352 = vlaneseq
    %v1353 = vshrl.u32 %v1352, 7
    %v1354 = vsub.s32 %v1351, %v1353
    %v1355 = vrot.slane %v1341, %v1354
    %v1358 = vadd.f32 %v1042, %v1348
    %v1359 = vadd.f32 %v1044, %v1355
    %v1360 = vstv %s1040
    %vm1361 = vcmp.lt.s32.totalorder %v1360, %v76
    %v1362 = vxor.u32 %v1358, 2147483648
    %v1363 = vxor.u32 %v1359, 2147483648
    %v1364 = vmul.f32 %v1362, 1.442695
    %v1365 = vpow.pop %v1364
    %v1366 = vmul.f32 %v1363, 1.442695
    %v1367 = vpow.pop %v1366
    %v1368 = vadd.f32 %v1365, 1.0
    %v1369 = vadd.f32 %v1367, 1.0
    %v1370 = vrcp.pop %v1368
    %v1371 = vmul.f32 1.0, %v1370
    %v1372 = vrcp.pop %v1369
    %v1373 = vmul.f32 1.0, %v1372
    %v1376 = vrot.slane %v1358, 1
    %v1377 = vrot.slane %v1359, 1
    %v1380 = vxor.u32 %v1376, 2147483648
    %v1381 = vxor.u32 %v1377, 2147483648
    %v1382 = vmul.f32 %v1380, 1.442695
    %v1383 = vpow.pop %v1382
    %v1384 = vmul.f32 %v1381, 1.442695
    %v1385 = vpow.pop %v1384
    %v1386 = vadd.f32 %v1383, 1.0
    %v1387 = vadd.f32 %v1385, 1.0
    %v1388 = vrcp.pop %v1386
    %v1389 = vmul.f32 1.0, %v1388
    %v1390 = vrcp.pop %v1387
    %v1391 = vmul.f32 1.0, %v1390
    %v1392 = vrot.slane %v1358, 2
    %v1393 = vrot.slane %v1359, 2
    %v1396 = vtanh.pop %v1392
    %v1397 = vtanh.pop %v1393
    %v1398 = vrot.slane %v1358, 3
    %v1399 = vrot.slane %v1359, 3
    %v1402 = vxor.u32 %v1398, 2147483648
    %v1403 = vxor.u32 %v1399, 2147483648
    %v1404 = vmul.f32 %v1402, 1.442695
    %v1405 = vpow.pop %v1404
    %v1406 = vmul.f32 %v1403, 1.442695
    %v1407 = vpow.pop %v1406
    %v1408 = vadd.f32 %v1405, 1.0
    %v1409 = vadd.f32 %v1407, 1.0
    %v1410 = vrcp.pop %v1408
    %v1411 = vmul.f32 1.0, %v1410
    %v1412 = vrcp.pop %v1409
    %v1413 = vmul.f32 1.0, %v1412
    %v1416 = vunpack.c.l.s4 1966171168
    %v1417 = vunpack.c.0.s8 %v1416
    %v1418 = vlaneseq
    %v1419 = vshrl.u32 %v1418, 7
    %v1420 = vsub.s32 %v1417, %v1419
    %v1421 = vrot.slane %v531, %v1420
    %v1422 = vcombine.high %v1421, %v1421
    %v1424 = vunpack.c.l.s4 1966171168
    %v1425 = vunpack.c.0.s8 %v1424
    %v1426 = vlaneseq
    %v1427 = vshrl.u32 %v1426, 7
    %v1428 = vsub.s32 %v1425, %v1427
    %v1429 = vrot.slane %v1421, %v1428
    %v1431 = vunpack.c.l.s4 1966171168
    %v1432 = vunpack.c.0.s8 %v1431
    %v1433 = vlaneseq
    %v1434 = vshrl.u32 %v1433, 7
    %v1435 = vsub.s32 %v1432, %v1434
    %v1436 = vrot.slane %v1422, %v1435
    %v1439 = vmul.f32 %v1389, %v1429
    %v1440 = vmul.f32 %v1391, %v1436
    %v1441 = vmul.f32 %v1371, %v1396
    %v1442 = vmul.f32 %v1373, %v1397
    %v1443 = vadd.f32 %v1439, %v1441
    %v1444 = vadd.f32 %v1440, %v1442
    %v1445 = vtanh.pop %v1443
    %v1446 = vtanh.pop %v1444
    %v1447 = vmul.f32 %v1411, %v1445
    %v1448 = vmul.f32 %v1413, %v1446
    %v1449 = vsel %vm1361, 1, 0
    %1450 = vset.pattern.permute.xlu0 0
    %1451 = vperm.xlu0 %1450, %v1449
    %v1452 = vpop.permute.xlu0 %1451
    %vm1453 = vcmp.eq.s32.totalorder %v1452, 1
    %v1456 = vcombine.low %v1447, %v1448
    %v1458 = vunpack.c.l.s4 1966171168
    %v1459 = vunpack.c.0.s8 %v1458
    %v1460 = vlaneseq
    %v1461 = vshrl.u32 %v1460, 7
    %v1462 = vsub.s32 %v1459, %v1461
    %v1463 = vrot.slane %v1456, %v1462
    %v1465 = vunpack.c.l.s4 1966171168
    %v1466 = vunpack.c.0.s8 %v1465
    %v1467 = vlaneseq
    %v1468 = vshrl.u32 %v1467, 7
    %v1469 = vsub.s32 %v1466, %v1468
    %v1470 = vrot.slane %v1463, %v1469
    %v1472 = vsel %vm1453, %v1470, %v512
    %v1475 = vcombine.low %v1443, %v1444
    %v1477 = vunpack.c.l.s4 1966171168
    %v1478 = vunpack.c.0.s8 %v1477
    %v1479 = vlaneseq
    %v1480 = vshrl.u32 %v1479, 7
    %v1481 = vsub.s32 %v1478, %v1480
    %v1482 = vrot.slane %v1475, %v1481
    %v1484 = vunpack.c.l.s4 1966171168
    %v1485 = vunpack.c.0.s8 %v1484
    %v1486 = vlaneseq
    %v1487 = vshrl.u32 %v1486, 7
    %v1488 = vsub.s32 %v1485, %v1487
    %v1489 = vrot.slane %v1482, %v1488
    %v1491 = vsel %vm1453, %v1489, %v531
    %v1492 = vsel %vm1453, %v1470, 0.0
    %v1495 = vunpack.c.l.s4 1966171168
    %v1496 = vunpack.c.0.s8 %v1495
    %v1497 = vlaneseq
    %v1498 = vshrl.u32 %v1497, 7
    %v1499 = vsub.s32 %v1496, %v1498
    %v1500 = vrot.slane %v1492, %v1499
    %v1501 = vcombine.high %v1500, %v1500
    %v1503 = vunpack.c.l.s4 1966171168
    %v1504 = vunpack.c.0.s8 %v1503
    %v1505 = vlaneseq
    %v1506 = vshrl.u32 %v1505, 7
    %v1507 = vsub.s32 %v1504, %v1506
    %v1508 = vrot.slane %v1500, %v1507
    %v1510 = vunpack.c.l.s4 1966171168
    %v1511 = vunpack.c.0.s8 %v1510
    %v1512 = vlaneseq
    %v1513 = vshrl.u32 %v1512, 7
    %v1514 = vsub.s32 %v1511, %v1513
    %v1515 = vrot.slane %v1501, %v1514
    %1518 = vst [vmem:[%s5 + $0x1] sm:$0x1] %v1508
    %1519 = vst [vmem:[%s5 + $0x9] sm:$0x1] %v1515
    %s1520 = ssub.s32 6, %s77
    %s1521 = scalar_lea.vmem %s59, 38
    %v1522 = vld [vmem:[%s1521] ss:$8 sm:$0xf]
    %s1523 = scalar_lea.vmem %s59, 102
    %v1524 = vld [vmem:[%s1523] ss:$8 sm:$0xf]
    %v1525 = vpack.c.bf16 %v992, %v992
    %v1526 = vld [vmem:[#allocation6] sm:$0xff]
    %v1527 = vld [vmem:[#allocation6 + $0x8] sm:$0xff]
    %v1528 = vld [vmem:[#allocation6 + $0x10] sm:$0xff]
    %v1529 = vld [vmem:[#allocation6 + $0x18] sm:$0xff]
    %v1530 = vld [vmem:[#allocation6 + $0x20] sm:$0xff]
    %v1531 = vld [vmem:[#allocation6 + $0x28] sm:$0xff]
    %v1532 = vld [vmem:[#allocation6 + $0x30] sm:$0xff]
    %v1533 = vld [vmem:[#allocation6 + $0x38] sm:$0xff]
    %v1534 = vld [vmem:[#allocation6 + $0x40] sm:$0xff]
    %v1535 = vld [vmem:[#allocation6 + $0x48] sm:$0xff]
    %v1536 = vld [vmem:[#allocation6 + $0x50] sm:$0xff]
    %v1537 = vld [vmem:[#allocation6 + $0x58] sm:$0xff]
    %v1538 = vld [vmem:[#allocation6 + $0x60] sm:$0xff]
    %v1539 = vld [vmem:[#allocation6 + $0x68] sm:$0xff]
    %v1540 = vld [vmem:[#allocation6 + $0x70] sm:$0xff]
    %v1541 = vld [vmem:[#allocation6 + $0x78] sm:$0xff]
    %v1542 = vld [vmem:[#allocation6 + $0x80] sm:$0xff]
    %v1543 = vld [vmem:[#allocation6 + $0x88] sm:$0xff]
    %v1544 = vld [vmem:[#allocation6 + $0x90] sm:$0xff]
    %v1545 = vld [vmem:[#allocation6 + $0x98] sm:$0xff]
    %v1546 = vld [vmem:[#allocation6 + $0xa0] sm:$0xff]
    %v1547 = vld [vmem:[#allocation6 + $0xa8] sm:$0xff]
    %v1548 = vld [vmem:[#allocation6 + $0xb0] sm:$0xff]
    %v1549 = vld [vmem:[#allocation6 + $0xb8] sm:$0xff]
    %v1550 = vld [vmem:[#allocation6 + $0xc0] sm:$0xff]
    %v1551 = vld [vmem:[#allocation6 + $0xc8] sm:$0xff]
    %v1552 = vld [vmem:[#allocation6 + $0xd0] sm:$0xff]
    %v1553 = vld [vmem:[#allocation6 + $0xd8] sm:$0xff]
    %v1554 = vld [vmem:[#allocation6 + $0xe0] sm:$0xff]
    %v1555 = vld [vmem:[#allocation6 + $0xe8] sm:$0xff]
    %v1556 = vld [vmem:[#allocation6 + $0xf0] sm:$0xff]
    %v1557 = vld [vmem:[#allocation6 + $0xf8] sm:$0xff]
    %v1590 = vunpack.c.l.b16 %v1526
    %v1591 = vunpack.c.h.b16 %v1526
    %v1592 = vunpack.c.l.b16 %v1527
    %v1593 = vunpack.c.h.b16 %v1527
    %v1594 = vunpack.c.l.b16 %v1528
    %v1595 = vunpack.c.h.b16 %v1528
    %v1596 = vunpack.c.l.b16 %v1529
    %v1597 = vunpack.c.h.b16 %v1529
    %v1598 = vunpack.c.l.b16 %v1530
    %v1599 = vunpack.c.h.b16 %v1530
    %v1600 = vunpack.c.l.b16 %v1531
    %v1601 = vunpack.c.h.b16 %v1531
    %v1602 = vunpack.c.l.b16 %v1532
    %v1603 = vunpack.c.h.b16 %v1532
    %v1604 = vunpack.c.l.b16 %v1533
    %v1605 = vunpack.c.h.b16 %v1533
    %v1606 = vunpack.c.l.b16 %v1534
    %v1607 = vunpack.c.h.b16 %v1534
    %v1608 = vunpack.c.l.b16 %v1535
    %v1609 = vunpack.c.h.b16 %v1535
    %v1610 = vunpack.c.l.b16 %v1536
    %v1611 = vunpack.c.h.b16 %v1536
    %v1612 = vunpack.c.l.b16 %v1537
    %v1613 = vunpack.c.h.b16 %v1537
    %v1614 = vunpack.c.l.b16 %v1538
    %v1615 = vunpack.c.h.b16 %v1538
    %v1616 = vunpack.c.l.b16 %v1539
    %v1617 = vunpack.c.h.b16 %v1539
    %v1618 = vunpack.c.l.b16 %v1540
    %v1619 = vunpack.c.h.b16 %v1540
    %v1620 = vunpack.c.l.b16 %v1541
    %v1621 = vunpack.c.h.b16 %v1541
    %v1622 = vunpack.c.l.b16 %v1542
    %v1623 = vunpack.c.h.b16 %v1542
    %v1624 = vunpack.c.l.b16 %v1543
    %v1625 = vunpack.c.h.b16 %v1543
    %v1626 = vunpack.c.l.b16 %v1544
    %v1627 = vunpack.c.h.b16 %v1544
    %v1628 = vunpack.c.l.b16 %v1545
    %v1629 = vunpack.c.h.b16 %v1545
    %v1630 = vunpack.c.l.b16 %v1546
    %v1631 = vunpack.c.h.b16 %v1546
    %v1632 = vunpack.c.l.b16 %v1547
    %v1633 = vunpack.c.h.b16 %v1547
    %v1634 = vunpack.c.l.b16 %v1548
    %v1635 = vunpack.c.h.b16 %v1548
    %v1636 = vunpack.c.l.b16 %v1549
    %v1637 = vunpack.c.h.b16 %v1549
    %v1638 = vunpack.c.l.b16 %v1550
    %v1639 = vunpack.c.h.b16 %v1550
    %v1640 = vunpack.c.l.b16 %v1551
    %v1641 = vunpack.c.h.b16 %v1551
    %v1642 = vunpack.c.l.b16 %v1552
    %v1643 = vunpack.c.h.b16 %v1552
    %v1644 = vunpack.c.l.b16 %v1553
    %v1645 = vunpack.c.h.b16 %v1553
    %v1646 = vunpack.c.l.b16 %v1554
    %v1647 = vunpack.c.h.b16 %v1554
    %v1648 = vunpack.c.l.b16 %v1555
    %v1649 = vunpack.c.h.b16 %v1555
    %v1650 = vunpack.c.l.b16 %v1556
    %v1651 = vunpack.c.h.b16 %v1556
    %v1652 = vunpack.c.l.b16 %v1557
    %v1653 = vunpack.c.h.b16 %v1557
    %v1654 = vpack.c.b16 %v1594, %v1590
    %v1655 = vpack.c.b16 %v1595, %v1591
    %v1656 = vpack.c.b16 %v1596, %v1592
    %v1657 = vpack.c.b16 %v1597, %v1593
    %v1658 = vpack.c.b16 %v1602, %v1598
    %v1659 = vpack.c.b16 %v1603, %v1599
    %v1660 = vpack.c.b16 %v1604, %v1600
    %v1661 = vpack.c.b16 %v1605, %v1601
    %v1662 = vpack.c.b16 %v1610, %v1606
    %v1663 = vpack.c.b16 %v1611, %v1607
    %v1664 = vpack.c.b16 %v1612, %v1608
    %v1665 = vpack.c.b16 %v1613, %v1609
    %v1666 = vpack.c.b16 %v1618, %v1614
    %v1667 = vpack.c.b16 %v1619, %v1615
    %v1668 = vpack.c.b16 %v1620, %v1616
    %v1669 = vpack.c.b16 %v1621, %v1617
    %v1670 = vpack.c.b16 %v1626, %v1622
    %v1671 = vpack.c.b16 %v1627, %v1623
    %v1672 = vpack.c.b16 %v1628, %v1624
    %v1673 = vpack.c.b16 %v1629, %v1625
    %v1674 = vpack.c.b16 %v1634, %v1630
    %v1675 = vpack.c.b16 %v1635, %v1631
    %v1676 = vpack.c.b16 %v1636, %v1632
    %v1677 = vpack.c.b16 %v1637, %v1633
    %v1678 = vpack.c.b16 %v1642, %v1638
    %v1679 = vpack.c.b16 %v1643, %v1639
    %v1680 = vpack.c.b16 %v1644, %v1640
    %v1681 = vpack.c.b16 %v1645, %v1641
    %v1682 = vpack.c.b16 %v1650, %v1646
    %v1683 = vpack.c.b16 %v1651, %v1647
    %v1684 = vpack.c.b16 %v1652, %v1648
    %v1685 = vpack.c.b16 %v1653, %v1649
    %1718 = vmatprep.subr.bf16.mxu0 %v1655
    %1719 = vmatpush1.bf16.msra.mxu0 %v1654
    %1720 = vmatprep.subr.bf16.mxu0 %v1659
    %1721 = vmatpush1.bf16.msra.mxu0 %v1658
    %1722 = vmatprep.subr.bf16.mxu0 %v1663
    %1723 = vmatpush1.bf16.msra.mxu0 %v1662
    %1724 = vmatprep.subr.bf16.mxu0 %v1667
    %1725 = vmatpush1.bf16.msra.mxu0 %v1666
    %1726 = vmatprep.subr.bf16.mxu0 %v1671
    %1727 = vmatpush1.bf16.msra.mxu0 %v1670
    %1728 = vmatprep.subr.bf16.mxu0 %v1675
    %1729 = vmatpush1.bf16.msra.mxu0 %v1674
    %1730 = vmatprep.subr.bf16.mxu0 %v1679
    %1731 = vmatpush1.bf16.msra.mxu0 %v1678
    %1732 = vmatprep.subr.bf16.mxu0 %v1683
    %1733 = vmatpush1.bf16.msra.mxu0 %v1682
    %1734 = vmatprep.subr.bf16.mxu0 0
    %1735 = vmatpush1.bf16.msra.mxu0 0
    %1736 = vmatprep.subr.bf16.mxu0 0
    %1737 = vmatpush1.bf16.msra.mxu0 0
    %1738 = vmatprep.subr.bf16.mxu0 0
    %1739 = vmatpush1.bf16.msra.mxu0 0
    %1740 = vmatprep.subr.bf16.mxu0 0
    %1741 = vmatpush1.bf16.msra.mxu0 0
    %1742 = vmatprep.subr.bf16.mxu0 0
    %1743 = vmatpush1.bf16.msra.mxu0 0
    %1744 = vmatprep.subr.bf16.mxu0 0
    %1745 = vmatpush1.bf16.msra.mxu0 0
    %1746 = vmatprep.subr.bf16.mxu0 0
    %1747 = vmatpush1.bf16.msra.mxu0 0
    %1748 = vmatprep.subr.bf16.mxu0 0
    %1749 = vmatpush1.bf16.msra.mxu0 0
    %1750 = vmatprep.mubr.bf16.mxu0 0
    %1751 = vmatmul.mubr.bf16.gmra.mrb[0].mxu0 %v1525
    %v1752 = vpop.f32.mrb[0].mxu0
    %v1753 = vadd.f32 0.0, %v1752
    %v1754 = vpop.f32.mrb[0].mxu0
    %v1755 = vadd.f32 0.0, %v1754
    %v1756 = vpop.f32.mrb[0].mxu0
    %v1757 = vpop.f32.mrb[0].mxu0
    %1758 = vdwg.mxu0
    %1759 = vmatprep.subr.bf16.mxu0 %v1657
    %1760 = vmatpush1.bf16.msra.mxu0 %v1656
    %1761 = vmatprep.subr.bf16.mxu0 %v1661
    %1762 = vmatpush1.bf16.msra.mxu0 %v1660
    %1763 = vmatprep.subr.bf16.mxu0 %v1665
    %1764 = vmatpush1.bf16.msra.mxu0 %v1664
    %1765 = vmatprep.subr.bf16.mxu0 %v1669
    %1766 = vmatpush1.bf16.msra.mxu0 %v1668
    %1767 = vmatprep.subr.bf16.mxu0 %v1673
    %1768 = vmatpush1.bf16.msra.mxu0 %v1672
    %1769 = vmatprep.subr.bf16.mxu0 %v1677
    %1770 = vmatpush1.bf16.msra.mxu0 %v1676
    %1771 = vmatprep.subr.bf16.mxu0 %v1681
    %1772 = vmatpush1.bf16.msra.mxu0 %v1680
    %1773 = vmatprep.subr.bf16.mxu0 %v1685
    %1774 = vmatpush1.bf16.msra.mxu0 %v1684
    %1775 = vmatprep.subr.bf16.mxu0 0
    %1776 = vmatpush1.bf16.msra.mxu0 0
    %1777 = vmatprep.subr.bf16.mxu0 0
    %1778 = vmatpush1.bf16.msra.mxu0 0
    %1779 = vmatprep.subr.bf16.mxu0 0
    %1780 = vmatpush1.bf16.msra.mxu0 0
    %1781 = vmatprep.subr.bf16.mxu0 0
    %1782 = vmatpush1.bf16.msra.mxu0 0
    %1783 = vmatprep.subr.bf16.mxu0 0
    %1784 = vmatpush1.bf16.msra.mxu0 0
    %1785 = vmatprep.subr.bf16.mxu0 0
    %1786 = vmatpush1.bf16.msra.mxu0 0
    %1787 = vmatprep.subr.bf16.mxu0 0
    %1788 = vmatpush1.bf16.msra.mxu0 0
    %1789 = vmatprep.subr.bf16.mxu0 0
    %1790 = vmatpush1.bf16.msra.mxu0 0
    %1791 = vmatprep.mubr.bf16.mxu0 0
    %1792 = vmatmul.mubr.bf16.gmra.mrb[0].mxu0 %v1525
    %v1793 = vpop.f32.mrb[0].mxu0
    %v1794 = vadd.f32 0.0, %v1793
    %v1795 = vpop.f32.mrb[0].mxu0
    %v1796 = vadd.f32 0.0, %v1795
    %v1797 = vpop.f32.mrb[0].mxu0
    %v1798 = vpop.f32.mrb[0].mxu0
    %1799 = vdwg.mxu0
    %v1804 = vcombine.low %v1753, %v1755
    %v1805 = vcombine.low %v1794, %v1796
    %v1807 = vunpack.c.l.s4 1966171168
    %v1808 = vunpack.c.0.s8 %v1807
    %v1809 = vlaneseq
    %v1810 = vshrl.u32 %v1809, 7
    %v1811 = vsub.s32 %v1808, %v1810
    %v1812 = vrot.slane %v1804, %v1811
    %v1814 = vunpack.c.l.s4 1966171168
    %v1815 = vunpack.c.0.s8 %v1814
    %v1816 = vlaneseq
    %v1817 = vshrl.u32 %v1816, 7
    %v1818 = vsub.s32 %v1815, %v1817
    %v1819 = vrot.slane %v1805, %v1818
    %v1820 = vcombine.low %v1812, %v1819
    %v1821 = vcombine.high %v1812, %v1819
    %v1823 = vunpack.c.l.s4 1966171168
    %v1824 = vunpack.c.0.s8 %v1823
    %v1825 = vlaneseq
    %v1826 = vshrl.u32 %v1825, 7
    %v1827 = vsub.s32 %v1824, %v1826
    %v1828 = vrot.slane %v1820, %v1827
    %v1830 = vunpack.c.l.s4 1966171168
    %v1831 = vunpack.c.0.s8 %v1830
    %v1832 = vlaneseq
    %v1833 = vshrl.u32 %v1832, 7
    %v1834 = vsub.s32 %v1831, %v1833
    %v1835 = vrot.slane %v1821, %v1834
    %v1838 = vadd.f32 %v1522, %v1828
    %v1839 = vadd.f32 %v1524, %v1835
    %v1840 = vstv %s1520
    %vm1841 = vcmp.lt.s32.totalorder %v1840, %v76
    %v1842 = vxor.u32 %v1838, 2147483648
    %v1843 = vxor.u32 %v1839, 2147483648
    %v1844 = vmul.f32 %v1842, 1.442695
    %v1845 = vpow.pop %v1844
    %v1846 = vmul.f32 %v1843, 1.442695
    %v1847 = vpow.pop %v1846
    %v1848 = vadd.f32 %v1845, 1.0
    %v1849 = vadd.f32 %v1847, 1.0
    %v1850 = vrcp.pop %v1848
    %v1851 = vmul.f32 1.0, %v1850
    %v1852 = vrcp.pop %v1849
    %v1853 = vmul.f32 1.0, %v1852
    %v1856 = vrot.slane %v1838, 1
    %v1857 = vrot.slane %v1839, 1
    %v1860 = vxor.u32 %v1856, 2147483648
    %v1861 = vxor.u32 %v1857, 2147483648
    %v1862 = vmul.f32 %v1860, 1.442695
    %v1863 = vpow.pop %v1862
    %v1864 = vmul.f32 %v1861, 1.442695
    %v1865 = vpow.pop %v1864
    %v1866 = vadd.f32 %v1863, 1.0
    %v1867 = vadd.f32 %v1865, 1.0
    %v1868 = vrcp.pop %v1866
    %v1869 = vmul.f32 1.0, %v1868
    %v1870 = vrcp.pop %v1867
    %v1871 = vmul.f32 1.0, %v1870
    %v1872 = vrot.slane %v1838, 2
    %v1873 = vrot.slane %v1839, 2
    %v1876 = vtanh.pop %v1872
    %v1877 = vtanh.pop %v1873
    %v1878 = vrot.slane %v1838, 3
    %v1879 = vrot.slane %v1839, 3
    %v1882 = vxor.u32 %v1878, 2147483648
    %v1883 = vxor.u32 %v1879, 2147483648
    %v1884 = vmul.f32 %v1882, 1.442695
    %v1885 = vpow.pop %v1884
    %v1886 = vmul.f32 %v1883, 1.442695
    %v1887 = vpow.pop %v1886
    %v1888 = vadd.f32 %v1885, 1.0
    %v1889 = vadd.f32 %v1887, 1.0
    %v1890 = vrcp.pop %v1888
    %v1891 = vmul.f32 1.0, %v1890
    %v1892 = vrcp.pop %v1889
    %v1893 = vmul.f32 1.0, %v1892
    %v1896 = vunpack.c.l.s4 1966171168
    %v1897 = vunpack.c.0.s8 %v1896
    %v1898 = vlaneseq
    %v1899 = vshrl.u32 %v1898, 7
    %v1900 = vsub.s32 %v1897, %v1899
    %v1901 = vrot.slane %v1011, %v1900
    %v1902 = vcombine.high %v1901, %v1901
    %v1904 = vunpack.c.l.s4 1966171168
    %v1905 = vunpack.c.0.s8 %v1904
    %v1906 = vlaneseq
    %v1907 = vshrl.u32 %v1906, 7
    %v1908 = vsub.s32 %v1905, %v1907
    %v1909 = vrot.slane %v1901, %v1908
    %v1911 = vunpack.c.l.s4 1966171168
    %v1912 = vunpack.c.0.s8 %v1911
    %v1913 = vlaneseq
    %v1914 = vshrl.u32 %v1913, 7
    %v1915 = vsub.s32 %v1912, %v1914
    %v1916 = vrot.slane %v1902, %v1915
    %v1919 = vmul.f32 %v1869, %v1909
    %v1920 = vmul.f32 %v1871, %v1916
    %v1921 = vmul.f32 %v1851, %v1876
    %v1922 = vmul.f32 %v1853, %v1877
    %v1923 = vadd.f32 %v1919, %v1921
    %v1924 = vadd.f32 %v1920, %v1922
    %v1925 = vtanh.pop %v1923
    %v1926 = vtanh.pop %v1924
    %v1927 = vmul.f32 %v1891, %v1925
    %v1928 = vmul.f32 %v1893, %v1926
    %v1929 = vsel %vm1841, 1, 0
    %1930 = vset.pattern.permute.xlu0 0
    %1931 = vperm.xlu0 %1930, %v1929
    %v1932 = vpop.permute.xlu0 %1931
    %vm1933 = vcmp.eq.s32.totalorder %v1932, 1
    %v1936 = vcombine.low %v1927, %v1928
    %v1938 = vunpack.c.l.s4 1966171168
    %v1939 = vunpack.c.0.s8 %v1938
    %v1940 = vlaneseq
    %v1941 = vshrl.u32 %v1940, 7
    %v1942 = vsub.s32 %v1939, %v1941
    %v1943 = vrot.slane %v1936, %v1942
    %v1945 = vunpack.c.l.s4 1966171168
    %v1946 = vunpack.c.0.s8 %v1945
    %v1947 = vlaneseq
    %v1948 = vshrl.u32 %v1947, 7
    %v1949 = vsub.s32 %v1946, %v1948
    %v1950 = vrot.slane %v1943, %v1949
    %v1952 = vsel %vm1933, %v1950, %v992
    %v1955 = vcombine.low %v1923, %v1924
    %v1957 = vunpack.c.l.s4 1966171168
    %v1958 = vunpack.c.0.s8 %v1957
    %v1959 = vlaneseq
    %v1960 = vshrl.u32 %v1959, 7
    %v1961 = vsub.s32 %v1958, %v1960
    %v1962 = vrot.slane %v1955, %v1961
    %v1964 = vunpack.c.l.s4 1966171168
    %v1965 = vunpack.c.0.s8 %v1964
    %v1966 = vlaneseq
    %v1967 = vshrl.u32 %v1966, 7
    %v1968 = vsub.s32 %v1965, %v1967
    %v1969 = vrot.slane %v1962, %v1968
    %v1971 = vsel %vm1933, %v1969, %v1011
    %v1972 = vsel %vm1933, %v1950, 0.0
    %v1975 = vunpack.c.l.s4 1966171168
    %v1976 = vunpack.c.0.s8 %v1975
    %v1977 = vlaneseq
    %v1978 = vshrl.u32 %v1977, 7
    %v1979 = vsub.s32 %v1976, %v1978
    %v1980 = vrot.slane %v1972, %v1979
    %v1981 = vcombine.high %v1980, %v1980
    %v1983 = vunpack.c.l.s4 1966171168
    %v1984 = vunpack.c.0.s8 %v1983
    %v1985 = vlaneseq
    %v1986 = vshrl.u32 %v1985, 7
    %v1987 = vsub.s32 %v1984, %v1986
    %v1988 = vrot.slane %v1980, %v1987
    %v1990 = vunpack.c.l.s4 1966171168
    %v1991 = vunpack.c.0.s8 %v1990
    %v1992 = vlaneseq
    %v1993 = vshrl.u32 %v1992, 7
    %v1994 = vsub.s32 %v1991, %v1993
    %v1995 = vrot.slane %v1981, %v1994
    %1998 = vst [vmem:[%s65 + $0x6] sm:$0x1] %v1988
    %1999 = vst [vmem:[%s65 + $0xe] sm:$0x1] %v1995
    %s2000 = sadd.s32 %s77, 2
    %s2001 = scalar_lea.vmem %s1, 2
    %v2002 = vld [vmem:[%s2001] ss:$8 sm:$0xf]
    %s2003 = scalar_lea.vmem %s1, 66
    %v2004 = vld [vmem:[%s2003] ss:$8 sm:$0xf]
    %v2005 = vpack.c.bf16 %v1472, %v1472
    %v2006 = vld [vmem:[%s3] sm:$0xff]
    %v2007 = vld [vmem:[%s3 + $0x8] sm:$0xff]
    %v2008 = vld [vmem:[%s3 + $0x10] sm:$0xff]
    %v2009 = vld [vmem:[%s3 + $0x18] sm:$0xff]
    %v2010 = vld [vmem:[%s3 + $0x20] sm:$0xff]
    %v2011 = vld [vmem:[%s3 + $0x28] sm:$0xff]
    %v2012 = vld [vmem:[%s3 + $0x30] sm:$0xff]
    %v2013 = vld [vmem:[%s3 + $0x38] sm:$0xff]
    %v2014 = vld [vmem:[%s3 + $0x40] sm:$0xff]
    %v2015 = vld [vmem:[%s3 + $0x48] sm:$0xff]
    %v2016 = vld [vmem:[%s3 + $0x50] sm:$0xff]
    %v2017 = vld [vmem:[%s3 + $0x58] sm:$0xff]
    %v2018 = vld [vmem:[%s3 + $0x60] sm:$0xff]
    %v2019 = vld [vmem:[%s3 + $0x68] sm:$0xff]
    %v2020 = vld [vmem:[%s3 + $0x70] sm:$0xff]
    %v2021 = vld [vmem:[%s3 + $0x78] sm:$0xff]
    %v2022 = vld [vmem:[%s3 + $0x80] sm:$0xff]
    %v2023 = vld [vmem:[%s3 + $0x88] sm:$0xff]
    %v2024 = vld [vmem:[%s3 + $0x90] sm:$0xff]
    %v2025 = vld [vmem:[%s3 + $0x98] sm:$0xff]
    %v2026 = vld [vmem:[%s3 + $0xa0] sm:$0xff]
    %v2027 = vld [vmem:[%s3 + $0xa8] sm:$0xff]
    %v2028 = vld [vmem:[%s3 + $0xb0] sm:$0xff]
    %v2029 = vld [vmem:[%s3 + $0xb8] sm:$0xff]
    %v2030 = vld [vmem:[%s3 + $0xc0] sm:$0xff]
    %v2031 = vld [vmem:[%s3 + $0xc8] sm:$0xff]
    %v2032 = vld [vmem:[%s3 + $0xd0] sm:$0xff]
    %v2033 = vld [vmem:[%s3 + $0xd8] sm:$0xff]
    %v2034 = vld [vmem:[%s3 + $0xe0] sm:$0xff]
    %v2035 = vld [vmem:[%s3 + $0xe8] sm:$0xff]
    %v2036 = vld [vmem:[%s3 + $0xf0] sm:$0xff]
    %v2037 = vld [vmem:[%s3 + $0xf8] sm:$0xff]
    %v2070 = vunpack.c.l.b16 %v2006
    %v2071 = vunpack.c.h.b16 %v2006
    %v2072 = vunpack.c.l.b16 %v2007
    %v2073 = vunpack.c.h.b16 %v2007
    %v2074 = vunpack.c.l.b16 %v2008
    %v2075 = vunpack.c.h.b16 %v2008
    %v2076 = vunpack.c.l.b16 %v2009
    %v2077 = vunpack.c.h.b16 %v2009
    %v2078 = vunpack.c.l.b16 %v2010
    %v2079 = vunpack.c.h.b16 %v2010
    %v2080 = vunpack.c.l.b16 %v2011
    %v2081 = vunpack.c.h.b16 %v2011
    %v2082 = vunpack.c.l.b16 %v2012
    %v2083 = vunpack.c.h.b16 %v2012
    %v2084 = vunpack.c.l.b16 %v2013
    %v2085 = vunpack.c.h.b16 %v2013
    %v2086 = vunpack.c.l.b16 %v2014
    %v2087 = vunpack.c.h.b16 %v2014
    %v2088 = vunpack.c.l.b16 %v2015
    %v2089 = vunpack.c.h.b16 %v2015
    %v2090 = vunpack.c.l.b16 %v2016
    %v2091 = vunpack.c.h.b16 %v2016
    %v2092 = vunpack.c.l.b16 %v2017
    %v2093 = vunpack.c.h.b16 %v2017
    %v2094 = vunpack.c.l.b16 %v2018
    %v2095 = vunpack.c.h.b16 %v2018
    %v2096 = vunpack.c.l.b16 %v2019
    %v2097 = vunpack.c.h.b16 %v2019
    %v2098 = vunpack.c.l.b16 %v2020
    %v2099 = vunpack.c.h.b16 %v2020
    %v2100 = vunpack.c.l.b16 %v2021
    %v2101 = vunpack.c.h.b16 %v2021
    %v2102 = vunpack.c.l.b16 %v2022
    %v2103 = vunpack.c.h.b16 %v2022
    %v2104 = vunpack.c.l.b16 %v2023
    %v2105 = vunpack.c.h.b16 %v2023
    %v2106 = vunpack.c.l.b16 %v2024
    %v2107 = vunpack.c.h.b16 %v2024
    %v2108 = vunpack.c.l.b16 %v2025
    %v2109 = vunpack.c.h.b16 %v2025
    %v2110 = vunpack.c.l.b16 %v2026
    %v2111 = vunpack.c.h.b16 %v2026
    %v2112 = vunpack.c.l.b16 %v2027
    %v2113 = vunpack.c.h.b16 %v2027
    %v2114 = vunpack.c.l.b16 %v2028
    %v2115 = vunpack.c.h.b16 %v2028
    %v2116 = vunpack.c.l.b16 %v2029
    %v2117 = vunpack.c.h.b16 %v2029
    %v2118 = vunpack.c.l.b16 %v2030
    %v2119 = vunpack.c.h.b16 %v2030
    %v2120 = vunpack.c.l.b16 %v2031
    %v2121 = vunpack.c.h.b16 %v2031
    %v2122 = vunpack.c.l.b16 %v2032
    %v2123 = vunpack.c.h.b16 %v2032
    %v2124 = vunpack.c.l.b16 %v2033
    %v2125 = vunpack.c.h.b16 %v2033
    %v2126 = vunpack.c.l.b16 %v2034
    %v2127 = vunpack.c.h.b16 %v2034
    %v2128 = vunpack.c.l.b16 %v2035
    %v2129 = vunpack.c.h.b16 %v2035
    %v2130 = vunpack.c.l.b16 %v2036
    %v2131 = vunpack.c.h.b16 %v2036
    %v2132 = vunpack.c.l.b16 %v2037
    %v2133 = vunpack.c.h.b16 %v2037
    %v2134 = vpack.c.b16 %v2074, %v2070
    %v2135 = vpack.c.b16 %v2075, %v2071
    %v2136 = vpack.c.b16 %v2076, %v2072
    %v2137 = vpack.c.b16 %v2077, %v2073
    %v2138 = vpack.c.b16 %v2082, %v2078
    %v2139 = vpack.c.b16 %v2083, %v2079
    %v2140 = vpack.c.b16 %v2084, %v2080
    %v2141 = vpack.c.b16 %v2085, %v2081
    %v2142 = vpack.c.b16 %v2090, %v2086
    %v2143 = vpack.c.b16 %v2091, %v2087
    %v2144 = vpack.c.b16 %v2092, %v2088
    %v2145 = vpack.c.b16 %v2093, %v2089
    %v2146 = vpack.c.b16 %v2098, %v2094
    %v2147 = vpack.c.b16 %v2099, %v2095
    %v2148 = vpack.c.b16 %v2100, %v2096
    %v2149 = vpack.c.b16 %v2101, %v2097
    %v2150 = vpack.c.b16 %v2106, %v2102
    %v2151 = vpack.c.b16 %v2107, %v2103
    %v2152 = vpack.c.b16 %v2108, %v2104
    %v2153 = vpack.c.b16 %v2109, %v2105
    %v2154 = vpack.c.b16 %v2114, %v2110
    %v2155 = vpack.c.b16 %v2115, %v2111
    %v2156 = vpack.c.b16 %v2116, %v2112
    %v2157 = vpack.c.b16 %v2117, %v2113
    %v2158 = vpack.c.b16 %v2122, %v2118
    %v2159 = vpack.c.b16 %v2123, %v2119
    %v2160 = vpack.c.b16 %v2124, %v2120
    %v2161 = vpack.c.b16 %v2125, %v2121
    %v2162 = vpack.c.b16 %v2130, %v2126
    %v2163 = vpack.c.b16 %v2131, %v2127
    %v2164 = vpack.c.b16 %v2132, %v2128
    %v2165 = vpack.c.b16 %v2133, %v2129
    %2198 = vmatprep.subr.bf16.mxu0 %v2135
    %2199 = vmatpush1.bf16.msra.mxu0 %v2134
    %2200 = vmatprep.subr.bf16.mxu0 %v2139
    %2201 = vmatpush1.bf16.msra.mxu0 %v2138
    %2202 = vmatprep.subr.bf16.mxu0 %v2143
    %2203 = vmatpush1.bf16.msra.mxu0 %v2142
    %2204 = vmatprep.subr.bf16.mxu0 %v2147
    %2205 = vmatpush1.bf16.msra.mxu0 %v2146
    %2206 = vmatprep.subr.bf16.mxu0 %v2151
    %2207 = vmatpush1.bf16.msra.mxu0 %v2150
    %2208 = vmatprep.subr.bf16.mxu0 %v2155
    %2209 = vmatpush1.bf16.msra.mxu0 %v2154
    %2210 = vmatprep.subr.bf16.mxu0 %v2159
    %2211 = vmatpush1.bf16.msra.mxu0 %v2158
    %2212 = vmatprep.subr.bf16.mxu0 %v2163
    %2213 = vmatpush1.bf16.msra.mxu0 %v2162
    %2214 = vmatprep.subr.bf16.mxu0 0
    %2215 = vmatpush1.bf16.msra.mxu0 0
    %2216 = vmatprep.subr.bf16.mxu0 0
    %2217 = vmatpush1.bf16.msra.mxu0 0
    %2218 = vmatprep.subr.bf16.mxu0 0
    %2219 = vmatpush1.bf16.msra.mxu0 0
    %2220 = vmatprep.subr.bf16.mxu0 0
    %2221 = vmatpush1.bf16.msra.mxu0 0
    %2222 = vmatprep.subr.bf16.mxu0 0
    %2223 = vmatpush1.bf16.msra.mxu0 0
    %2224 = vmatprep.subr.bf16.mxu0 0
    %2225 = vmatpush1.bf16.msra.mxu0 0
    %2226 = vmatprep.subr.bf16.mxu0 0
    %2227 = vmatpush1.bf16.msra.mxu0 0
    %2228 = vmatprep.subr.bf16.mxu0 0
    %2229 = vmatpush1.bf16.msra.mxu0 0
    %2230 = vmatprep.mubr.bf16.mxu0 0
    %2231 = vmatmul.mubr.bf16.gmra.mrb[0].mxu0 %v2005
    %v2232 = vpop.f32.mrb[0].mxu0
    %v2233 = vadd.f32 0.0, %v2232
    %v2234 = vpop.f32.mrb[0].mxu0
    %v2235 = vadd.f32 0.0, %v2234
    %v2236 = vpop.f32.mrb[0].mxu0
    %v2237 = vpop.f32.mrb[0].mxu0
    %2238 = vdwg.mxu0
    %2239 = vmatprep.subr.bf16.mxu0 %v2137
    %2240 = vmatpush1.bf16.msra.mxu0 %v2136
    %2241 = vmatprep.subr.bf16.mxu0 %v2141
    %2242 = vmatpush1.bf16.msra.mxu0 %v2140
    %2243 = vmatprep.subr.bf16.mxu0 %v2145
    %2244 = vmatpush1.bf16.msra.mxu0 %v2144
    %2245 = vmatprep.subr.bf16.mxu0 %v2149
    %2246 = vmatpush1.bf16.msra.mxu0 %v2148
    %2247 = vmatprep.subr.bf16.mxu0 %v2153
    %2248 = vmatpush1.bf16.msra.mxu0 %v2152
    %2249 = vmatprep.subr.bf16.mxu0 %v2157
    %2250 = vmatpush1.bf16.msra.mxu0 %v2156
    %2251 = vmatprep.subr.bf16.mxu0 %v2161
    %2252 = vmatpush1.bf16.msra.mxu0 %v2160
    %2253 = vmatprep.subr.bf16.mxu0 %v2165
    %2254 = vmatpush1.bf16.msra.mxu0 %v2164
    %2255 = vmatprep.subr.bf16.mxu0 0
    %2256 = vmatpush1.bf16.msra.mxu0 0
    %2257 = vmatprep.subr.bf16.mxu0 0
    %2258 = vmatpush1.bf16.msra.mxu0 0
    %2259 = vmatprep.subr.bf16.mxu0 0
    %2260 = vmatpush1.bf16.msra.mxu0 0
    %2261 = vmatprep.subr.bf16.mxu0 0
    %2262 = vmatpush1.bf16.msra.mxu0 0
    %2263 = vmatprep.subr.bf16.mxu0 0
    %2264 = vmatpush1.bf16.msra.mxu0 0
    %2265 = vmatprep.subr.bf16.mxu0 0
    %2266 = vmatpush1.bf16.msra.mxu0 0
    %2267 = vmatprep.subr.bf16.mxu0 0
    %2268 = vmatpush1.bf16.msra.mxu0 0
    %2269 = vmatprep.subr.bf16.mxu0 0
    %2270 = vmatpush1.bf16.msra.mxu0 0
    %2271 = vmatprep.mubr.bf16.mxu0 0
    %2272 = vmatmul.mubr.bf16.gmra.mrb[0].mxu0 %v2005
    %v2273 = vpop.f32.mrb[0].mxu0
    %v2274 = vadd.f32 0.0, %v2273
    %v2275 = vpop.f32.mrb[0].mxu0
    %v2276 = vadd.f32 0.0, %v2275
    %v2277 = vpop.f32.mrb[0].mxu0
    %v2278 = vpop.f32.mrb[0].mxu0
    %2279 = vdwg.mxu0
    %v2284 = vcombine.low %v2233, %v2235
    %v2285 = vcombine.low %v2274, %v2276
    %v2287 = vunpack.c.l.s4 1966171168
    %v2288 = vunpack.c.0.s8 %v2287
    %v2289 = vlaneseq
    %v2290 = vshrl.u32 %v2289, 7
    %v2291 = vsub.s32 %v2288, %v2290
    %v2292 = vrot.slane %v2284, %v2291
    %v2294 = vunpack.c.l.s4 1966171168
    %v2295 = vunpack.c.0.s8 %v2294
    %v2296 = vlaneseq
    %v2297 = vshrl.u32 %v2296, 7
    %v2298 = vsub.s32 %v2295, %v2297
    %v2299 = vrot.slane %v2285, %v2298
    %v2300 = vcombine.low %v2292, %v2299
    %v2301 = vcombine.high %v2292, %v2299
    %v2303 = vunpack.c.l.s4 1966171168
    %v2304 = vunpack.c.0.s8 %v2303
    %v2305 = vlaneseq
    %v2306 = vshrl.u32 %v2305, 7
    %v2307 = vsub.s32 %v2304, %v2306
    %v2308 = vrot.slane %v2300, %v2307
    %v2310 = vunpack.c.l.s4 1966171168
    %v2311 = vunpack.c.0.s8 %v2310
    %v2312 = vlaneseq
    %v2313 = vshrl.u32 %v2312, 7
    %v2314 = vsub.s32 %v2311, %v2313
    %v2315 = vrot.slane %v2301, %v2314
    %v2318 = vadd.f32 %v2002, %v2308
    %v2319 = vadd.f32 %v2004, %v2315
    %v2320 = vstv %s2000
    %vm2321 = vcmp.lt.s32.totalorder %v2320, %v76
    %v2322 = vxor.u32 %v2318, 2147483648
    %v2323 = vxor.u32 %v2319, 2147483648
    %v2324 = vmul.f32 %v2322, 1.442695
    %v2325 = vpow.pop %v2324
    %v2326 = vmul.f32 %v2323, 1.442695
    %v2327 = vpow.pop %v2326
    %v2328 = vadd.f32 %v2325, 1.0
    %v2329 = vadd.f32 %v2327, 1.0
    %v2330 = vrcp.pop %v2328
    %v2331 = vmul.f32 1.0, %v2330
    %v2332 = vrcp.pop %v2329
    %v2333 = vmul.f32 1.0, %v2332
    %v2336 = vrot.slane %v2318, 1
    %v2337 = vrot.slane %v2319, 1
    %v2340 = vxor.u32 %v2336, 2147483648
    %v2341 = vxor.u32 %v2337, 2147483648
    %v2342 = vmul.f32 %v2340, 1.442695
    %v2343 = vpow.pop %v2342
    %v2344 = vmul.f32 %v2341, 1.442695
    %v2345 = vpow.pop %v2344
    %v2346 = vadd.f32 %v2343, 1.0
    %v2347 = vadd.f32 %v2345, 1.0
    %v2348 = vrcp.pop %v2346
    %v2349 = vmul.f32 1.0, %v2348
    %v2350 = vrcp.pop %v2347
    %v2351 = vmul.f32 1.0, %v2350
    %v2352 = vrot.slane %v2318, 2
    %v2353 = vrot.slane %v2319, 2
    %v2356 = vtanh.pop %v2352
    %v2357 = vtanh.pop %v2353
    %v2358 = vrot.slane %v2318, 3
    %v2359 = vrot.slane %v2319, 3
    %v2362 = vxor.u32 %v2358, 2147483648
    %v2363 = vxor.u32 %v2359, 2147483648
    %v2364 = vmul.f32 %v2362, 1.442695
    %v2365 = vpow.pop %v2364
    %v2366 = vmul.f32 %v2363, 1.442695
    %v2367 = vpow.pop %v2366
    %v2368 = vadd.f32 %v2365, 1.0
    %v2369 = vadd.f32 %v2367, 1.0
    %v2370 = vrcp.pop %v2368
    %v2371 = vmul.f32 1.0, %v2370
    %v2372 = vrcp.pop %v2369
    %v2373 = vmul.f32 1.0, %v2372
    %v2376 = vunpack.c.l.s4 1966171168
    %v2377 = vunpack.c.0.s8 %v2376
    %v2378 = vlaneseq
    %v2379 = vshrl.u32 %v2378, 7
    %v2380 = vsub.s32 %v2377, %v2379
    %v2381 = vrot.slane %v1491, %v2380
    %v2382 = vcombine.high %v2381, %v2381
    %v2384 = vunpack.c.l.s4 1966171168
    %v2385 = vunpack.c.0.s8 %v2384
    %v2386 = vlaneseq
    %v2387 = vshrl.u32 %v2386, 7
    %v2388 = vsub.s32 %v2385, %v2387
    %v2389 = vrot.slane %v2381, %v2388
    %v2391 = vunpack.c.l.s4 1966171168
    %v2392 = vunpack.c.0.s8 %v2391
    %v2393 = vlaneseq
    %v2394 = vshrl.u32 %v2393, 7
    %v2395 = vsub.s32 %v2392, %v2394
    %v2396 = vrot.slane %v2382, %v2395
    %v2399 = vmul.f32 %v2349, %v2389
    %v2400 = vmul.f32 %v2351, %v2396
    %v2401 = vmul.f32 %v2331, %v2356
    %v2402 = vmul.f32 %v2333, %v2357
    %v2403 = vadd.f32 %v2399, %v2401
    %v2404 = vadd.f32 %v2400, %v2402
    %v2405 = vtanh.pop %v2403
    %v2406 = vtanh.pop %v2404
    %v2407 = vmul.f32 %v2371, %v2405
    %v2408 = vmul.f32 %v2373, %v2406
    %v2409 = vsel %vm2321, 1, 0
    %2410 = vset.pattern.permute.xlu0 0
    %2411 = vperm.xlu0 %2410, %v2409
    %v2412 = vpop.permute.xlu0 %2411
    %vm2413 = vcmp.eq.s32.totalorder %v2412, 1
    %v2416 = vcombine.low %v2407, %v2408
    %v2418 = vunpack.c.l.s4 1966171168
    %v2419 = vunpack.c.0.s8 %v2418
    %v2420 = vlaneseq
    %v2421 = vshrl.u32 %v2420, 7
    %v2422 = vsub.s32 %v2419, %v2421
    %v2423 = vrot.slane %v2416, %v2422
    %v2425 = vunpack.c.l.s4 1966171168
    %v2426 = vunpack.c.0.s8 %v2425
    %v2427 = vlaneseq
    %v2428 = vshrl.u32 %v2427, 7
    %v2429 = vsub.s32 %v2426, %v2428
    %v2430 = vrot.slane %v2423, %v2429
    %v2432 = vsel %vm2413, %v2430, %v1472
    %v2435 = vcombine.low %v2403, %v2404
    %v2437 = vunpack.c.l.s4 1966171168
    %v2438 = vunpack.c.0.s8 %v2437
    %v2439 = vlaneseq
    %v2440 = vshrl.u32 %v2439, 7
    %v2441 = vsub.s32 %v2438, %v2440
    %v2442 = vrot.slane %v2435, %v2441
    %v2444 = vunpack.c.l.s4 1966171168
    %v2445 = vunpack.c.0.s8 %v2444
    %v2446 = vlaneseq
    %v2447 = vshrl.u32 %v2446, 7
    %v2448 = vsub.s32 %v2445, %v2447
    %v2449 = vrot.slane %v2442, %v2448
    %v2451 = vsel %vm2413, %v2449, %v1491
    %v2452 = vsel %vm2413, %v2430, 0.0
    %v2455 = vunpack.c.l.s4 1966171168
    %v2456 = vunpack.c.0.s8 %v2455
    %v2457 = vlaneseq
    %v2458 = vshrl.u32 %v2457, 7
    %v2459 = vsub.s32 %v2456, %v2458
    %v2460 = vrot.slane %v2452, %v2459
    %v2461 = vcombine.high %v2460, %v2460
    %v2463 = vunpack.c.l.s4 1966171168
    %v2464 = vunpack.c.0.s8 %v2463
    %v2465 = vlaneseq
    %v2466 = vshrl.u32 %v2465, 7
    %v2467 = vsub.s32 %v2464, %v2466
    %v2468 = vrot.slane %v2460, %v2467
    %v2470 = vunpack.c.l.s4 1966171168
    %v2471 = vunpack.c.0.s8 %v2470
    %v2472 = vlaneseq
    %v2473 = vshrl.u32 %v2472, 7
    %v2474 = vsub.s32 %v2471, %v2473
    %v2475 = vrot.slane %v2461, %v2474
    %2478 = vst [vmem:[%s5 + $0x2] sm:$0x1] %v2468
    %2479 = vst [vmem:[%s5 + $0xa] sm:$0x1] %v2475
    %s2480 = ssub.s32 5, %s77
    %s2481 = scalar_lea.vmem %s59, 37
    %v2482 = vld [vmem:[%s2481] ss:$8 sm:$0xf]
    %s2483 = scalar_lea.vmem %s59, 101
    %v2484 = vld [vmem:[%s2483] ss:$8 sm:$0xf]
    %v2485 = vpack.c.bf16 %v1952, %v1952
    %v2486 = vld [vmem:[#allocation6] sm:$0xff]
    %v2487 = vld [vmem:[#allocation6 + $0x8] sm:$0xff]
    %v2488 = vld [vmem:[#allocation6 + $0x10] sm:$0xff]
    %v2489 = vld [vmem:[#allocation6 + $0x18] sm:$0xff]
    %v2490 = vld [vmem:[#allocation6 + $0x20] sm:$0xff]
    %v2491 = vld [vmem:[#allocation6 + $0x28] sm:$0xff]
    %v2492 = vld [vmem:[#allocation6 + $0x30] sm:$0xff]
    %v2493 = vld [vmem:[#allocation6 + $0x38] sm:$0xff]
    %v2494 = vld [vmem:[#allocation6 + $0x40] sm:$0xff]
    %v2495 = vld [vmem:[#allocation6 + $0x48] sm:$0xff]
    %v2496 = vld [vmem:[#allocation6 + $0x50] sm:$0xff]
    %v2497 = vld [vmem:[#allocation6 + $0x58] sm:$0xff]
    %v2498 = vld [vmem:[#allocation6 + $0x60] sm:$0xff]
    %v2499 = vld [vmem:[#allocation6 + $0x68] sm:$0xff]
    %v2500 = vld [vmem:[#allocation6 + $0x70] sm:$0xff]
    %v2501 = vld [vmem:[#allocation6 + $0x78] sm:$0xff]
    %v2502 = vld [vmem:[#allocation6 + $0x80] sm:$0xff]
    %v2503 = vld [vmem:[#allocation6 + $0x88] sm:$0xff]
    %v2504 = vld [vmem:[#allocation6 + $0x90] sm:$0xff]
    %v2505 = vld [vmem:[#allocation6 + $0x98] sm:$0xff]
    %v2506 = vld [vmem:[#allocation6 + $0xa0] sm:$0xff]
    %v2507 = vld [vmem:[#allocation6 + $0xa8] sm:$0xff]
    %v2508 = vld [vmem:[#allocation6 + $0xb0] sm:$0xff]
    %v2509 = vld [vmem:[#allocation6 + $0xb8] sm:$0xff]
    %v2510 = vld [vmem:[#allocation6 + $0xc0] sm:$0xff]
    %v2511 = vld [vmem:[#allocation6 + $0xc8] sm:$0xff]
    %v2512 = vld [vmem:[#allocation6 + $0xd0] sm:$0xff]
    %v2513 = vld [vmem:[#allocation6 + $0xd8] sm:$0xff]
    %v2514 = vld [vmem:[#allocation6 + $0xe0] sm:$0xff]
    %v2515 = vld [vmem:[#allocation6 + $0xe8] sm:$0xff]
    %v2516 = vld [vmem:[#allocation6 + $0xf0] sm:$0xff]
    %v2517 = vld [vmem:[#allocation6 + $0xf8] sm:$0xff]
    %v2550 = vunpack.c.l.b16 %v2486
    %v2551 = vunpack.c.h.b16 %v2486
    %v2552 = vunpack.c.l.b16 %v2487
    %v2553 = vunpack.c.h.b16 %v2487
    %v2554 = vunpack.c.l.b16 %v2488
    %v2555 = vunpack.c.h.b16 %v2488
    %v2556 = vunpack.c.l.b16 %v2489
    %v2557 = vunpack.c.h.b16 %v2489
    %v2558 = vunpack.c.l.b16 %v2490
    %v2559 = vunpack.c.h.b16 %v2490
    %v2560 = vunpack.c.l.b16 %v2491
    %v2561 = vunpack.c.h.b16 %v2491
    %v2562 = vunpack.c.l.b16 %v2492
    %v2563 = vunpack.c.h.b16 %v2492
    %v2564 = vunpack.c.l.b16 %v2493
    %v2565 = vunpack.c.h.b16 %v2493
    %v2566 = vunpack.c.l.b16 %v2494
    %v2567 = vunpack.c.h.b16 %v2494
    %v2568 = vunpack.c.l.b16 %v2495
    %v2569 = vunpack.c.h.b16 %v2495
    %v2570 = vunpack.c.l.b16 %v2496
    %v2571 = vunpack.c.h.b16 %v2496
    %v2572 = vunpack.c.l.b16 %v2497
    %v2573 = vunpack.c.h.b16 %v2497
    %v2574 = vunpack.c.l.b16 %v2498
    %v2575 = vunpack.c.h.b16 %v2498
    %v2576 = vunpack.c.l.b16 %v2499
    %v2577 = vunpack.c.h.b16 %v2499
    %v2578 = vunpack.c.l.b16 %v2500
    %v2579 = vunpack.c.h.b16 %v2500
    %v2580 = vunpack.c.l.b16 %v2501
    %v2581 = vunpack.c.h.b16 %v2501
    %v2582 = vunpack.c.l.b16 %v2502
    %v2583 = vunpack.c.h.b16 %v2502
    %v2584 = vunpack.c.l.b16 %v2503
    %v2585 = vunpack.c.h.b16 %v2503
    %v2586 = vunpack.c.l.b16 %v2504
    %v2587 = vunpack.c.h.b16 %v2504
    %v2588 = vunpack.c.l.b16 %v2505
    %v2589 = vunpack.c.h.b16 %v2505
    %v2590 = vunpack.c.l.b16 %v2506
    %v2591 = vunpack.c.h.b16 %v2506
    %v2592 = vunpack.c.l.b16 %v2507
    %v2593 = vunpack.c.h.b16 %v2507
    %v2594 = vunpack.c.l.b16 %v2508
    %v2595 = vunpack.c.h.b16 %v2508
    %v2596 = vunpack.c.l.b16 %v2509
    %v2597 = vunpack.c.h.b16 %v2509
    %v2598 = vunpack.c.l.b16 %v2510
    %v2599 = vunpack.c.h.b16 %v2510
    %v2600 = vunpack.c.l.b16 %v2511
    %v2601 = vunpack.c.h.b16 %v2511
    %v2602 = vunpack.c.l.b16 %v2512
    %v2603 = vunpack.c.h.b16 %v2512
    %v2604 = vunpack.c.l.b16 %v2513
    %v2605 = vunpack.c.h.b16 %v2513
    %v2606 = vunpack.c.l.b16 %v2514
    %v2607 = vunpack.c.h.b16 %v2514
    %v2608 = vunpack.c.l.b16 %v2515
    %v2609 = vunpack.c.h.b16 %v2515
    %v2610 = vunpack.c.l.b16 %v2516
    %v2611 = vunpack.c.h.b16 %v2516
    %v2612 = vunpack.c.l.b16 %v2517
    %v2613 = vunpack.c.h.b16 %v2517
    %v2614 = vpack.c.b16 %v2554, %v2550
    %v2615 = vpack.c.b16 %v2555, %v2551
    %v2616 = vpack.c.b16 %v2556, %v2552
    %v2617 = vpack.c.b16 %v2557, %v2553
    %v2618 = vpack.c.b16 %v2562, %v2558
    %v2619 = vpack.c.b16 %v2563, %v2559
    %v2620 = vpack.c.b16 %v2564, %v2560
    %v2621 = vpack.c.b16 %v2565, %v2561
    %v2622 = vpack.c.b16 %v2570, %v2566
    %v2623 = vpack.c.b16 %v2571, %v2567
    %v2624 = vpack.c.b16 %v2572, %v2568
    %v2625 = vpack.c.b16 %v2573, %v2569
    %v2626 = vpack.c.b16 %v2578, %v2574
    %v2627 = vpack.c.b16 %v2579, %v2575
    %v2628 = vpack.c.b16 %v2580, %v2576
    %v2629 = vpack.c.b16 %v2581, %v2577
    %v2630 = vpack.c.b16 %v2586, %v2582
    %v2631 = vpack.c.b16 %v2587, %v2583
    %v2632 = vpack.c.b16 %v2588, %v2584
    %v2633 = vpack.c.b16 %v2589, %v2585
    %v2634 = vpack.c.b16 %v2594, %v2590
    %v2635 = vpack.c.b16 %v2595, %v2591
    %v2636 = vpack.c.b16 %v2596, %v2592
    %v2637 = vpack.c.b16 %v2597, %v2593
    %v2638 = vpack.c.b16 %v2602, %v2598
    %v2639 = vpack.c.b16 %v2603, %v2599
    %v2640 = vpack.c.b16 %v2604, %v2600
    %v2641 = vpack.c.b16 %v2605, %v2601
    %v2642 = vpack.c.b16 %v2610, %v2606
    %v2643 = vpack.c.b16 %v2611, %v2607
    %v2644 = vpack.c.b16 %v2612, %v2608
    %v2645 = vpack.c.b16 %v2613, %v2609
    %2678 = vmatprep.subr.bf16.mxu0 %v2615
    %2679 = vmatpush1.bf16.msra.mxu0 %v2614
    %2680 = vmatprep.subr.bf16.mxu0 %v2619
    %2681 = vmatpush1.bf16.msra.mxu0 %v2618
    %2682 = vmatprep.subr.bf16.mxu0 %v2623
    %2683 = vmatpush1.bf16.msra.mxu0 %v2622
    %2684 = vmatprep.subr.bf16.mxu0 %v2627
    %2685 = vmatpush1.bf16.msra.mxu0 %v2626
    %2686 = vmatprep.subr.bf16.mxu0 %v2631
    %2687 = vmatpush1.bf16.msra.mxu0 %v2630
    %2688 = vmatprep.subr.bf16.mxu0 %v2635
    %2689 = vmatpush1.bf16.msra.mxu0 %v2634
    %2690 = vmatprep.subr.bf16.mxu0 %v2639
    %2691 = vmatpush1.bf16.msra.mxu0 %v2638
    %2692 = vmatprep.subr.bf16.mxu0 %v2643
    %2693 = vmatpush1.bf16.msra.mxu0 %v2642
    %2694 = vmatprep.subr.bf16.mxu0 0
    %2695 = vmatpush1.bf16.msra.mxu0 0
    %2696 = vmatprep.subr.bf16.mxu0 0
    %2697 = vmatpush1.bf16.msra.mxu0 0
    %2698 = vmatprep.subr.bf16.mxu0 0
    %2699 = vmatpush1.bf16.msra.mxu0 0
    %2700 = vmatprep.subr.bf16.mxu0 0
    %2701 = vmatpush1.bf16.msra.mxu0 0
    %2702 = vmatprep.subr.bf16.mxu0 0
    %2703 = vmatpush1.bf16.msra.mxu0 0
    %2704 = vmatprep.subr.bf16.mxu0 0
    %2705 = vmatpush1.bf16.msra.mxu0 0
    %2706 = vmatprep.subr.bf16.mxu0 0
    %2707 = vmatpush1.bf16.msra.mxu0 0
    %2708 = vmatprep.subr.bf16.mxu0 0
    %2709 = vmatpush1.bf16.msra.mxu0 0
    %2710 = vmatprep.mubr.bf16.mxu0 0
    %2711 = vmatmul.mubr.bf16.gmra.mrb[0].mxu0 %v2485
    %v2712 = vpop.f32.mrb[0].mxu0
    %v2713 = vadd.f32 0.0, %v2712
    %v2714 = vpop.f32.mrb[0].mxu0
    %v2715 = vadd.f32 0.0, %v2714
    %v2716 = vpop.f32.mrb[0].mxu0
    %v2717 = vpop.f32.mrb[0].mxu0
    %2718 = vdwg.mxu0
    %2719 = vmatprep.subr.bf16.mxu0 %v2617
    %2720 = vmatpush1.bf16.msra.mxu0 %v2616
    %2721 = vmatprep.subr.bf16.mxu0 %v2621
    %2722 = vmatpush1.bf16.msra.mxu0 %v2620
    %2723 = vmatprep.subr.bf16.mxu0 %v2625
    %2724 = vmatpush1.bf16.msra.mxu0 %v2624
    %2725 = vmatprep.subr.bf16.mxu0 %v2629
    %2726 = vmatpush1.bf16.msra.mxu0 %v2628
    %2727 = vmatprep.subr.bf16.mxu0 %v2633
    %2728 = vmatpush1.bf16.msra.mxu0 %v2632
    %2729 = vmatprep.subr.bf16.mxu0 %v2637
    %2730 = vmatpush1.bf16.msra.mxu0 %v2636
    %2731 = vmatprep.subr.bf16.mxu0 %v2641
    %2732 = vmatpush1.bf16.msra.mxu0 %v2640
    %2733 = vmatprep.subr.bf16.mxu0 %v2645
    %2734 = vmatpush1.bf16.msra.mxu0 %v2644
    %2735 = vmatprep.subr.bf16.mxu0 0
    %2736 = vmatpush1.bf16.msra.mxu0 0
    %2737 = vmatprep.subr.bf16.mxu0 0
    %2738 = vmatpush1.bf16.msra.mxu0 0
    %2739 = vmatprep.subr.bf16.mxu0 0
    %2740 = vmatpush1.bf16.msra.mxu0 0
    %2741 = vmatprep.subr.bf16.mxu0 0
    %2742 = vmatpush1.bf16.msra.mxu0 0
    %2743 = vmatprep.subr.bf16.mxu0 0
    %2744 = vmatpush1.bf16.msra.mxu0 0
    %2745 = vmatprep.subr.bf16.mxu0 0
    %2746 = vmatpush1.bf16.msra.mxu0 0
    %2747 = vmatprep.subr.bf16.mxu0 0
    %2748 = vmatpush1.bf16.msra.mxu0 0
    %2749 = vmatprep.subr.bf16.mxu0 0
    %2750 = vmatpush1.bf16.msra.mxu0 0
    %2751 = vmatprep.mubr.bf16.mxu0 0
    %2752 = vmatmul.mubr.bf16.gmra.mrb[0].mxu0 %v2485
    %v2753 = vpop.f32.mrb[0].mxu0
    %v2754 = vadd.f32 0.0, %v2753
    %v2755 = vpop.f32.mrb[0].mxu0
    %v2756 = vadd.f32 0.0, %v2755
    %v2757 = vpop.f32.mrb[0].mxu0
    %v2758 = vpop.f32.mrb[0].mxu0
    %2759 = vdwg.mxu0
    %v2764 = vcombine.low %v2713, %v2715
    %v2765 = vcombine.low %v2754, %v2756
    %v2767 = vunpack.c.l.s4 1966171168
    %v2768 = vunpack.c.0.s8 %v2767
    %v2769 = vlaneseq
    %v2770 = vshrl.u32 %v2769, 7
    %v2771 = vsub.s32 %v2768, %v2770
    %v2772 = vrot.slane %v2764, %v2771
    %v2774 = vunpack.c.l.s4 1966171168
    %v2775 = vunpack.c.0.s8 %v2774
    %v2776 = vlaneseq
    %v2777 = vshrl.u32 %v2776, 7
    %v2778 = vsub.s32 %v2775, %v2777
    %v2779 = vrot.slane %v2765, %v2778
    %v2780 = vcombine.low %v2772, %v2779
    %v2781 = vcombine.high %v2772, %v2779
    %v2783 = vunpack.c.l.s4 1966171168
    %v2784 = vunpack.c.0.s8 %v2783
    %v2785 = vlaneseq
    %v2786 = vshrl.u32 %v2785, 7
    %v2787 = vsub.s32 %v2784, %v2786
    %v2788 = vrot.slane %v2780, %v2787
    %v2790 = vunpack.c.l.s4 1966171168
    %v2791 = vunpack.c.0.s8 %v2790
    %v2792 = vlaneseq
    %v2793 = vshrl.u32 %v2792, 7
    %v2794 = vsub.s32 %v2791, %v2793
    %v2795 = vrot.slane %v2781, %v2794
    %v2798 = vadd.f32 %v2482, %v2788
    %v2799 = vadd.f32 %v2484, %v2795
    %v2800 = vstv %s2480
    %vm2801 = vcmp.lt.s32.totalorder %v2800, %v76
    %v2802 = vxor.u32 %v2798, 2147483648
    %v2803 = vxor.u32 %v2799, 2147483648
    %v2804 = vmul.f32 %v2802, 1.442695
    %v2805 = vpow.pop %v2804
    %v2806 = vmul.f32 %v2803, 1.442695
    %v2807 = vpow.pop %v2806
    %v2808 = vadd.f32 %v2805, 1.0
    %v2809 = vadd.f32 %v2807, 1.0
    %v2810 = vrcp.pop %v2808
    %v2811 = vmul.f32 1.0, %v2810
    %v2812 = vrcp.pop %v2809
    %v2813 = vmul.f32 1.0, %v2812
    %v2816 = vrot.slane %v2798, 1
    %v2817 = vrot.slane %v2799, 1
    %v2820 = vxor.u32 %v2816, 2147483648
    %v2821 = vxor.u32 %v2817, 2147483648
    %v2822 = vmul.f32 %v2820, 1.442695
    %v2823 = vpow.pop %v2822
    %v2824 = vmul.f32 %v2821, 1.442695
    %v2825 = vpow.pop %v2824
    %v2826 = vadd.f32 %v2823, 1.0
    %v2827 = vadd.f32 %v2825, 1.0
    %v2828 = vrcp.pop %v2826
    %v2829 = vmul.f32 1.0, %v2828
    %v2830 = vrcp.pop %v2827
    %v2831 = vmul.f32 1.0, %v2830
    %v2832 = vrot.slane %v2798, 2
    %v2833 = vrot.slane %v2799, 2
    %v2836 = vtanh.pop %v2832
    %v2837 = vtanh.pop %v2833
    %v2838 = vrot.slane %v2798, 3
    %v2839 = vrot.slane %v2799, 3
    %v2842 = vxor.u32 %v2838, 2147483648
    %v2843 = vxor.u32 %v2839, 2147483648
    %v2844 = vmul.f32 %v2842, 1.442695
    %v2845 = vpow.pop %v2844
    %v2846 = vmul.f32 %v2843, 1.442695
    %v2847 = vpow.pop %v2846
    %v2848 = vadd.f32 %v2845, 1.0
    %v2849 = vadd.f32 %v2847, 1.0
    %v2850 = vrcp.pop %v2848
    %v2851 = vmul.f32 1.0, %v2850
    %v2852 = vrcp.pop %v2849
    %v2853 = vmul.f32 1.0, %v2852
    %v2856 = vunpack.c.l.s4 1966171168
    %v2857 = vunpack.c.0.s8 %v2856
    %v2858 = vlaneseq
    %v2859 = vshrl.u32 %v2858, 7
    %v2860 = vsub.s32 %v2857, %v2859
    %v2861 = vrot.slane %v1971, %v2860
    %v2862 = vcombine.high %v2861, %v2861
    %v2864 = vunpack.c.l.s4 1966171168
    %v2865 = vunpack.c.0.s8 %v2864
    %v2866 = vlaneseq
    %v2867 = vshrl.u32 %v2866, 7
    %v2868 = vsub.s32 %v2865, %v2867
    %v2869 = vrot.slane %v2861, %v2868
    %v2871 = vunpack.c.l.s4 1966171168
    %v2872 = vunpack.c.0.s8 %v2871
    %v2873 = vlaneseq
    %v2874 = vshrl.u32 %v2873, 7
    %v2875 = vsub.s32 %v2872, %v2874
    %v2876 = vrot.slane %v2862, %v2875
    %v2879 = vmul.f32 %v2829, %v2869
    %v2880 = vmul.f32 %v2831, %v2876
    %v2881 = vmul.f32 %v2811, %v2836
    %v2882 = vmul.f32 %v2813, %v2837
    %v2883 = vadd.f32 %v2879, %v2881
    %v2884 = vadd.f32 %v2880, %v2882
    %v2885 = vtanh.pop %v2883
    %v2886 = vtanh.pop %v2884
    %v2887 = vmul.f32 %v2851, %v2885
    %v2888 = vmul.f32 %v2853, %v2886
    %v2889 = vsel %vm2801, 1, 0
    %2890 = vset.pattern.permute.xlu0 0
    %2891 = vperm.xlu0 %2890, %v2889
    %v2892 = vpop.permute.xlu0 %2891
    %vm2893 = vcmp.eq.s32.totalorder %v2892, 1
    %v2896 = vcombine.low %v2887, %v2888
    %v2898 = vunpack.c.l.s4 1966171168
    %v2899 = vunpack.c.0.s8 %v2898
    %v2900 = vlaneseq
    %v2901 = vshrl.u32 %v2900, 7
    %v2902 = vsub.s32 %v2899, %v2901
    %v2903 = vrot.slane %v2896, %v2902
    %v2905 = vunpack.c.l.s4 1966171168
    %v2906 = vunpack.c.0.s8 %v2905
    %v2907 = vlaneseq
    %v2908 = vshrl.u32 %v2907, 7
    %v2909 = vsub.s32 %v2906, %v2908
    %v2910 = vrot.slane %v2903, %v2909
    %v2912 = vsel %vm2893, %v2910, %v1952
    %v2915 = vcombine.low %v2883, %v2884
    %v2917 = vunpack.c.l.s4 1966171168
    %v2918 = vunpack.c.0.s8 %v2917
    %v2919 = vlaneseq
    %v2920 = vshrl.u32 %v2919, 7
    %v2921 = vsub.s32 %v2918, %v2920
    %v2922 = vrot.slane %v2915, %v2921
    %v2924 = vunpack.c.l.s4 1966171168
    %v2925 = vunpack.c.0.s8 %v2924
    %v2926 = vlaneseq
    %v2927 = vshrl.u32 %v2926, 7
    %v2928 = vsub.s32 %v2925, %v2927
    %v2929 = vrot.slane %v2922, %v2928
    %v2931 = vsel %vm2893, %v2929, %v1971
    %v2932 = vsel %vm2893, %v2910, 0.0
    %v2935 = vunpack.c.l.s4 1966171168
    %v2936 = vunpack.c.0.s8 %v2935
    %v2937 = vlaneseq
    %v2938 = vshrl.u32 %v2937, 7
    %v2939 = vsub.s32 %v2936, %v2938
    %v2940 = vrot.slane %v2932, %v2939
    %v2941 = vcombine.high %v2940, %v2940
    %v2943 = vunpack.c.l.s4 1966171168
    %v2944 = vunpack.c.0.s8 %v2943
    %v2945 = vlaneseq
    %v2946 = vshrl.u32 %v2945, 7
    %v2947 = vsub.s32 %v2944, %v2946
    %v2948 = vrot.slane %v2940, %v2947
    %v2950 = vunpack.c.l.s4 1966171168
    %v2951 = vunpack.c.0.s8 %v2950
    %v2952 = vlaneseq
    %v2953 = vshrl.u32 %v2952, 7
    %v2954 = vsub.s32 %v2951, %v2953
    %v2955 = vrot.slane %v2941, %v2954
    %2958 = vst [vmem:[%s65 + $0x5] sm:$0x1] %v2948
    %2959 = vst [vmem:[%s65 + $0xd] sm:$0x1] %v2955
    %s2960 = sadd.s32 %s77, 3
    %s2961 = scalar_lea.vmem %s1, 3
    %v2962 = vld [vmem:[%s2961] ss:$8 sm:$0xf]
    %s2963 = scalar_lea.vmem %s1, 67
    %v2964 = vld [vmem:[%s2963] ss:$8 sm:$0xf]
    %v2965 = vpack.c.bf16 %v2432, %v2432
    %v2966 = vld [vmem:[%s3] sm:$0xff]
    %v2967 = vld [vmem:[%s3 + $0x8] sm:$0xff]
    %v2968 = vld [vmem:[%s3 + $0x10] sm:$0xff]
    %v2969 = vld [vmem:[%s3 + $0x18] sm:$0xff]
    %v2970 = vld [vmem:[%s3 + $0x20] sm:$0xff]
    %v2971 = vld [vmem:[%s3 + $0x28] sm:$0xff]
    %v2972 = vld [vmem:[%s3 + $0x30] sm:$0xff]
    %v2973 = vld [vmem:[%s3 + $0x38] sm:$0xff]
    %v2974 = vld [vmem:[%s3 + $0x40] sm:$0xff]
    %v2975 = vld [vmem:[%s3 + $0x48] sm:$0xff]
    %v2976 = vld [vmem:[%s3 + $0x50] sm:$0xff]
    %v2977 = vld [vmem:[%s3 + $0x58] sm:$0xff]
    %v2978 = vld [vmem:[%s3 + $0x60] sm:$0xff]
    %v2979 = vld [vmem:[%s3 + $0x68] sm:$0xff]
    %v2980 = vld [vmem:[%s3 + $0x70] sm:$0xff]
    %v2981 = vld [vmem:[%s3 + $0x78] sm:$0xff]
    %v2982 = vld [vmem:[%s3 + $0x80] sm:$0xff]
    %v2983 = vld [vmem:[%s3 + $0x88] sm:$0xff]
    %v2984 = vld [vmem:[%s3 + $0x90] sm:$0xff]
    %v2985 = vld [vmem:[%s3 + $0x98] sm:$0xff]
    %v2986 = vld [vmem:[%s3 + $0xa0] sm:$0xff]
    %v2987 = vld [vmem:[%s3 + $0xa8] sm:$0xff]
    %v2988 = vld [vmem:[%s3 + $0xb0] sm:$0xff]
    %v2989 = vld [vmem:[%s3 + $0xb8] sm:$0xff]
    %v2990 = vld [vmem:[%s3 + $0xc0] sm:$0xff]
    %v2991 = vld [vmem:[%s3 + $0xc8] sm:$0xff]
    %v2992 = vld [vmem:[%s3 + $0xd0] sm:$0xff]
    %v2993 = vld [vmem:[%s3 + $0xd8] sm:$0xff]
    %v2994 = vld [vmem:[%s3 + $0xe0] sm:$0xff]
    %v2995 = vld [vmem:[%s3 + $0xe8] sm:$0xff]
    %v2996 = vld [vmem:[%s3 + $0xf0] sm:$0xff]
    %v2997 = vld [vmem:[%s3 + $0xf8] sm:$0xff]
    %v3030 = vunpack.c.l.b16 %v2966
    %v3031 = vunpack.c.h.b16 %v2966
    %v3032 = vunpack.c.l.b16 %v2967
    %v3033 = vunpack.c.h.b16 %v2967
    %v3034 = vunpack.c.l.b16 %v2968
    %v3035 = vunpack.c.h.b16 %v2968
    %v3036 = vunpack.c.l.b16 %v2969
    %v3037 = vunpack.c.h.b16 %v2969
    %v3038 = vunpack.c.l.b16 %v2970
    %v3039 = vunpack.c.h.b16 %v2970
    %v3040 = vunpack.c.l.b16 %v2971
    %v3041 = vunpack.c.h.b16 %v2971
    %v3042 = vunpack.c.l.b16 %v2972
    %v3043 = vunpack.c.h.b16 %v2972
    %v3044 = vunpack.c.l.b16 %v2973
    %v3045 = vunpack.c.h.b16 %v2973
    %v3046 = vunpack.c.l.b16 %v2974
    %v3047 = vunpack.c.h.b16 %v2974
    %v3048 = vunpack.c.l.b16 %v2975
    %v3049 = vunpack.c.h.b16 %v2975
    %v3050 = vunpack.c.l.b16 %v2976
    %v3051 = vunpack.c.h.b16 %v2976
    %v3052 = vunpack.c.l.b16 %v2977
    %v3053 = vunpack.c.h.b16 %v2977
    %v3054 = vunpack.c.l.b16 %v2978
    %v3055 = vunpack.c.h.b16 %v2978
    %v3056 = vunpack.c.l.b16 %v2979
    %v3057 = vunpack.c.h.b16 %v2979
    %v3058 = vunpack.c.l.b16 %v2980
    %v3059 = vunpack.c.h.b16 %v2980
    %v3060 = vunpack.c.l.b16 %v2981
    %v3061 = vunpack.c.h.b16 %v2981
    %v3062 = vunpack.c.l.b16 %v2982
    %v3063 = vunpack.c.h.b16 %v2982
    %v3064 = vunpack.c.l.b16 %v2983
    %v3065 = vunpack.c.h.b16 %v2983
    %v3066 = vunpack.c.l.b16 %v2984
    %v3067 = vunpack.c.h.b16 %v2984
    %v3068 = vunpack.c.l.b16 %v2985
    %v3069 = vunpack.c.h.b16 %v2985
    %v3070 = vunpack.c.l.b16 %v2986
    %v3071 = vunpack.c.h.b16 %v2986
    %v3072 = vunpack.c.l.b16 %v2987
    %v3073 = vunpack.c.h.b16 %v2987
    %v3074 = vunpack.c.l.b16 %v2988
    %v3075 = vunpack.c.h.b16 %v2988
    %v3076 = vunpack.c.l.b16 %v2989
    %v3077 = vunpack.c.h.b16 %v2989
    %v3078 = vunpack.c.l.b16 %v2990
    %v3079 = vunpack.c.h.b16 %v2990
    %v3080 = vunpack.c.l.b16 %v2991
    %v3081 = vunpack.c.h.b16 %v2991
    %v3082 = vunpack.c.l.b16 %v2992
    %v3083 = vunpack.c.h.b16 %v2992
    %v3084 = vunpack.c.l.b16 %v2993
    %v3085 = vunpack.c.h.b16 %v2993
    %v3086 = vunpack.c.l.b16 %v2994
    %v3087 = vunpack.c.h.b16 %v2994
    %v3088 = vunpack.c.l.b16 %v2995
    %v3089 = vunpack.c.h.b16 %v2995
    %v3090 = vunpack.c.l.b16 %v2996
    %v3091 = vunpack.c.h.b16 %v2996
    %v3092 = vunpack.c.l.b16 %v2997
    %v3093 = vunpack.c.h.b16 %v2997
    %v3094 = vpack.c.b16 %v3034, %v3030
    %v3095 = vpack.c.b16 %v3035, %v3031
    %v3096 = vpack.c.b16 %v3036, %v3032
    %v3097 = vpack.c.b16 %v3037, %v3033
    %v3098 = vpack.c.b16 %v3042, %v3038
    %v3099 = vpack.c.b16 %v3043, %v3039
    %v3100 = vpack.c.b16 %v3044, %v3040
    %v3101 = vpack.c.b16 %v3045, %v3041
    %v3102 = vpack.c.b16 %v3050, %v3046
    %v3103 = vpack.c.b16 %v3051, %v3047
    %v3104 = vpack.c.b16 %v3052, %v3048
    %v3105 = vpack.c.b16 %v3053, %v3049
    %v3106 = vpack.c.b16 %v3058, %v3054
    %v3107 = vpack.c.b16 %v3059, %v3055
    %v3108 = vpack.c.b16 %v3060, %v3056
    %v3109 = vpack.c.b16 %v3061, %v3057
    %v3110 = vpack.c.b16 %v3066, %v3062
    %v3111 = vpack.c.b16 %v3067, %v3063
    %v3112 = vpack.c.b16 %v3068, %v3064
    %v3113 = vpack.c.b16 %v3069, %v3065
    %v3114 = vpack.c.b16 %v3074, %v3070
    %v3115 = vpack.c.b16 %v3075, %v3071
    %v3116 = vpack.c.b16 %v3076, %v3072
    %v3117 = vpack.c.b16 %v3077, %v3073
    %v3118 = vpack.c.b16 %v3082, %v3078
    %v3119 = vpack.c.b16 %v3083, %v3079
    %v3120 = vpack.c.b16 %v3084, %v3080
    %v3121 = vpack.c.b16 %v3085, %v3081
    %v3122 = vpack.c.b16 %v3090, %v3086
    %v3123 = vpack.c.b16 %v3091, %v3087
    %v3124 = vpack.c.b16 %v3092, %v3088
    %v3125 = vpack.c.b16 %v3093, %v3089
    %3158 = vmatprep.subr.bf16.mxu0 %v3095
    %3159 = vmatpush1.bf16.msra.mxu0 %v3094
    %3160 = vmatprep.subr.bf16.mxu0 %v3099
    %3161 = vmatpush1.bf16.msra.mxu0 %v3098
    %3162 = vmatprep.subr.bf16.mxu0 %v3103
    %3163 = vmatpush1.bf16.msra.mxu0 %v3102
    %3164 = vmatprep.subr.bf16.mxu0 %v3107
    %3165 = vmatpush1.bf16.msra.mxu0 %v3106
    %3166 = vmatprep.subr.bf16.mxu0 %v3111
    %3167 = vmatpush1.bf16.msra.mxu0 %v3110
    %3168 = vmatprep.subr.bf16.mxu0 %v3115
    %3169 = vmatpush1.bf16.msra.mxu0 %v3114
    %3170 = vmatprep.subr.bf16.mxu0 %v3119
    %3171 = vmatpush1.bf16.msra.mxu0 %v3118
    %3172 = vmatprep.subr.bf16.mxu0 %v3123
    %3173 = vmatpush1.bf16.msra.mxu0 %v3122
    %3174 = vmatprep.subr.bf16.mxu0 0
    %3175 = vmatpush1.bf16.msra.mxu0 0
    %3176 = vmatprep.subr.bf16.mxu0 0
    %3177 = vmatpush1.bf16.msra.mxu0 0
    %3178 = vmatprep.subr.bf16.mxu0 0
    %3179 = vmatpush1.bf16.msra.mxu0 0
    %3180 = vmatprep.subr.bf16.mxu0 0
    %3181 = vmatpush1.bf16.msra.mxu0 0
    %3182 = vmatprep.subr.bf16.mxu0 0
    %3183 = vmatpush1.bf16.msra.mxu0 0
    %3184 = vmatprep.subr.bf16.mxu0 0
    %3185 = vmatpush1.bf16.msra.mxu0 0
    %3186 = vmatprep.subr.bf16.mxu0 0
    %3187 = vmatpush1.bf16.msra.mxu0 0
    %3188 = vmatprep.subr.bf16.mxu0 0
    %3189 = vmatpush1.bf16.msra.mxu0 0
    %3190 = vmatprep.mubr.bf16.mxu0 0
    %3191 = vmatmul.mubr.bf16.gmra.mrb[0].mxu0 %v2965
    %v3192 = vpop.f32.mrb[0].mxu0
    %v3193 = vadd.f32 0.0, %v3192
    %v3194 = vpop.f32.mrb[0].mxu0
    %v3195 = vadd.f32 0.0, %v3194
    %v3196 = vpop.f32.mrb[0].mxu0
    %v3197 = vpop.f32.mrb[0].mxu0
    %3198 = vdwg.mxu0
    %3199 = vmatprep.subr.bf16.mxu0 %v3097
    %3200 = vmatpush1.bf16.msra.mxu0 %v3096
    %3201 = vmatprep.subr.bf16.mxu0 %v3101
    %3202 = vmatpush1.bf16.msra.mxu0 %v3100
    %3203 = vmatprep.subr.bf16.mxu0 %v3105
    %3204 = vmatpush1.bf16.msra.mxu0 %v3104
    %3205 = vmatprep.subr.bf16.mxu0 %v3109
    %3206 = vmatpush1.bf16.msra.mxu0 %v3108
    %3207 = vmatprep.subr.bf16.mxu0 %v3113
    %3208 = vmatpush1.bf16.msra.mxu0 %v3112
    %3209 = vmatprep.subr.bf16.mxu0 %v3117
    %3210 = vmatpush1.bf16.msra.mxu0 %v3116
    %3211 = vmatprep.subr.bf16.mxu0 %v3121
    %3212 = vmatpush1.bf16.msra.mxu0 %v3120
    %3213 = vmatprep.subr.bf16.mxu0 %v3125
    %3214 = vmatpush1.bf16.msra.mxu0 %v3124
    %3215 = vmatprep.subr.bf16.mxu0 0
    %3216 = vmatpush1.bf16.msra.mxu0 0
    %3217 = vmatprep.subr.bf16.mxu0 0
    %3218 = vmatpush1.bf16.msra.mxu0 0
    %3219 = vmatprep.subr.bf16.mxu0 0
    %3220 = vmatpush1.bf16.msra.mxu0 0
    %3221 = vmatprep.subr.bf16.mxu0 0
    %3222 = vmatpush1.bf16.msra.mxu0 0
    %3223 = vmatprep.subr.bf16.mxu0 0
    %3224 = vmatpush1.bf16.msra.mxu0 0
    %3225 = vmatprep.subr.bf16.mxu0 0
    %3226 = vmatpush1.bf16.msra.mxu0 0
    %3227 = vmatprep.subr.bf16.mxu0 0
    %3228 = vmatpush1.bf16.msra.mxu0 0
    %3229 = vmatprep.subr.bf16.mxu0 0
    %3230 = vmatpush1.bf16.msra.mxu0 0
    %3231 = vmatprep.mubr.bf16.mxu0 0
    %3232 = vmatmul.mubr.bf16.gmra.mrb[0].mxu0 %v2965
    %v3233 = vpop.f32.mrb[0].mxu0
    %v3234 = vadd.f32 0.0, %v3233
    %v3235 = vpop.f32.mrb[0].mxu0
    %v3236 = vadd.f32 0.0, %v3235
    %v3237 = vpop.f32.mrb[0].mxu0
    %v3238 = vpop.f32.mrb[0].mxu0
    %3239 = vdwg.mxu0
    %v3244 = vcombine.low %v3193, %v3195
    %v3245 = vcombine.low %v3234, %v3236
    %v3247 = vunpack.c.l.s4 1966171168
    %v3248 = vunpack.c.0.s8 %v3247
    %v3249 = vlaneseq
    %v3250 = vshrl.u32 %v3249, 7
    %v3251 = vsub.s32 %v3248, %v3250
    %v3252 = vrot.slane %v3244, %v3251
    %v3254 = vunpack.c.l.s4 1966171168
    %v3255 = vunpack.c.0.s8 %v3254
    %v3256 = vlaneseq
    %v3257 = vshrl.u32 %v3256, 7
    %v3258 = vsub.s32 %v3255, %v3257
    %v3259 = vrot.slane %v3245, %v3258
    %v3260 = vcombine.low %v3252, %v3259
    %v3261 = vcombine.high %v3252, %v3259
    %v3263 = vunpack.c.l.s4 1966171168
    %v3264 = vunpack.c.0.s8 %v3263
    %v3265 = vlaneseq
    %v3266 = vshrl.u32 %v3265, 7
    %v3267 = vsub.s32 %v3264, %v3266
    %v3268 = vrot.slane %v3260, %v3267
    %v3270 = vunpack.c.l.s4 1966171168
    %v3271 = vunpack.c.0.s8 %v3270
    %v3272 = vlaneseq
    %v3273 = vshrl.u32 %v3272, 7
    %v3274 = vsub.s32 %v3271, %v3273
    %v3275 = vrot.slane %v3261, %v3274
    %v3278 = vadd.f32 %v2962, %v3268
    %v3279 = vadd.f32 %v2964, %v3275
    %v3280 = vstv %s2960
    %vm3281 = vcmp.lt.s32.totalorder %v3280, %v76
    %v3282 = vxor.u32 %v3278, 2147483648
    %v3283 = vxor.u32 %v3279, 2147483648
    %v3284 = vmul.f32 %v3282, 1.442695
    %v3285 = vpow.pop %v3284
    %v3286 = vmul.f32 %v3283, 1.442695
    %v3287 = vpow.pop %v3286
    %v3288 = vadd.f32 %v3285, 1.0
    %v3289 = vadd.f32 %v3287, 1.0
    %v3290 = vrcp.pop %v3288
    %v3291 = vmul.f32 1.0, %v3290
    %v3292 = vrcp.pop %v3289
    %v3293 = vmul.f32 1.0, %v3292
    %v3296 = vrot.slane %v3278, 1
    %v3297 = vrot.slane %v3279, 1
    %v3300 = vxor.u32 %v3296, 2147483648
    %v3301 = vxor.u32 %v3297, 2147483648
    %v3302 = vmul.f32 %v3300, 1.442695
    %v3303 = vpow.pop %v3302
    %v3304 = vmul.f32 %v3301, 1.442695
    %v3305 = vpow.pop %v3304
    %v3306 = vadd.f32 %v3303, 1.0
    %v3307 = vadd.f32 %v3305, 1.0
    %v3308 = vrcp.pop %v3306
    %v3309 = vmul.f32 1.0, %v3308
    %v3310 = vrcp.pop %v3307
    %v3311 = vmul.f32 1.0, %v3310
    %v3312 = vrot.slane %v3278, 2
    %v3313 = vrot.slane %v3279, 2
    %v3316 = vtanh.pop %v3312
    %v3317 = vtanh.pop %v3313
    %v3318 = vrot.slane %v3278, 3
    %v3319 = vrot.slane %v3279, 3
    %v3322 = vxor.u32 %v3318, 2147483648
    %v3323 = vxor.u32 %v3319, 2147483648
    %v3324 = vmul.f32 %v3322, 1.442695
    %v3325 = vpow.pop %v3324
    %v3326 = vmul.f32 %v3323, 1.442695
    %v3327 = vpow.pop %v3326
    %v3328 = vadd.f32 %v3325, 1.0
    %v3329 = vadd.f32 %v3327, 1.0
    %v3330 = vrcp.pop %v3328
    %v3331 = vmul.f32 1.0, %v3330
    %v3332 = vrcp.pop %v3329
    %v3333 = vmul.f32 1.0, %v3332
    %v3336 = vunpack.c.l.s4 1966171168
    %v3337 = vunpack.c.0.s8 %v3336
    %v3338 = vlaneseq
    %v3339 = vshrl.u32 %v3338, 7
    %v3340 = vsub.s32 %v3337, %v3339
    %v3341 = vrot.slane %v2451, %v3340
    %v3342 = vcombine.high %v3341, %v3341
    %v3344 = vunpack.c.l.s4 1966171168
    %v3345 = vunpack.c.0.s8 %v3344
    %v3346 = vlaneseq
    %v3347 = vshrl.u32 %v3346, 7
    %v3348 = vsub.s32 %v3345, %v3347
    %v3349 = vrot.slane %v3341, %v3348
    %v3351 = vunpack.c.l.s4 1966171168
    %v3352 = vunpack.c.0.s8 %v3351
    %v3353 = vlaneseq
    %v3354 = vshrl.u32 %v3353, 7
    %v3355 = vsub.s32 %v3352, %v3354
    %v3356 = vrot.slane %v3342, %v3355
    %v3359 = vmul.f32 %v3309, %v3349
    %v3360 = vmul.f32 %v3311, %v3356
    %v3361 = vmul.f32 %v3291, %v3316
    %v3362 = vmul.f32 %v3293, %v3317
    %v3363 = vadd.f32 %v3359, %v3361
    %v3364 = vadd.f32 %v3360, %v3362
    %v3365 = vtanh.pop %v3363
    %v3366 = vtanh.pop %v3364
    %v3367 = vmul.f32 %v3331, %v3365
    %v3368 = vmul.f32 %v3333, %v3366
    %v3369 = vsel %vm3281, 1, 0
    %3370 = vset.pattern.permute.xlu0 0
    %3371 = vperm.xlu0 %3370, %v3369
    %v3372 = vpop.permute.xlu0 %3371
    %vm3373 = vcmp.eq.s32.totalorder %v3372, 1
    %v3376 = vcombine.low %v3367, %v3368
    %v3378 = vunpack.c.l.s4 1966171168
    %v3379 = vunpack.c.0.s8 %v3378
    %v3380 = vlaneseq
    %v3381 = vshrl.u32 %v3380, 7
    %v3382 = vsub.s32 %v3379, %v3381
    %v3383 = vrot.slane %v3376, %v3382
    %v3385 = vunpack.c.l.s4 1966171168
    %v3386 = vunpack.c.0.s8 %v3385
    %v3387 = vlaneseq
    %v3388 = vshrl.u32 %v3387, 7
    %v3389 = vsub.s32 %v3386, %v3388
    %v3390 = vrot.slane %v3383, %v3389
    %v3392 = vsel %vm3373, %v3390, %v2432
    %v3395 = vcombine.low %v3363, %v3364
    %v3397 = vunpack.c.l.s4 1966171168
    %v3398 = vunpack.c.0.s8 %v3397
    %v3399 = vlaneseq
    %v3400 = vshrl.u32 %v3399, 7
    %v3401 = vsub.s32 %v3398, %v3400
    %v3402 = vrot.slane %v3395, %v3401
    %v3404 = vunpack.c.l.s4 1966171168
    %v3405 = vunpack.c.0.s8 %v3404
    %v3406 = vlaneseq
    %v3407 = vshrl.u32 %v3406, 7
    %v3408 = vsub.s32 %v3405, %v3407
    %v3409 = vrot.slane %v3402, %v3408
    %v3411 = vsel %vm3373, %v3409, %v2451
    %v3412 = vsel %vm3373, %v3390, 0.0
    %v3415 = vunpack.c.l.s4 1966171168
    %v3416 = vunpack.c.0.s8 %v3415
    %v3417 = vlaneseq
    %v3418 = vshrl.u32 %v3417, 7
    %v3419 = vsub.s32 %v3416, %v3418
    %v3420 = vrot.slane %v3412, %v3419
    %v3421 = vcombine.high %v3420, %v3420
    %v3423 = vunpack.c.l.s4 1966171168
    %v3424 = vunpack.c.0.s8 %v3423
    %v3425 = vlaneseq
    %v3426 = vshrl.u32 %v3425, 7
    %v3427 = vsub.s32 %v3424, %v3426
    %v3428 = vrot.slane %v3420, %v3427
    %v3430 = vunpack.c.l.s4 1966171168
    %v3431 = vunpack.c.0.s8 %v3430
    %v3432 = vlaneseq
    %v3433 = vshrl.u32 %v3432, 7
    %v3434 = vsub.s32 %v3431, %v3433
    %v3435 = vrot.slane %v3421, %v3434
    %3438 = vst [vmem:[%s5 + $0x3] sm:$0x1] %v3428
    %3439 = vst [vmem:[%s5 + $0xb] sm:$0x1] %v3435
    %s3440 = ssub.s32 4, %s77
    %s3441 = scalar_lea.vmem %s59, 36
    %v3442 = vld [vmem:[%s3441] ss:$8 sm:$0xf]
    %s3443 = scalar_lea.vmem %s59, 100
    %v3444 = vld [vmem:[%s3443] ss:$8 sm:$0xf]
    %v3445 = vpack.c.bf16 %v2912, %v2912
    %v3446 = vld [vmem:[#allocation6] sm:$0xff]
    %v3447 = vld [vmem:[#allocation6 + $0x8] sm:$0xff]
    %v3448 = vld [vmem:[#allocation6 + $0x10] sm:$0xff]
    %v3449 = vld [vmem:[#allocation6 + $0x18] sm:$0xff]
    %v3450 = vld [vmem:[#allocation6 + $0x20] sm:$0xff]
    %v3451 = vld [vmem:[#allocation6 + $0x28] sm:$0xff]
    %v3452 = vld [vmem:[#allocation6 + $0x30] sm:$0xff]
    %v3453 = vld [vmem:[#allocation6 + $0x38] sm:$0xff]
    %v3454 = vld [vmem:[#allocation6 + $0x40] sm:$0xff]
    %v3455 = vld [vmem:[#allocation6 + $0x48] sm:$0xff]
    %v3456 = vld [vmem:[#allocation6 + $0x50] sm:$0xff]
    %v3457 = vld [vmem:[#allocation6 + $0x58] sm:$0xff]
    %v3458 = vld [vmem:[#allocation6 + $0x60] sm:$0xff]
    %v3459 = vld [vmem:[#allocation6 + $0x68] sm:$0xff]
    %v3460 = vld [vmem:[#allocation6 + $0x70] sm:$0xff]
    %v3461 = vld [vmem:[#allocation6 + $0x78] sm:$0xff]
    %v3462 = vld [vmem:[#allocation6 + $0x80] sm:$0xff]
    %v3463 = vld [vmem:[#allocation6 + $0x88] sm:$0xff]
    %v3464 = vld [vmem:[#allocation6 + $0x90] sm:$0xff]
    %v3465 = vld [vmem:[#allocation6 + $0x98] sm:$0xff]
    %v3466 = vld [vmem:[#allocation6 + $0xa0] sm:$0xff]
    %v3467 = vld [vmem:[#allocation6 + $0xa8] sm:$0xff]
    %v3468 = vld [vmem:[#allocation6 + $0xb0] sm:$0xff]
    %v3469 = vld [vmem:[#allocation6 + $0xb8] sm:$0xff]
    %v3470 = vld [vmem:[#allocation6 + $0xc0] sm:$0xff]
    %v3471 = vld [vmem:[#allocation6 + $0xc8] sm:$0xff]
    %v3472 = vld [vmem:[#allocation6 + $0xd0] sm:$0xff]
    %v3473 = vld [vmem:[#allocation6 + $0xd8] sm:$0xff]
    %v3474 = vld [vmem:[#allocation6 + $0xe0] sm:$0xff]
    %v3475 = vld [vmem:[#allocation6 + $0xe8] sm:$0xff]
    %v3476 = vld [vmem:[#allocation6 + $0xf0] sm:$0xff]
    %v3477 = vld [vmem:[#allocation6 + $0xf8] sm:$0xff]
    %v3510 = vunpack.c.l.b16 %v3446
    %v3511 = vunpack.c.h.b16 %v3446
    %v3512 = vunpack.c.l.b16 %v3447
    %v3513 = vunpack.c.h.b16 %v3447
    %v3514 = vunpack.c.l.b16 %v3448
    %v3515 = vunpack.c.h.b16 %v3448
    %v3516 = vunpack.c.l.b16 %v3449
    %v3517 = vunpack.c.h.b16 %v3449
    %v3518 = vunpack.c.l.b16 %v3450
    %v3519 = vunpack.c.h.b16 %v3450
    %v3520 = vunpack.c.l.b16 %v3451
    %v3521 = vunpack.c.h.b16 %v3451
    %v3522 = vunpack.c.l.b16 %v3452
    %v3523 = vunpack.c.h.b16 %v3452
    %v3524 = vunpack.c.l.b16 %v3453
    %v3525 = vunpack.c.h.b16 %v3453
    %v3526 = vunpack.c.l.b16 %v3454
    %v3527 = vunpack.c.h.b16 %v3454
    %v3528 = vunpack.c.l.b16 %v3455
    %v3529 = vunpack.c.h.b16 %v3455
    %v3530 = vunpack.c.l.b16 %v3456
    %v3531 = vunpack.c.h.b16 %v3456
    %v3532 = vunpack.c.l.b16 %v3457
    %v3533 = vunpack.c.h.b16 %v3457
    %v3534 = vunpack.c.l.b16 %v3458
    %v3535 = vunpack.c.h.b16 %v3458
    %v3536 = vunpack.c.l.b16 %v3459
    %v3537 = vunpack.c.h.b16 %v3459
    %v3538 = vunpack.c.l.b16 %v3460
    %v3539 = vunpack.c.h.b16 %v3460
    %v3540 = vunpack.c.l.b16 %v3461
    %v3541 = vunpack.c.h.b16 %v3461
    %v3542 = vunpack.c.l.b16 %v3462
    %v3543 = vunpack.c.h.b16 %v3462
    %v3544 = vunpack.c.l.b16 %v3463
    %v3545 = vunpack.c.h.b16 %v3463
    %v3546 = vunpack.c.l.b16 %v3464
    %v3547 = vunpack.c.h.b16 %v3464
    %v3548 = vunpack.c.l.b16 %v3465
    %v3549 = vunpack.c.h.b16 %v3465
    %v3550 = vunpack.c.l.b16 %v3466
    %v3551 = vunpack.c.h.b16 %v3466
    %v3552 = vunpack.c.l.b16 %v3467
    %v3553 = vunpack.c.h.b16 %v3467
    %v3554 = vunpack.c.l.b16 %v3468
    %v3555 = vunpack.c.h.b16 %v3468
    %v3556 = vunpack.c.l.b16 %v3469
    %v3557 = vunpack.c.h.b16 %v3469
    %v3558 = vunpack.c.l.b16 %v3470
    %v3559 = vunpack.c.h.b16 %v3470
    %v3560 = vunpack.c.l.b16 %v3471
    %v3561 = vunpack.c.h.b16 %v3471
    %v3562 = vunpack.c.l.b16 %v3472
    %v3563 = vunpack.c.h.b16 %v3472
    %v3564 = vunpack.c.l.b16 %v3473
    %v3565 = vunpack.c.h.b16 %v3473
    %v3566 = vunpack.c.l.b16 %v3474
    %v3567 = vunpack.c.h.b16 %v3474
    %v3568 = vunpack.c.l.b16 %v3475
    %v3569 = vunpack.c.h.b16 %v3475
    %v3570 = vunpack.c.l.b16 %v3476
    %v3571 = vunpack.c.h.b16 %v3476
    %v3572 = vunpack.c.l.b16 %v3477
    %v3573 = vunpack.c.h.b16 %v3477
    %v3574 = vpack.c.b16 %v3514, %v3510
    %v3575 = vpack.c.b16 %v3515, %v3511
    %v3576 = vpack.c.b16 %v3516, %v3512
    %v3577 = vpack.c.b16 %v3517, %v3513
    %v3578 = vpack.c.b16 %v3522, %v3518
    %v3579 = vpack.c.b16 %v3523, %v3519
    %v3580 = vpack.c.b16 %v3524, %v3520
    %v3581 = vpack.c.b16 %v3525, %v3521
    %v3582 = vpack.c.b16 %v3530, %v3526
    %v3583 = vpack.c.b16 %v3531, %v3527
    %v3584 = vpack.c.b16 %v3532, %v3528
    %v3585 = vpack.c.b16 %v3533, %v3529
    %v3586 = vpack.c.b16 %v3538, %v3534
    %v3587 = vpack.c.b16 %v3539, %v3535
    %v3588 = vpack.c.b16 %v3540, %v3536
    %v3589 = vpack.c.b16 %v3541, %v3537
    %v3590 = vpack.c.b16 %v3546, %v3542
    %v3591 = vpack.c.b16 %v3547, %v3543
    %v3592 = vpack.c.b16 %v3548, %v3544
    %v3593 = vpack.c.b16 %v3549, %v3545
    %v3594 = vpack.c.b16 %v3554, %v3550
    %v3595 = vpack.c.b16 %v3555, %v3551
    %v3596 = vpack.c.b16 %v3556, %v3552
    %v3597 = vpack.c.b16 %v3557, %v3553
    %v3598 = vpack.c.b16 %v3562, %v3558
    %v3599 = vpack.c.b16 %v3563, %v3559
    %v3600 = vpack.c.b16 %v3564, %v3560
    %v3601 = vpack.c.b16 %v3565, %v3561
    %v3602 = vpack.c.b16 %v3570, %v3566
    %v3603 = vpack.c.b16 %v3571, %v3567
    %v3604 = vpack.c.b16 %v3572, %v3568
    %v3605 = vpack.c.b16 %v3573, %v3569
    %3638 = vmatprep.subr.bf16.mxu0 %v3575
    %3639 = vmatpush1.bf16.msra.mxu0 %v3574
    %3640 = vmatprep.subr.bf16.mxu0 %v3579
    %3641 = vmatpush1.bf16.msra.mxu0 %v3578
    %3642 = vmatprep.subr.bf16.mxu0 %v3583
    %3643 = vmatpush1.bf16.msra.mxu0 %v3582
    %3644 = vmatprep.subr.bf16.mxu0 %v3587
    %3645 = vmatpush1.bf16.msra.mxu0 %v3586
    %3646 = vmatprep.subr.bf16.mxu0 %v3591
    %3647 = vmatpush1.bf16.msra.mxu0 %v3590
    %3648 = vmatprep.subr.bf16.mxu0 %v3595
    %3649 = vmatpush1.bf16.msra.mxu0 %v3594
    %3650 = vmatprep.subr.bf16.mxu0 %v3599
    %3651 = vmatpush1.bf16.msra.mxu0 %v3598
    %3652 = vmatprep.subr.bf16.mxu0 %v3603
    %3653 = vmatpush1.bf16.msra.mxu0 %v3602
    %3654 = vmatprep.subr.bf16.mxu0 0
    %3655 = vmatpush1.bf16.msra.mxu0 0
    %3656 = vmatprep.subr.bf16.mxu0 0
    %3657 = vmatpush1.bf16.msra.mxu0 0
    %3658 = vmatprep.subr.bf16.mxu0 0
    %3659 = vmatpush1.bf16.msra.mxu0 0
    %3660 = vmatprep.subr.bf16.mxu0 0
    %3661 = vmatpush1.bf16.msra.mxu0 0
    %3662 = vmatprep.subr.bf16.mxu0 0
    %3663 = vmatpush1.bf16.msra.mxu0 0
    %3664 = vmatprep.subr.bf16.mxu0 0
    %3665 = vmatpush1.bf16.msra.mxu0 0
    %3666 = vmatprep.subr.bf16.mxu0 0
    %3667 = vmatpush1.bf16.msra.mxu0 0
    %3668 = vmatprep.subr.bf16.mxu0 0
    %3669 = vmatpush1.bf16.msra.mxu0 0
    %3670 = vmatprep.mubr.bf16.mxu0 0
    %3671 = vmatmul.mubr.bf16.gmra.mrb[0].mxu0 %v3445
    %v3672 = vpop.f32.mrb[0].mxu0
    %v3673 = vadd.f32 0.0, %v3672
    %v3674 = vpop.f32.mrb[0].mxu0
    %v3675 = vadd.f32 0.0, %v3674
    %v3676 = vpop.f32.mrb[0].mxu0
    %v3677 = vpop.f32.mrb[0].mxu0
    %3678 = vdwg.mxu0
    %3679 = vmatprep.subr.bf16.mxu0 %v3577
    %3680 = vmatpush1.bf16.msra.mxu0 %v3576
    %3681 = vmatprep.subr.bf16.mxu0 %v3581
    %3682 = vmatpush1.bf16.msra.mxu0 %v3580
    %3683 = vmatprep.subr.bf16.mxu0 %v3585
    %3684 = vmatpush1.bf16.msra.mxu0 %v3584
    %3685 = vmatprep.subr.bf16.mxu0 %v3589
    %3686 = vmatpush1.bf16.msra.mxu0 %v3588
    %3687 = vmatprep.subr.bf16.mxu0 %v3593
    %3688 = vmatpush1.bf16.msra.mxu0 %v3592
    %3689 = vmatprep.subr.bf16.mxu0 %v3597
    %3690 = vmatpush1.bf16.msra.mxu0 %v3596
    %3691 = vmatprep.subr.bf16.mxu0 %v3601
    %3692 = vmatpush1.bf16.msra.mxu0 %v3600
    %3693 = vmatprep.subr.bf16.mxu0 %v3605
    %3694 = vmatpush1.bf16.msra.mxu0 %v3604
    %3695 = vmatprep.subr.bf16.mxu0 0
    %3696 = vmatpush1.bf16.msra.mxu0 0
    %3697 = vmatprep.subr.bf16.mxu0 0
    %3698 = vmatpush1.bf16.msra.mxu0 0
    %3699 = vmatprep.subr.bf16.mxu0 0
    %3700 = vmatpush1.bf16.msra.mxu0 0
    %3701 = vmatprep.subr.bf16.mxu0 0
    %3702 = vmatpush1.bf16.msra.mxu0 0
    %3703 = vmatprep.subr.bf16.mxu0 0
    %3704 = vmatpush1.bf16.msra.mxu0 0
    %3705 = vmatprep.subr.bf16.mxu0 0
    %3706 = vmatpush1.bf16.msra.mxu0 0
    %3707 = vmatprep.subr.bf16.mxu0 0
    %3708 = vmatpush1.bf16.msra.mxu0 0
    %3709 = vmatprep.subr.bf16.mxu0 0
    %3710 = vmatpush1.bf16.msra.mxu0 0
    %3711 = vmatprep.mubr.bf16.mxu0 0
    %3712 = vmatmul.mubr.bf16.gmra.mrb[0].mxu0 %v3445
    %v3713 = vpop.f32.mrb[0].mxu0
    %v3714 = vadd.f32 0.0, %v3713
    %v3715 = vpop.f32.mrb[0].mxu0
    %v3716 = vadd.f32 0.0, %v3715
    %v3717 = vpop.f32.mrb[0].mxu0
    %v3718 = vpop.f32.mrb[0].mxu0
    %3719 = vdwg.mxu0
    %v3724 = vcombine.low %v3673, %v3675
    %v3725 = vcombine.low %v3714, %v3716
    %v3727 = vunpack.c.l.s4 1966171168
    %v3728 = vunpack.c.0.s8 %v3727
    %v3729 = vlaneseq
    %v3730 = vshrl.u32 %v3729, 7
    %v3731 = vsub.s32 %v3728, %v3730
    %v3732 = vrot.slane %v3724, %v3731
    %v3734 = vunpack.c.l.s4 1966171168
    %v3735 = vunpack.c.0.s8 %v3734
    %v3736 = vlaneseq
    %v3737 = vshrl.u32 %v3736, 7
    %v3738 = vsub.s32 %v3735, %v3737
    %v3739 = vrot.slane %v3725, %v3738
    %v3740 = vcombine.low %v3732, %v3739
    %v3741 = vcombine.high %v3732, %v3739
    %v3743 = vunpack.c.l.s4 1966171168
    %v3744 = vunpack.c.0.s8 %v3743
    %v3745 = vlaneseq
    %v3746 = vshrl.u32 %v3745, 7
    %v3747 = vsub.s32 %v3744, %v3746
    %v3748 = vrot.slane %v3740, %v3747
    %v3750 = vunpack.c.l.s4 1966171168
    %v3751 = vunpack.c.0.s8 %v3750
    %v3752 = vlaneseq
    %v3753 = vshrl.u32 %v3752, 7
    %v3754 = vsub.s32 %v3751, %v3753
    %v3755 = vrot.slane %v3741, %v3754
    %v3758 = vadd.f32 %v3442, %v3748
    %v3759 = vadd.f32 %v3444, %v3755
    %v3760 = vstv %s3440
    %vm3761 = vcmp.lt.s32.totalorder %v3760, %v76
    %v3762 = vxor.u32 %v3758, 2147483648
    %v3763 = vxor.u32 %v3759, 2147483648
    %v3764 = vmul.f32 %v3762, 1.442695
    %v3765 = vpow.pop %v3764
    %v3766 = vmul.f32 %v3763, 1.442695
    %v3767 = vpow.pop %v3766
    %v3768 = vadd.f32 %v3765, 1.0
    %v3769 = vadd.f32 %v3767, 1.0
    %v3770 = vrcp.pop %v3768
    %v3771 = vmul.f32 1.0, %v3770
    %v3772 = vrcp.pop %v3769
    %v3773 = vmul.f32 1.0, %v3772
    %v3776 = vrot.slane %v3758, 1
    %v3777 = vrot.slane %v3759, 1
    %v3780 = vxor.u32 %v3776, 2147483648
    %v3781 = vxor.u32 %v3777, 2147483648
    %v3782 = vmul.f32 %v3780, 1.442695
    %v3783 = vpow.pop %v3782
    %v3784 = vmul.f32 %v3781, 1.442695
    %v3785 = vpow.pop %v3784
    %v3786 = vadd.f32 %v3783, 1.0
    %v3787 = vadd.f32 %v3785, 1.0
    %v3788 = vrcp.pop %v3786
    %v3789 = vmul.f32 1.0, %v3788
    %v3790 = vrcp.pop %v3787
    %v3791 = vmul.f32 1.0, %v3790
    %v3792 = vrot.slane %v3758, 2
    %v3793 = vrot.slane %v3759, 2
    %v3796 = vtanh.pop %v3792
    %v3797 = vtanh.pop %v3793
    %v3798 = vrot.slane %v3758, 3
    %v3799 = vrot.slane %v3759, 3
    %v3802 = vxor.u32 %v3798, 2147483648
    %v3803 = vxor.u32 %v3799, 2147483648
    %v3804 = vmul.f32 %v3802, 1.442695
    %v3805 = vpow.pop %v3804
    %v3806 = vmul.f32 %v3803, 1.442695
    %v3807 = vpow.pop %v3806
    %v3808 = vadd.f32 %v3805, 1.0
    %v3809 = vadd.f32 %v3807, 1.0
    %v3810 = vrcp.pop %v3808
    %v3811 = vmul.f32 1.0, %v3810
    %v3812 = vrcp.pop %v3809
    %v3813 = vmul.f32 1.0, %v3812
    %v3816 = vunpack.c.l.s4 1966171168
    %v3817 = vunpack.c.0.s8 %v3816
    %v3818 = vlaneseq
    %v3819 = vshrl.u32 %v3818, 7
    %v3820 = vsub.s32 %v3817, %v3819
    %v3821 = vrot.slane %v2931, %v3820
    %v3822 = vcombine.high %v3821, %v3821
    %v3824 = vunpack.c.l.s4 1966171168
    %v3825 = vunpack.c.0.s8 %v3824
    %v3826 = vlaneseq
    %v3827 = vshrl.u32 %v3826, 7
    %v3828 = vsub.s32 %v3825, %v3827
    %v3829 = vrot.slane %v3821, %v3828
    %v3831 = vunpack.c.l.s4 1966171168
    %v3832 = vunpack.c.0.s8 %v3831
    %v3833 = vlaneseq
    %v3834 = vshrl.u32 %v3833, 7
    %v3835 = vsub.s32 %v3832, %v3834
    %v3836 = vrot.slane %v3822, %v3835
    %v3839 = vmul.f32 %v3789, %v3829
    %v3840 = vmul.f32 %v3791, %v3836
    %v3841 = vmul.f32 %v3771, %v3796
    %v3842 = vmul.f32 %v3773, %v3797
    %v3843 = vadd.f32 %v3839, %v3841
    %v3844 = vadd.f32 %v3840, %v3842
    %v3845 = vtanh.pop %v3843
    %v3846 = vtanh.pop %v3844
    %v3847 = vmul.f32 %v3811, %v3845
    %v3848 = vmul.f32 %v3813, %v3846
    %v3849 = vsel %vm3761, 1, 0
    %3850 = vset.pattern.permute.xlu0 0
    %3851 = vperm.xlu0 %3850, %v3849
    %v3852 = vpop.permute.xlu0 %3851
    %vm3853 = vcmp.eq.s32.totalorder %v3852, 1
    %v3856 = vcombine.low %v3847, %v3848
    %v3858 = vunpack.c.l.s4 1966171168
    %v3859 = vunpack.c.0.s8 %v3858
    %v3860 = vlaneseq
    %v3861 = vshrl.u32 %v3860, 7
    %v3862 = vsub.s32 %v3859, %v3861
    %v3863 = vrot.slane %v3856, %v3862
    %v3865 = vunpack.c.l.s4 1966171168
    %v3866 = vunpack.c.0.s8 %v3865
    %v3867 = vlaneseq
    %v3868 = vshrl.u32 %v3867, 7
    %v3869 = vsub.s32 %v3866, %v3868
    %v3870 = vrot.slane %v3863, %v3869
    %v3872 = vsel %vm3853, %v3870, %v2912
    %v3875 = vcombine.low %v3843, %v3844
    %v3877 = vunpack.c.l.s4 1966171168
    %v3878 = vunpack.c.0.s8 %v3877
    %v3879 = vlaneseq
    %v3880 = vshrl.u32 %v3879, 7
    %v3881 = vsub.s32 %v3878, %v3880
    %v3882 = vrot.slane %v3875, %v3881
    %v3884 = vunpack.c.l.s4 1966171168
    %v3885 = vunpack.c.0.s8 %v3884
    %v3886 = vlaneseq
    %v3887 = vshrl.u32 %v3886, 7
    %v3888 = vsub.s32 %v3885, %v3887
    %v3889 = vrot.slane %v3882, %v3888
    %v3891 = vsel %vm3853, %v3889, %v2931
    %v3892 = vsel %vm3853, %v3870, 0.0
    %v3895 = vunpack.c.l.s4 1966171168
    %v3896 = vunpack.c.0.s8 %v3895
    %v3897 = vlaneseq
    %v3898 = vshrl.u32 %v3897, 7
    %v3899 = vsub.s32 %v3896, %v3898
    %v3900 = vrot.slane %v3892, %v3899
    %v3901 = vcombine.high %v3900, %v3900
    %v3903 = vunpack.c.l.s4 1966171168
    %v3904 = vunpack.c.0.s8 %v3903
    %v3905 = vlaneseq
    %v3906 = vshrl.u32 %v3905, 7
    %v3907 = vsub.s32 %v3904, %v3906
    %v3908 = vrot.slane %v3900, %v3907
    %v3910 = vunpack.c.l.s4 1966171168
    %v3911 = vunpack.c.0.s8 %v3910
    %v3912 = vlaneseq
    %v3913 = vshrl.u32 %v3912, 7
    %v3914 = vsub.s32 %v3911, %v3913
    %v3915 = vrot.slane %v3901, %v3914
    %3918 = vst [vmem:[%s65 + $0x4] sm:$0x1] %v3908
    %3919 = vst [vmem:[%s65 + $0xc] sm:$0x1] %v3915
    %s3920 = sadd.s32 %s77, 4
    %s3921 = scalar_lea.vmem %s1, 4
    %v3922 = vld [vmem:[%s3921] ss:$8 sm:$0xf]
    %s3923 = scalar_lea.vmem %s1, 68
    %v3924 = vld [vmem:[%s3923] ss:$8 sm:$0xf]
    %v3925 = vpack.c.bf16 %v3392, %v3392
    %v3926 = vld [vmem:[%s3] sm:$0xff]
    %v3927 = vld [vmem:[%s3 + $0x8] sm:$0xff]
    %v3928 = vld [vmem:[%s3 + $0x10] sm:$0xff]
    %v3929 = vld [vmem:[%s3 + $0x18] sm:$0xff]
    %v3930 = vld [vmem:[%s3 + $0x20] sm:$0xff]
    %v3931 = vld [vmem:[%s3 + $0x28] sm:$0xff]
    %v3932 = vld [vmem:[%s3 + $0x30] sm:$0xff]
    %v3933 = vld [vmem:[%s3 + $0x38] sm:$0xff]
    %v3934 = vld [vmem:[%s3 + $0x40] sm:$0xff]
    %v3935 = vld [vmem:[%s3 + $0x48] sm:$0xff]
    %v3936 = vld [vmem:[%s3 + $0x50] sm:$0xff]
    %v3937 = vld [vmem:[%s3 + $0x58] sm:$0xff]
    %v3938 = vld [vmem:[%s3 + $0x60] sm:$0xff]
    %v3939 = vld [vmem:[%s3 + $0x68] sm:$0xff]
    %v3940 = vld [vmem:[%s3 + $0x70] sm:$0xff]
    %v3941 = vld [vmem:[%s3 + $0x78] sm:$0xff]
    %v3942 = vld [vmem:[%s3 + $0x80] sm:$0xff]
    %v3943 = vld [vmem:[%s3 + $0x88] sm:$0xff]
    %v3944 = vld [vmem:[%s3 + $0x90] sm:$0xff]
    %v3945 = vld [vmem:[%s3 + $0x98] sm:$0xff]
    %v3946 = vld [vmem:[%s3 + $0xa0] sm:$0xff]
    %v3947 = vld [vmem:[%s3 + $0xa8] sm:$0xff]
    %v3948 = vld [vmem:[%s3 + $0xb0] sm:$0xff]
    %v3949 = vld [vmem:[%s3 + $0xb8] sm:$0xff]
    %v3950 = vld [vmem:[%s3 + $0xc0] sm:$0xff]
    %v3951 = vld [vmem:[%s3 + $0xc8] sm:$0xff]
    %v3952 = vld [vmem:[%s3 + $0xd0] sm:$0xff]
    %v3953 = vld [vmem:[%s3 + $0xd8] sm:$0xff]
    %v3954 = vld [vmem:[%s3 + $0xe0] sm:$0xff]
    %v3955 = vld [vmem:[%s3 + $0xe8] sm:$0xff]
    %v3956 = vld [vmem:[%s3 + $0xf0] sm:$0xff]
    %v3957 = vld [vmem:[%s3 + $0xf8] sm:$0xff]
    %v3990 = vunpack.c.l.b16 %v3926
    %v3991 = vunpack.c.h.b16 %v3926
    %v3992 = vunpack.c.l.b16 %v3927
    %v3993 = vunpack.c.h.b16 %v3927
    %v3994 = vunpack.c.l.b16 %v3928
    %v3995 = vunpack.c.h.b16 %v3928
    %v3996 = vunpack.c.l.b16 %v3929
    %v3997 = vunpack.c.h.b16 %v3929
    %v3998 = vunpack.c.l.b16 %v3930
    %v3999 = vunpack.c.h.b16 %v3930
    %v4000 = vunpack.c.l.b16 %v3931
    %v4001 = vunpack.c.h.b16 %v3931
    %v4002 = vunpack.c.l.b16 %v3932
    %v4003 = vunpack.c.h.b16 %v3932
    %v4004 = vunpack.c.l.b16 %v3933
    %v4005 = vunpack.c.h.b16 %v3933
    %v4006 = vunpack.c.l.b16 %v3934
    %v4007 = vunpack.c.h.b16 %v3934
    %v4008 = vunpack.c.l.b16 %v3935
    %v4009 = vunpack.c.h.b16 %v3935
    %v4010 = vunpack.c.l.b16 %v3936
    %v4011 = vunpack.c.h.b16 %v3936
    %v4012 = vunpack.c.l.b16 %v3937
    %v4013 = vunpack.c.h.b16 %v3937
    %v4014 = vunpack.c.l.b16 %v3938
    %v4015 = vunpack.c.h.b16 %v3938
    %v4016 = vunpack.c.l.b16 %v3939
    %v4017 = vunpack.c.h.b16 %v3939
    %v4018 = vunpack.c.l.b16 %v3940
    %v4019 = vunpack.c.h.b16 %v3940
    %v4020 = vunpack.c.l.b16 %v3941
    %v4021 = vunpack.c.h.b16 %v3941
    %v4022 = vunpack.c.l.b16 %v3942
    %v4023 = vunpack.c.h.b16 %v3942
    %v4024 = vunpack.c.l.b16 %v3943
    %v4025 = vunpack.c.h.b16 %v3943
    %v4026 = vunpack.c.l.b16 %v3944
    %v4027 = vunpack.c.h.b16 %v3944
    %v4028 = vunpack.c.l.b16 %v3945
    %v4029 = vunpack.c.h.b16 %v3945
    %v4030 = vunpack.c.l.b16 %v3946
    %v4031 = vunpack.c.h.b16 %v3946
    %v4032 = vunpack.c.l.b16 %v3947
    %v4033 = vunpack.c.h.b16 %v3947
    %v4034 = vunpack.c.l.b16 %v3948
    %v4035 = vunpack.c.h.b16 %v3948
    %v4036 = vunpack.c.l.b16 %v3949
    %v4037 = vunpack.c.h.b16 %v3949
    %v4038 = vunpack.c.l.b16 %v3950
    %v4039 = vunpack.c.h.b16 %v3950
    %v4040 = vunpack.c.l.b16 %v3951
    %v4041 = vunpack.c.h.b16 %v3951
    %v4042 = vunpack.c.l.b16 %v3952
    %v4043 = vunpack.c.h.b16 %v3952
    %v4044 = vunpack.c.l.b16 %v3953
    %v4045 = vunpack.c.h.b16 %v3953
    %v4046 = vunpack.c.l.b16 %v3954
    %v4047 = vunpack.c.h.b16 %v3954
    %v4048 = vunpack.c.l.b16 %v3955
    %v4049 = vunpack.c.h.b16 %v3955
    %v4050 = vunpack.c.l.b16 %v3956
    %v4051 = vunpack.c.h.b16 %v3956
    %v4052 = vunpack.c.l.b16 %v3957
    %v4053 = vunpack.c.h.b16 %v3957
    %v4054 = vpack.c.b16 %v3994, %v3990
    %v4055 = vpack.c.b16 %v3995, %v3991
    %v4056 = vpack.c.b16 %v3996, %v3992
    %v4057 = vpack.c.b16 %v3997, %v3993
    %v4058 = vpack.c.b16 %v4002, %v3998
    %v4059 = vpack.c.b16 %v4003, %v3999
    %v4060 = vpack.c.b16 %v4004, %v4000
    %v4061 = vpack.c.b16 %v4005, %v4001
    %v4062 = vpack.c.b16 %v4010, %v4006
    %v4063 = vpack.c.b16 %v4011, %v4007
    %v4064 = vpack.c.b16 %v4012, %v4008
    %v4065 = vpack.c.b16 %v4013, %v4009
    %v4066 = vpack.c.b16 %v4018, %v4014
    %v4067 = vpack.c.b16 %v4019, %v4015
    %v4068 = vpack.c.b16 %v4020, %v4016
    %v4069 = vpack.c.b16 %v4021, %v4017
    %v4070 = vpack.c.b16 %v4026, %v4022
    %v4071 = vpack.c.b16 %v4027, %v4023
    %v4072 = vpack.c.b16 %v4028, %v4024
    %v4073 = vpack.c.b16 %v4029, %v4025
    %v4074 = vpack.c.b16 %v4034, %v4030
    %v4075 = vpack.c.b16 %v4035, %v4031
    %v4076 = vpack.c.b16 %v4036, %v4032
    %v4077 = vpack.c.b16 %v4037, %v4033
    %v4078 = vpack.c.b16 %v4042, %v4038
    %v4079 = vpack.c.b16 %v4043, %v4039
    %v4080 = vpack.c.b16 %v4044, %v4040
    %v4081 = vpack.c.b16 %v4045, %v4041
    %v4082 = vpack.c.b16 %v4050, %v4046
    %v4083 = vpack.c.b16 %v4051, %v4047
    %v4084 = vpack.c.b16 %v4052, %v4048
    %v4085 = vpack.c.b16 %v4053, %v4049
    %4118 = vmatprep.subr.bf16.mxu0 %v4055
    %4119 = vmatpush1.bf16.msra.mxu0 %v4054
    %4120 = vmatprep.subr.bf16.mxu0 %v4059
    %4121 = vmatpush1.bf16.msra.mxu0 %v4058
    %4122 = vmatprep.subr.bf16.mxu0 %v4063
    %4123 = vmatpush1.bf16.msra.mxu0 %v4062
    %4124 = vmatprep.subr.bf16.mxu0 %v4067
    %4125 = vmatpush1.bf16.msra.mxu0 %v4066
    %4126 = vmatprep.subr.bf16.mxu0 %v4071
    %4127 = vmatpush1.bf16.msra.mxu0 %v4070
    %4128 = vmatprep.subr.bf16.mxu0 %v4075
    %4129 = vmatpush1.bf16.msra.mxu0 %v4074
    %4130 = vmatprep.subr.bf16.mxu0 %v4079
    %4131 = vmatpush1.bf16.msra.mxu0 %v4078
    %4132 = vmatprep.subr.bf16.mxu0 %v4083
    %4133 = vmatpush1.bf16.msra.mxu0 %v4082
    %4134 = vmatprep.subr.bf16.mxu0 0
    %4135 = vmatpush1.bf16.msra.mxu0 0
    %4136 = vmatprep.subr.bf16.mxu0 0
    %4137 = vmatpush1.bf16.msra.mxu0 0
    %4138 = vmatprep.subr.bf16.mxu0 0
    %4139 = vmatpush1.bf16.msra.mxu0 0
    %4140 = vmatprep.subr.bf16.mxu0 0
    %4141 = vmatpush1.bf16.msra.mxu0 0
    %4142 = vmatprep.subr.bf16.mxu0 0
    %4143 = vmatpush1.bf16.msra.mxu0 0
    %4144 = vmatprep.subr.bf16.mxu0 0
    %4145 = vmatpush1.bf16.msra.mxu0 0
    %4146 = vmatprep.subr.bf16.mxu0 0
    %4147 = vmatpush1.bf16.msra.mxu0 0
    %4148 = vmatprep.subr.bf16.mxu0 0
    %4149 = vmatpush1.bf16.msra.mxu0 0
    %4150 = vmatprep.mubr.bf16.mxu0 0
    %4151 = vmatmul.mubr.bf16.gmra.mrb[0].mxu0 %v3925
    %v4152 = vpop.f32.mrb[0].mxu0
    %v4153 = vadd.f32 0.0, %v4152
    %v4154 = vpop.f32.mrb[0].mxu0
    %v4155 = vadd.f32 0.0, %v4154
    %v4156 = vpop.f32.mrb[0].mxu0
    %v4157 = vpop.f32.mrb[0].mxu0
    %4158 = vdwg.mxu0
    %4159 = vmatprep.subr.bf16.mxu0 %v4057
    %4160 = vmatpush1.bf16.msra.mxu0 %v4056
    %4161 = vmatprep.subr.bf16.mxu0 %v4061
    %4162 = vmatpush1.bf16.msra.mxu0 %v4060
    %4163 = vmatprep.subr.bf16.mxu0 %v4065
    %4164 = vmatpush1.bf16.msra.mxu0 %v4064
    %4165 = vmatprep.subr.bf16.mxu0 %v4069
    %4166 = vmatpush1.bf16.msra.mxu0 %v4068
    %4167 = vmatprep.subr.bf16.mxu0 %v4073
    %4168 = vmatpush1.bf16.msra.mxu0 %v4072
    %4169 = vmatprep.subr.bf16.mxu0 %v4077
    %4170 = vmatpush1.bf16.msra.mxu0 %v4076
    %4171 = vmatprep.subr.bf16.mxu0 %v4081
    %4172 = vmatpush1.bf16.msra.mxu0 %v4080
    %4173 = vmatprep.subr.bf16.mxu0 %v4085
    %4174 = vmatpush1.bf16.msra.mxu0 %v4084
    %4175 = vmatprep.subr.bf16.mxu0 0
    %4176 = vmatpush1.bf16.msra.mxu0 0
    %4177 = vmatprep.subr.bf16.mxu0 0
    %4178 = vmatpush1.bf16.msra.mxu0 0
    %4179 = vmatprep.subr.bf16.mxu0 0
    %4180 = vmatpush1.bf16.msra.mxu0 0
    %4181 = vmatprep.subr.bf16.mxu0 0
    %4182 = vmatpush1.bf16.msra.mxu0 0
    %4183 = vmatprep.subr.bf16.mxu0 0
    %4184 = vmatpush1.bf16.msra.mxu0 0
    %4185 = vmatprep.subr.bf16.mxu0 0
    %4186 = vmatpush1.bf16.msra.mxu0 0
    %4187 = vmatprep.subr.bf16.mxu0 0
    %4188 = vmatpush1.bf16.msra.mxu0 0
    %4189 = vmatprep.subr.bf16.mxu0 0
    %4190 = vmatpush1.bf16.msra.mxu0 0
    %4191 = vmatprep.mubr.bf16.mxu0 0
    %4192 = vmatmul.mubr.bf16.gmra.mrb[0].mxu0 %v3925
    %v4193 = vpop.f32.mrb[0].mxu0
    %v4194 = vadd.f32 0.0, %v4193
    %v4195 = vpop.f32.mrb[0].mxu0
    %v4196 = vadd.f32 0.0, %v4195
    %v4197 = vpop.f32.mrb[0].mxu0
    %v4198 = vpop.f32.mrb[0].mxu0
    %4199 = vdwg.mxu0
    %v4204 = vcombine.low %v4153, %v4155
    %v4205 = vcombine.low %v4194, %v4196
    %v4207 = vunpack.c.l.s4 1966171168
    %v4208 = vunpack.c.0.s8 %v4207
    %v4209 = vlaneseq
    %v4210 = vshrl.u32 %v4209, 7
    %v4211 = vsub.s32 %v4208, %v4210
    %v4212 = vrot.slane %v4204, %v4211
    %v4214 = vunpack.c.l.s4 1966171168
    %v4215 = vunpack.c.0.s8 %v4214
    %v4216 = vlaneseq
    %v4217 = vshrl.u32 %v4216, 7
    %v4218 = vsub.s32 %v4215, %v4217
    %v4219 = vrot.slane %v4205, %v4218
    %v4220 = vcombine.low %v4212, %v4219
    %v4221 = vcombine.high %v4212, %v4219
    %v4223 = vunpack.c.l.s4 1966171168
    %v4224 = vunpack.c.0.s8 %v4223
    %v4225 = vlaneseq
    %v4226 = vshrl.u32 %v4225, 7
    %v4227 = vsub.s32 %v4224, %v4226
    %v4228 = vrot.slane %v4220, %v4227
    %v4230 = vunpack.c.l.s4 1966171168
    %v4231 = vunpack.c.0.s8 %v4230
    %v4232 = vlaneseq
    %v4233 = vshrl.u32 %v4232, 7
    %v4234 = vsub.s32 %v4231, %v4233
    %v4235 = vrot.slane %v4221, %v4234
    %v4238 = vadd.f32 %v3922, %v4228
    %v4239 = vadd.f32 %v3924, %v4235
    %v4240 = vstv %s3920
    %vm4241 = vcmp.lt.s32.totalorder %v4240, %v76
    %v4242 = vxor.u32 %v4238, 2147483648
    %v4243 = vxor.u32 %v4239, 2147483648
    %v4244 = vmul.f32 %v4242, 1.442695
    %v4245 = vpow.pop %v4244
    %v4246 = vmul.f32 %v4243, 1.442695
    %v4247 = vpow.pop %v4246
    %v4248 = vadd.f32 %v4245, 1.0
    %v4249 = vadd.f32 %v4247, 1.0
    %v4250 = vrcp.pop %v4248
    %v4251 = vmul.f32 1.0, %v4250
    %v4252 = vrcp.pop %v4249
    %v4253 = vmul.f32 1.0, %v4252
    %v4256 = vrot.slane %v4238, 1
    %v4257 = vrot.slane %v4239, 1
    %v4260 = vxor.u32 %v4256, 2147483648
    %v4261 = vxor.u32 %v4257, 2147483648
    %v4262 = vmul.f32 %v4260, 1.442695
    %v4263 = vpow.pop %v4262
    %v4264 = vmul.f32 %v4261, 1.442695
    %v4265 = vpow.pop %v4264
    %v4266 = vadd.f32 %v4263, 1.0
    %v4267 = vadd.f32 %v4265, 1.0
    %v4268 = vrcp.pop %v4266
    %v4269 = vmul.f32 1.0, %v4268
    %v4270 = vrcp.pop %v4267
    %v4271 = vmul.f32 1.0, %v4270
    %v4272 = vrot.slane %v4238, 2
    %v4273 = vrot.slane %v4239, 2
    %v4276 = vtanh.pop %v4272
    %v4277 = vtanh.pop %v4273
    %v4278 = vrot.slane %v4238, 3
    %v4279 = vrot.slane %v4239, 3
    %v4282 = vxor.u32 %v4278, 2147483648
    %v4283 = vxor.u32 %v4279, 2147483648
    %v4284 = vmul.f32 %v4282, 1.442695
    %v4285 = vpow.pop %v4284
    %v4286 = vmul.f32 %v4283, 1.442695
    %v4287 = vpow.pop %v4286
    %v4288 = vadd.f32 %v4285, 1.0
    %v4289 = vadd.f32 %v4287, 1.0
    %v4290 = vrcp.pop %v4288
    %v4291 = vmul.f32 1.0, %v4290
    %v4292 = vrcp.pop %v4289
    %v4293 = vmul.f32 1.0, %v4292
    %v4296 = vunpack.c.l.s4 1966171168
    %v4297 = vunpack.c.0.s8 %v4296
    %v4298 = vlaneseq
    %v4299 = vshrl.u32 %v4298, 7
    %v4300 = vsub.s32 %v4297, %v4299
    %v4301 = vrot.slane %v3411, %v4300
    %v4302 = vcombine.high %v4301, %v4301
    %v4304 = vunpack.c.l.s4 1966171168
    %v4305 = vunpack.c.0.s8 %v4304
    %v4306 = vlaneseq
    %v4307 = vshrl.u32 %v4306, 7
    %v4308 = vsub.s32 %v4305, %v4307
    %v4309 = vrot.slane %v4301, %v4308
    %v4311 = vunpack.c.l.s4 1966171168
    %v4312 = vunpack.c.0.s8 %v4311
    %v4313 = vlaneseq
    %v4314 = vshrl.u32 %v4313, 7
    %v4315 = vsub.s32 %v4312, %v4314
    %v4316 = vrot.slane %v4302, %v4315
    %v4319 = vmul.f32 %v4269, %v4309
    %v4320 = vmul.f32 %v4271, %v4316
    %v4321 = vmul.f32 %v4251, %v4276
    %v4322 = vmul.f32 %v4253, %v4277
    %v4323 = vadd.f32 %v4319, %v4321
    %v4324 = vadd.f32 %v4320, %v4322
    %v4325 = vtanh.pop %v4323
    %v4326 = vtanh.pop %v4324
    %v4327 = vmul.f32 %v4291, %v4325
    %v4328 = vmul.f32 %v4293, %v4326
    %v4329 = vsel %vm4241, 1, 0
    %4330 = vset.pattern.permute.xlu0 0
    %4331 = vperm.xlu0 %4330, %v4329
    %v4332 = vpop.permute.xlu0 %4331
    %vm4333 = vcmp.eq.s32.totalorder %v4332, 1
    %v4336 = vcombine.low %v4327, %v4328
    %v4338 = vunpack.c.l.s4 1966171168
    %v4339 = vunpack.c.0.s8 %v4338
    %v4340 = vlaneseq
    %v4341 = vshrl.u32 %v4340, 7
    %v4342 = vsub.s32 %v4339, %v4341
    %v4343 = vrot.slane %v4336, %v4342
    %v4345 = vunpack.c.l.s4 1966171168
    %v4346 = vunpack.c.0.s8 %v4345
    %v4347 = vlaneseq
    %v4348 = vshrl.u32 %v4347, 7
    %v4349 = vsub.s32 %v4346, %v4348
    %v4350 = vrot.slane %v4343, %v4349
    %v4352 = vsel %vm4333, %v4350, %v3392
    %v4355 = vcombine.low %v4323, %v4324
    %v4357 = vunpack.c.l.s4 1966171168
    %v4358 = vunpack.c.0.s8 %v4357
    %v4359 = vlaneseq
    %v4360 = vshrl.u32 %v4359, 7
    %v4361 = vsub.s32 %v4358, %v4360
    %v4362 = vrot.slane %v4355, %v4361
    %v4364 = vunpack.c.l.s4 1966171168
    %v4365 = vunpack.c.0.s8 %v4364
    %v4366 = vlaneseq
    %v4367 = vshrl.u32 %v4366, 7
    %v4368 = vsub.s32 %v4365, %v4367
    %v4369 = vrot.slane %v4362, %v4368
    %v4371 = vsel %vm4333, %v4369, %v3411
    %v4372 = vsel %vm4333, %v4350, 0.0
    %v4375 = vunpack.c.l.s4 1966171168
    %v4376 = vunpack.c.0.s8 %v4375
    %v4377 = vlaneseq
    %v4378 = vshrl.u32 %v4377, 7
    %v4379 = vsub.s32 %v4376, %v4378
    %v4380 = vrot.slane %v4372, %v4379
    %v4381 = vcombine.high %v4380, %v4380
    %v4383 = vunpack.c.l.s4 1966171168
    %v4384 = vunpack.c.0.s8 %v4383
    %v4385 = vlaneseq
    %v4386 = vshrl.u32 %v4385, 7
    %v4387 = vsub.s32 %v4384, %v4386
    %v4388 = vrot.slane %v4380, %v4387
    %v4390 = vunpack.c.l.s4 1966171168
    %v4391 = vunpack.c.0.s8 %v4390
    %v4392 = vlaneseq
    %v4393 = vshrl.u32 %v4392, 7
    %v4394 = vsub.s32 %v4391, %v4393
    %v4395 = vrot.slane %v4381, %v4394
    %4398 = vst [vmem:[%s5 + $0x4] sm:$0x1] %v4388
    %4399 = vst [vmem:[%s5 + $0xc] sm:$0x1] %v4395
    %s4400 = ssub.s32 3, %s77
    %s4401 = scalar_lea.vmem %s59, 35
    %v4402 = vld [vmem:[%s4401] ss:$8 sm:$0xf]
    %s4403 = scalar_lea.vmem %s59, 99
    %v4404 = vld [vmem:[%s4403] ss:$8 sm:$0xf]
    %v4405 = vpack.c.bf16 %v3872, %v3872
    %v4406 = vld [vmem:[#allocation6] sm:$0xff]
    %v4407 = vld [vmem:[#allocation6 + $0x8] sm:$0xff]
    %v4408 = vld [vmem:[#allocation6 + $0x10] sm:$0xff]
    %v4409 = vld [vmem:[#allocation6 + $0x18] sm:$0xff]
    %v4410 = vld [vmem:[#allocation6 + $0x20] sm:$0xff]
    %v4411 = vld [vmem:[#allocation6 + $0x28] sm:$0xff]
    %v4412 = vld [vmem:[#allocation6 + $0x30] sm:$0xff]
    %v4413 = vld [vmem:[#allocation6 + $0x38] sm:$0xff]
    %v4414 = vld [vmem:[#allocation6 + $0x40] sm:$0xff]
    %v4415 = vld [vmem:[#allocation6 + $0x48] sm:$0xff]
    %v4416 = vld [vmem:[#allocation6 + $0x50] sm:$0xff]
    %v4417 = vld [vmem:[#allocation6 + $0x58] sm:$0xff]
    %v4418 = vld [vmem:[#allocation6 + $0x60] sm:$0xff]
    %v4419 = vld [vmem:[#allocation6 + $0x68] sm:$0xff]
    %v4420 = vld [vmem:[#allocation6 + $0x70] sm:$0xff]
    %v4421 = vld [vmem:[#allocation6 + $0x78] sm:$0xff]
    %v4422 = vld [vmem:[#allocation6 + $0x80] sm:$0xff]
    %v4423 = vld [vmem:[#allocation6 + $0x88] sm:$0xff]
    %v4424 = vld [vmem:[#allocation6 + $0x90] sm:$0xff]
    %v4425 = vld [vmem:[#allocation6 + $0x98] sm:$0xff]
    %v4426 = vld [vmem:[#allocation6 + $0xa0] sm:$0xff]
    %v4427 = vld [vmem:[#allocation6 + $0xa8] sm:$0xff]
    %v4428 = vld [vmem:[#allocation6 + $0xb0] sm:$0xff]
    %v4429 = vld [vmem:[#allocation6 + $0xb8] sm:$0xff]
    %v4430 = vld [vmem:[#allocation6 + $0xc0] sm:$0xff]
    %v4431 = vld [vmem:[#allocation6 + $0xc8] sm:$0xff]
    %v4432 = vld [vmem:[#allocation6 + $0xd0] sm:$0xff]
    %v4433 = vld [vmem:[#allocation6 + $0xd8] sm:$0xff]
    %v4434 = vld [vmem:[#allocation6 + $0xe0] sm:$0xff]
    %v4435 = vld [vmem:[#allocation6 + $0xe8] sm:$0xff]
    %v4436 = vld [vmem:[#allocation6 + $0xf0] sm:$0xff]
    %v4437 = vld [vmem:[#allocation6 + $0xf8] sm:$0xff]
    %v4470 = vunpack.c.l.b16 %v4406
    %v4471 = vunpack.c.h.b16 %v4406
    %v4472 = vunpack.c.l.b16 %v4407
    %v4473 = vunpack.c.h.b16 %v4407
    %v4474 = vunpack.c.l.b16 %v4408
    %v4475 = vunpack.c.h.b16 %v4408
    %v4476 = vunpack.c.l.b16 %v4409
    %v4477 = vunpack.c.h.b16 %v4409
    %v4478 = vunpack.c.l.b16 %v4410
    %v4479 = vunpack.c.h.b16 %v4410
    %v4480 = vunpack.c.l.b16 %v4411
    %v4481 = vunpack.c.h.b16 %v4411
    %v4482 = vunpack.c.l.b16 %v4412
    %v4483 = vunpack.c.h.b16 %v4412
    %v4484 = vunpack.c.l.b16 %v4413
    %v4485 = vunpack.c.h.b16 %v4413
    %v4486 = vunpack.c.l.b16 %v4414
    %v4487 = vunpack.c.h.b16 %v4414
    %v4488 = vunpack.c.l.b16 %v4415
    %v4489 = vunpack.c.h.b16 %v4415
    %v4490 = vunpack.c.l.b16 %v4416
    %v4491 = vunpack.c.h.b16 %v4416
    %v4492 = vunpack.c.l.b16 %v4417
    %v4493 = vunpack.c.h.b16 %v4417
    %v4494 = vunpack.c.l.b16 %v4418
    %v4495 = vunpack.c.h.b16 %v4418
    %v4496 = vunpack.c.l.b16 %v4419
    %v4497 = vunpack.c.h.b16 %v4419
    %v4498 = vunpack.c.l.b16 %v4420
    %v4499 = vunpack.c.h.b16 %v4420
    %v4500 = vunpack.c.l.b16 %v4421
    %v4501 = vunpack.c.h.b16 %v4421
    %v4502 = vunpack.c.l.b16 %v4422
    %v4503 = vunpack.c.h.b16 %v4422
    %v4504 = vunpack.c.l.b16 %v4423
    %v4505 = vunpack.c.h.b16 %v4423
    %v4506 = vunpack.c.l.b16 %v4424
    %v4507 = vunpack.c.h.b16 %v4424
    %v4508 = vunpack.c.l.b16 %v4425
    %v4509 = vunpack.c.h.b16 %v4425
    %v4510 = vunpack.c.l.b16 %v4426
    %v4511 = vunpack.c.h.b16 %v4426
    %v4512 = vunpack.c.l.b16 %v4427
    %v4513 = vunpack.c.h.b16 %v4427
    %v4514 = vunpack.c.l.b16 %v4428
    %v4515 = vunpack.c.h.b16 %v4428
    %v4516 = vunpack.c.l.b16 %v4429
    %v4517 = vunpack.c.h.b16 %v4429
    %v4518 = vunpack.c.l.b16 %v4430
    %v4519 = vunpack.c.h.b16 %v4430
    %v4520 = vunpack.c.l.b16 %v4431
    %v4521 = vunpack.c.h.b16 %v4431
    %v4522 = vunpack.c.l.b16 %v4432
    %v4523 = vunpack.c.h.b16 %v4432
    %v4524 = vunpack.c.l.b16 %v4433
    %v4525 = vunpack.c.h.b16 %v4433
    %v4526 = vunpack.c.l.b16 %v4434
    %v4527 = vunpack.c.h.b16 %v4434
    %v4528 = vunpack.c.l.b16 %v4435
    %v4529 = vunpack.c.h.b16 %v4435
    %v4530 = vunpack.c.l.b16 %v4436
    %v4531 = vunpack.c.h.b16 %v4436
    %v4532 = vunpack.c.l.b16 %v4437
    %v4533 = vunpack.c.h.b16 %v4437
    %v4534 = vpack.c.b16 %v4474, %v4470
    %v4535 = vpack.c.b16 %v4475, %v4471
    %v4536 = vpack.c.b16 %v4476, %v4472
    %v4537 = vpack.c.b16 %v4477, %v4473
    %v4538 = vpack.c.b16 %v4482, %v4478
    %v4539 = vpack.c.b16 %v4483, %v4479
    %v4540 = vpack.c.b16 %v4484, %v4480
    %v4541 = vpack.c.b16 %v4485, %v4481
    %v4542 = vpack.c.b16 %v4490, %v4486
    %v4543 = vpack.c.b16 %v4491, %v4487
    %v4544 = vpack.c.b16 %v4492, %v4488
    %v4545 = vpack.c.b16 %v4493, %v4489
    %v4546 = vpack.c.b16 %v4498, %v4494
    %v4547 = vpack.c.b16 %v4499, %v4495
    %v4548 = vpack.c.b16 %v4500, %v4496
    %v4549 = vpack.c.b16 %v4501, %v4497
    %v4550 = vpack.c.b16 %v4506, %v4502
    %v4551 = vpack.c.b16 %v4507, %v4503
    %v4552 = vpack.c.b16 %v4508, %v4504
    %v4553 = vpack.c.b16 %v4509, %v4505
    %v4554 = vpack.c.b16 %v4514, %v4510
    %v4555 = vpack.c.b16 %v4515, %v4511
    %v4556 = vpack.c.b16 %v4516, %v4512
    %v4557 = vpack.c.b16 %v4517, %v4513
    %v4558 = vpack.c.b16 %v4522, %v4518
    %v4559 = vpack.c.b16 %v4523, %v4519
    %v4560 = vpack.c.b16 %v4524, %v4520
    %v4561 = vpack.c.b16 %v4525, %v4521
    %v4562 = vpack.c.b16 %v4530, %v4526
    %v4563 = vpack.c.b16 %v4531, %v4527
    %v4564 = vpack.c.b16 %v4532, %v4528
    %v4565 = vpack.c.b16 %v4533, %v4529
    %4598 = vmatprep.subr.bf16.mxu0 %v4535
    %4599 = vmatpush1.bf16.msra.mxu0 %v4534
    %4600 = vmatprep.subr.bf16.mxu0 %v4539
    %4601 = vmatpush1.bf16.msra.mxu0 %v4538
    %4602 = vmatprep.subr.bf16.mxu0 %v4543
    %4603 = vmatpush1.bf16.msra.mxu0 %v4542
    %4604 = vmatprep.subr.bf16.mxu0 %v4547
    %4605 = vmatpush1.bf16.msra.mxu0 %v4546
    %4606 = vmatprep.subr.bf16.mxu0 %v4551
    %4607 = vmatpush1.bf16.msra.mxu0 %v4550
    %4608 = vmatprep.subr.bf16.mxu0 %v4555
    %4609 = vmatpush1.bf16.msra.mxu0 %v4554
    %4610 = vmatprep.subr.bf16.mxu0 %v4559
    %4611 = vmatpush1.bf16.msra.mxu0 %v4558
    %4612 = vmatprep.subr.bf16.mxu0 %v4563
    %4613 = vmatpush1.bf16.msra.mxu0 %v4562
    %4614 = vmatprep.subr.bf16.mxu0 0
    %4615 = vmatpush1.bf16.msra.mxu0 0
    %4616 = vmatprep.subr.bf16.mxu0 0
    %4617 = vmatpush1.bf16.msra.mxu0 0
    %4618 = vmatprep.subr.bf16.mxu0 0
    %4619 = vmatpush1.bf16.msra.mxu0 0
    %4620 = vmatprep.subr.bf16.mxu0 0
    %4621 = vmatpush1.bf16.msra.mxu0 0
    %4622 = vmatprep.subr.bf16.mxu0 0
    %4623 = vmatpush1.bf16.msra.mxu0 0
    %4624 = vmatprep.subr.bf16.mxu0 0
    %4625 = vmatpush1.bf16.msra.mxu0 0
    %4626 = vmatprep.subr.bf16.mxu0 0
    %4627 = vmatpush1.bf16.msra.mxu0 0
    %4628 = vmatprep.subr.bf16.mxu0 0
    %4629 = vmatpush1.bf16.msra.mxu0 0
    %4630 = vmatprep.mubr.bf16.mxu0 0
    %4631 = vmatmul.mubr.bf16.gmra.mrb[0].mxu0 %v4405
    %v4632 = vpop.f32.mrb[0].mxu0
    %v4633 = vadd.f32 0.0, %v4632
    %v4634 = vpop.f32.mrb[0].mxu0
    %v4635 = vadd.f32 0.0, %v4634
    %v4636 = vpop.f32.mrb[0].mxu0
    %v4637 = vpop.f32.mrb[0].mxu0
    %4638 = vdwg.mxu0
    %4639 = vmatprep.subr.bf16.mxu0 %v4537
    %4640 = vmatpush1.bf16.msra.mxu0 %v4536
    %4641 = vmatprep.subr.bf16.mxu0 %v4541
    %4642 = vmatpush1.bf16.msra.mxu0 %v4540
    %4643 = vmatprep.subr.bf16.mxu0 %v4545
    %4644 = vmatpush1.bf16.msra.mxu0 %v4544
    %4645 = vmatprep.subr.bf16.mxu0 %v4549
    %4646 = vmatpush1.bf16.msra.mxu0 %v4548
    %4647 = vmatprep.subr.bf16.mxu0 %v4553
    %4648 = vmatpush1.bf16.msra.mxu0 %v4552
    %4649 = vmatprep.subr.bf16.mxu0 %v4557
    %4650 = vmatpush1.bf16.msra.mxu0 %v4556
    %4651 = vmatprep.subr.bf16.mxu0 %v4561
    %4652 = vmatpush1.bf16.msra.mxu0 %v4560
    %4653 = vmatprep.subr.bf16.mxu0 %v4565
    %4654 = vmatpush1.bf16.msra.mxu0 %v4564
    %4655 = vmatprep.subr.bf16.mxu0 0
    %4656 = vmatpush1.bf16.msra.mxu0 0
    %4657 = vmatprep.subr.bf16.mxu0 0
    %4658 = vmatpush1.bf16.msra.mxu0 0
    %4659 = vmatprep.subr.bf16.mxu0 0
    %4660 = vmatpush1.bf16.msra.mxu0 0
    %4661 = vmatprep.subr.bf16.mxu0 0
    %4662 = vmatpush1.bf16.msra.mxu0 0
    %4663 = vmatprep.subr.bf16.mxu0 0
    %4664 = vmatpush1.bf16.msra.mxu0 0
    %4665 = vmatprep.subr.bf16.mxu0 0
    %4666 = vmatpush1.bf16.msra.mxu0 0
    %4667 = vmatprep.subr.bf16.mxu0 0
    %4668 = vmatpush1.bf16.msra.mxu0 0
    %4669 = vmatprep.subr.bf16.mxu0 0
    %4670 = vmatpush1.bf16.msra.mxu0 0
    %4671 = vmatprep.mubr.bf16.mxu0 0
    %4672 = vmatmul.mubr.bf16.gmra.mrb[0].mxu0 %v4405
    %v4673 = vpop.f32.mrb[0].mxu0
    %v4674 = vadd.f32 0.0, %v4673
    %v4675 = vpop.f32.mrb[0].mxu0
    %v4676 = vadd.f32 0.0, %v4675
    %v4677 = vpop.f32.mrb[0].mxu0
    %v4678 = vpop.f32.mrb[0].mxu0
    %4679 = vdwg.mxu0
    %v4684 = vcombine.low %v4633, %v4635
    %v4685 = vcombine.low %v4674, %v4676
    %v4687 = vunpack.c.l.s4 1966171168
    %v4688 = vunpack.c.0.s8 %v4687
    %v4689 = vlaneseq
    %v4690 = vshrl.u32 %v4689, 7
    %v4691 = vsub.s32 %v4688, %v4690
    %v4692 = vrot.slane %v4684, %v4691
    %v4694 = vunpack.c.l.s4 1966171168
    %v4695 = vunpack.c.0.s8 %v4694
    %v4696 = vlaneseq
    %v4697 = vshrl.u32 %v4696, 7
    %v4698 = vsub.s32 %v4695, %v4697
    %v4699 = vrot.slane %v4685, %v4698
    %v4700 = vcombine.low %v4692, %v4699
    %v4701 = vcombine.high %v4692, %v4699
    %v4703 = vunpack.c.l.s4 1966171168
    %v4704 = vunpack.c.0.s8 %v4703
    %v4705 = vlaneseq
    %v4706 = vshrl.u32 %v4705, 7
    %v4707 = vsub.s32 %v4704, %v4706
    %v4708 = vrot.slane %v4700, %v4707
    %v4710 = vunpack.c.l.s4 1966171168
    %v4711 = vunpack.c.0.s8 %v4710
    %v4712 = vlaneseq
    %v4713 = vshrl.u32 %v4712, 7
    %v4714 = vsub.s32 %v4711, %v4713
    %v4715 = vrot.slane %v4701, %v4714
    %v4718 = vadd.f32 %v4402, %v4708
    %v4719 = vadd.f32 %v4404, %v4715
    %v4720 = vstv %s4400
    %vm4721 = vcmp.lt.s32.totalorder %v4720, %v76
    %v4722 = vxor.u32 %v4718, 2147483648
    %v4723 = vxor.u32 %v4719, 2147483648
    %v4724 = vmul.f32 %v4722, 1.442695
    %v4725 = vpow.pop %v4724
    %v4726 = vmul.f32 %v4723, 1.442695
    %v4727 = vpow.pop %v4726
    %v4728 = vadd.f32 %v4725, 1.0
    %v4729 = vadd.f32 %v4727, 1.0
    %v4730 = vrcp.pop %v4728
    %v4731 = vmul.f32 1.0, %v4730
    %v4732 = vrcp.pop %v4729
    %v4733 = vmul.f32 1.0, %v4732
    %v4736 = vrot.slane %v4718, 1
    %v4737 = vrot.slane %v4719, 1
    %v4740 = vxor.u32 %v4736, 2147483648
    %v4741 = vxor.u32 %v4737, 2147483648
    %v4742 = vmul.f32 %v4740, 1.442695
    %v4743 = vpow.pop %v4742
    %v4744 = vmul.f32 %v4741, 1.442695
    %v4745 = vpow.pop %v4744
    %v4746 = vadd.f32 %v4743, 1.0
    %v4747 = vadd.f32 %v4745, 1.0
    %v4748 = vrcp.pop %v4746
    %v4749 = vmul.f32 1.0, %v4748
    %v4750 = vrcp.pop %v4747
    %v4751 = vmul.f32 1.0, %v4750
    %v4752 = vrot.slane %v4718, 2
    %v4753 = vrot.slane %v4719, 2
    %v4756 = vtanh.pop %v4752
    %v4757 = vtanh.pop %v4753
    %v4758 = vrot.slane %v4718, 3
    %v4759 = vrot.slane %v4719, 3
    %v4762 = vxor.u32 %v4758, 2147483648
    %v4763 = vxor.u32 %v4759, 2147483648
    %v4764 = vmul.f32 %v4762, 1.442695
    %v4765 = vpow.pop %v4764
    %v4766 = vmul.f32 %v4763, 1.442695
    %v4767 = vpow.pop %v4766
    %v4768 = vadd.f32 %v4765, 1.0
    %v4769 = vadd.f32 %v4767, 1.0
    %v4770 = vrcp.pop %v4768
    %v4771 = vmul.f32 1.0, %v4770
    %v4772 = vrcp.pop %v4769
    %v4773 = vmul.f32 1.0, %v4772
    %v4776 = vunpack.c.l.s4 1966171168
    %v4777 = vunpack.c.0.s8 %v4776
    %v4778 = vlaneseq
    %v4779 = vshrl.u32 %v4778, 7
    %v4780 = vsub.s32 %v4777, %v4779
    %v4781 = vrot.slane %v3891, %v4780
    %v4782 = vcombine.high %v4781, %v4781
    %v4784 = vunpack.c.l.s4 1966171168
    %v4785 = vunpack.c.0.s8 %v4784
    %v4786 = vlaneseq
    %v4787 = vshrl.u32 %v4786, 7
    %v4788 = vsub.s32 %v4785, %v4787
    %v4789 = vrot.slane %v4781, %v4788
    %v4791 = vunpack.c.l.s4 1966171168
    %v4792 = vunpack.c.0.s8 %v4791
    %v4793 = vlaneseq
    %v4794 = vshrl.u32 %v4793, 7
    %v4795 = vsub.s32 %v4792, %v4794
    %v4796 = vrot.slane %v4782, %v4795
    %v4799 = vmul.f32 %v4749, %v4789
    %v4800 = vmul.f32 %v4751, %v4796
    %v4801 = vmul.f32 %v4731, %v4756
    %v4802 = vmul.f32 %v4733, %v4757
    %v4803 = vadd.f32 %v4799, %v4801
    %v4804 = vadd.f32 %v4800, %v4802
    %v4805 = vtanh.pop %v4803
    %v4806 = vtanh.pop %v4804
    %v4807 = vmul.f32 %v4771, %v4805
    %v4808 = vmul.f32 %v4773, %v4806
    %v4809 = vsel %vm4721, 1, 0
    %4810 = vset.pattern.permute.xlu0 0
    %4811 = vperm.xlu0 %4810, %v4809
    %v4812 = vpop.permute.xlu0 %4811
    %vm4813 = vcmp.eq.s32.totalorder %v4812, 1
    %v4816 = vcombine.low %v4807, %v4808
    %v4818 = vunpack.c.l.s4 1966171168
    %v4819 = vunpack.c.0.s8 %v4818
    %v4820 = vlaneseq
    %v4821 = vshrl.u32 %v4820, 7
    %v4822 = vsub.s32 %v4819, %v4821
    %v4823 = vrot.slane %v4816, %v4822
    %v4825 = vunpack.c.l.s4 1966171168
    %v4826 = vunpack.c.0.s8 %v4825
    %v4827 = vlaneseq
    %v4828 = vshrl.u32 %v4827, 7
    %v4829 = vsub.s32 %v4826, %v4828
    %v4830 = vrot.slane %v4823, %v4829
    %v4832 = vsel %vm4813, %v4830, %v3872
    %v4835 = vcombine.low %v4803, %v4804
    %v4837 = vunpack.c.l.s4 1966171168
    %v4838 = vunpack.c.0.s8 %v4837
    %v4839 = vlaneseq
    %v4840 = vshrl.u32 %v4839, 7
    %v4841 = vsub.s32 %v4838, %v4840
    %v4842 = vrot.slane %v4835, %v4841
    %v4844 = vunpack.c.l.s4 1966171168
    %v4845 = vunpack.c.0.s8 %v4844
    %v4846 = vlaneseq
    %v4847 = vshrl.u32 %v4846, 7
    %v4848 = vsub.s32 %v4845, %v4847
    %v4849 = vrot.slane %v4842, %v4848
    %v4851 = vsel %vm4813, %v4849, %v3891
    %v4852 = vsel %vm4813, %v4830, 0.0
    %v4855 = vunpack.c.l.s4 1966171168
    %v4856 = vunpack.c.0.s8 %v4855
    %v4857 = vlaneseq
    %v4858 = vshrl.u32 %v4857, 7
    %v4859 = vsub.s32 %v4856, %v4858
    %v4860 = vrot.slane %v4852, %v4859
    %v4861 = vcombine.high %v4860, %v4860
    %v4863 = vunpack.c.l.s4 1966171168
    %v4864 = vunpack.c.0.s8 %v4863
    %v4865 = vlaneseq
    %v4866 = vshrl.u32 %v4865, 7
    %v4867 = vsub.s32 %v4864, %v4866
    %v4868 = vrot.slane %v4860, %v4867
    %v4870 = vunpack.c.l.s4 1966171168
    %v4871 = vunpack.c.0.s8 %v4870
    %v4872 = vlaneseq
    %v4873 = vshrl.u32 %v4872, 7
    %v4874 = vsub.s32 %v4871, %v4873
    %v4875 = vrot.slane %v4861, %v4874
    %4878 = vst [vmem:[%s65 + $0x3] sm:$0x1] %v4868
    %4879 = vst [vmem:[%s65 + $0xb] sm:$0x1] %v4875
    %s4880 = sadd.s32 %s77, 5
    %s4881 = scalar_lea.vmem %s1, 5
    %v4882 = vld [vmem:[%s4881] ss:$8 sm:$0xf]
    %s4883 = scalar_lea.vmem %s1, 69
    %v4884 = vld [vmem:[%s4883] ss:$8 sm:$0xf]
    %v4885 = vpack.c.bf16 %v4352, %v4352
    %v4886 = vld [vmem:[%s3] sm:$0xff]
    %v4887 = vld [vmem:[%s3 + $0x8] sm:$0xff]
    %v4888 = vld [vmem:[%s3 + $0x10] sm:$0xff]
    %v4889 = vld [vmem:[%s3 + $0x18] sm:$0xff]
    %v4890 = vld [vmem:[%s3 + $0x20] sm:$0xff]
    %v4891 = vld [vmem:[%s3 + $0x28] sm:$0xff]
    %v4892 = vld [vmem:[%s3 + $0x30] sm:$0xff]
    %v4893 = vld [vmem:[%s3 + $0x38] sm:$0xff]
    %v4894 = vld [vmem:[%s3 + $0x40] sm:$0xff]
    %v4895 = vld [vmem:[%s3 + $0x48] sm:$0xff]
    %v4896 = vld [vmem:[%s3 + $0x50] sm:$0xff]
    %v4897 = vld [vmem:[%s3 + $0x58] sm:$0xff]
    %v4898 = vld [vmem:[%s3 + $0x60] sm:$0xff]
    %v4899 = vld [vmem:[%s3 + $0x68] sm:$0xff]
    %v4900 = vld [vmem:[%s3 + $0x70] sm:$0xff]
    %v4901 = vld [vmem:[%s3 + $0x78] sm:$0xff]
    %v4902 = vld [vmem:[%s3 + $0x80] sm:$0xff]
    %v4903 = vld [vmem:[%s3 + $0x88] sm:$0xff]
    %v4904 = vld [vmem:[%s3 + $0x90] sm:$0xff]
    %v4905 = vld [vmem:[%s3 + $0x98] sm:$0xff]
    %v4906 = vld [vmem:[%s3 + $0xa0] sm:$0xff]
    %v4907 = vld [vmem:[%s3 + $0xa8] sm:$0xff]
    %v4908 = vld [vmem:[%s3 + $0xb0] sm:$0xff]
    %v4909 = vld [vmem:[%s3 + $0xb8] sm:$0xff]
    %v4910 = vld [vmem:[%s3 + $0xc0] sm:$0xff]
    %v4911 = vld [vmem:[%s3 + $0xc8] sm:$0xff]
    %v4912 = vld [vmem:[%s3 + $0xd0] sm:$0xff]
    %v4913 = vld [vmem:[%s3 + $0xd8] sm:$0xff]
    %v4914 = vld [vmem:[%s3 + $0xe0] sm:$0xff]
    %v4915 = vld [vmem:[%s3 + $0xe8] sm:$0xff]
    %v4916 = vld [vmem:[%s3 + $0xf0] sm:$0xff]
    %v4917 = vld [vmem:[%s3 + $0xf8] sm:$0xff]
    %v4950 = vunpack.c.l.b16 %v4886
    %v4951 = vunpack.c.h.b16 %v4886
    %v4952 = vunpack.c.l.b16 %v4887
    %v4953 = vunpack.c.h.b16 %v4887
    %v4954 = vunpack.c.l.b16 %v4888
    %v4955 = vunpack.c.h.b16 %v4888
    %v4956 = vunpack.c.l.b16 %v4889
    %v4957 = vunpack.c.h.b16 %v4889
    %v4958 = vunpack.c.l.b16 %v4890
    %v4959 = vunpack.c.h.b16 %v4890
    %v4960 = vunpack.c.l.b16 %v4891
    %v4961 = vunpack.c.h.b16 %v4891
    %v4962 = vunpack.c.l.b16 %v4892
    %v4963 = vunpack.c.h.b16 %v4892
    %v4964 = vunpack.c.l.b16 %v4893
    %v4965 = vunpack.c.h.b16 %v4893
    %v4966 = vunpack.c.l.b16 %v4894
    %v4967 = vunpack.c.h.b16 %v4894
    %v4968 = vunpack.c.l.b16 %v4895
    %v4969 = vunpack.c.h.b16 %v4895
    %v4970 = vunpack.c.l.b16 %v4896
    %v4971 = vunpack.c.h.b16 %v4896
    %v4972 = vunpack.c.l.b16 %v4897
    %v4973 = vunpack.c.h.b16 %v4897
    %v4974 = vunpack.c.l.b16 %v4898
    %v4975 = vunpack.c.h.b16 %v4898
    %v4976 = vunpack.c.l.b16 %v4899
    %v4977 = vunpack.c.h.b16 %v4899
    %v4978 = vunpack.c.l.b16 %v4900
    %v4979 = vunpack.c.h.b16 %v4900
    %v4980 = vunpack.c.l.b16 %v4901
    %v4981 = vunpack.c.h.b16 %v4901
    %v4982 = vunpack.c.l.b16 %v4902
    %v4983 = vunpack.c.h.b16 %v4902
    %v4984 = vunpack.c.l.b16 %v4903
    %v4985 = vunpack.c.h.b16 %v4903
    %v4986 = vunpack.c.l.b16 %v4904
    %v4987 = vunpack.c.h.b16 %v4904
    %v4988 = vunpack.c.l.b16 %v4905
    %v4989 = vunpack.c.h.b16 %v4905
    %v4990 = vunpack.c.l.b16 %v4906
    %v4991 = vunpack.c.h.b16 %v4906
    %v4992 = vunpack.c.l.b16 %v4907
    %v4993 = vunpack.c.h.b16 %v4907
    %v4994 = vunpack.c.l.b16 %v4908
    %v4995 = vunpack.c.h.b16 %v4908
    %v4996 = vunpack.c.l.b16 %v4909
    %v4997 = vunpack.c.h.b16 %v4909
    %v4998 = vunpack.c.l.b16 %v4910
    %v4999 = vunpack.c.h.b16 %v4910
    %v5000 = vunpack.c.l.b16 %v4911
    %v5001 = vunpack.c.h.b16 %v4911
    %v5002 = vunpack.c.l.b16 %v4912
    %v5003 = vunpack.c.h.b16 %v4912
    %v5004 = vunpack.c.l.b16 %v4913
    %v5005 = vunpack.c.h.b16 %v4913
    %v5006 = vunpack.c.l.b16 %v4914
    %v5007 = vunpack.c.h.b16 %v4914
    %v5008 = vunpack.c.l.b16 %v4915
    %v5009 = vunpack.c.h.b16 %v4915
    %v5010 = vunpack.c.l.b16 %v4916
    %v5011 = vunpack.c.h.b16 %v4916
    %v5012 = vunpack.c.l.b16 %v4917
    %v5013 = vunpack.c.h.b16 %v4917
    %v5014 = vpack.c.b16 %v4954, %v4950
    %v5015 = vpack.c.b16 %v4955, %v4951
    %v5016 = vpack.c.b16 %v4956, %v4952
    %v5017 = vpack.c.b16 %v4957, %v4953
    %v5018 = vpack.c.b16 %v4962, %v4958
    %v5019 = vpack.c.b16 %v4963, %v4959
    %v5020 = vpack.c.b16 %v4964, %v4960
    %v5021 = vpack.c.b16 %v4965, %v4961
    %v5022 = vpack.c.b16 %v4970, %v4966
    %v5023 = vpack.c.b16 %v4971, %v4967
    %v5024 = vpack.c.b16 %v4972, %v4968
    %v5025 = vpack.c.b16 %v4973, %v4969
    %v5026 = vpack.c.b16 %v4978, %v4974
    %v5027 = vpack.c.b16 %v4979, %v4975
    %v5028 = vpack.c.b16 %v4980, %v4976
    %v5029 = vpack.c.b16 %v4981, %v4977
    %v5030 = vpack.c.b16 %v4986, %v4982
    %v5031 = vpack.c.b16 %v4987, %v4983
    %v5032 = vpack.c.b16 %v4988, %v4984
    %v5033 = vpack.c.b16 %v4989, %v4985
    %v5034 = vpack.c.b16 %v4994, %v4990
    %v5035 = vpack.c.b16 %v4995, %v4991
    %v5036 = vpack.c.b16 %v4996, %v4992
    %v5037 = vpack.c.b16 %v4997, %v4993
    %v5038 = vpack.c.b16 %v5002, %v4998
    %v5039 = vpack.c.b16 %v5003, %v4999
    %v5040 = vpack.c.b16 %v5004, %v5000
    %v5041 = vpack.c.b16 %v5005, %v5001
    %v5042 = vpack.c.b16 %v5010, %v5006
    %v5043 = vpack.c.b16 %v5011, %v5007
    %v5044 = vpack.c.b16 %v5012, %v5008
    %v5045 = vpack.c.b16 %v5013, %v5009
    %5078 = vmatprep.subr.bf16.mxu0 %v5015
    %5079 = vmatpush1.bf16.msra.mxu0 %v5014
    %5080 = vmatprep.subr.bf16.mxu0 %v5019
    %5081 = vmatpush1.bf16.msra.mxu0 %v5018
    %5082 = vmatprep.subr.bf16.mxu0 %v5023
    %5083 = vmatpush1.bf16.msra.mxu0 %v5022
    %5084 = vmatprep.subr.bf16.mxu0 %v5027
    %5085 = vmatpush1.bf16.msra.mxu0 %v5026
    %5086 = vmatprep.subr.bf16.mxu0 %v5031
    %5087 = vmatpush1.bf16.msra.mxu0 %v5030
    %5088 = vmatprep.subr.bf16.mxu0 %v5035
    %5089 = vmatpush1.bf16.msra.mxu0 %v5034
    %5090 = vmatprep.subr.bf16.mxu0 %v5039
    %5091 = vmatpush1.bf16.msra.mxu0 %v5038
    %5092 = vmatprep.subr.bf16.mxu0 %v5043
    %5093 = vmatpush1.bf16.msra.mxu0 %v5042
    %5094 = vmatprep.subr.bf16.mxu0 0
    %5095 = vmatpush1.bf16.msra.mxu0 0
    %5096 = vmatprep.subr.bf16.mxu0 0
    %5097 = vmatpush1.bf16.msra.mxu0 0
    %5098 = vmatprep.subr.bf16.mxu0 0
    %5099 = vmatpush1.bf16.msra.mxu0 0
    %5100 = vmatprep.subr.bf16.mxu0 0
    %5101 = vmatpush1.bf16.msra.mxu0 0
    %5102 = vmatprep.subr.bf16.mxu0 0
    %5103 = vmatpush1.bf16.msra.mxu0 0
    %5104 = vmatprep.subr.bf16.mxu0 0
    %5105 = vmatpush1.bf16.msra.mxu0 0
    %5106 = vmatprep.subr.bf16.mxu0 0
    %5107 = vmatpush1.bf16.msra.mxu0 0
    %5108 = vmatprep.subr.bf16.mxu0 0
    %5109 = vmatpush1.bf16.msra.mxu0 0
    %5110 = vmatprep.mubr.bf16.mxu0 0
    %5111 = vmatmul.mubr.bf16.gmra.mrb[0].mxu0 %v4885
    %v5112 = vpop.f32.mrb[0].mxu0
    %v5113 = vadd.f32 0.0, %v5112
    %v5114 = vpop.f32.mrb[0].mxu0
    %v5115 = vadd.f32 0.0, %v5114
    %v5116 = vpop.f32.mrb[0].mxu0
    %v5117 = vpop.f32.mrb[0].mxu0
    %5118 = vdwg.mxu0
    %5119 = vmatprep.subr.bf16.mxu0 %v5017
    %5120 = vmatpush1.bf16.msra.mxu0 %v5016
    %5121 = vmatprep.subr.bf16.mxu0 %v5021
    %5122 = vmatpush1.bf16.msra.mxu0 %v5020
    %5123 = vmatprep.subr.bf16.mxu0 %v5025
    %5124 = vmatpush1.bf16.msra.mxu0 %v5024
    %5125 = vmatprep.subr.bf16.mxu0 %v5029
    %5126 = vmatpush1.bf16.msra.mxu0 %v5028
    %5127 = vmatprep.subr.bf16.mxu0 %v5033
    %5128 = vmatpush1.bf16.msra.mxu0 %v5032
    %5129 = vmatprep.subr.bf16.mxu0 %v5037
    %5130 = vmatpush1.bf16.msra.mxu0 %v5036
    %5131 = vmatprep.subr.bf16.mxu0 %v5041
    %5132 = vmatpush1.bf16.msra.mxu0 %v5040
    %5133 = vmatprep.subr.bf16.mxu0 %v5045
    %5134 = vmatpush1.bf16.msra.mxu0 %v5044
    %5135 = vmatprep.subr.bf16.mxu0 0
    %5136 = vmatpush1.bf16.msra.mxu0 0
    %5137 = vmatprep.subr.bf16.mxu0 0
    %5138 = vmatpush1.bf16.msra.mxu0 0
    %5139 = vmatprep.subr.bf16.mxu0 0
    %5140 = vmatpush1.bf16.msra.mxu0 0
    %5141 = vmatprep.subr.bf16.mxu0 0
    %5142 = vmatpush1.bf16.msra.mxu0 0
    %5143 = vmatprep.subr.bf16.mxu0 0
    %5144 = vmatpush1.bf16.msra.mxu0 0
    %5145 = vmatprep.subr.bf16.mxu0 0
    %5146 = vmatpush1.bf16.msra.mxu0 0
    %5147 = vmatprep.subr.bf16.mxu0 0
    %5148 = vmatpush1.bf16.msra.mxu0 0
    %5149 = vmatprep.subr.bf16.mxu0 0
    %5150 = vmatpush1.bf16.msra.mxu0 0
    %5151 = vmatprep.mubr.bf16.mxu0 0
    %5152 = vmatmul.mubr.bf16.gmra.mrb[0].mxu0 %v4885
    %v5153 = vpop.f32.mrb[0].mxu0
    %v5154 = vadd.f32 0.0, %v5153
    %v5155 = vpop.f32.mrb[0].mxu0
    %v5156 = vadd.f32 0.0, %v5155
    %v5157 = vpop.f32.mrb[0].mxu0
    %v5158 = vpop.f32.mrb[0].mxu0
    %5159 = vdwg.mxu0
    %v5164 = vcombine.low %v5113, %v5115
    %v5165 = vcombine.low %v5154, %v5156
    %v5167 = vunpack.c.l.s4 1966171168
    %v5168 = vunpack.c.0.s8 %v5167
    %v5169 = vlaneseq
    %v5170 = vshrl.u32 %v5169, 7
    %v5171 = vsub.s32 %v5168, %v5170
    %v5172 = vrot.slane %v5164, %v5171
    %v5174 = vunpack.c.l.s4 1966171168
    %v5175 = vunpack.c.0.s8 %v5174
    %v5176 = vlaneseq
    %v5177 = vshrl.u32 %v5176, 7
    %v5178 = vsub.s32 %v5175, %v5177
    %v5179 = vrot.slane %v5165, %v5178
    %v5180 = vcombine.low %v5172, %v5179
    %v5181 = vcombine.high %v5172, %v5179
    %v5183 = vunpack.c.l.s4 1966171168
    %v5184 = vunpack.c.0.s8 %v5183
    %v5185 = vlaneseq
    %v5186 = vshrl.u32 %v5185, 7
    %v5187 = vsub.s32 %v5184, %v5186
    %v5188 = vrot.slane %v5180, %v5187
    %v5190 = vunpack.c.l.s4 1966171168
    %v5191 = vunpack.c.0.s8 %v5190
    %v5192 = vlaneseq
    %v5193 = vshrl.u32 %v5192, 7
    %v5194 = vsub.s32 %v5191, %v5193
    %v5195 = vrot.slane %v5181, %v5194
    %v5198 = vadd.f32 %v4882, %v5188
    %v5199 = vadd.f32 %v4884, %v5195
    %v5200 = vstv %s4880
    %vm5201 = vcmp.lt.s32.totalorder %v5200, %v76
    %v5202 = vxor.u32 %v5198, 2147483648
    %v5203 = vxor.u32 %v5199, 2147483648
    %v5204 = vmul.f32 %v5202, 1.442695
    %v5205 = vpow.pop %v5204
    %v5206 = vmul.f32 %v5203, 1.442695
    %v5207 = vpow.pop %v5206
    %v5208 = vadd.f32 %v5205, 1.0
    %v5209 = vadd.f32 %v5207, 1.0
    %v5210 = vrcp.pop %v5208
    %v5211 = vmul.f32 1.0, %v5210
    %v5212 = vrcp.pop %v5209
    %v5213 = vmul.f32 1.0, %v5212
    %v5216 = vrot.slane %v5198, 1
    %v5217 = vrot.slane %v5199, 1
    %v5220 = vxor.u32 %v5216, 2147483648
    %v5221 = vxor.u32 %v5217, 2147483648
    %v5222 = vmul.f32 %v5220, 1.442695
    %v5223 = vpow.pop %v5222
    %v5224 = vmul.f32 %v5221, 1.442695
    %v5225 = vpow.pop %v5224
    %v5226 = vadd.f32 %v5223, 1.0
    %v5227 = vadd.f32 %v5225, 1.0
    %v5228 = vrcp.pop %v5226
    %v5229 = vmul.f32 1.0, %v5228
    %v5230 = vrcp.pop %v5227
    %v5231 = vmul.f32 1.0, %v5230
    %v5232 = vrot.slane %v5198, 2
    %v5233 = vrot.slane %v5199, 2
    %v5236 = vtanh.pop %v5232
    %v5237 = vtanh.pop %v5233
    %v5238 = vrot.slane %v5198, 3
    %v5239 = vrot.slane %v5199, 3
    %v5242 = vxor.u32 %v5238, 2147483648
    %v5243 = vxor.u32 %v5239, 2147483648
    %v5244 = vmul.f32 %v5242, 1.442695
    %v5245 = vpow.pop %v5244
    %v5246 = vmul.f32 %v5243, 1.442695
    %v5247 = vpow.pop %v5246
    %v5248 = vadd.f32 %v5245, 1.0
    %v5249 = vadd.f32 %v5247, 1.0
    %v5250 = vrcp.pop %v5248
    %v5251 = vmul.f32 1.0, %v5250
    %v5252 = vrcp.pop %v5249
    %v5253 = vmul.f32 1.0, %v5252
    %v5256 = vunpack.c.l.s4 1966171168
    %v5257 = vunpack.c.0.s8 %v5256
    %v5258 = vlaneseq
    %v5259 = vshrl.u32 %v5258, 7
    %v5260 = vsub.s32 %v5257, %v5259
    %v5261 = vrot.slane %v4371, %v5260
    %v5262 = vcombine.high %v5261, %v5261
    %v5264 = vunpack.c.l.s4 1966171168
    %v5265 = vunpack.c.0.s8 %v5264
    %v5266 = vlaneseq
    %v5267 = vshrl.u32 %v5266, 7
    %v5268 = vsub.s32 %v5265, %v5267
    %v5269 = vrot.slane %v5261, %v5268
    %v5271 = vunpack.c.l.s4 1966171168
    %v5272 = vunpack.c.0.s8 %v5271
    %v5273 = vlaneseq
    %v5274 = vshrl.u32 %v5273, 7
    %v5275 = vsub.s32 %v5272, %v5274
    %v5276 = vrot.slane %v5262, %v5275
    %v5279 = vmul.f32 %v5229, %v5269
    %v5280 = vmul.f32 %v5231, %v5276
    %v5281 = vmul.f32 %v5211, %v5236
    %v5282 = vmul.f32 %v5213, %v5237
    %v5283 = vadd.f32 %v5279, %v5281
    %v5284 = vadd.f32 %v5280, %v5282
    %v5285 = vtanh.pop %v5283
    %v5286 = vtanh.pop %v5284
    %v5287 = vmul.f32 %v5251, %v5285
    %v5288 = vmul.f32 %v5253, %v5286
    %v5289 = vsel %vm5201, 1, 0
    %5290 = vset.pattern.permute.xlu0 0
    %5291 = vperm.xlu0 %5290, %v5289
    %v5292 = vpop.permute.xlu0 %5291
    %vm5293 = vcmp.eq.s32.totalorder %v5292, 1
    %v5296 = vcombine.low %v5287, %v5288
    %v5298 = vunpack.c.l.s4 1966171168
    %v5299 = vunpack.c.0.s8 %v5298
    %v5300 = vlaneseq
    %v5301 = vshrl.u32 %v5300, 7
    %v5302 = vsub.s32 %v5299, %v5301
    %v5303 = vrot.slane %v5296, %v5302
    %v5305 = vunpack.c.l.s4 1966171168
    %v5306 = vunpack.c.0.s8 %v5305
    %v5307 = vlaneseq
    %v5308 = vshrl.u32 %v5307, 7
    %v5309 = vsub.s32 %v5306, %v5308
    %v5310 = vrot.slane %v5303, %v5309
    %v5312 = vsel %vm5293, %v5310, %v4352
    %v5315 = vcombine.low %v5283, %v5284
    %v5317 = vunpack.c.l.s4 1966171168
    %v5318 = vunpack.c.0.s8 %v5317
    %v5319 = vlaneseq
    %v5320 = vshrl.u32 %v5319, 7
    %v5321 = vsub.s32 %v5318, %v5320
    %v5322 = vrot.slane %v5315, %v5321
    %v5324 = vunpack.c.l.s4 1966171168
    %v5325 = vunpack.c.0.s8 %v5324
    %v5326 = vlaneseq
    %v5327 = vshrl.u32 %v5326, 7
    %v5328 = vsub.s32 %v5325, %v5327
    %v5329 = vrot.slane %v5322, %v5328
    %v5331 = vsel %vm5293, %v5329, %v4371
    %v5332 = vsel %vm5293, %v5310, 0.0
    %v5335 = vunpack.c.l.s4 1966171168
    %v5336 = vunpack.c.0.s8 %v5335
    %v5337 = vlaneseq
    %v5338 = vshrl.u32 %v5337, 7
    %v5339 = vsub.s32 %v5336, %v5338
    %v5340 = vrot.slane %v5332, %v5339
    %v5341 = vcombine.high %v5340, %v5340
    %v5343 = vunpack.c.l.s4 1966171168
    %v5344 = vunpack.c.0.s8 %v5343
    %v5345 = vlaneseq
    %v5346 = vshrl.u32 %v5345, 7
    %v5347 = vsub.s32 %v5344, %v5346
    %v5348 = vrot.slane %v5340, %v5347
    %v5350 = vunpack.c.l.s4 1966171168
    %v5351 = vunpack.c.0.s8 %v5350
    %v5352 = vlaneseq
    %v5353 = vshrl.u32 %v5352, 7
    %v5354 = vsub.s32 %v5351, %v5353
    %v5355 = vrot.slane %v5341, %v5354
    %5358 = vst [vmem:[%s5 + $0x5] sm:$0x1] %v5348
    %5359 = vst [vmem:[%s5 + $0xd] sm:$0x1] %v5355
    %s5360 = ssub.s32 2, %s77
    %s5361 = scalar_lea.vmem %s59, 34
    %v5362 = vld [vmem:[%s5361] ss:$8 sm:$0xf]
    %s5363 = scalar_lea.vmem %s59, 98
    %v5364 = vld [vmem:[%s5363] ss:$8 sm:$0xf]
    %v5365 = vpack.c.bf16 %v4832, %v4832
    %v5366 = vld [vmem:[#allocation6] sm:$0xff]
    %v5367 = vld [vmem:[#allocation6 + $0x8] sm:$0xff]
    %v5368 = vld [vmem:[#allocation6 + $0x10] sm:$0xff]
    %v5369 = vld [vmem:[#allocation6 + $0x18] sm:$0xff]
    %v5370 = vld [vmem:[#allocation6 + $0x20] sm:$0xff]
    %v5371 = vld [vmem:[#allocation6 + $0x28] sm:$0xff]
    %v5372 = vld [vmem:[#allocation6 + $0x30] sm:$0xff]
    %v5373 = vld [vmem:[#allocation6 + $0x38] sm:$0xff]
    %v5374 = vld [vmem:[#allocation6 + $0x40] sm:$0xff]
    %v5375 = vld [vmem:[#allocation6 + $0x48] sm:$0xff]
    %v5376 = vld [vmem:[#allocation6 + $0x50] sm:$0xff]
    %v5377 = vld [vmem:[#allocation6 + $0x58] sm:$0xff]
    %v5378 = vld [vmem:[#allocation6 + $0x60] sm:$0xff]
    %v5379 = vld [vmem:[#allocation6 + $0x68] sm:$0xff]
    %v5380 = vld [vmem:[#allocation6 + $0x70] sm:$0xff]
    %v5381 = vld [vmem:[#allocation6 + $0x78] sm:$0xff]
    %v5382 = vld [vmem:[#allocation6 + $0x80] sm:$0xff]
    %v5383 = vld [vmem:[#allocation6 + $0x88] sm:$0xff]
    %v5384 = vld [vmem:[#allocation6 + $0x90] sm:$0xff]
    %v5385 = vld [vmem:[#allocation6 + $0x98] sm:$0xff]
    %v5386 = vld [vmem:[#allocation6 + $0xa0] sm:$0xff]
    %v5387 = vld [vmem:[#allocation6 + $0xa8] sm:$0xff]
    %v5388 = vld [vmem:[#allocation6 + $0xb0] sm:$0xff]
    %v5389 = vld [vmem:[#allocation6 + $0xb8] sm:$0xff]
    %v5390 = vld [vmem:[#allocation6 + $0xc0] sm:$0xff]
    %v5391 = vld [vmem:[#allocation6 + $0xc8] sm:$0xff]
    %v5392 = vld [vmem:[#allocation6 + $0xd0] sm:$0xff]
    %v5393 = vld [vmem:[#allocation6 + $0xd8] sm:$0xff]
    %v5394 = vld [vmem:[#allocation6 + $0xe0] sm:$0xff]
    %v5395 = vld [vmem:[#allocation6 + $0xe8] sm:$0xff]
    %v5396 = vld [vmem:[#allocation6 + $0xf0] sm:$0xff]
    %v5397 = vld [vmem:[#allocation6 + $0xf8] sm:$0xff]
    %v5430 = vunpack.c.l.b16 %v5366
    %v5431 = vunpack.c.h.b16 %v5366
    %v5432 = vunpack.c.l.b16 %v5367
    %v5433 = vunpack.c.h.b16 %v5367
    %v5434 = vunpack.c.l.b16 %v5368
    %v5435 = vunpack.c.h.b16 %v5368
    %v5436 = vunpack.c.l.b16 %v5369
    %v5437 = vunpack.c.h.b16 %v5369
    %v5438 = vunpack.c.l.b16 %v5370
    %v5439 = vunpack.c.h.b16 %v5370
    %v5440 = vunpack.c.l.b16 %v5371
    %v5441 = vunpack.c.h.b16 %v5371
    %v5442 = vunpack.c.l.b16 %v5372
    %v5443 = vunpack.c.h.b16 %v5372
    %v5444 = vunpack.c.l.b16 %v5373
    %v5445 = vunpack.c.h.b16 %v5373
    %v5446 = vunpack.c.l.b16 %v5374
    %v5447 = vunpack.c.h.b16 %v5374
    %v5448 = vunpack.c.l.b16 %v5375
    %v5449 = vunpack.c.h.b16 %v5375
    %v5450 = vunpack.c.l.b16 %v5376
    %v5451 = vunpack.c.h.b16 %v5376
    %v5452 = vunpack.c.l.b16 %v5377
    %v5453 = vunpack.c.h.b16 %v5377
    %v5454 = vunpack.c.l.b16 %v5378
    %v5455 = vunpack.c.h.b16 %v5378
    %v5456 = vunpack.c.l.b16 %v5379
    %v5457 = vunpack.c.h.b16 %v5379
    %v5458 = vunpack.c.l.b16 %v5380
    %v5459 = vunpack.c.h.b16 %v5380
    %v5460 = vunpack.c.l.b16 %v5381
    %v5461 = vunpack.c.h.b16 %v5381
    %v5462 = vunpack.c.l.b16 %v5382
    %v5463 = vunpack.c.h.b16 %v5382
    %v5464 = vunpack.c.l.b16 %v5383
    %v5465 = vunpack.c.h.b16 %v5383
    %v5466 = vunpack.c.l.b16 %v5384
    %v5467 = vunpack.c.h.b16 %v5384
    %v5468 = vunpack.c.l.b16 %v5385
    %v5469 = vunpack.c.h.b16 %v5385
    %v5470 = vunpack.c.l.b16 %v5386
    %v5471 = vunpack.c.h.b16 %v5386
    %v5472 = vunpack.c.l.b16 %v5387
    %v5473 = vunpack.c.h.b16 %v5387
    %v5474 = vunpack.c.l.b16 %v5388
    %v5475 = vunpack.c.h.b16 %v5388
    %v5476 = vunpack.c.l.b16 %v5389
    %v5477 = vunpack.c.h.b16 %v5389
    %v5478 = vunpack.c.l.b16 %v5390
    %v5479 = vunpack.c.h.b16 %v5390
    %v5480 = vunpack.c.l.b16 %v5391
    %v5481 = vunpack.c.h.b16 %v5391
    %v5482 = vunpack.c.l.b16 %v5392
    %v5483 = vunpack.c.h.b16 %v5392
    %v5484 = vunpack.c.l.b16 %v5393
    %v5485 = vunpack.c.h.b16 %v5393
    %v5486 = vunpack.c.l.b16 %v5394
    %v5487 = vunpack.c.h.b16 %v5394
    %v5488 = vunpack.c.l.b16 %v5395
    %v5489 = vunpack.c.h.b16 %v5395
    %v5490 = vunpack.c.l.b16 %v5396
    %v5491 = vunpack.c.h.b16 %v5396
    %v5492 = vunpack.c.l.b16 %v5397
    %v5493 = vunpack.c.h.b16 %v5397
    %v5494 = vpack.c.b16 %v5434, %v5430
    %v5495 = vpack.c.b16 %v5435, %v5431
    %v5496 = vpack.c.b16 %v5436, %v5432
    %v5497 = vpack.c.b16 %v5437, %v5433
    %v5498 = vpack.c.b16 %v5442, %v5438
    %v5499 = vpack.c.b16 %v5443, %v5439
    %v5500 = vpack.c.b16 %v5444, %v5440
    %v5501 = vpack.c.b16 %v5445, %v5441
    %v5502 = vpack.c.b16 %v5450, %v5446
    %v5503 = vpack.c.b16 %v5451, %v5447
    %v5504 = vpack.c.b16 %v5452, %v5448
    %v5505 = vpack.c.b16 %v5453, %v5449
    %v5506 = vpack.c.b16 %v5458, %v5454
    %v5507 = vpack.c.b16 %v5459, %v5455
    %v5508 = vpack.c.b16 %v5460, %v5456
    %v5509 = vpack.c.b16 %v5461, %v5457
    %v5510 = vpack.c.b16 %v5466, %v5462
    %v5511 = vpack.c.b16 %v5467, %v5463
    %v5512 = vpack.c.b16 %v5468, %v5464
    %v5513 = vpack.c.b16 %v5469, %v5465
    %v5514 = vpack.c.b16 %v5474, %v5470
    %v5515 = vpack.c.b16 %v5475, %v5471
    %v5516 = vpack.c.b16 %v5476, %v5472
    %v5517 = vpack.c.b16 %v5477, %v5473
    %v5518 = vpack.c.b16 %v5482, %v5478
    %v5519 = vpack.c.b16 %v5483, %v5479
    %v5520 = vpack.c.b16 %v5484, %v5480
    %v5521 = vpack.c.b16 %v5485, %v5481
    %v5522 = vpack.c.b16 %v5490, %v5486
    %v5523 = vpack.c.b16 %v5491, %v5487
    %v5524 = vpack.c.b16 %v5492, %v5488
    %v5525 = vpack.c.b16 %v5493, %v5489
    %5558 = vmatprep.subr.bf16.mxu0 %v5495
    %5559 = vmatpush1.bf16.msra.mxu0 %v5494
    %5560 = vmatprep.subr.bf16.mxu0 %v5499
    %5561 = vmatpush1.bf16.msra.mxu0 %v5498
    %5562 = vmatprep.subr.bf16.mxu0 %v5503
    %5563 = vmatpush1.bf16.msra.mxu0 %v5502
    %5564 = vmatprep.subr.bf16.mxu0 %v5507
    %5565 = vmatpush1.bf16.msra.mxu0 %v5506
    %5566 = vmatprep.subr.bf16.mxu0 %v5511
    %5567 = vmatpush1.bf16.msra.mxu0 %v5510
    %5568 = vmatprep.subr.bf16.mxu0 %v5515
    %5569 = vmatpush1.bf16.msra.mxu0 %v5514
    %5570 = vmatprep.subr.bf16.mxu0 %v5519
    %5571 = vmatpush1.bf16.msra.mxu0 %v5518
    %5572 = vmatprep.subr.bf16.mxu0 %v5523
    %5573 = vmatpush1.bf16.msra.mxu0 %v5522
    %5574 = vmatprep.subr.bf16.mxu0 0
    %5575 = vmatpush1.bf16.msra.mxu0 0
    %5576 = vmatprep.subr.bf16.mxu0 0
    %5577 = vmatpush1.bf16.msra.mxu0 0
    %5578 = vmatprep.subr.bf16.mxu0 0
    %5579 = vmatpush1.bf16.msra.mxu0 0
    %5580 = vmatprep.subr.bf16.mxu0 0
    %5581 = vmatpush1.bf16.msra.mxu0 0
    %5582 = vmatprep.subr.bf16.mxu0 0
    %5583 = vmatpush1.bf16.msra.mxu0 0
    %5584 = vmatprep.subr.bf16.mxu0 0
    %5585 = vmatpush1.bf16.msra.mxu0 0
    %5586 = vmatprep.subr.bf16.mxu0 0
    %5587 = vmatpush1.bf16.msra.mxu0 0
    %5588 = vmatprep.subr.bf16.mxu0 0
    %5589 = vmatpush1.bf16.msra.mxu0 0
    %5590 = vmatprep.mubr.bf16.mxu0 0
    %5591 = vmatmul.mubr.bf16.gmra.mrb[0].mxu0 %v5365
    %v5592 = vpop.f32.mrb[0].mxu0
    %v5593 = vadd.f32 0.0, %v5592
    %v5594 = vpop.f32.mrb[0].mxu0
    %v5595 = vadd.f32 0.0, %v5594
    %v5596 = vpop.f32.mrb[0].mxu0
    %v5597 = vpop.f32.mrb[0].mxu0
    %5598 = vdwg.mxu0
    %5599 = vmatprep.subr.bf16.mxu0 %v5497
    %5600 = vmatpush1.bf16.msra.mxu0 %v5496
    %5601 = vmatprep.subr.bf16.mxu0 %v5501
    %5602 = vmatpush1.bf16.msra.mxu0 %v5500
    %5603 = vmatprep.subr.bf16.mxu0 %v5505
    %5604 = vmatpush1.bf16.msra.mxu0 %v5504
    %5605 = vmatprep.subr.bf16.mxu0 %v5509
    %5606 = vmatpush1.bf16.msra.mxu0 %v5508
    %5607 = vmatprep.subr.bf16.mxu0 %v5513
    %5608 = vmatpush1.bf16.msra.mxu0 %v5512
    %5609 = vmatprep.subr.bf16.mxu0 %v5517
    %5610 = vmatpush1.bf16.msra.mxu0 %v5516
    %5611 = vmatprep.subr.bf16.mxu0 %v5521
    %5612 = vmatpush1.bf16.msra.mxu0 %v5520
    %5613 = vmatprep.subr.bf16.mxu0 %v5525
    %5614 = vmatpush1.bf16.msra.mxu0 %v5524
    %5615 = vmatprep.subr.bf16.mxu0 0
    %5616 = vmatpush1.bf16.msra.mxu0 0
    %5617 = vmatprep.subr.bf16.mxu0 0
    %5618 = vmatpush1.bf16.msra.mxu0 0
    %5619 = vmatprep.subr.bf16.mxu0 0
    %5620 = vmatpush1.bf16.msra.mxu0 0
    %5621 = vmatprep.subr.bf16.mxu0 0
    %5622 = vmatpush1.bf16.msra.mxu0 0
    %5623 = vmatprep.subr.bf16.mxu0 0
    %5624 = vmatpush1.bf16.msra.mxu0 0
    %5625 = vmatprep.subr.bf16.mxu0 0
    %5626 = vmatpush1.bf16.msra.mxu0 0
    %5627 = vmatprep.subr.bf16.mxu0 0
    %5628 = vmatpush1.bf16.msra.mxu0 0
    %5629 = vmatprep.subr.bf16.mxu0 0
    %5630 = vmatpush1.bf16.msra.mxu0 0
    %5631 = vmatprep.mubr.bf16.mxu0 0
    %5632 = vmatmul.mubr.bf16.gmra.mrb[0].mxu0 %v5365
    %v5633 = vpop.f32.mrb[0].mxu0
    %v5634 = vadd.f32 0.0, %v5633
    %v5635 = vpop.f32.mrb[0].mxu0
    %v5636 = vadd.f32 0.0, %v5635
    %v5637 = vpop.f32.mrb[0].mxu0
    %v5638 = vpop.f32.mrb[0].mxu0
    %5639 = vdwg.mxu0
    %v5644 = vcombine.low %v5593, %v5595
    %v5645 = vcombine.low %v5634, %v5636
    %v5647 = vunpack.c.l.s4 1966171168
    %v5648 = vunpack.c.0.s8 %v5647
    %v5649 = vlaneseq
    %v5650 = vshrl.u32 %v5649, 7
    %v5651 = vsub.s32 %v5648, %v5650
    %v5652 = vrot.slane %v5644, %v5651
    %v5654 = vunpack.c.l.s4 1966171168
    %v5655 = vunpack.c.0.s8 %v5654
    %v5656 = vlaneseq
    %v5657 = vshrl.u32 %v5656, 7
    %v5658 = vsub.s32 %v5655, %v5657
    %v5659 = vrot.slane %v5645, %v5658
    %v5660 = vcombine.low %v5652, %v5659
    %v5661 = vcombine.high %v5652, %v5659
    %v5663 = vunpack.c.l.s4 1966171168
    %v5664 = vunpack.c.0.s8 %v5663
    %v5665 = vlaneseq
    %v5666 = vshrl.u32 %v5665, 7
    %v5667 = vsub.s32 %v5664, %v5666
    %v5668 = vrot.slane %v5660, %v5667
    %v5670 = vunpack.c.l.s4 1966171168
    %v5671 = vunpack.c.0.s8 %v5670
    %v5672 = vlaneseq
    %v5673 = vshrl.u32 %v5672, 7
    %v5674 = vsub.s32 %v5671, %v5673
    %v5675 = vrot.slane %v5661, %v5674
    %v5678 = vadd.f32 %v5362, %v5668
    %v5679 = vadd.f32 %v5364, %v5675
    %v5680 = vstv %s5360
    %vm5681 = vcmp.lt.s32.totalorder %v5680, %v76
    %v5682 = vxor.u32 %v5678, 2147483648
    %v5683 = vxor.u32 %v5679, 2147483648
    %v5684 = vmul.f32 %v5682, 1.442695
    %v5685 = vpow.pop %v5684
    %v5686 = vmul.f32 %v5683, 1.442695
    %v5687 = vpow.pop %v5686
    %v5688 = vadd.f32 %v5685, 1.0
    %v5689 = vadd.f32 %v5687, 1.0
    %v5690 = vrcp.pop %v5688
    %v5691 = vmul.f32 1.0, %v5690
    %v5692 = vrcp.pop %v5689
    %v5693 = vmul.f32 1.0, %v5692
    %v5696 = vrot.slane %v5678, 1
    %v5697 = vrot.slane %v5679, 1
    %v5700 = vxor.u32 %v5696, 2147483648
    %v5701 = vxor.u32 %v5697, 2147483648
    %v5702 = vmul.f32 %v5700, 1.442695
    %v5703 = vpow.pop %v5702
    %v5704 = vmul.f32 %v5701, 1.442695
    %v5705 = vpow.pop %v5704
    %v5706 = vadd.f32 %v5703, 1.0
    %v5707 = vadd.f32 %v5705, 1.0
    %v5708 = vrcp.pop %v5706
    %v5709 = vmul.f32 1.0, %v5708
    %v5710 = vrcp.pop %v5707
    %v5711 = vmul.f32 1.0, %v5710
    %v5712 = vrot.slane %v5678, 2
    %v5713 = vrot.slane %v5679, 2
    %v5716 = vtanh.pop %v5712
    %v5717 = vtanh.pop %v5713
    %v5718 = vrot.slane %v5678, 3
    %v5719 = vrot.slane %v5679, 3
    %v5722 = vxor.u32 %v5718, 2147483648
    %v5723 = vxor.u32 %v5719, 2147483648
    %v5724 = vmul.f32 %v5722, 1.442695
    %v5725 = vpow.pop %v5724
    %v5726 = vmul.f32 %v5723, 1.442695
    %v5727 = vpow.pop %v5726
    %v5728 = vadd.f32 %v5725, 1.0
    %v5729 = vadd.f32 %v5727, 1.0
    %v5730 = vrcp.pop %v5728
    %v5731 = vmul.f32 1.0, %v5730
    %v5732 = vrcp.pop %v5729
    %v5733 = vmul.f32 1.0, %v5732
    %v5736 = vunpack.c.l.s4 1966171168
    %v5737 = vunpack.c.0.s8 %v5736
    %v5738 = vlaneseq
    %v5739 = vshrl.u32 %v5738, 7
    %v5740 = vsub.s32 %v5737, %v5739
    %v5741 = vrot.slane %v4851, %v5740
    %v5742 = vcombine.high %v5741, %v5741
    %v5744 = vunpack.c.l.s4 1966171168
    %v5745 = vunpack.c.0.s8 %v5744
    %v5746 = vlaneseq
    %v5747 = vshrl.u32 %v5746, 7
    %v5748 = vsub.s32 %v5745, %v5747
    %v5749 = vrot.slane %v5741, %v5748
    %v5751 = vunpack.c.l.s4 1966171168
    %v5752 = vunpack.c.0.s8 %v5751
    %v5753 = vlaneseq
    %v5754 = vshrl.u32 %v5753, 7
    %v5755 = vsub.s32 %v5752, %v5754
    %v5756 = vrot.slane %v5742, %v5755
    %v5759 = vmul.f32 %v5709, %v5749
    %v5760 = vmul.f32 %v5711, %v5756
    %v5761 = vmul.f32 %v5691, %v5716
    %v5762 = vmul.f32 %v5693, %v5717
    %v5763 = vadd.f32 %v5759, %v5761
    %v5764 = vadd.f32 %v5760, %v5762
    %v5765 = vtanh.pop %v5763
    %v5766 = vtanh.pop %v5764
    %v5767 = vmul.f32 %v5731, %v5765
    %v5768 = vmul.f32 %v5733, %v5766
    %v5769 = vsel %vm5681, 1, 0
    %5770 = vset.pattern.permute.xlu0 0
    %5771 = vperm.xlu0 %5770, %v5769
    %v5772 = vpop.permute.xlu0 %5771
    %vm5773 = vcmp.eq.s32.totalorder %v5772, 1
    %v5776 = vcombine.low %v5767, %v5768
    %v5778 = vunpack.c.l.s4 1966171168
    %v5779 = vunpack.c.0.s8 %v5778
    %v5780 = vlaneseq
    %v5781 = vshrl.u32 %v5780, 7
    %v5782 = vsub.s32 %v5779, %v5781
    %v5783 = vrot.slane %v5776, %v5782
    %v5785 = vunpack.c.l.s4 1966171168
    %v5786 = vunpack.c.0.s8 %v5785
    %v5787 = vlaneseq
    %v5788 = vshrl.u32 %v5787, 7
    %v5789 = vsub.s32 %v5786, %v5788
    %v5790 = vrot.slane %v5783, %v5789
    %v5792 = vsel %vm5773, %v5790, %v4832
    %v5795 = vcombine.low %v5763, %v5764
    %v5797 = vunpack.c.l.s4 1966171168
    %v5798 = vunpack.c.0.s8 %v5797
    %v5799 = vlaneseq
    %v5800 = vshrl.u32 %v5799, 7
    %v5801 = vsub.s32 %v5798, %v5800
    %v5802 = vrot.slane %v5795, %v5801
    %v5804 = vunpack.c.l.s4 1966171168
    %v5805 = vunpack.c.0.s8 %v5804
    %v5806 = vlaneseq
    %v5807 = vshrl.u32 %v5806, 7
    %v5808 = vsub.s32 %v5805, %v5807
    %v5809 = vrot.slane %v5802, %v5808
    %v5811 = vsel %vm5773, %v5809, %v4851
    %v5812 = vsel %vm5773, %v5790, 0.0
    %v5815 = vunpack.c.l.s4 1966171168
    %v5816 = vunpack.c.0.s8 %v5815
    %v5817 = vlaneseq
    %v5818 = vshrl.u32 %v5817, 7
    %v5819 = vsub.s32 %v5816, %v5818
    %v5820 = vrot.slane %v5812, %v5819
    %v5821 = vcombine.high %v5820, %v5820
    %v5823 = vunpack.c.l.s4 1966171168
    %v5824 = vunpack.c.0.s8 %v5823
    %v5825 = vlaneseq
    %v5826 = vshrl.u32 %v5825, 7
    %v5827 = vsub.s32 %v5824, %v5826
    %v5828 = vrot.slane %v5820, %v5827
    %v5830 = vunpack.c.l.s4 1966171168
    %v5831 = vunpack.c.0.s8 %v5830
    %v5832 = vlaneseq
    %v5833 = vshrl.u32 %v5832, 7
    %v5834 = vsub.s32 %v5831, %v5833
    %v5835 = vrot.slane %v5821, %v5834
    %5838 = vst [vmem:[%s65 + $0x2] sm:$0x1] %v5828
    %5839 = vst [vmem:[%s65 + $0xa] sm:$0x1] %v5835
    %s5840 = sadd.s32 %s77, 6
    %s5841 = scalar_lea.vmem %s1, 6
    %v5842 = vld [vmem:[%s5841] ss:$8 sm:$0xf]
    %s5843 = scalar_lea.vmem %s1, 70
    %v5844 = vld [vmem:[%s5843] ss:$8 sm:$0xf]
    %v5845 = vpack.c.bf16 %v5312, %v5312
    %v5846 = vld [vmem:[%s3] sm:$0xff]
    %v5847 = vld [vmem:[%s3 + $0x8] sm:$0xff]
    %v5848 = vld [vmem:[%s3 + $0x10] sm:$0xff]
    %v5849 = vld [vmem:[%s3 + $0x18] sm:$0xff]
    %v5850 = vld [vmem:[%s3 + $0x20] sm:$0xff]
    %v5851 = vld [vmem:[%s3 + $0x28] sm:$0xff]
    %v5852 = vld [vmem:[%s3 + $0x30] sm:$0xff]
    %v5853 = vld [vmem:[%s3 + $0x38] sm:$0xff]
    %v5854 = vld [vmem:[%s3 + $0x40] sm:$0xff]
    %v5855 = vld [vmem:[%s3 + $0x48] sm:$0xff]
    %v5856 = vld [vmem:[%s3 + $0x50] sm:$0xff]
    %v5857 = vld [vmem:[%s3 + $0x58] sm:$0xff]
    %v5858 = vld [vmem:[%s3 + $0x60] sm:$0xff]
    %v5859 = vld [vmem:[%s3 + $0x68] sm:$0xff]
    %v5860 = vld [vmem:[%s3 + $0x70] sm:$0xff]
    %v5861 = vld [vmem:[%s3 + $0x78] sm:$0xff]
    %v5862 = vld [vmem:[%s3 + $0x80] sm:$0xff]
    %v5863 = vld [vmem:[%s3 + $0x88] sm:$0xff]
    %v5864 = vld [vmem:[%s3 + $0x90] sm:$0xff]
    %v5865 = vld [vmem:[%s3 + $0x98] sm:$0xff]
    %v5866 = vld [vmem:[%s3 + $0xa0] sm:$0xff]
    %v5867 = vld [vmem:[%s3 + $0xa8] sm:$0xff]
    %v5868 = vld [vmem:[%s3 + $0xb0] sm:$0xff]
    %v5869 = vld [vmem:[%s3 + $0xb8] sm:$0xff]
    %v5870 = vld [vmem:[%s3 + $0xc0] sm:$0xff]
    %v5871 = vld [vmem:[%s3 + $0xc8] sm:$0xff]
    %v5872 = vld [vmem:[%s3 + $0xd0] sm:$0xff]
    %v5873 = vld [vmem:[%s3 + $0xd8] sm:$0xff]
    %v5874 = vld [vmem:[%s3 + $0xe0] sm:$0xff]
    %v5875 = vld [vmem:[%s3 + $0xe8] sm:$0xff]
    %v5876 = vld [vmem:[%s3 + $0xf0] sm:$0xff]
    %v5877 = vld [vmem:[%s3 + $0xf8] sm:$0xff]
    %v5910 = vunpack.c.l.b16 %v5846
    %v5911 = vunpack.c.h.b16 %v5846
    %v5912 = vunpack.c.l.b16 %v5847
    %v5913 = vunpack.c.h.b16 %v5847
    %v5914 = vunpack.c.l.b16 %v5848
    %v5915 = vunpack.c.h.b16 %v5848
    %v5916 = vunpack.c.l.b16 %v5849
    %v5917 = vunpack.c.h.b16 %v5849
    %v5918 = vunpack.c.l.b16 %v5850
    %v5919 = vunpack.c.h.b16 %v5850
    %v5920 = vunpack.c.l.b16 %v5851
    %v5921 = vunpack.c.h.b16 %v5851
    %v5922 = vunpack.c.l.b16 %v5852
    %v5923 = vunpack.c.h.b16 %v5852
    %v5924 = vunpack.c.l.b16 %v5853
    %v5925 = vunpack.c.h.b16 %v5853
    %v5926 = vunpack.c.l.b16 %v5854
    %v5927 = vunpack.c.h.b16 %v5854
    %v5928 = vunpack.c.l.b16 %v5855
    %v5929 = vunpack.c.h.b16 %v5855
    %v5930 = vunpack.c.l.b16 %v5856
    %v5931 = vunpack.c.h.b16 %v5856
    %v5932 = vunpack.c.l.b16 %v5857
    %v5933 = vunpack.c.h.b16 %v5857
    %v5934 = vunpack.c.l.b16 %v5858
    %v5935 = vunpack.c.h.b16 %v5858
    %v5936 = vunpack.c.l.b16 %v5859
    %v5937 = vunpack.c.h.b16 %v5859
    %v5938 = vunpack.c.l.b16 %v5860
    %v5939 = vunpack.c.h.b16 %v5860
    %v5940 = vunpack.c.l.b16 %v5861
    %v5941 = vunpack.c.h.b16 %v5861
    %v5942 = vunpack.c.l.b16 %v5862
    %v5943 = vunpack.c.h.b16 %v5862
    %v5944 = vunpack.c.l.b16 %v5863
    %v5945 = vunpack.c.h.b16 %v5863
    %v5946 = vunpack.c.l.b16 %v5864
    %v5947 = vunpack.c.h.b16 %v5864
    %v5948 = vunpack.c.l.b16 %v5865
    %v5949 = vunpack.c.h.b16 %v5865
    %v5950 = vunpack.c.l.b16 %v5866
    %v5951 = vunpack.c.h.b16 %v5866
    %v5952 = vunpack.c.l.b16 %v5867
    %v5953 = vunpack.c.h.b16 %v5867
    %v5954 = vunpack.c.l.b16 %v5868
    %v5955 = vunpack.c.h.b16 %v5868
    %v5956 = vunpack.c.l.b16 %v5869
    %v5957 = vunpack.c.h.b16 %v5869
    %v5958 = vunpack.c.l.b16 %v5870
    %v5959 = vunpack.c.h.b16 %v5870
    %v5960 = vunpack.c.l.b16 %v5871
    %v5961 = vunpack.c.h.b16 %v5871
    %v5962 = vunpack.c.l.b16 %v5872
    %v5963 = vunpack.c.h.b16 %v5872
    %v5964 = vunpack.c.l.b16 %v5873
    %v5965 = vunpack.c.h.b16 %v5873
    %v5966 = vunpack.c.l.b16 %v5874
    %v5967 = vunpack.c.h.b16 %v5874
    %v5968 = vunpack.c.l.b16 %v5875
    %v5969 = vunpack.c.h.b16 %v5875
    %v5970 = vunpack.c.l.b16 %v5876
    %v5971 = vunpack.c.h.b16 %v5876
    %v5972 = vunpack.c.l.b16 %v5877
    %v5973 = vunpack.c.h.b16 %v5877
    %v5974 = vpack.c.b16 %v5914, %v5910
    %v5975 = vpack.c.b16 %v5915, %v5911
    %v5976 = vpack.c.b16 %v5916, %v5912
    %v5977 = vpack.c.b16 %v5917, %v5913
    %v5978 = vpack.c.b16 %v5922, %v5918
    %v5979 = vpack.c.b16 %v5923, %v5919
    %v5980 = vpack.c.b16 %v5924, %v5920
    %v5981 = vpack.c.b16 %v5925, %v5921
    %v5982 = vpack.c.b16 %v5930, %v5926
    %v5983 = vpack.c.b16 %v5931, %v5927
    %v5984 = vpack.c.b16 %v5932, %v5928
    %v5985 = vpack.c.b16 %v5933, %v5929
    %v5986 = vpack.c.b16 %v5938, %v5934
    %v5987 = vpack.c.b16 %v5939, %v5935
    %v5988 = vpack.c.b16 %v5940, %v5936
    %v5989 = vpack.c.b16 %v5941, %v5937
    %v5990 = vpack.c.b16 %v5946, %v5942
    %v5991 = vpack.c.b16 %v5947, %v5943
    %v5992 = vpack.c.b16 %v5948, %v5944
    %v5993 = vpack.c.b16 %v5949, %v5945
    %v5994 = vpack.c.b16 %v5954, %v5950
    %v5995 = vpack.c.b16 %v5955, %v5951
    %v5996 = vpack.c.b16 %v5956, %v5952
    %v5997 = vpack.c.b16 %v5957, %v5953
    %v5998 = vpack.c.b16 %v5962, %v5958
    %v5999 = vpack.c.b16 %v5963, %v5959
    %v6000 = vpack.c.b16 %v5964, %v5960
    %v6001 = vpack.c.b16 %v5965, %v5961
    %v6002 = vpack.c.b16 %v5970, %v5966
    %v6003 = vpack.c.b16 %v5971, %v5967
    %v6004 = vpack.c.b16 %v5972, %v5968
    %v6005 = vpack.c.b16 %v5973, %v5969
    %6038 = vmatprep.subr.bf16.mxu0 %v5975
    %6039 = vmatpush1.bf16.msra.mxu0 %v5974
    %6040 = vmatprep.subr.bf16.mxu0 %v5979
    %6041 = vmatpush1.bf16.msra.mxu0 %v5978
    %6042 = vmatprep.subr.bf16.mxu0 %v5983
    %6043 = vmatpush1.bf16.msra.mxu0 %v5982
    %6044 = vmatprep.subr.bf16.mxu0 %v5987
    %6045 = vmatpush1.bf16.msra.mxu0 %v5986
    %6046 = vmatprep.subr.bf16.mxu0 %v5991
    %6047 = vmatpush1.bf16.msra.mxu0 %v5990
    %6048 = vmatprep.subr.bf16.mxu0 %v5995
    %6049 = vmatpush1.bf16.msra.mxu0 %v5994
    %6050 = vmatprep.subr.bf16.mxu0 %v5999
    %6051 = vmatpush1.bf16.msra.mxu0 %v5998
    %6052 = vmatprep.subr.bf16.mxu0 %v6003
    %6053 = vmatpush1.bf16.msra.mxu0 %v6002
    %6054 = vmatprep.subr.bf16.mxu0 0
    %6055 = vmatpush1.bf16.msra.mxu0 0
    %6056 = vmatprep.subr.bf16.mxu0 0
    %6057 = vmatpush1.bf16.msra.mxu0 0
    %6058 = vmatprep.subr.bf16.mxu0 0
    %6059 = vmatpush1.bf16.msra.mxu0 0
    %6060 = vmatprep.subr.bf16.mxu0 0
    %6061 = vmatpush1.bf16.msra.mxu0 0
    %6062 = vmatprep.subr.bf16.mxu0 0
    %6063 = vmatpush1.bf16.msra.mxu0 0
    %6064 = vmatprep.subr.bf16.mxu0 0
    %6065 = vmatpush1.bf16.msra.mxu0 0
    %6066 = vmatprep.subr.bf16.mxu0 0
    %6067 = vmatpush1.bf16.msra.mxu0 0
    %6068 = vmatprep.subr.bf16.mxu0 0
    %6069 = vmatpush1.bf16.msra.mxu0 0
    %6070 = vmatprep.mubr.bf16.mxu0 0
    %6071 = vmatmul.mubr.bf16.gmra.mrb[0].mxu0 %v5845
    %v6072 = vpop.f32.mrb[0].mxu0
    %v6073 = vadd.f32 0.0, %v6072
    %v6074 = vpop.f32.mrb[0].mxu0
    %v6075 = vadd.f32 0.0, %v6074
    %v6076 = vpop.f32.mrb[0].mxu0
    %v6077 = vpop.f32.mrb[0].mxu0
    %6078 = vdwg.mxu0
    %6079 = vmatprep.subr.bf16.mxu0 %v5977
    %6080 = vmatpush1.bf16.msra.mxu0 %v5976
    %6081 = vmatprep.subr.bf16.mxu0 %v5981
    %6082 = vmatpush1.bf16.msra.mxu0 %v5980
    %6083 = vmatprep.subr.bf16.mxu0 %v5985
    %6084 = vmatpush1.bf16.msra.mxu0 %v5984
    %6085 = vmatprep.subr.bf16.mxu0 %v5989
    %6086 = vmatpush1.bf16.msra.mxu0 %v5988
    %6087 = vmatprep.subr.bf16.mxu0 %v5993
    %6088 = vmatpush1.bf16.msra.mxu0 %v5992
    %6089 = vmatprep.subr.bf16.mxu0 %v5997
    %6090 = vmatpush1.bf16.msra.mxu0 %v5996
    %6091 = vmatprep.subr.bf16.mxu0 %v6001
    %6092 = vmatpush1.bf16.msra.mxu0 %v6000
    %6093 = vmatprep.subr.bf16.mxu0 %v6005
    %6094 = vmatpush1.bf16.msra.mxu0 %v6004
    %6095 = vmatprep.subr.bf16.mxu0 0
    %6096 = vmatpush1.bf16.msra.mxu0 0
    %6097 = vmatprep.subr.bf16.mxu0 0
    %6098 = vmatpush1.bf16.msra.mxu0 0
    %6099 = vmatprep.subr.bf16.mxu0 0
    %6100 = vmatpush1.bf16.msra.mxu0 0
    %6101 = vmatprep.subr.bf16.mxu0 0
    %6102 = vmatpush1.bf16.msra.mxu0 0
    %6103 = vmatprep.subr.bf16.mxu0 0
    %6104 = vmatpush1.bf16.msra.mxu0 0
    %6105 = vmatprep.subr.bf16.mxu0 0
    %6106 = vmatpush1.bf16.msra.mxu0 0
    %6107 = vmatprep.subr.bf16.mxu0 0
    %6108 = vmatpush1.bf16.msra.mxu0 0
    %6109 = vmatprep.subr.bf16.mxu0 0
    %6110 = vmatpush1.bf16.msra.mxu0 0
    %6111 = vmatprep.mubr.bf16.mxu0 0
    %6112 = vmatmul.mubr.bf16.gmra.mrb[0].mxu0 %v5845
    %v6113 = vpop.f32.mrb[0].mxu0
    %v6114 = vadd.f32 0.0, %v6113
    %v6115 = vpop.f32.mrb[0].mxu0
    %v6116 = vadd.f32 0.0, %v6115
    %v6117 = vpop.f32.mrb[0].mxu0
    %v6118 = vpop.f32.mrb[0].mxu0
    %6119 = vdwg.mxu0
    %v6124 = vcombine.low %v6073, %v6075
    %v6125 = vcombine.low %v6114, %v6116
    %v6127 = vunpack.c.l.s4 1966171168
    %v6128 = vunpack.c.0.s8 %v6127
    %v6129 = vlaneseq
    %v6130 = vshrl.u32 %v6129, 7
    %v6131 = vsub.s32 %v6128, %v6130
    %v6132 = vrot.slane %v6124, %v6131
    %v6134 = vunpack.c.l.s4 1966171168
    %v6135 = vunpack.c.0.s8 %v6134
    %v6136 = vlaneseq
    %v6137 = vshrl.u32 %v6136, 7
    %v6138 = vsub.s32 %v6135, %v6137
    %v6139 = vrot.slane %v6125, %v6138
    %v6140 = vcombine.low %v6132, %v6139
    %v6141 = vcombine.high %v6132, %v6139
    %v6143 = vunpack.c.l.s4 1966171168
    %v6144 = vunpack.c.0.s8 %v6143
    %v6145 = vlaneseq
    %v6146 = vshrl.u32 %v6145, 7
    %v6147 = vsub.s32 %v6144, %v6146
    %v6148 = vrot.slane %v6140, %v6147
    %v6150 = vunpack.c.l.s4 1966171168
    %v6151 = vunpack.c.0.s8 %v6150
    %v6152 = vlaneseq
    %v6153 = vshrl.u32 %v6152, 7
    %v6154 = vsub.s32 %v6151, %v6153
    %v6155 = vrot.slane %v6141, %v6154
    %v6158 = vadd.f32 %v5842, %v6148
    %v6159 = vadd.f32 %v5844, %v6155
    %v6160 = vstv %s5840
    %vm6161 = vcmp.lt.s32.totalorder %v6160, %v76
    %v6162 = vxor.u32 %v6158, 2147483648
    %v6163 = vxor.u32 %v6159, 2147483648
    %v6164 = vmul.f32 %v6162, 1.442695
    %v6165 = vpow.pop %v6164
    %v6166 = vmul.f32 %v6163, 1.442695
    %v6167 = vpow.pop %v6166
    %v6168 = vadd.f32 %v6165, 1.0
    %v6169 = vadd.f32 %v6167, 1.0
    %v6170 = vrcp.pop %v6168
    %v6171 = vmul.f32 1.0, %v6170
    %v6172 = vrcp.pop %v6169
    %v6173 = vmul.f32 1.0, %v6172
    %v6176 = vrot.slane %v6158, 1
    %v6177 = vrot.slane %v6159, 1
    %v6180 = vxor.u32 %v6176, 2147483648
    %v6181 = vxor.u32 %v6177, 2147483648
    %v6182 = vmul.f32 %v6180, 1.442695
    %v6183 = vpow.pop %v6182
    %v6184 = vmul.f32 %v6181, 1.442695
    %v6185 = vpow.pop %v6184
    %v6186 = vadd.f32 %v6183, 1.0
    %v6187 = vadd.f32 %v6185, 1.0
    %v6188 = vrcp.pop %v6186
    %v6189 = vmul.f32 1.0, %v6188
    %v6190 = vrcp.pop %v6187
    %v6191 = vmul.f32 1.0, %v6190
    %v6192 = vrot.slane %v6158, 2
    %v6193 = vrot.slane %v6159, 2
    %v6196 = vtanh.pop %v6192
    %v6197 = vtanh.pop %v6193
    %v6198 = vrot.slane %v6158, 3
    %v6199 = vrot.slane %v6159, 3
    %v6202 = vxor.u32 %v6198, 2147483648
    %v6203 = vxor.u32 %v6199, 2147483648
    %v6204 = vmul.f32 %v6202, 1.442695
    %v6205 = vpow.pop %v6204
    %v6206 = vmul.f32 %v6203, 1.442695
    %v6207 = vpow.pop %v6206
    %v6208 = vadd.f32 %v6205, 1.0
    %v6209 = vadd.f32 %v6207, 1.0
    %v6210 = vrcp.pop %v6208
    %v6211 = vmul.f32 1.0, %v6210
    %v6212 = vrcp.pop %v6209
    %v6213 = vmul.f32 1.0, %v6212
    %v6216 = vunpack.c.l.s4 1966171168
    %v6217 = vunpack.c.0.s8 %v6216
    %v6218 = vlaneseq
    %v6219 = vshrl.u32 %v6218, 7
    %v6220 = vsub.s32 %v6217, %v6219
    %v6221 = vrot.slane %v5331, %v6220
    %v6222 = vcombine.high %v6221, %v6221
    %v6224 = vunpack.c.l.s4 1966171168
    %v6225 = vunpack.c.0.s8 %v6224
    %v6226 = vlaneseq
    %v6227 = vshrl.u32 %v6226, 7
    %v6228 = vsub.s32 %v6225, %v6227
    %v6229 = vrot.slane %v6221, %v6228
    %v6231 = vunpack.c.l.s4 1966171168
    %v6232 = vunpack.c.0.s8 %v6231
    %v6233 = vlaneseq
    %v6234 = vshrl.u32 %v6233, 7
    %v6235 = vsub.s32 %v6232, %v6234
    %v6236 = vrot.slane %v6222, %v6235
    %v6239 = vmul.f32 %v6189, %v6229
    %v6240 = vmul.f32 %v6191, %v6236
    %v6241 = vmul.f32 %v6171, %v6196
    %v6242 = vmul.f32 %v6173, %v6197
    %v6243 = vadd.f32 %v6239, %v6241
    %v6244 = vadd.f32 %v6240, %v6242
    %v6245 = vtanh.pop %v6243
    %v6246 = vtanh.pop %v6244
    %v6247 = vmul.f32 %v6211, %v6245
    %v6248 = vmul.f32 %v6213, %v6246
    %v6249 = vsel %vm6161, 1, 0
    %6250 = vset.pattern.permute.xlu0 0
    %6251 = vperm.xlu0 %6250, %v6249
    %v6252 = vpop.permute.xlu0 %6251
    %vm6253 = vcmp.eq.s32.totalorder %v6252, 1
    %v6256 = vcombine.low %v6247, %v6248
    %v6258 = vunpack.c.l.s4 1966171168
    %v6259 = vunpack.c.0.s8 %v6258
    %v6260 = vlaneseq
    %v6261 = vshrl.u32 %v6260, 7
    %v6262 = vsub.s32 %v6259, %v6261
    %v6263 = vrot.slane %v6256, %v6262
    %v6265 = vunpack.c.l.s4 1966171168
    %v6266 = vunpack.c.0.s8 %v6265
    %v6267 = vlaneseq
    %v6268 = vshrl.u32 %v6267, 7
    %v6269 = vsub.s32 %v6266, %v6268
    %v6270 = vrot.slane %v6263, %v6269
    %v6272 = vsel %vm6253, %v6270, %v5312
    %v6275 = vcombine.low %v6243, %v6244
    %v6277 = vunpack.c.l.s4 1966171168
    %v6278 = vunpack.c.0.s8 %v6277
    %v6279 = vlaneseq
    %v6280 = vshrl.u32 %v6279, 7
    %v6281 = vsub.s32 %v6278, %v6280
    %v6282 = vrot.slane %v6275, %v6281
    %v6284 = vunpack.c.l.s4 1966171168
    %v6285 = vunpack.c.0.s8 %v6284
    %v6286 = vlaneseq
    %v6287 = vshrl.u32 %v6286, 7
    %v6288 = vsub.s32 %v6285, %v6287
    %v6289 = vrot.slane %v6282, %v6288
    %v6291 = vsel %vm6253, %v6289, %v5331
    %v6292 = vsel %vm6253, %v6270, 0.0
    %v6295 = vunpack.c.l.s4 1966171168
    %v6296 = vunpack.c.0.s8 %v6295
    %v6297 = vlaneseq
    %v6298 = vshrl.u32 %v6297, 7
    %v6299 = vsub.s32 %v6296, %v6298
    %v6300 = vrot.slane %v6292, %v6299
    %v6301 = vcombine.high %v6300, %v6300
    %v6303 = vunpack.c.l.s4 1966171168
    %v6304 = vunpack.c.0.s8 %v6303
    %v6305 = vlaneseq
    %v6306 = vshrl.u32 %v6305, 7
    %v6307 = vsub.s32 %v6304, %v6306
    %v6308 = vrot.slane %v6300, %v6307
    %v6310 = vunpack.c.l.s4 1966171168
    %v6311 = vunpack.c.0.s8 %v6310
    %v6312 = vlaneseq
    %v6313 = vshrl.u32 %v6312, 7
    %v6314 = vsub.s32 %v6311, %v6313
    %v6315 = vrot.slane %v6301, %v6314
    %6318 = vst [vmem:[%s5 + $0x6] sm:$0x1] %v6308
    %6319 = vst [vmem:[%s5 + $0xe] sm:$0x1] %v6315
    %s6320 = ssub.s32 1, %s77
    %s6321 = scalar_lea.vmem %s59, 33
    %v6322 = vld [vmem:[%s6321] ss:$8 sm:$0xf]
    %s6323 = scalar_lea.vmem %s59, 97
    %v6324 = vld [vmem:[%s6323] ss:$8 sm:$0xf]
    %v6325 = vpack.c.bf16 %v5792, %v5792
    %v6326 = vld [vmem:[#allocation6] sm:$0xff]
    %v6327 = vld [vmem:[#allocation6 + $0x8] sm:$0xff]
    %v6328 = vld [vmem:[#allocation6 + $0x10] sm:$0xff]
    %v6329 = vld [vmem:[#allocation6 + $0x18] sm:$0xff]
    %v6330 = vld [vmem:[#allocation6 + $0x20] sm:$0xff]
    %v6331 = vld [vmem:[#allocation6 + $0x28] sm:$0xff]
    %v6332 = vld [vmem:[#allocation6 + $0x30] sm:$0xff]
    %v6333 = vld [vmem:[#allocation6 + $0x38] sm:$0xff]
    %v6334 = vld [vmem:[#allocation6 + $0x40] sm:$0xff]
    %v6335 = vld [vmem:[#allocation6 + $0x48] sm:$0xff]
    %v6336 = vld [vmem:[#allocation6 + $0x50] sm:$0xff]
    %v6337 = vld [vmem:[#allocation6 + $0x58] sm:$0xff]
    %v6338 = vld [vmem:[#allocation6 + $0x60] sm:$0xff]
    %v6339 = vld [vmem:[#allocation6 + $0x68] sm:$0xff]
    %v6340 = vld [vmem:[#allocation6 + $0x70] sm:$0xff]
    %v6341 = vld [vmem:[#allocation6 + $0x78] sm:$0xff]
    %v6342 = vld [vmem:[#allocation6 + $0x80] sm:$0xff]
    %v6343 = vld [vmem:[#allocation6 + $0x88] sm:$0xff]
    %v6344 = vld [vmem:[#allocation6 + $0x90] sm:$0xff]
    %v6345 = vld [vmem:[#allocation6 + $0x98] sm:$0xff]
    %v6346 = vld [vmem:[#allocation6 + $0xa0] sm:$0xff]
    %v6347 = vld [vmem:[#allocation6 + $0xa8] sm:$0xff]
    %v6348 = vld [vmem:[#allocation6 + $0xb0] sm:$0xff]
    %v6349 = vld [vmem:[#allocation6 + $0xb8] sm:$0xff]
    %v6350 = vld [vmem:[#allocation6 + $0xc0] sm:$0xff]
    %v6351 = vld [vmem:[#allocation6 + $0xc8] sm:$0xff]
    %v6352 = vld [vmem:[#allocation6 + $0xd0] sm:$0xff]
    %v6353 = vld [vmem:[#allocation6 + $0xd8] sm:$0xff]
    %v6354 = vld [vmem:[#allocation6 + $0xe0] sm:$0xff]
    %v6355 = vld [vmem:[#allocation6 + $0xe8] sm:$0xff]
    %v6356 = vld [vmem:[#allocation6 + $0xf0] sm:$0xff]
    %v6357 = vld [vmem:[#allocation6 + $0xf8] sm:$0xff]
    %v6390 = vunpack.c.l.b16 %v6326
    %v6391 = vunpack.c.h.b16 %v6326
    %v6392 = vunpack.c.l.b16 %v6327
    %v6393 = vunpack.c.h.b16 %v6327
    %v6394 = vunpack.c.l.b16 %v6328
    %v6395 = vunpack.c.h.b16 %v6328
    %v6396 = vunpack.c.l.b16 %v6329
    %v6397 = vunpack.c.h.b16 %v6329
    %v6398 = vunpack.c.l.b16 %v6330
    %v6399 = vunpack.c.h.b16 %v6330
    %v6400 = vunpack.c.l.b16 %v6331
    %v6401 = vunpack.c.h.b16 %v6331
    %v6402 = vunpack.c.l.b16 %v6332
    %v6403 = vunpack.c.h.b16 %v6332
    %v6404 = vunpack.c.l.b16 %v6333
    %v6405 = vunpack.c.h.b16 %v6333
    %v6406 = vunpack.c.l.b16 %v6334
    %v6407 = vunpack.c.h.b16 %v6334
    %v6408 = vunpack.c.l.b16 %v6335
    %v6409 = vunpack.c.h.b16 %v6335
    %v6410 = vunpack.c.l.b16 %v6336
    %v6411 = vunpack.c.h.b16 %v6336
    %v6412 = vunpack.c.l.b16 %v6337
    %v6413 = vunpack.c.h.b16 %v6337
    %v6414 = vunpack.c.l.b16 %v6338
    %v6415 = vunpack.c.h.b16 %v6338
    %v6416 = vunpack.c.l.b16 %v6339
    %v6417 = vunpack.c.h.b16 %v6339
    %v6418 = vunpack.c.l.b16 %v6340
    %v6419 = vunpack.c.h.b16 %v6340
    %v6420 = vunpack.c.l.b16 %v6341
    %v6421 = vunpack.c.h.b16 %v6341
    %v6422 = vunpack.c.l.b16 %v6342
    %v6423 = vunpack.c.h.b16 %v6342
    %v6424 = vunpack.c.l.b16 %v6343
    %v6425 = vunpack.c.h.b16 %v6343
    %v6426 = vunpack.c.l.b16 %v6344
    %v6427 = vunpack.c.h.b16 %v6344
    %v6428 = vunpack.c.l.b16 %v6345
    %v6429 = vunpack.c.h.b16 %v6345
    %v6430 = vunpack.c.l.b16 %v6346
    %v6431 = vunpack.c.h.b16 %v6346
    %v6432 = vunpack.c.l.b16 %v6347
    %v6433 = vunpack.c.h.b16 %v6347
    %v6434 = vunpack.c.l.b16 %v6348
    %v6435 = vunpack.c.h.b16 %v6348
    %v6436 = vunpack.c.l.b16 %v6349
    %v6437 = vunpack.c.h.b16 %v6349
    %v6438 = vunpack.c.l.b16 %v6350
    %v6439 = vunpack.c.h.b16 %v6350
    %v6440 = vunpack.c.l.b16 %v6351
    %v6441 = vunpack.c.h.b16 %v6351
    %v6442 = vunpack.c.l.b16 %v6352
    %v6443 = vunpack.c.h.b16 %v6352
    %v6444 = vunpack.c.l.b16 %v6353
    %v6445 = vunpack.c.h.b16 %v6353
    %v6446 = vunpack.c.l.b16 %v6354
    %v6447 = vunpack.c.h.b16 %v6354
    %v6448 = vunpack.c.l.b16 %v6355
    %v6449 = vunpack.c.h.b16 %v6355
    %v6450 = vunpack.c.l.b16 %v6356
    %v6451 = vunpack.c.h.b16 %v6356
    %v6452 = vunpack.c.l.b16 %v6357
    %v6453 = vunpack.c.h.b16 %v6357
    %v6454 = vpack.c.b16 %v6394, %v6390
    %v6455 = vpack.c.b16 %v6395, %v6391
    %v6456 = vpack.c.b16 %v6396, %v6392
    %v6457 = vpack.c.b16 %v6397, %v6393
    %v6458 = vpack.c.b16 %v6402, %v6398
    %v6459 = vpack.c.b16 %v6403, %v6399
    %v6460 = vpack.c.b16 %v6404, %v6400
    %v6461 = vpack.c.b16 %v6405, %v6401
    %v6462 = vpack.c.b16 %v6410, %v6406
    %v6463 = vpack.c.b16 %v6411, %v6407
    %v6464 = vpack.c.b16 %v6412, %v6408
    %v6465 = vpack.c.b16 %v6413, %v6409
    %v6466 = vpack.c.b16 %v6418, %v6414
    %v6467 = vpack.c.b16 %v6419, %v6415
    %v6468 = vpack.c.b16 %v6420, %v6416
    %v6469 = vpack.c.b16 %v6421, %v6417
    %v6470 = vpack.c.b16 %v6426, %v6422
    %v6471 = vpack.c.b16 %v6427, %v6423
    %v6472 = vpack.c.b16 %v6428, %v6424
    %v6473 = vpack.c.b16 %v6429, %v6425
    %v6474 = vpack.c.b16 %v6434, %v6430
    %v6475 = vpack.c.b16 %v6435, %v6431
    %v6476 = vpack.c.b16 %v6436, %v6432
    %v6477 = vpack.c.b16 %v6437, %v6433
    %v6478 = vpack.c.b16 %v6442, %v6438
    %v6479 = vpack.c.b16 %v6443, %v6439
    %v6480 = vpack.c.b16 %v6444, %v6440
    %v6481 = vpack.c.b16 %v6445, %v6441
    %v6482 = vpack.c.b16 %v6450, %v6446
    %v6483 = vpack.c.b16 %v6451, %v6447
    %v6484 = vpack.c.b16 %v6452, %v6448
    %v6485 = vpack.c.b16 %v6453, %v6449
    %6518 = vmatprep.subr.bf16.mxu0 %v6455
    %6519 = vmatpush1.bf16.msra.mxu0 %v6454
    %6520 = vmatprep.subr.bf16.mxu0 %v6459
    %6521 = vmatpush1.bf16.msra.mxu0 %v6458
    %6522 = vmatprep.subr.bf16.mxu0 %v6463
    %6523 = vmatpush1.bf16.msra.mxu0 %v6462
    %6524 = vmatprep.subr.bf16.mxu0 %v6467
    %6525 = vmatpush1.bf16.msra.mxu0 %v6466
    %6526 = vmatprep.subr.bf16.mxu0 %v6471
    %6527 = vmatpush1.bf16.msra.mxu0 %v6470
    %6528 = vmatprep.subr.bf16.mxu0 %v6475
    %6529 = vmatpush1.bf16.msra.mxu0 %v6474
    %6530 = vmatprep.subr.bf16.mxu0 %v6479
    %6531 = vmatpush1.bf16.msra.mxu0 %v6478
    %6532 = vmatprep.subr.bf16.mxu0 %v6483
    %6533 = vmatpush1.bf16.msra.mxu0 %v6482
    %6534 = vmatprep.subr.bf16.mxu0 0
    %6535 = vmatpush1.bf16.msra.mxu0 0
    %6536 = vmatprep.subr.bf16.mxu0 0
    %6537 = vmatpush1.bf16.msra.mxu0 0
    %6538 = vmatprep.subr.bf16.mxu0 0
    %6539 = vmatpush1.bf16.msra.mxu0 0
    %6540 = vmatprep.subr.bf16.mxu0 0
    %6541 = vmatpush1.bf16.msra.mxu0 0
    %6542 = vmatprep.subr.bf16.mxu0 0
    %6543 = vmatpush1.bf16.msra.mxu0 0
    %6544 = vmatprep.subr.bf16.mxu0 0
    %6545 = vmatpush1.bf16.msra.mxu0 0
    %6546 = vmatprep.subr.bf16.mxu0 0
    %6547 = vmatpush1.bf16.msra.mxu0 0
    %6548 = vmatprep.subr.bf16.mxu0 0
    %6549 = vmatpush1.bf16.msra.mxu0 0
    %6550 = vmatprep.mubr.bf16.mxu0 0
    %6551 = vmatmul.mubr.bf16.gmra.mrb[0].mxu0 %v6325
    %v6552 = vpop.f32.mrb[0].mxu0
    %v6553 = vadd.f32 0.0, %v6552
    %v6554 = vpop.f32.mrb[0].mxu0
    %v6555 = vadd.f32 0.0, %v6554
    %v6556 = vpop.f32.mrb[0].mxu0
    %v6557 = vpop.f32.mrb[0].mxu0
    %6558 = vdwg.mxu0
    %6559 = vmatprep.subr.bf16.mxu0 %v6457
    %6560 = vmatpush1.bf16.msra.mxu0 %v6456
    %6561 = vmatprep.subr.bf16.mxu0 %v6461
    %6562 = vmatpush1.bf16.msra.mxu0 %v6460
    %6563 = vmatprep.subr.bf16.mxu0 %v6465
    %6564 = vmatpush1.bf16.msra.mxu0 %v6464
    %6565 = vmatprep.subr.bf16.mxu0 %v6469
    %6566 = vmatpush1.bf16.msra.mxu0 %v6468
    %6567 = vmatprep.subr.bf16.mxu0 %v6473
    %6568 = vmatpush1.bf16.msra.mxu0 %v6472
    %6569 = vmatprep.subr.bf16.mxu0 %v6477
    %6570 = vmatpush1.bf16.msra.mxu0 %v6476
    %6571 = vmatprep.subr.bf16.mxu0 %v6481
    %6572 = vmatpush1.bf16.msra.mxu0 %v6480
    %6573 = vmatprep.subr.bf16.mxu0 %v6485
    %6574 = vmatpush1.bf16.msra.mxu0 %v6484
    %6575 = vmatprep.subr.bf16.mxu0 0
    %6576 = vmatpush1.bf16.msra.mxu0 0
    %6577 = vmatprep.subr.bf16.mxu0 0
    %6578 = vmatpush1.bf16.msra.mxu0 0
    %6579 = vmatprep.subr.bf16.mxu0 0
    %6580 = vmatpush1.bf16.msra.mxu0 0
    %6581 = vmatprep.subr.bf16.mxu0 0
    %6582 = vmatpush1.bf16.msra.mxu0 0
    %6583 = vmatprep.subr.bf16.mxu0 0
    %6584 = vmatpush1.bf16.msra.mxu0 0
    %6585 = vmatprep.subr.bf16.mxu0 0
    %6586 = vmatpush1.bf16.msra.mxu0 0
    %6587 = vmatprep.subr.bf16.mxu0 0
    %6588 = vmatpush1.bf16.msra.mxu0 0
    %6589 = vmatprep.subr.bf16.mxu0 0
    %6590 = vmatpush1.bf16.msra.mxu0 0
    %6591 = vmatprep.mubr.bf16.mxu0 0
    %6592 = vmatmul.mubr.bf16.gmra.mrb[0].mxu0 %v6325
    %v6593 = vpop.f32.mrb[0].mxu0
    %v6594 = vadd.f32 0.0, %v6593
    %v6595 = vpop.f32.mrb[0].mxu0
    %v6596 = vadd.f32 0.0, %v6595
    %v6597 = vpop.f32.mrb[0].mxu0
    %v6598 = vpop.f32.mrb[0].mxu0
    %6599 = vdwg.mxu0
    %v6604 = vcombine.low %v6553, %v6555
    %v6605 = vcombine.low %v6594, %v6596
    %v6607 = vunpack.c.l.s4 1966171168
    %v6608 = vunpack.c.0.s8 %v6607
    %v6609 = vlaneseq
    %v6610 = vshrl.u32 %v6609, 7
    %v6611 = vsub.s32 %v6608, %v6610
    %v6612 = vrot.slane %v6604, %v6611
    %v6614 = vunpack.c.l.s4 1966171168
    %v6615 = vunpack.c.0.s8 %v6614
    %v6616 = vlaneseq
    %v6617 = vshrl.u32 %v6616, 7
    %v6618 = vsub.s32 %v6615, %v6617
    %v6619 = vrot.slane %v6605, %v6618
    %v6620 = vcombine.low %v6612, %v6619
    %v6621 = vcombine.high %v6612, %v6619
    %v6623 = vunpack.c.l.s4 1966171168
    %v6624 = vunpack.c.0.s8 %v6623
    %v6625 = vlaneseq
    %v6626 = vshrl.u32 %v6625, 7
    %v6627 = vsub.s32 %v6624, %v6626
    %v6628 = vrot.slane %v6620, %v6627
    %v6630 = vunpack.c.l.s4 1966171168
    %v6631 = vunpack.c.0.s8 %v6630
    %v6632 = vlaneseq
    %v6633 = vshrl.u32 %v6632, 7
    %v6634 = vsub.s32 %v6631, %v6633
    %v6635 = vrot.slane %v6621, %v6634
    %v6638 = vadd.f32 %v6322, %v6628
    %v6639 = vadd.f32 %v6324, %v6635
    %v6640 = vstv %s6320
    %vm6641 = vcmp.lt.s32.totalorder %v6640, %v76
    %v6642 = vxor.u32 %v6638, 2147483648
    %v6643 = vxor.u32 %v6639, 2147483648
    %v6644 = vmul.f32 %v6642, 1.442695
    %v6645 = vpow.pop %v6644
    %v6646 = vmul.f32 %v6643, 1.442695
    %v6647 = vpow.pop %v6646
    %v6648 = vadd.f32 %v6645, 1.0
    %v6649 = vadd.f32 %v6647, 1.0
    %v6650 = vrcp.pop %v6648
    %v6651 = vmul.f32 1.0, %v6650
    %v6652 = vrcp.pop %v6649
    %v6653 = vmul.f32 1.0, %v6652
    %v6656 = vrot.slane %v6638, 1
    %v6657 = vrot.slane %v6639, 1
    %v6660 = vxor.u32 %v6656, 2147483648
    %v6661 = vxor.u32 %v6657, 2147483648
    %v6662 = vmul.f32 %v6660, 1.442695
    %v6663 = vpow.pop %v6662
    %v6664 = vmul.f32 %v6661, 1.442695
    %v6665 = vpow.pop %v6664
    %v6666 = vadd.f32 %v6663, 1.0
    %v6667 = vadd.f32 %v6665, 1.0
    %v6668 = vrcp.pop %v6666
    %v6669 = vmul.f32 1.0, %v6668
    %v6670 = vrcp.pop %v6667
    %v6671 = vmul.f32 1.0, %v6670
    %v6672 = vrot.slane %v6638, 2
    %v6673 = vrot.slane %v6639, 2
    %v6676 = vtanh.pop %v6672
    %v6677 = vtanh.pop %v6673
    %v6678 = vrot.slane %v6638, 3
    %v6679 = vrot.slane %v6639, 3
    %v6682 = vxor.u32 %v6678, 2147483648
    %v6683 = vxor.u32 %v6679, 2147483648
    %v6684 = vmul.f32 %v6682, 1.442695
    %v6685 = vpow.pop %v6684
    %v6686 = vmul.f32 %v6683, 1.442695
    %v6687 = vpow.pop %v6686
    %v6688 = vadd.f32 %v6685, 1.0
    %v6689 = vadd.f32 %v6687, 1.0
    %v6690 = vrcp.pop %v6688
    %v6691 = vmul.f32 1.0, %v6690
    %v6692 = vrcp.pop %v6689
    %v6693 = vmul.f32 1.0, %v6692
    %v6696 = vunpack.c.l.s4 1966171168
    %v6697 = vunpack.c.0.s8 %v6696
    %v6698 = vlaneseq
    %v6699 = vshrl.u32 %v6698, 7
    %v6700 = vsub.s32 %v6697, %v6699
    %v6701 = vrot.slane %v5811, %v6700
    %v6702 = vcombine.high %v6701, %v6701
    %v6704 = vunpack.c.l.s4 1966171168
    %v6705 = vunpack.c.0.s8 %v6704
    %v6706 = vlaneseq
    %v6707 = vshrl.u32 %v6706, 7
    %v6708 = vsub.s32 %v6705, %v6707
    %v6709 = vrot.slane %v6701, %v6708
    %v6711 = vunpack.c.l.s4 1966171168
    %v6712 = vunpack.c.0.s8 %v6711
    %v6713 = vlaneseq
    %v6714 = vshrl.u32 %v6713, 7
    %v6715 = vsub.s32 %v6712, %v6714
    %v6716 = vrot.slane %v6702, %v6715
    %v6719 = vmul.f32 %v6669, %v6709
    %v6720 = vmul.f32 %v6671, %v6716
    %v6721 = vmul.f32 %v6651, %v6676
    %v6722 = vmul.f32 %v6653, %v6677
    %v6723 = vadd.f32 %v6719, %v6721
    %v6724 = vadd.f32 %v6720, %v6722
    %v6725 = vtanh.pop %v6723
    %v6726 = vtanh.pop %v6724
    %v6727 = vmul.f32 %v6691, %v6725
    %v6728 = vmul.f32 %v6693, %v6726
    %v6729 = vsel %vm6641, 1, 0
    %6730 = vset.pattern.permute.xlu0 0
    %6731 = vperm.xlu0 %6730, %v6729
    %v6732 = vpop.permute.xlu0 %6731
    %vm6733 = vcmp.eq.s32.totalorder %v6732, 1
    %v6736 = vcombine.low %v6727, %v6728
    %v6738 = vunpack.c.l.s4 1966171168
    %v6739 = vunpack.c.0.s8 %v6738
    %v6740 = vlaneseq
    %v6741 = vshrl.u32 %v6740, 7
    %v6742 = vsub.s32 %v6739, %v6741
    %v6743 = vrot.slane %v6736, %v6742
    %v6745 = vunpack.c.l.s4 1966171168
    %v6746 = vunpack.c.0.s8 %v6745
    %v6747 = vlaneseq
    %v6748 = vshrl.u32 %v6747, 7
    %v6749 = vsub.s32 %v6746, %v6748
    %v6750 = vrot.slane %v6743, %v6749
    %v6752 = vsel %vm6733, %v6750, %v5792
    %v6755 = vcombine.low %v6723, %v6724
    %v6757 = vunpack.c.l.s4 1966171168
    %v6758 = vunpack.c.0.s8 %v6757
    %v6759 = vlaneseq
    %v6760 = vshrl.u32 %v6759, 7
    %v6761 = vsub.s32 %v6758, %v6760
    %v6762 = vrot.slane %v6755, %v6761
    %v6764 = vunpack.c.l.s4 1966171168
    %v6765 = vunpack.c.0.s8 %v6764
    %v6766 = vlaneseq
    %v6767 = vshrl.u32 %v6766, 7
    %v6768 = vsub.s32 %v6765, %v6767
    %v6769 = vrot.slane %v6762, %v6768
    %v6771 = vsel %vm6733, %v6769, %v5811
    %v6772 = vsel %vm6733, %v6750, 0.0
    %v6775 = vunpack.c.l.s4 1966171168
    %v6776 = vunpack.c.0.s8 %v6775
    %v6777 = vlaneseq
    %v6778 = vshrl.u32 %v6777, 7
    %v6779 = vsub.s32 %v6776, %v6778
    %v6780 = vrot.slane %v6772, %v6779
    %v6781 = vcombine.high %v6780, %v6780
    %v6783 = vunpack.c.l.s4 1966171168
    %v6784 = vunpack.c.0.s8 %v6783
    %v6785 = vlaneseq
    %v6786 = vshrl.u32 %v6785, 7
    %v6787 = vsub.s32 %v6784, %v6786
    %v6788 = vrot.slane %v6780, %v6787
    %v6790 = vunpack.c.l.s4 1966171168
    %v6791 = vunpack.c.0.s8 %v6790
    %v6792 = vlaneseq
    %v6793 = vshrl.u32 %v6792, 7
    %v6794 = vsub.s32 %v6791, %v6793
    %v6795 = vrot.slane %v6781, %v6794
    %6798 = vst [vmem:[%s65 + $0x1] sm:$0x1] %v6788
    %6799 = vst [vmem:[%s65 + $0x9] sm:$0x1] %v6795
    %s6800 = sadd.s32 %s77, 7
    %s6801 = scalar_lea.vmem %s1, 7
    %v6802 = vld [vmem:[%s6801] ss:$8 sm:$0xf]
    %s6803 = scalar_lea.vmem %s1, 71
    %v6804 = vld [vmem:[%s6803] ss:$8 sm:$0xf]
    %v6805 = vpack.c.bf16 %v6272, %v6272
    %v6806 = vld [vmem:[%s3] sm:$0xff]
    %v6807 = vld [vmem:[%s3 + $0x8] sm:$0xff]
    %v6808 = vld [vmem:[%s3 + $0x10] sm:$0xff]
    %v6809 = vld [vmem:[%s3 + $0x18] sm:$0xff]
    %v6810 = vld [vmem:[%s3 + $0x20] sm:$0xff]
    %v6811 = vld [vmem:[%s3 + $0x28] sm:$0xff]
    %v6812 = vld [vmem:[%s3 + $0x30] sm:$0xff]
    %v6813 = vld [vmem:[%s3 + $0x38] sm:$0xff]
    %v6814 = vld [vmem:[%s3 + $0x40] sm:$0xff]
    %v6815 = vld [vmem:[%s3 + $0x48] sm:$0xff]
    %v6816 = vld [vmem:[%s3 + $0x50] sm:$0xff]
    %v6817 = vld [vmem:[%s3 + $0x58] sm:$0xff]
    %v6818 = vld [vmem:[%s3 + $0x60] sm:$0xff]
    %v6819 = vld [vmem:[%s3 + $0x68] sm:$0xff]
    %v6820 = vld [vmem:[%s3 + $0x70] sm:$0xff]
    %v6821 = vld [vmem:[%s3 + $0x78] sm:$0xff]
    %v6822 = vld [vmem:[%s3 + $0x80] sm:$0xff]
    %v6823 = vld [vmem:[%s3 + $0x88] sm:$0xff]
    %v6824 = vld [vmem:[%s3 + $0x90] sm:$0xff]
    %v6825 = vld [vmem:[%s3 + $0x98] sm:$0xff]
    %v6826 = vld [vmem:[%s3 + $0xa0] sm:$0xff]
    %v6827 = vld [vmem:[%s3 + $0xa8] sm:$0xff]
    %v6828 = vld [vmem:[%s3 + $0xb0] sm:$0xff]
    %v6829 = vld [vmem:[%s3 + $0xb8] sm:$0xff]
    %v6830 = vld [vmem:[%s3 + $0xc0] sm:$0xff]
    %v6831 = vld [vmem:[%s3 + $0xc8] sm:$0xff]
    %v6832 = vld [vmem:[%s3 + $0xd0] sm:$0xff]
    %v6833 = vld [vmem:[%s3 + $0xd8] sm:$0xff]
    %v6834 = vld [vmem:[%s3 + $0xe0] sm:$0xff]
    %v6835 = vld [vmem:[%s3 + $0xe8] sm:$0xff]
    %v6836 = vld [vmem:[%s3 + $0xf0] sm:$0xff]
    %v6837 = vld [vmem:[%s3 + $0xf8] sm:$0xff]
    %v6870 = vunpack.c.l.b16 %v6806
    %v6871 = vunpack.c.h.b16 %v6806
    %v6872 = vunpack.c.l.b16 %v6807
    %v6873 = vunpack.c.h.b16 %v6807
    %v6874 = vunpack.c.l.b16 %v6808
    %v6875 = vunpack.c.h.b16 %v6808
    %v6876 = vunpack.c.l.b16 %v6809
    %v6877 = vunpack.c.h.b16 %v6809
    %v6878 = vunpack.c.l.b16 %v6810
    %v6879 = vunpack.c.h.b16 %v6810
    %v6880 = vunpack.c.l.b16 %v6811
    %v6881 = vunpack.c.h.b16 %v6811
    %v6882 = vunpack.c.l.b16 %v6812
    %v6883 = vunpack.c.h.b16 %v6812
    %v6884 = vunpack.c.l.b16 %v6813
    %v6885 = vunpack.c.h.b16 %v6813
    %v6886 = vunpack.c.l.b16 %v6814
    %v6887 = vunpack.c.h.b16 %v6814
    %v6888 = vunpack.c.l.b16 %v6815
    %v6889 = vunpack.c.h.b16 %v6815
    %v6890 = vunpack.c.l.b16 %v6816
    %v6891 = vunpack.c.h.b16 %v6816
    %v6892 = vunpack.c.l.b16 %v6817
    %v6893 = vunpack.c.h.b16 %v6817
    %v6894 = vunpack.c.l.b16 %v6818
    %v6895 = vunpack.c.h.b16 %v6818
    %v6896 = vunpack.c.l.b16 %v6819
    %v6897 = vunpack.c.h.b16 %v6819
    %v6898 = vunpack.c.l.b16 %v6820
    %v6899 = vunpack.c.h.b16 %v6820
    %v6900 = vunpack.c.l.b16 %v6821
    %v6901 = vunpack.c.h.b16 %v6821
    %v6902 = vunpack.c.l.b16 %v6822
    %v6903 = vunpack.c.h.b16 %v6822
    %v6904 = vunpack.c.l.b16 %v6823
    %v6905 = vunpack.c.h.b16 %v6823
    %v6906 = vunpack.c.l.b16 %v6824
    %v6907 = vunpack.c.h.b16 %v6824
    %v6908 = vunpack.c.l.b16 %v6825
    %v6909 = vunpack.c.h.b16 %v6825
    %v6910 = vunpack.c.l.b16 %v6826
    %v6911 = vunpack.c.h.b16 %v6826
    %v6912 = vunpack.c.l.b16 %v6827
    %v6913 = vunpack.c.h.b16 %v6827
    %v6914 = vunpack.c.l.b16 %v6828
    %v6915 = vunpack.c.h.b16 %v6828
    %v6916 = vunpack.c.l.b16 %v6829
    %v6917 = vunpack.c.h.b16 %v6829
    %v6918 = vunpack.c.l.b16 %v6830
    %v6919 = vunpack.c.h.b16 %v6830
    %v6920 = vunpack.c.l.b16 %v6831
    %v6921 = vunpack.c.h.b16 %v6831
    %v6922 = vunpack.c.l.b16 %v6832
    %v6923 = vunpack.c.h.b16 %v6832
    %v6924 = vunpack.c.l.b16 %v6833
    %v6925 = vunpack.c.h.b16 %v6833
    %v6926 = vunpack.c.l.b16 %v6834
    %v6927 = vunpack.c.h.b16 %v6834
    %v6928 = vunpack.c.l.b16 %v6835
    %v6929 = vunpack.c.h.b16 %v6835
    %v6930 = vunpack.c.l.b16 %v6836
    %v6931 = vunpack.c.h.b16 %v6836
    %v6932 = vunpack.c.l.b16 %v6837
    %v6933 = vunpack.c.h.b16 %v6837
    %v6934 = vpack.c.b16 %v6874, %v6870
    %v6935 = vpack.c.b16 %v6875, %v6871
    %v6936 = vpack.c.b16 %v6876, %v6872
    %v6937 = vpack.c.b16 %v6877, %v6873
    %v6938 = vpack.c.b16 %v6882, %v6878
    %v6939 = vpack.c.b16 %v6883, %v6879
    %v6940 = vpack.c.b16 %v6884, %v6880
    %v6941 = vpack.c.b16 %v6885, %v6881
    %v6942 = vpack.c.b16 %v6890, %v6886
    %v6943 = vpack.c.b16 %v6891, %v6887
    %v6944 = vpack.c.b16 %v6892, %v6888
    %v6945 = vpack.c.b16 %v6893, %v6889
    %v6946 = vpack.c.b16 %v6898, %v6894
    %v6947 = vpack.c.b16 %v6899, %v6895
    %v6948 = vpack.c.b16 %v6900, %v6896
    %v6949 = vpack.c.b16 %v6901, %v6897
    %v6950 = vpack.c.b16 %v6906, %v6902
    %v6951 = vpack.c.b16 %v6907, %v6903
    %v6952 = vpack.c.b16 %v6908, %v6904
    %v6953 = vpack.c.b16 %v6909, %v6905
    %v6954 = vpack.c.b16 %v6914, %v6910
    %v6955 = vpack.c.b16 %v6915, %v6911
    %v6956 = vpack.c.b16 %v6916, %v6912
    %v6957 = vpack.c.b16 %v6917, %v6913
    %v6958 = vpack.c.b16 %v6922, %v6918
    %v6959 = vpack.c.b16 %v6923, %v6919
    %v6960 = vpack.c.b16 %v6924, %v6920
    %v6961 = vpack.c.b16 %v6925, %v6921
    %v6962 = vpack.c.b16 %v6930, %v6926
    %v6963 = vpack.c.b16 %v6931, %v6927
    %v6964 = vpack.c.b16 %v6932, %v6928
    %v6965 = vpack.c.b16 %v6933, %v6929
    %6998 = vmatprep.subr.bf16.mxu0 %v6935
    %6999 = vmatpush1.bf16.msra.mxu0 %v6934
    %7000 = vmatprep.subr.bf16.mxu0 %v6939
    %7001 = vmatpush1.bf16.msra.mxu0 %v6938
    %7002 = vmatprep.subr.bf16.mxu0 %v6943
    %7003 = vmatpush1.bf16.msra.mxu0 %v6942
    %7004 = vmatprep.subr.bf16.mxu0 %v6947
    %7005 = vmatpush1.bf16.msra.mxu0 %v6946
    %7006 = vmatprep.subr.bf16.mxu0 %v6951
    %7007 = vmatpush1.bf16.msra.mxu0 %v6950
    %7008 = vmatprep.subr.bf16.mxu0 %v6955
    %7009 = vmatpush1.bf16.msra.mxu0 %v6954
    %7010 = vmatprep.subr.bf16.mxu0 %v6959
    %7011 = vmatpush1.bf16.msra.mxu0 %v6958
    %7012 = vmatprep.subr.bf16.mxu0 %v6963
    %7013 = vmatpush1.bf16.msra.mxu0 %v6962
    %7014 = vmatprep.subr.bf16.mxu0 0
    %7015 = vmatpush1.bf16.msra.mxu0 0
    %7016 = vmatprep.subr.bf16.mxu0 0
    %7017 = vmatpush1.bf16.msra.mxu0 0
    %7018 = vmatprep.subr.bf16.mxu0 0
    %7019 = vmatpush1.bf16.msra.mxu0 0
    %7020 = vmatprep.subr.bf16.mxu0 0
    %7021 = vmatpush1.bf16.msra.mxu0 0
    %7022 = vmatprep.subr.bf16.mxu0 0
    %7023 = vmatpush1.bf16.msra.mxu0 0
    %7024 = vmatprep.subr.bf16.mxu0 0
    %7025 = vmatpush1.bf16.msra.mxu0 0
    %7026 = vmatprep.subr.bf16.mxu0 0
    %7027 = vmatpush1.bf16.msra.mxu0 0
    %7028 = vmatprep.subr.bf16.mxu0 0
    %7029 = vmatpush1.bf16.msra.mxu0 0
    %7030 = vmatprep.mubr.bf16.mxu0 0
    %7031 = vmatmul.mubr.bf16.gmra.mrb[0].mxu0 %v6805
    %v7032 = vpop.f32.mrb[0].mxu0
    %v7033 = vadd.f32 0.0, %v7032
    %v7034 = vpop.f32.mrb[0].mxu0
    %v7035 = vadd.f32 0.0, %v7034
    %v7036 = vpop.f32.mrb[0].mxu0
    %v7037 = vpop.f32.mrb[0].mxu0
    %7038 = vdwg.mxu0
    %7039 = vmatprep.subr.bf16.mxu0 %v6937
    %7040 = vmatpush1.bf16.msra.mxu0 %v6936
    %7041 = vmatprep.subr.bf16.mxu0 %v6941
    %7042 = vmatpush1.bf16.msra.mxu0 %v6940
    %7043 = vmatprep.subr.bf16.mxu0 %v6945
    %7044 = vmatpush1.bf16.msra.mxu0 %v6944
    %7045 = vmatprep.subr.bf16.mxu0 %v6949
    %7046 = vmatpush1.bf16.msra.mxu0 %v6948
    %7047 = vmatprep.subr.bf16.mxu0 %v6953
    %7048 = vmatpush1.bf16.msra.mxu0 %v6952
    %7049 = vmatprep.subr.bf16.mxu0 %v6957
    %7050 = vmatpush1.bf16.msra.mxu0 %v6956
    %7051 = vmatprep.subr.bf16.mxu0 %v6961
    %7052 = vmatpush1.bf16.msra.mxu0 %v6960
    %7053 = vmatprep.subr.bf16.mxu0 %v6965
    %7054 = vmatpush1.bf16.msra.mxu0 %v6964
    %7055 = vmatprep.subr.bf16.mxu0 0
    %7056 = vmatpush1.bf16.msra.mxu0 0
    %7057 = vmatprep.subr.bf16.mxu0 0
    %7058 = vmatpush1.bf16.msra.mxu0 0
    %7059 = vmatprep.subr.bf16.mxu0 0
    %7060 = vmatpush1.bf16.msra.mxu0 0
    %7061 = vmatprep.subr.bf16.mxu0 0
    %7062 = vmatpush1.bf16.msra.mxu0 0
    %7063 = vmatprep.subr.bf16.mxu0 0
    %7064 = vmatpush1.bf16.msra.mxu0 0
    %7065 = vmatprep.subr.bf16.mxu0 0
    %7066 = vmatpush1.bf16.msra.mxu0 0
    %7067 = vmatprep.subr.bf16.mxu0 0
    %7068 = vmatpush1.bf16.msra.mxu0 0
    %7069 = vmatprep.subr.bf16.mxu0 0
    %7070 = vmatpush1.bf16.msra.mxu0 0
    %7071 = vmatprep.mubr.bf16.mxu0 0
    %7072 = vmatmul.mubr.bf16.gmra.mrb[0].mxu0 %v6805
    %v7073 = vpop.f32.mrb[0].mxu0
    %v7074 = vadd.f32 0.0, %v7073
    %v7075 = vpop.f32.mrb[0].mxu0
    %v7076 = vadd.f32 0.0, %v7075
    %v7077 = vpop.f32.mrb[0].mxu0
    %v7078 = vpop.f32.mrb[0].mxu0
    %7079 = vdwg.mxu0
    %v7084 = vcombine.low %v7033, %v7035
    %v7085 = vcombine.low %v7074, %v7076
    %v7087 = vunpack.c.l.s4 1966171168
    %v7088 = vunpack.c.0.s8 %v7087
    %v7089 = vlaneseq
    %v7090 = vshrl.u32 %v7089, 7
    %v7091 = vsub.s32 %v7088, %v7090
    %v7092 = vrot.slane %v7084, %v7091
    %v7094 = vunpack.c.l.s4 1966171168
    %v7095 = vunpack.c.0.s8 %v7094
    %v7096 = vlaneseq
    %v7097 = vshrl.u32 %v7096, 7
    %v7098 = vsub.s32 %v7095, %v7097
    %v7099 = vrot.slane %v7085, %v7098
    %v7100 = vcombine.low %v7092, %v7099
    %v7101 = vcombine.high %v7092, %v7099
    %v7103 = vunpack.c.l.s4 1966171168
    %v7104 = vunpack.c.0.s8 %v7103
    %v7105 = vlaneseq
    %v7106 = vshrl.u32 %v7105, 7
    %v7107 = vsub.s32 %v7104, %v7106
    %v7108 = vrot.slane %v7100, %v7107
    %v7110 = vunpack.c.l.s4 1966171168
    %v7111 = vunpack.c.0.s8 %v7110
    %v7112 = vlaneseq
    %v7113 = vshrl.u32 %v7112, 7
    %v7114 = vsub.s32 %v7111, %v7113
    %v7115 = vrot.slane %v7101, %v7114
    %v7118 = vadd.f32 %v6802, %v7108
    %v7119 = vadd.f32 %v6804, %v7115
    %v7120 = vstv %s6800
    %vm7121 = vcmp.lt.s32.totalorder %v7120, %v76
    %v7122 = vxor.u32 %v7118, 2147483648
    %v7123 = vxor.u32 %v7119, 2147483648
    %v7124 = vmul.f32 %v7122, 1.442695
    %v7125 = vpow.pop %v7124
    %v7126 = vmul.f32 %v7123, 1.442695
    %v7127 = vpow.pop %v7126
    %v7128 = vadd.f32 %v7125, 1.0
    %v7129 = vadd.f32 %v7127, 1.0
    %v7130 = vrcp.pop %v7128
    %v7131 = vmul.f32 1.0, %v7130
    %v7132 = vrcp.pop %v7129
    %v7133 = vmul.f32 1.0, %v7132
    %v7136 = vrot.slane %v7118, 1
    %v7137 = vrot.slane %v7119, 1
    %v7140 = vxor.u32 %v7136, 2147483648
    %v7141 = vxor.u32 %v7137, 2147483648
    %v7142 = vmul.f32 %v7140, 1.442695
    %v7143 = vpow.pop %v7142
    %v7144 = vmul.f32 %v7141, 1.442695
    %v7145 = vpow.pop %v7144
    %v7146 = vadd.f32 %v7143, 1.0
    %v7147 = vadd.f32 %v7145, 1.0
    %v7148 = vrcp.pop %v7146
    %v7149 = vmul.f32 1.0, %v7148
    %v7150 = vrcp.pop %v7147
    %v7151 = vmul.f32 1.0, %v7150
    %v7152 = vrot.slane %v7118, 2
    %v7153 = vrot.slane %v7119, 2
    %v7156 = vtanh.pop %v7152
    %v7157 = vtanh.pop %v7153
    %v7158 = vrot.slane %v7118, 3
    %v7159 = vrot.slane %v7119, 3
    %v7162 = vxor.u32 %v7158, 2147483648
    %v7163 = vxor.u32 %v7159, 2147483648
    %v7164 = vmul.f32 %v7162, 1.442695
    %v7165 = vpow.pop %v7164
    %v7166 = vmul.f32 %v7163, 1.442695
    %v7167 = vpow.pop %v7166
    %v7168 = vadd.f32 %v7165, 1.0
    %v7169 = vadd.f32 %v7167, 1.0
    %v7170 = vrcp.pop %v7168
    %v7171 = vmul.f32 1.0, %v7170
    %v7172 = vrcp.pop %v7169
    %v7173 = vmul.f32 1.0, %v7172
    %v7176 = vunpack.c.l.s4 1966171168
    %v7177 = vunpack.c.0.s8 %v7176
    %v7178 = vlaneseq
    %v7179 = vshrl.u32 %v7178, 7
    %v7180 = vsub.s32 %v7177, %v7179
    %v7181 = vrot.slane %v6291, %v7180
    %v7182 = vcombine.high %v7181, %v7181
    %v7184 = vunpack.c.l.s4 1966171168
    %v7185 = vunpack.c.0.s8 %v7184
    %v7186 = vlaneseq
    %v7187 = vshrl.u32 %v7186, 7
    %v7188 = vsub.s32 %v7185, %v7187
    %v7189 = vrot.slane %v7181, %v7188
    %v7191 = vunpack.c.l.s4 1966171168
    %v7192 = vunpack.c.0.s8 %v7191
    %v7193 = vlaneseq
    %v7194 = vshrl.u32 %v7193, 7
    %v7195 = vsub.s32 %v7192, %v7194
    %v7196 = vrot.slane %v7182, %v7195
    %v7199 = vmul.f32 %v7149, %v7189
    %v7200 = vmul.f32 %v7151, %v7196
    %v7201 = vmul.f32 %v7131, %v7156
    %v7202 = vmul.f32 %v7133, %v7157
    %v7203 = vadd.f32 %v7199, %v7201
    %v7204 = vadd.f32 %v7200, %v7202
    %v7205 = vtanh.pop %v7203
    %v7206 = vtanh.pop %v7204
    %v7207 = vmul.f32 %v7171, %v7205
    %v7208 = vmul.f32 %v7173, %v7206
    %v7209 = vsel %vm7121, 1, 0
    %7210 = vset.pattern.permute.xlu0 0
    %7211 = vperm.xlu0 %7210, %v7209
    %v7212 = vpop.permute.xlu0 %7211
    %vm7213 = vcmp.eq.s32.totalorder %v7212, 1
    %v7216 = vcombine.low %v7207, %v7208
    %v7218 = vunpack.c.l.s4 1966171168
    %v7219 = vunpack.c.0.s8 %v7218
    %v7220 = vlaneseq
    %v7221 = vshrl.u32 %v7220, 7
    %v7222 = vsub.s32 %v7219, %v7221
    %v7223 = vrot.slane %v7216, %v7222
    %v7225 = vunpack.c.l.s4 1966171168
    %v7226 = vunpack.c.0.s8 %v7225
    %v7227 = vlaneseq
    %v7228 = vshrl.u32 %v7227, 7
    %v7229 = vsub.s32 %v7226, %v7228
    %v7230 = vrot.slane %v7223, %v7229
    %v7232 = vsel %vm7213, %v7230, %v6272
    %v7235 = vcombine.low %v7203, %v7204
    %v7237 = vunpack.c.l.s4 1966171168
    %v7238 = vunpack.c.0.s8 %v7237
    %v7239 = vlaneseq
    %v7240 = vshrl.u32 %v7239, 7
    %v7241 = vsub.s32 %v7238, %v7240
    %v7242 = vrot.slane %v7235, %v7241
    %v7244 = vunpack.c.l.s4 1966171168
    %v7245 = vunpack.c.0.s8 %v7244
    %v7246 = vlaneseq
    %v7247 = vshrl.u32 %v7246, 7
    %v7248 = vsub.s32 %v7245, %v7247
    %v7249 = vrot.slane %v7242, %v7248
    %v7251 = vsel %vm7213, %v7249, %v6291
    %v7252 = vsel %vm7213, %v7230, 0.0
    %v7255 = vunpack.c.l.s4 1966171168
    %v7256 = vunpack.c.0.s8 %v7255
    %v7257 = vlaneseq
    %v7258 = vshrl.u32 %v7257, 7
    %v7259 = vsub.s32 %v7256, %v7258
    %v7260 = vrot.slane %v7252, %v7259
    %v7261 = vcombine.high %v7260, %v7260
    %v7263 = vunpack.c.l.s4 1966171168
    %v7264 = vunpack.c.0.s8 %v7263
    %v7265 = vlaneseq
    %v7266 = vshrl.u32 %v7265, 7
    %v7267 = vsub.s32 %v7264, %v7266
    %v7268 = vrot.slane %v7260, %v7267
    %v7270 = vunpack.c.l.s4 1966171168
    %v7271 = vunpack.c.0.s8 %v7270
    %v7272 = vlaneseq
    %v7273 = vshrl.u32 %v7272, 7
    %v7274 = vsub.s32 %v7271, %v7273
    %v7275 = vrot.slane %v7261, %v7274
    %7278 = vst [vmem:[%s5 + $0x7] sm:$0x1] %v7268
    %7279 = vst [vmem:[%s5 + $0xf] sm:$0x1] %v7275
    %s7280 = ssub.s32 0, %s77
    %s7281 = scalar_lea.vmem %s59, 32
    %v7282 = vld [vmem:[%s7281] ss:$8 sm:$0xf]
    %s7283 = scalar_lea.vmem %s59, 96
    %v7284 = vld [vmem:[%s7283] ss:$8 sm:$0xf]
    %v7285 = vpack.c.bf16 %v6752, %v6752
    %v7286 = vld [vmem:[#allocation6] sm:$0xff]
    %v7287 = vld [vmem:[#allocation6 + $0x8] sm:$0xff]
    %v7288 = vld [vmem:[#allocation6 + $0x10] sm:$0xff]
    %v7289 = vld [vmem:[#allocation6 + $0x18] sm:$0xff]
    %v7290 = vld [vmem:[#allocation6 + $0x20] sm:$0xff]
    %v7291 = vld [vmem:[#allocation6 + $0x28] sm:$0xff]
    %v7292 = vld [vmem:[#allocation6 + $0x30] sm:$0xff]
    %v7293 = vld [vmem:[#allocation6 + $0x38] sm:$0xff]
    %v7294 = vld [vmem:[#allocation6 + $0x40] sm:$0xff]
    %v7295 = vld [vmem:[#allocation6 + $0x48] sm:$0xff]
    %v7296 = vld [vmem:[#allocation6 + $0x50] sm:$0xff]
    %v7297 = vld [vmem:[#allocation6 + $0x58] sm:$0xff]
    %v7298 = vld [vmem:[#allocation6 + $0x60] sm:$0xff]
    %v7299 = vld [vmem:[#allocation6 + $0x68] sm:$0xff]
    %v7300 = vld [vmem:[#allocation6 + $0x70] sm:$0xff]
    %v7301 = vld [vmem:[#allocation6 + $0x78] sm:$0xff]
    %v7302 = vld [vmem:[#allocation6 + $0x80] sm:$0xff]
    %v7303 = vld [vmem:[#allocation6 + $0x88] sm:$0xff]
    %v7304 = vld [vmem:[#allocation6 + $0x90] sm:$0xff]
    %v7305 = vld [vmem:[#allocation6 + $0x98] sm:$0xff]
    %v7306 = vld [vmem:[#allocation6 + $0xa0] sm:$0xff]
    %v7307 = vld [vmem:[#allocation6 + $0xa8] sm:$0xff]
    %v7308 = vld [vmem:[#allocation6 + $0xb0] sm:$0xff]
    %v7309 = vld [vmem:[#allocation6 + $0xb8] sm:$0xff]
    %v7310 = vld [vmem:[#allocation6 + $0xc0] sm:$0xff]
    %v7311 = vld [vmem:[#allocation6 + $0xc8] sm:$0xff]
    %v7312 = vld [vmem:[#allocation6 + $0xd0] sm:$0xff]
    %v7313 = vld [vmem:[#allocation6 + $0xd8] sm:$0xff]
    %v7314 = vld [vmem:[#allocation6 + $0xe0] sm:$0xff]
    %v7315 = vld [vmem:[#allocation6 + $0xe8] sm:$0xff]
    %v7316 = vld [vmem:[#allocation6 + $0xf0] sm:$0xff]
    %v7317 = vld [vmem:[#allocation6 + $0xf8] sm:$0xff]
    %v7350 = vunpack.c.l.b16 %v7286
    %v7351 = vunpack.c.h.b16 %v7286
    %v7352 = vunpack.c.l.b16 %v7287
    %v7353 = vunpack.c.h.b16 %v7287
    %v7354 = vunpack.c.l.b16 %v7288
    %v7355 = vunpack.c.h.b16 %v7288
    %v7356 = vunpack.c.l.b16 %v7289
    %v7357 = vunpack.c.h.b16 %v7289
    %v7358 = vunpack.c.l.b16 %v7290
    %v7359 = vunpack.c.h.b16 %v7290
    %v7360 = vunpack.c.l.b16 %v7291
    %v7361 = vunpack.c.h.b16 %v7291
    %v7362 = vunpack.c.l.b16 %v7292
    %v7363 = vunpack.c.h.b16 %v7292
    %v7364 = vunpack.c.l.b16 %v7293
    %v7365 = vunpack.c.h.b16 %v7293
    %v7366 = vunpack.c.l.b16 %v7294
    %v7367 = vunpack.c.h.b16 %v7294
    %v7368 = vunpack.c.l.b16 %v7295
    %v7369 = vunpack.c.h.b16 %v7295
    %v7370 = vunpack.c.l.b16 %v7296
    %v7371 = vunpack.c.h.b16 %v7296
    %v7372 = vunpack.c.l.b16 %v7297
    %v7373 = vunpack.c.h.b16 %v7297
    %v7374 = vunpack.c.l.b16 %v7298
    %v7375 = vunpack.c.h.b16 %v7298
    %v7376 = vunpack.c.l.b16 %v7299
    %v7377 = vunpack.c.h.b16 %v7299
    %v7378 = vunpack.c.l.b16 %v7300
    %v7379 = vunpack.c.h.b16 %v7300
    %v7380 = vunpack.c.l.b16 %v7301
    %v7381 = vunpack.c.h.b16 %v7301
    %v7382 = vunpack.c.l.b16 %v7302
    %v7383 = vunpack.c.h.b16 %v7302
    %v7384 = vunpack.c.l.b16 %v7303
    %v7385 = vunpack.c.h.b16 %v7303
    %v7386 = vunpack.c.l.b16 %v7304
    %v7387 = vunpack.c.h.b16 %v7304
    %v7388 = vunpack.c.l.b16 %v7305
    %v7389 = vunpack.c.h.b16 %v7305
    %v7390 = vunpack.c.l.b16 %v7306
    %v7391 = vunpack.c.h.b16 %v7306
    %v7392 = vunpack.c.l.b16 %v7307
    %v7393 = vunpack.c.h.b16 %v7307
    %v7394 = vunpack.c.l.b16 %v7308
    %v7395 = vunpack.c.h.b16 %v7308
    %v7396 = vunpack.c.l.b16 %v7309
    %v7397 = vunpack.c.h.b16 %v7309
    %v7398 = vunpack.c.l.b16 %v7310
    %v7399 = vunpack.c.h.b16 %v7310
    %v7400 = vunpack.c.l.b16 %v7311
    %v7401 = vunpack.c.h.b16 %v7311
    %v7402 = vunpack.c.l.b16 %v7312
    %v7403 = vunpack.c.h.b16 %v7312
    %v7404 = vunpack.c.l.b16 %v7313
    %v7405 = vunpack.c.h.b16 %v7313
    %v7406 = vunpack.c.l.b16 %v7314
    %v7407 = vunpack.c.h.b16 %v7314
    %v7408 = vunpack.c.l.b16 %v7315
    %v7409 = vunpack.c.h.b16 %v7315
    %v7410 = vunpack.c.l.b16 %v7316
    %v7411 = vunpack.c.h.b16 %v7316
    %v7412 = vunpack.c.l.b16 %v7317
    %v7413 = vunpack.c.h.b16 %v7317
    %v7414 = vpack.c.b16 %v7354, %v7350
    %v7415 = vpack.c.b16 %v7355, %v7351
    %v7416 = vpack.c.b16 %v7356, %v7352
    %v7417 = vpack.c.b16 %v7357, %v7353
    %v7418 = vpack.c.b16 %v7362, %v7358
    %v7419 = vpack.c.b16 %v7363, %v7359
    %v7420 = vpack.c.b16 %v7364, %v7360
    %v7421 = vpack.c.b16 %v7365, %v7361
    %v7422 = vpack.c.b16 %v7370, %v7366
    %v7423 = vpack.c.b16 %v7371, %v7367
    %v7424 = vpack.c.b16 %v7372, %v7368
    %v7425 = vpack.c.b16 %v7373, %v7369
    %v7426 = vpack.c.b16 %v7378, %v7374
    %v7427 = vpack.c.b16 %v7379, %v7375
    %v7428 = vpack.c.b16 %v7380, %v7376
    %v7429 = vpack.c.b16 %v7381, %v7377
    %v7430 = vpack.c.b16 %v7386, %v7382
    %v7431 = vpack.c.b16 %v7387, %v7383
    %v7432 = vpack.c.b16 %v7388, %v7384
    %v7433 = vpack.c.b16 %v7389, %v7385
    %v7434 = vpack.c.b16 %v7394, %v7390
    %v7435 = vpack.c.b16 %v7395, %v7391
    %v7436 = vpack.c.b16 %v7396, %v7392
    %v7437 = vpack.c.b16 %v7397, %v7393
    %v7438 = vpack.c.b16 %v7402, %v7398
    %v7439 = vpack.c.b16 %v7403, %v7399
    %v7440 = vpack.c.b16 %v7404, %v7400
    %v7441 = vpack.c.b16 %v7405, %v7401
    %v7442 = vpack.c.b16 %v7410, %v7406
    %v7443 = vpack.c.b16 %v7411, %v7407
    %v7444 = vpack.c.b16 %v7412, %v7408
    %v7445 = vpack.c.b16 %v7413, %v7409
    %7478 = vmatprep.subr.bf16.mxu0 %v7415
    %7479 = vmatpush1.bf16.msra.mxu0 %v7414
    %7480 = vmatprep.subr.bf16.mxu0 %v7419
    %7481 = vmatpush1.bf16.msra.mxu0 %v7418
    %7482 = vmatprep.subr.bf16.mxu0 %v7423
    %7483 = vmatpush1.bf16.msra.mxu0 %v7422
    %7484 = vmatprep.subr.bf16.mxu0 %v7427
    %7485 = vmatpush1.bf16.msra.mxu0 %v7426
    %7486 = vmatprep.subr.bf16.mxu0 %v7431
    %7487 = vmatpush1.bf16.msra.mxu0 %v7430
    %7488 = vmatprep.subr.bf16.mxu0 %v7435
    %7489 = vmatpush1.bf16.msra.mxu0 %v7434
    %7490 = vmatprep.subr.bf16.mxu0 %v7439
    %7491 = vmatpush1.bf16.msra.mxu0 %v7438
    %7492 = vmatprep.subr.bf16.mxu0 %v7443
    %7493 = vmatpush1.bf16.msra.mxu0 %v7442
    %7494 = vmatprep.subr.bf16.mxu0 0
    %7495 = vmatpush1.bf16.msra.mxu0 0
    %7496 = vmatprep.subr.bf16.mxu0 0
    %7497 = vmatpush1.bf16.msra.mxu0 0
    %7498 = vmatprep.subr.bf16.mxu0 0
    %7499 = vmatpush1.bf16.msra.mxu0 0
    %7500 = vmatprep.subr.bf16.mxu0 0
    %7501 = vmatpush1.bf16.msra.mxu0 0
    %7502 = vmatprep.subr.bf16.mxu0 0
    %7503 = vmatpush1.bf16.msra.mxu0 0
    %7504 = vmatprep.subr.bf16.mxu0 0
    %7505 = vmatpush1.bf16.msra.mxu0 0
    %7506 = vmatprep.subr.bf16.mxu0 0
    %7507 = vmatpush1.bf16.msra.mxu0 0
    %7508 = vmatprep.subr.bf16.mxu0 0
    %7509 = vmatpush1.bf16.msra.mxu0 0
    %7510 = vmatprep.mubr.bf16.mxu0 0
    %7511 = vmatmul.mubr.bf16.gmra.mrb[0].mxu0 %v7285
    %v7512 = vpop.f32.mrb[0].mxu0
    %v7513 = vadd.f32 0.0, %v7512
    %v7514 = vpop.f32.mrb[0].mxu0
    %v7515 = vadd.f32 0.0, %v7514
    %v7516 = vpop.f32.mrb[0].mxu0
    %v7517 = vpop.f32.mrb[0].mxu0
    %7518 = vdwg.mxu0
    %7519 = vmatprep.subr.bf16.mxu0 %v7417
    %7520 = vmatpush1.bf16.msra.mxu0 %v7416
    %7521 = vmatprep.subr.bf16.mxu0 %v7421
    %7522 = vmatpush1.bf16.msra.mxu0 %v7420
    %7523 = vmatprep.subr.bf16.mxu0 %v7425
    %7524 = vmatpush1.bf16.msra.mxu0 %v7424
    %7525 = vmatprep.subr.bf16.mxu0 %v7429
    %7526 = vmatpush1.bf16.msra.mxu0 %v7428
    %7527 = vmatprep.subr.bf16.mxu0 %v7433
    %7528 = vmatpush1.bf16.msra.mxu0 %v7432
    %7529 = vmatprep.subr.bf16.mxu0 %v7437
    %7530 = vmatpush1.bf16.msra.mxu0 %v7436
    %7531 = vmatprep.subr.bf16.mxu0 %v7441
    %7532 = vmatpush1.bf16.msra.mxu0 %v7440
    %7533 = vmatprep.subr.bf16.mxu0 %v7445
    %7534 = vmatpush1.bf16.msra.mxu0 %v7444
    %7535 = vmatprep.subr.bf16.mxu0 0
    %7536 = vmatpush1.bf16.msra.mxu0 0
    %7537 = vmatprep.subr.bf16.mxu0 0
    %7538 = vmatpush1.bf16.msra.mxu0 0
    %7539 = vmatprep.subr.bf16.mxu0 0
    %7540 = vmatpush1.bf16.msra.mxu0 0
    %7541 = vmatprep.subr.bf16.mxu0 0
    %7542 = vmatpush1.bf16.msra.mxu0 0
    %7543 = vmatprep.subr.bf16.mxu0 0
    %7544 = vmatpush1.bf16.msra.mxu0 0
    %7545 = vmatprep.subr.bf16.mxu0 0
    %7546 = vmatpush1.bf16.msra.mxu0 0
    %7547 = vmatprep.subr.bf16.mxu0 0
    %7548 = vmatpush1.bf16.msra.mxu0 0
    %7549 = vmatprep.subr.bf16.mxu0 0
    %7550 = vmatpush1.bf16.msra.mxu0 0
    %7551 = vmatprep.mubr.bf16.mxu0 0
    %7552 = vmatmul.mubr.bf16.gmra.mrb[0].mxu0 %v7285
    %v7553 = vpop.f32.mrb[0].mxu0
    %v7554 = vadd.f32 0.0, %v7553
    %v7555 = vpop.f32.mrb[0].mxu0
    %v7556 = vadd.f32 0.0, %v7555
    %v7557 = vpop.f32.mrb[0].mxu0
    %v7558 = vpop.f32.mrb[0].mxu0
    %7559 = vdwg.mxu0
    %v7564 = vcombine.low %v7513, %v7515
    %v7565 = vcombine.low %v7554, %v7556
    %v7567 = vunpack.c.l.s4 1966171168
    %v7568 = vunpack.c.0.s8 %v7567
    %v7569 = vlaneseq
    %v7570 = vshrl.u32 %v7569, 7
    %v7571 = vsub.s32 %v7568, %v7570
    %v7572 = vrot.slane %v7564, %v7571
    %v7574 = vunpack.c.l.s4 1966171168
    %v7575 = vunpack.c.0.s8 %v7574
    %v7576 = vlaneseq
    %v7577 = vshrl.u32 %v7576, 7
    %v7578 = vsub.s32 %v7575, %v7577
    %v7579 = vrot.slane %v7565, %v7578
    %v7580 = vcombine.low %v7572, %v7579
    %v7581 = vcombine.high %v7572, %v7579
    %v7583 = vunpack.c.l.s4 1966171168
    %v7584 = vunpack.c.0.s8 %v7583
    %v7585 = vlaneseq
    %v7586 = vshrl.u32 %v7585, 7
    %v7587 = vsub.s32 %v7584, %v7586
    %v7588 = vrot.slane %v7580, %v7587
    %v7590 = vunpack.c.l.s4 1966171168
    %v7591 = vunpack.c.0.s8 %v7590
    %v7592 = vlaneseq
    %v7593 = vshrl.u32 %v7592, 7
    %v7594 = vsub.s32 %v7591, %v7593
    %v7595 = vrot.slane %v7581, %v7594
    %v7598 = vadd.f32 %v7282, %v7588
    %v7599 = vadd.f32 %v7284, %v7595
    %v7600 = vstv %s7280
    %vm7601 = vcmp.lt.s32.totalorder %v7600, %v76
    %v7602 = vxor.u32 %v7598, 2147483648
    %v7603 = vxor.u32 %v7599, 2147483648
    %v7604 = vmul.f32 %v7602, 1.442695
    %v7605 = vpow.pop %v7604
    %v7606 = vmul.f32 %v7603, 1.442695
    %v7607 = vpow.pop %v7606
    %v7608 = vadd.f32 %v7605, 1.0
    %v7609 = vadd.f32 %v7607, 1.0
    %v7610 = vrcp.pop %v7608
    %v7611 = vmul.f32 1.0, %v7610
    %v7612 = vrcp.pop %v7609
    %v7613 = vmul.f32 1.0, %v7612
    %v7616 = vrot.slane %v7598, 1
    %v7617 = vrot.slane %v7599, 1
    %v7620 = vxor.u32 %v7616, 2147483648
    %v7621 = vxor.u32 %v7617, 2147483648
    %v7622 = vmul.f32 %v7620, 1.442695
    %v7623 = vpow.pop %v7622
    %v7624 = vmul.f32 %v7621, 1.442695
    %v7625 = vpow.pop %v7624
    %v7626 = vadd.f32 %v7623, 1.0
    %v7627 = vadd.f32 %v7625, 1.0
    %v7628 = vrcp.pop %v7626
    %v7629 = vmul.f32 1.0, %v7628
    %v7630 = vrcp.pop %v7627
    %v7631 = vmul.f32 1.0, %v7630
    %v7632 = vrot.slane %v7598, 2
    %v7633 = vrot.slane %v7599, 2
    %v7636 = vtanh.pop %v7632
    %v7637 = vtanh.pop %v7633
    %v7638 = vrot.slane %v7598, 3
    %v7639 = vrot.slane %v7599, 3
    %v7642 = vxor.u32 %v7638, 2147483648
    %v7643 = vxor.u32 %v7639, 2147483648
    %v7644 = vmul.f32 %v7642, 1.442695
    %v7645 = vpow.pop %v7644
    %v7646 = vmul.f32 %v7643, 1.442695
    %v7647 = vpow.pop %v7646
    %v7648 = vadd.f32 %v7645, 1.0
    %v7649 = vadd.f32 %v7647, 1.0
    %v7650 = vrcp.pop %v7648
    %v7651 = vmul.f32 1.0, %v7650
    %v7652 = vrcp.pop %v7649
    %v7653 = vmul.f32 1.0, %v7652
    %v7656 = vunpack.c.l.s4 1966171168
    %v7657 = vunpack.c.0.s8 %v7656
    %v7658 = vlaneseq
    %v7659 = vshrl.u32 %v7658, 7
    %v7660 = vsub.s32 %v7657, %v7659
    %v7661 = vrot.slane %v6771, %v7660
    %v7662 = vcombine.high %v7661, %v7661
    %v7664 = vunpack.c.l.s4 1966171168
    %v7665 = vunpack.c.0.s8 %v7664
    %v7666 = vlaneseq
    %v7667 = vshrl.u32 %v7666, 7
    %v7668 = vsub.s32 %v7665, %v7667
    %v7669 = vrot.slane %v7661, %v7668
    %v7671 = vunpack.c.l.s4 1966171168
    %v7672 = vunpack.c.0.s8 %v7671
    %v7673 = vlaneseq
    %v7674 = vshrl.u32 %v7673, 7
    %v7675 = vsub.s32 %v7672, %v7674
    %v7676 = vrot.slane %v7662, %v7675
    %v7679 = vmul.f32 %v7629, %v7669
    %v7680 = vmul.f32 %v7631, %v7676
    %v7681 = vmul.f32 %v7611, %v7636
    %v7682 = vmul.f32 %v7613, %v7637
    %v7683 = vadd.f32 %v7679, %v7681
    %v7684 = vadd.f32 %v7680, %v7682
    %v7685 = vtanh.pop %v7683
    %v7686 = vtanh.pop %v7684
    %v7687 = vmul.f32 %v7651, %v7685
    %v7688 = vmul.f32 %v7653, %v7686
    %v7689 = vsel %vm7601, 1, 0
    %7690 = vset.pattern.permute.xlu0 0
    %7691 = vperm.xlu0 %7690, %v7689
    %v7692 = vpop.permute.xlu0 %7691
    %vm7693 = vcmp.eq.s32.totalorder %v7692, 1
    %v7696 = vcombine.low %v7687, %v7688
    %v7698 = vunpack.c.l.s4 1966171168
    %v7699 = vunpack.c.0.s8 %v7698
    %v7700 = vlaneseq
    %v7701 = vshrl.u32 %v7700, 7
    %v7702 = vsub.s32 %v7699, %v7701
    %v7703 = vrot.slane %v7696, %v7702
    %v7705 = vunpack.c.l.s4 1966171168
    %v7706 = vunpack.c.0.s8 %v7705
    %v7707 = vlaneseq
    %v7708 = vshrl.u32 %v7707, 7
    %v7709 = vsub.s32 %v7706, %v7708
    %v7710 = vrot.slane %v7703, %v7709
    %v7712 = vsel %vm7693, %v7710, %v6752
    %v7715 = vcombine.low %v7683, %v7684
    %v7717 = vunpack.c.l.s4 1966171168
    %v7718 = vunpack.c.0.s8 %v7717
    %v7719 = vlaneseq
    %v7720 = vshrl.u32 %v7719, 7
    %v7721 = vsub.s32 %v7718, %v7720
    %v7722 = vrot.slane %v7715, %v7721
    %v7724 = vunpack.c.l.s4 1966171168
    %v7725 = vunpack.c.0.s8 %v7724
    %v7726 = vlaneseq
    %v7727 = vshrl.u32 %v7726, 7
    %v7728 = vsub.s32 %v7725, %v7727
    %v7729 = vrot.slane %v7722, %v7728
    %v7731 = vsel %vm7693, %v7729, %v6771
    %v7732 = vsel %vm7693, %v7710, 0.0
    %v7735 = vunpack.c.l.s4 1966171168
    %v7736 = vunpack.c.0.s8 %v7735
    %v7737 = vlaneseq
    %v7738 = vshrl.u32 %v7737, 7
    %v7739 = vsub.s32 %v7736, %v7738
    %v7740 = vrot.slane %v7732, %v7739
    %v7741 = vcombine.high %v7740, %v7740
    %v7743 = vunpack.c.l.s4 1966171168
    %v7744 = vunpack.c.0.s8 %v7743
    %v7745 = vlaneseq
    %v7746 = vshrl.u32 %v7745, 7
    %v7747 = vsub.s32 %v7744, %v7746
    %v7748 = vrot.slane %v7740, %v7747
    %v7750 = vunpack.c.l.s4 1966171168
    %v7751 = vunpack.c.0.s8 %v7750
    %v7752 = vlaneseq
    %v7753 = vshrl.u32 %v7752, 7
    %v7754 = vsub.s32 %v7751, %v7753
    %v7755 = vrot.slane %v7741, %v7754
    %7758 = vst [vmem:[%s65] sm:$0x1] %v7748
    %7759 = vst [vmem:[%s65 + $0x8] sm:$0x1] %v7755
    %7760 = vst [vmem:[#allocation2] sm:$0x3] %v7232
    %7761 = vst [vmem:[#allocation3] sm:$0x3] %v7251
    %7762 = vst [vmem:[#allocation4] sm:$0x3] %v7712
    %7763 = vst [vmem:[#allocation5] sm:$0x3] %v7731
    %s7764 = ssub.s32 0, 0
    %p7765 = scmp.lt.s32.totalorder %s7764, 0
    %s7766 = scalar_select %p7765, %s7764, 0
    %s7767 = smul.addr %s7766, 8
    %s7768 = scalar_lea.vmem %s6, %s7767
    // Predicated region
    $region30: #{bidaf_output_forward.7} parent=1 // pred_check
      _
    $region31: #{bidaf_output_forward.7} parent=1 // pred_check_branch
      %7770 = sbr.rel (0) target = $region33
    $region32: #{bidaf_output_forward.7} parent=1 // pred_region
      _
    $region33: #{bidaf_output_forward.7} parent=1 // pred_fallthru
      _
    // Predicated region
    $region34: #{bidaf_output_forward.7} parent=1 // pred_check
      _
    $region35: #{bidaf_output_forward.7} parent=1 // pred_check_branch
      %7772 = sbr.rel (0) target = $region37
    $region36: #{bidaf_output_forward.7} parent=1 // pred_region
      %s7773 = ssub.s32 0, 0
    $region37: #{bidaf_output_forward.7} parent=1 // pred_fallthru
      _
    // Predicated region
    $region38: #{bidaf_output_forward.7} parent=1 // pred_check
      _
    $region39: #{bidaf_output_forward.7} parent=1 // pred_check_branch
      %7775 = sbr.rel (0) target = $region41
    $region40: #{bidaf_output_forward.7} parent=1 // pred_region
      _
    $region41: #{bidaf_output_forward.7} parent=1 // pred_fallthru
      _
    // Predicated region
    $region42: #{bidaf_output_forward.7} parent=1 // pred_check
      _
    $region43: #{bidaf_output_forward.7} parent=1 // pred_check_branch
      %7777 = sbr.rel (0) target = $region45
    $region44: #{bidaf_output_forward.7} parent=1 // pred_region
      %s7778 = ssub.s32 0, 0
      %p7779 = scmp.lt.s32.totalorder %s7778, 0
      %s7780 = scalar_select %p7779, %s7778, 0
      %s7781 = smul.addr %s7780, 8
      %s7782 = scalar_lea.vmem %s6, %s7781
    $region45: #{bidaf_output_forward.7} parent=1 // pred_fallthru
      _
    %7783 = vsyncpa [#allocation7], 1

</llo_original>
